<compile_context>
chip_gen: v7x
topology: tpu7x:2x2x1
jax: 0.10.0
libtpu: 0.0.40
codegen_flags: <defaults>
</compile_context>

<pallas_src>
import jax
import jax.numpy as jnp
from jax.experimental import pallas as pl
from jax.experimental.pallas import tpu as pltpu

# logical (PyTorch) dims
D_IN, D_H1, D_H2 = 773, 600, 500
# lane-padded dims (multiples of 128) used inside the kernel
D_INP, D_H1P, D_H2P = 896, 640, 512


def _round_up(x, m):
    return ((x + m - 1) // m) * m


def vae_fwd_kernel(x_ref, eps_ref,
                   w1_ref, b1_ref, w2_ref, b2_ref,
                   w1112_ref, b1112_ref,
                   w7_ref, b7_ref, w8_ref, b8_ref,
                   recon_ref, mu_ref, logvar_ref):
    bf16 = jnp.bfloat16
    x = x_ref[...]

    # ---- encode: bf16 weights, bf16 dot inputs, f32 accumulation ----
    h1 = jnp.tanh(jnp.dot(x.astype(bf16), w1_ref[...],
                          preferred_element_type=jnp.float32) + b1_ref[...])
    h2 = jnp.tanh(jnp.dot(h1.astype(bf16), w2_ref[...],
                          preferred_element_type=jnp.float32) + b2_ref[...])
    # fused mu|logvar head: single (512, 1024) matmul, clean 512-lane split
    ml = jnp.dot(h2.astype(bf16), w1112_ref[...],
                 preferred_element_type=jnp.float32) + b1112_ref[...]
    mu = ml[:, :D_H2P]
    logvar = ml[:, D_H2P:]

    # ---- reparameterize (training mode), f32 on VPU/EUP ----
    std = jnp.exp(0.5 * logvar)
    z = eps_ref[...] * std + mu

    # ---- decode ----
    h7 = jnp.tanh(jnp.dot(z.astype(bf16), w7_ref[...],
                          preferred_element_type=jnp.float32) + b7_ref[...])
    logits = jnp.dot(h7.astype(bf16), w8_ref[...],
                     preferred_element_type=jnp.float32) + b8_ref[...]

    recon_ref[...] = jax.nn.sigmoid(logits)
    mu_ref[...] = mu
    logvar_ref[...] = logvar


def vae_forward(x, eps, packed, *, tile_b=256):
    """x: (B, 773) f32, eps: (B, 500) f32, packed: dict from pack_params()."""
    B = x.shape[0]
    TB = min(tile_b, _round_up(B, 8))     # batch tile (sublane-aligned)
    Bp = _round_up(B, TB)                 # padded batch

    # Zero-pad batch and feature dims to lane/sublane multiples.
    xp = jnp.zeros((Bp, D_INP), jnp.float32).at[:B, :D_IN].set(x)
    epsp = jnp.zeros((Bp, D_H2P), jnp.float32).at[:B, :D_H2].set(eps)

    def batch_spec(d):
        return pl.BlockSpec((TB, d), lambda b: (b, 0))

    def resident_spec(shape):
        # Same block for every grid step -> weights stay in VMEM, DMA'd once.
        return pl.BlockSpec(shape, lambda b: (0, 0))

    in_specs = [
        batch_spec(D_INP),                      # x
        batch_spec(D_H2P),                      # eps
        resident_spec((D_INP, D_H1P)),          # w1 (bf16)
        resident_spec((1, D_H1P)),              # b1
        resident_spec((D_H1P, D_H2P)),          # w2 (bf16)
        resident_spec((1, D_H2P)),              # b2
        resident_spec((D_H2P, 2 * D_H2P)),      # w11|w12 fused (bf16)
        resident_spec((1, 2 * D_H2P)),          # b11|b12 fused
        resident_spec((D_H2P, D_H1P)),          # w7 (bf16)
        resident_spec((1, D_H1P)),              # b7
        resident_spec((D_H1P, D_INP)),          # w8 (bf16)
        resident_spec((1, D_INP)),              # b8
    ]
    out_specs = (batch_spec(D_INP), batch_spec(D_H2P), batch_spec(D_H2P))
    out_shape = (
        jax.ShapeDtypeStruct((Bp, D_INP), jnp.float32),   # recon (padded)
        jax.ShapeDtypeStruct((Bp, D_H2P), jnp.float32),   # mu (padded)
        jax.ShapeDtypeStruct((Bp, D_H2P), jnp.float32),   # logvar (padded)
    )

    recon_p, mu_p, logvar_p = pl.pallas_call(
        vae_fwd_kernel,
        out_shape=out_shape,
        grid_spec=pltpu.PrefetchScalarGridSpec(
            num_scalar_prefetch=0,
            grid=(Bp // TB,),
            in_specs=in_specs,
            out_specs=out_specs,
        ),
        compiler_params=pltpu.CompilerParams(
            dimension_semantics=("parallel",),   # megacore sharding on v7x
            vmem_limit_bytes=32 << 20,           # fits v7x's 64 MiB VMEM
        ),
    )(xp, epsp,
      packed["w1"], packed["b1"], packed["w2"], packed["b2"],
      packed["w1112"], packed["b1112"],
      packed["w7"], packed["b7"], packed["w8"], packed["b8"])

    # Slice away batch/feature padding.
    return recon_p[:B, :D_IN], mu_p[:B, :D_H2], logvar_p[:B, :D_H2]


# ---------------------------------------------------------------------------
# Parameter construction / packing
# ---------------------------------------------------------------------------

def init_params(key):
    """Deterministic init mimicking nn.Linear's U(-1/sqrt(fan_in), +1/sqrt(fan_in)).

    Weights stored as (in_features, out_features) so y = x @ W + b.
    """
    dims = {
        "1":  (D_IN, D_H1),
        "2":  (D_H1, D_H2),
        "11": (D_H2, D_H2),
        "12": (D_H2, D_H2),
        "7":  (D_H2, D_H1),
        "8":  (D_H1, D_IN),
    }
    params = {}
    for name, (fan_in, fan_out) in dims.items():
        key, kw, kb = jax.random.split(key, 3)
        bound = 1.0 / jnp.sqrt(jnp.float32(fan_in))
        params[f"w{name}"] = jax.random.uniform(
            kw, (fan_in, fan_out), jnp.float32, -bound, bound)
        params[f"b{name}"] = jax.random.uniform(
            kb, (1, fan_out), jnp.float32, -bound, bound)
    return params


def _pad2(a, rows, cols):
    return jnp.zeros((rows, cols), a.dtype).at[:a.shape[0], :a.shape[1]].set(a)


def pack_params(p):
    """Zero-pad to lane multiples of 128, cast weights to bf16, fuse mu/logvar head."""
    return {
        "w1": _pad2(p["w1"], D_INP, D_H1P).astype(jnp.bfloat16),
        "b1": _pad2(p["b1"], 1, D_H1P),
        "w2": _pad2(p["w2"], D_H1P, D_H2P).astype(jnp.bfloat16),
        "b2": _pad2(p["b2"], 1, D_H2P),
        "w1112": jnp.concatenate(
            [_pad2(p["w11"], D_H2P, D_H2P), _pad2(p["w12"], D_H2P, D_H2P)],
            axis=1).astype(jnp.bfloat16),
        "b1112": jnp.concatenate(
            [_pad2(p["b11"], 1, D_H2P), _pad2(p["b12"], 1, D_H2P)], axis=1),
        "w7": _pad2(p["w7"], D_H2P, D_H1P).astype(jnp.bfloat16),
        "b7": _pad2(p["b7"], 1, D_H1P),
        "w8": _pad2(p["w8"], D_H1P, D_INP).astype(jnp.bfloat16),
        "b8": _pad2(p["b8"], 1, D_INP),
    }


# ---------------------------------------------------------------------------
# Pure-JAX reference (mirrors the kernel's bf16 weight/activation quantization)
# ---------------------------------------------------------------------------

def vae_forward_ref(x, eps, p):
    def q(a):  # bf16-quantize then back to f32, matching the kernel's dot inputs
        return a.astype(jnp.bfloat16).astype(jnp.float32)

    def dot(a, w):
        return jnp.dot(q(a), q(w), precision=jax.lax.Precision.HIGHEST)

    h1 = jnp.tanh(dot(x, p["w1"]) + p["b1"])
    h2 = jnp.tanh(dot(h1, p["w2"]) + p["b2"])
    mu = dot(h2, p["w11"]) + p["b11"]
    logvar = dot(h2, p["w12"]) + p["b12"]
    z = eps * jnp.exp(0.5 * logvar) + mu
    h7 = jnp.tanh(dot(z, p["w7"]) + p["b7"])
    recon = jax.nn.sigmoid(dot(h7, p["w8"]) + p["b8"])
    return recon, mu, logvar


if __name__ == "__main__":
    key = jax.random.PRNGKey(0)
    kparams, kx, keps = jax.random.split(key, 3)

    B = 8
    params = init_params(kparams)
    packed = pack_params(params)

    # Input is a 773-dim binary chess board encoding; use bernoulli {0, 1}.
    x = jax.random.bernoulli(kx, 0.5, (B, D_IN)).astype(jnp.float32)
    eps = jax.random.normal(keps, (B, D_H2), jnp.float32)

    recon, mu, logvar = vae_forward(x, eps, packed)
    jax.block_until_ready((recon, mu, logvar))

    # correctness check against pure-JAX reference (same bf16 weight quant)
    r_ref, mu_ref, lv_ref = vae_forward_ref(x, eps, params)
    assert recon.shape == (B, D_IN) and mu.shape == (B, D_H2) and logvar.shape == (B, D_H2)
    assert jnp.allclose(recon, r_ref, atol=2e-2, rtol=2e-2)
    assert jnp.allclose(mu, mu_ref, atol=2e-2, rtol=2e-2)
    assert jnp.allclose(logvar, lv_ref, atol=2e-2, rtol=2e-2)

    print("KERNEL_OK")
</pallas_src>

<mosaic_0001>
module attributes {stable_mosaic.version = 11 : i64} {
  func.func @vae_fwd_kernel(%arg0: i32, %arg1: memref<8x896xf32, #tpu.memory_space<vmem>>, %arg2: memref<8x512xf32, #tpu.memory_space<vmem>>, %arg3: memref<896x640xbf16, #tpu.memory_space<vmem>>, %arg4: memref<1x640xf32, #tpu.memory_space<vmem>>, %arg5: memref<640x512xbf16, #tpu.memory_space<vmem>>, %arg6: memref<1x512xf32, #tpu.memory_space<vmem>>, %arg7: memref<512x1024xbf16, #tpu.memory_space<vmem>>, %arg8: memref<1x1024xf32, #tpu.memory_space<vmem>>, %arg9: memref<512x640xbf16, #tpu.memory_space<vmem>>, %arg10: memref<1x640xf32, #tpu.memory_space<vmem>>, %arg11: memref<640x896xbf16, #tpu.memory_space<vmem>>, %arg12: memref<1x896xf32, #tpu.memory_space<vmem>>, %arg13: memref<8x896xf32, #tpu.memory_space<vmem>>, %arg14: memref<8x512xf32, #tpu.memory_space<vmem>>, %arg15: memref<8x512xf32, #tpu.memory_space<vmem>>) attributes {dimension_semantics = [#tpu.dimension_semantics<parallel>], iteration_bounds = array<i64: 1>, scalar_prefetch = 0 : i64, scratch_operands = 0 : i64, tpu.core_type = #tpu.core_type<tc>, window_params = [{transform_indices = @transform_0, window_bounds = array<i64: 8, 896>}, {transform_indices = @transform_1, window_bounds = array<i64: 8, 512>}, {pipeline_mode = #tpu.pipeline_mode<synchronous>, transform_indices = @transform_2, window_bounds = array<i64: 896, 640>}, {pipeline_mode = #tpu.pipeline_mode<synchronous>, transform_indices = @transform_3, window_bounds = array<i64: 1, 640>}, {pipeline_mode = #tpu.pipeline_mode<synchronous>, transform_indices = @transform_4, window_bounds = array<i64: 640, 512>}, {pipeline_mode = #tpu.pipeline_mode<synchronous>, transform_indices = @transform_5, window_bounds = array<i64: 1, 512>}, {pipeline_mode = #tpu.pipeline_mode<synchronous>, transform_indices = @transform_6, window_bounds = array<i64: 512, 1024>}, {pipeline_mode = #tpu.pipeline_mode<synchronous>, transform_indices = @transform_7, window_bounds = array<i64: 1, 1024>}, {pipeline_mode = #tpu.pipeline_mode<synchronous>, transform_indices = @transform_8, window_bounds = array<i64: 512, 640>}, {pipeline_mode = #tpu.pipeline_mode<synchronous>, transform_indices = @transform_9, window_bounds = array<i64: 1, 640>}, {pipeline_mode = #tpu.pipeline_mode<synchronous>, transform_indices = @transform_10, window_bounds = array<i64: 640, 896>}, {pipeline_mode = #tpu.pipeline_mode<synchronous>, transform_indices = @transform_11, window_bounds = array<i64: 1, 896>}, {transform_indices = @transform_12, window_bounds = array<i64: 8, 896>}, {transform_indices = @transform_13, window_bounds = array<i64: 8, 512>}, {transform_indices = @transform_14, window_bounds = array<i64: 8, 512>}]} {
    %c0 = arith.constant 0 : index
    %c0_0 = arith.constant 0 : index
    %0 = vector.load %arg1[%c0, %c0_0] : memref<8x896xf32, #tpu.memory_space<vmem>>, vector<8x896xf32>
    %1 = arith.truncf %0 : vector<8x896xf32> to vector<8x896xbf16>
    %c0_1 = arith.constant 0 : index
    %c0_2 = arith.constant 0 : index
    %2 = vector.load %arg3[%c0_1, %c0_2] : memref<896x640xbf16, #tpu.memory_space<vmem>>, vector<896x640xbf16>
    %cst = arith.constant dense<0.000000e+00> : vector<8x640xf32>
    %3 = tpu.matmul %1, %2, %cst {dimension_numbers = #tpu.dot_dimension_numbers<[1], [0], [0], [1], [0, 0, 1, 1], [], []>} : vector<8x896xbf16>, vector<896x640xbf16>, vector<8x640xf32> -> vector<8x640xf32>
    %c0_3 = arith.constant 0 : index
    %c0_4 = arith.constant 0 : index
    %4 = vector.load %arg4[%c0_3, %c0_4] : memref<1x640xf32, #tpu.memory_space<vmem>>, vector<1x640xf32>
    %5 = vector.broadcast %4 : vector<1x640xf32> to vector<8x640xf32>
    %6 = arith.addf %3, %5 : vector<8x640xf32>
    %7 = math.tanh %6 : vector<8x640xf32>
    %8 = arith.truncf %7 : vector<8x640xf32> to vector<8x640xbf16>
    %c0_5 = arith.constant 0 : index
    %c0_6 = arith.constant 0 : index
    %9 = vector.load %arg5[%c0_5, %c0_6] : memref<640x512xbf16, #tpu.memory_space<vmem>>, vector<640x512xbf16>
    %cst_7 = arith.constant dense<0.000000e+00> : vector<8x512xf32>
    %10 = tpu.matmul %8, %9, %cst_7 {dimension_numbers = #tpu.dot_dimension_numbers<[1], [0], [0], [1], [0, 0, 1, 1], [], []>} : vector<8x640xbf16>, vector<640x512xbf16>, vector<8x512xf32> -> vector<8x512xf32>
    %c0_8 = arith.constant 0 : index
    %c0_9 = arith.constant 0 : index
    %11 = vector.load %arg6[%c0_8, %c0_9] : memref<1x512xf32, #tpu.memory_space<vmem>>, vector<1x512xf32>
    %12 = vector.broadcast %11 : vector<1x512xf32> to vector<8x512xf32>
    %13 = arith.addf %10, %12 : vector<8x512xf32>
    %14 = math.tanh %13 : vector<8x512xf32>
    %15 = arith.truncf %14 : vector<8x512xf32> to vector<8x512xbf16>
    %c0_10 = arith.constant 0 : index
    %c0_11 = arith.constant 0 : index
    %16 = vector.load %arg7[%c0_10, %c0_11] : memref<512x1024xbf16, #tpu.memory_space<vmem>>, vector<512x1024xbf16>
    %cst_12 = arith.constant dense<0.000000e+00> : vector<8x1024xf32>
    %17 = tpu.matmul %15, %16, %cst_12 {dimension_numbers = #tpu.dot_dimension_numbers<[1], [0], [0], [1], [0, 0, 1, 1], [], []>} : vector<8x512xbf16>, vector<512x1024xbf16>, vector<8x1024xf32> -> vector<8x1024xf32>
    %c0_13 = arith.constant 0 : index
    %c0_14 = arith.constant 0 : index
    %18 = vector.load %arg8[%c0_13, %c0_14] : memref<1x1024xf32, #tpu.memory_space<vmem>>, vector<1x1024xf32>
    %19 = vector.broadcast %18 : vector<1x1024xf32> to vector<8x1024xf32>
    %20 = arith.addf %17, %19 : vector<8x1024xf32>
    %21 = vector.extract_strided_slice %20 {offsets = [0, 0], sizes = [8, 512], strides = [1, 1]} : vector<8x1024xf32> to vector<8x512xf32>
    %22 = vector.extract_strided_slice %20 {offsets = [0, 512], sizes = [8, 512], strides = [1, 1]} : vector<8x1024xf32> to vector<8x512xf32>
    %cst_15 = arith.constant 5.000000e-01 : f32
    %23 = vector.broadcast %cst_15 : f32 to vector<8x512xf32>
    %24 = arith.mulf %23, %22 : vector<8x512xf32>
    %25 = math.exp %24 : vector<8x512xf32>
    %c0_16 = arith.constant 0 : index
    %c0_17 = arith.constant 0 : index
    %26 = vector.load %arg2[%c0_16, %c0_17] : memref<8x512xf32, #tpu.memory_space<vmem>>, vector<8x512xf32>
    %27 = arith.mulf %26, %25 : vector<8x512xf32>
    %28 = arith.addf %27, %21 : vector<8x512xf32>
    %29 = arith.truncf %28 : vector<8x512xf32> to vector<8x512xbf16>
    %c0_18 = arith.constant 0 : index
    %c0_19 = arith.constant 0 : index
    %30 = vector.load %arg9[%c0_18, %c0_19] : memref<512x640xbf16, #tpu.memory_space<vmem>>, vector<512x640xbf16>
    %cst_20 = arith.constant dense<0.000000e+00> : vector<8x640xf32>
    %31 = tpu.matmul %29, %30, %cst_20 {dimension_numbers = #tpu.dot_dimension_numbers<[1], [0], [0], [1], [0, 0, 1, 1], [], []>} : vector<8x512xbf16>, vector<512x640xbf16>, vector<8x640xf32> -> vector<8x640xf32>
    %c0_21 = arith.constant 0 : index
    %c0_22 = arith.constant 0 : index
    %32 = vector.load %arg10[%c0_21, %c0_22] : memref<1x640xf32, #tpu.memory_space<vmem>>, vector<1x640xf32>
    %33 = vector.broadcast %32 : vector<1x640xf32> to vector<8x640xf32>
    %34 = arith.addf %31, %33 : vector<8x640xf32>
    %35 = math.tanh %34 : vector<8x640xf32>
    %36 = arith.truncf %35 : vector<8x640xf32> to vector<8x640xbf16>
    %c0_23 = arith.constant 0 : index
    %c0_24 = arith.constant 0 : index
    %37 = vector.load %arg11[%c0_23, %c0_24] : memref<640x896xbf16, #tpu.memory_space<vmem>>, vector<640x896xbf16>
    %cst_25 = arith.constant dense<0.000000e+00> : vector<8x896xf32>
    %38 = tpu.matmul %36, %37, %cst_25 {dimension_numbers = #tpu.dot_dimension_numbers<[1], [0], [0], [1], [0, 0, 1, 1], [], []>} : vector<8x640xbf16>, vector<640x896xbf16>, vector<8x896xf32> -> vector<8x896xf32>
    %c0_26 = arith.constant 0 : index
    %c0_27 = arith.constant 0 : index
    %39 = vector.load %arg12[%c0_26, %c0_27] : memref<1x896xf32, #tpu.memory_space<vmem>>, vector<1x896xf32>
    %40 = vector.broadcast %39 : vector<1x896xf32> to vector<8x896xf32>
    %41 = arith.addf %38, %40 : vector<8x896xf32>
    %42 = arith.negf %41 : vector<8x896xf32>
    %43 = math.exp %42 : vector<8x896xf32>
    %cst_28 = arith.constant 1.000000e+00 : f32
    %44 = vector.broadcast %cst_28 : f32 to vector<8x896xf32>
    %45 = arith.addf %44, %43 : vector<8x896xf32>
    %46 = arith.divf %44, %45 : vector<8x896xf32>
    %c0_29 = arith.constant 0 : index
    %c0_30 = arith.constant 0 : index
    %47 = vector.load %arg13[%c0_29, %c0_30] : memref<8x896xf32, #tpu.memory_space<vmem>>, vector<8x896xf32>
    tpu.vector_store %arg13[%c0_29, %c0_30], %46 {strides = array<i32>} : memref<8x896xf32, #tpu.memory_space<vmem>>, vector<8x896xf32>,
    %c0_31 = arith.constant 0 : index
    %c0_32 = arith.constant 0 : index
    %48 = vector.load %arg14[%c0_31, %c0_32] : memref<8x512xf32, #tpu.memory_space<vmem>>, vector<8x512xf32>
    tpu.vector_store %arg14[%c0_31, %c0_32], %21 {strides = array<i32>} : memref<8x512xf32, #tpu.memory_space<vmem>>, vector<8x512xf32>,
    %c0_33 = arith.constant 0 : index
    %c0_34 = arith.constant 0 : index
    %49 = vector.load %arg15[%c0_33, %c0_34] : memref<8x512xf32, #tpu.memory_space<vmem>>, vector<8x512xf32>
    tpu.vector_store %arg15[%c0_33, %c0_34], %22 {strides = array<i32>} : memref<8x512xf32, #tpu.memory_space<vmem>>, vector<8x512xf32>,
    return
  }
  func.func @transform_0(%arg0: i32) -> (i32, i32) {
    %c0_i32 = arith.constant 0 : i32
    %c0_i32_0 = arith.constant 0 : i32
    return %arg0, %c0_i32 : i32, i32
  }
  func.func @transform_1(%arg0: i32) -> (i32, i32) {
    %c0_i32 = arith.constant 0 : i32
    %c0_i32_0 = arith.constant 0 : i32
    return %arg0, %c0_i32 : i32, i32
  }
  func.func @transform_2(%arg0: i32) -> (i32, i32) {
    %c0_i32 = arith.constant 0 : i32
    %c0_i32_0 = arith.constant 0 : i32
    %c0_i32_1 = arith.constant 0 : i32
    return %c0_i32, %c0_i32_0 : i32, i32
  }
  func.func @transform_3(%arg0: i32) -> (i32, i32) {
    %c0_i32 = arith.constant 0 : i32
    %c0_i32_0 = arith.constant 0 : i32
    %c0_i32_1 = arith.constant 0 : i32
    return %c0_i32, %c0_i32_0 : i32, i32
  }
  func.func @transform_4(%arg0: i32) -> (i32, i32) {
    %c0_i32 = arith.constant 0 : i32
    %c0_i32_0 = arith.constant 0 : i32
    %c0_i32_1 = arith.constant 0 : i32
    return %c0_i32, %c0_i32_0 : i32, i32
  }
  func.func @transform_5(%arg0: i32) -> (i32, i32) {
    %c0_i32 = arith.constant 0 : i32
    %c0_i32_0 = arith.constant 0 : i32
    %c0_i32_1 = arith.constant 0 : i32
    return %c0_i32, %c0_i32_0 : i32, i32
  }
  func.func @transform_6(%arg0: i32) -> (i32, i32) {
    %c0_i32 = arith.constant 0 : i32
    %c0_i32_0 = arith.constant 0 : i32
    %c0_i32_1 = arith.constant 0 : i32
    return %c0_i32, %c0_i32_0 : i32, i32
  }
  func.func @transform_7(%arg0: i32) -> (i32, i32) {
    %c0_i32 = arith.constant 0 : i32
    %c0_i32_0 = arith.constant 0 : i32
    %c0_i32_1 = arith.constant 0 : i32
    return %c0_i32, %c0_i32_0 : i32, i32
  }
  func.func @transform_8(%arg0: i32) -> (i32, i32) {
    %c0_i32 = arith.constant 0 : i32
    %c0_i32_0 = arith.constant 0 : i32
    %c0_i32_1 = arith.constant 0 : i32
    return %c0_i32, %c0_i32_0 : i32, i32
  }
  func.func @transform_9(%arg0: i32) -> (i32, i32) {
    %c0_i32 = arith.constant 0 : i32
    %c0_i32_0 = arith.constant 0 : i32
    %c0_i32_1 = arith.constant 0 : i32
    return %c0_i32, %c0_i32_0 : i32, i32
  }
  func.func @transform_10(%arg0: i32) -> (i32, i32) {
    %c0_i32 = arith.constant 0 : i32
    %c0_i32_0 = arith.constant 0 : i32
    %c0_i32_1 = arith.constant 0 : i32
    return %c0_i32, %c0_i32_0 : i32, i32
  }
  func.func @transform_11(%arg0: i32) -> (i32, i32) {
    %c0_i32 = arith.constant 0 : i32
    %c0_i32_0 = arith.constant 0 : i32
    %c0_i32_1 = arith.constant 0 : i32
    return %c0_i32, %c0_i32_0 : i32, i32
  }
  func.func @transform_12(%arg0: i32) -> (i32, i32) {
    %c0_i32 = arith.constant 0 : i32
    %c0_i32_0 = arith.constant 0 : i32
    return %arg0, %c0_i32 : i32, i32
  }
  func.func @transform_13(%arg0: i32) -> (i32, i32) {
    %c0_i32 = arith.constant 0 : i32
    %c0_i32_0 = arith.constant 0 : i32
    return %arg0, %c0_i32 : i32, i32
  }
  func.func @transform_14(%arg0: i32) -> (i32, i32) {
    %c0_i32 = arith.constant 0 : i32
    %c0_i32_0 = arith.constant 0 : i32
    return %arg0, %c0_i32 : i32, i32
  }
}

</mosaic_0001>

<llo_original>
// kernel: tpu_custom_call.1
$region0: #{tpu_custom_call.1}
  #allocation0 [shape = 'u32[]', space=smem, size = 0x4, offset = 0x4, fixed_abs, tag = 'smem constant byte address 0x4 - core index']
  #allocation1 [shape = 'u32[144,128]{1,0:T(1,128)}', space=vmem, size = 0x12000, scoped, tag = 'internal scratch']
  %s0 = inlined_call_operand.hbm [shape: f32[8,896], index: 0, kind: input, shape index: {}]
  %s1 = inlined_call_operand.hbm [shape: f32[8,512], index: 1, kind: input, shape index: {}]
  %s2 = inlined_call_operand.hbm [shape: bf16[896,640], index: 2, kind: input, shape index: {}]
  %s3 = inlined_call_operand.hbm [shape: f32[1,640], index: 3, kind: input, shape index: {}]
  %s4 = inlined_call_operand.hbm [shape: bf16[640,512], index: 4, kind: input, shape index: {}]
  %s5 = inlined_call_operand.hbm [shape: f32[1,512], index: 5, kind: input, shape index: {}]
  %s6 = inlined_call_operand.hbm [shape: bf16[512,1024], index: 6, kind: input, shape index: {}]
  %s7 = inlined_call_operand.hbm [shape: f32[1,1024], index: 7, kind: input, shape index: {}]
  %s8 = inlined_call_operand.hbm [shape: bf16[512,640], index: 8, kind: input, shape index: {}]
  %s9 = inlined_call_operand.hbm [shape: f32[1,640], index: 9, kind: input, shape index: {}]
  %s10 = inlined_call_operand.hbm [shape: bf16[640,896], index: 10, kind: input, shape index: {}]
  %s11 = inlined_call_operand.hbm [shape: f32[1,896], index: 11, kind: input, shape index: {}]
  %s12 = inlined_call_operand.hbm [shape: f32[8,896], index: 12, kind: output, shape index: {0}]
  %s13 = inlined_call_operand.hbm [shape: f32[8,512], index: 13, kind: output, shape index: {1}]
  %s14 = inlined_call_operand.hbm [shape: f32[8,512], index: 14, kind: output, shape index: {2}]
  %15 = xla_tuple %s12, %s13, %s14
  %s16 = sld [smem:[#allocation0]]
  $region122: #{tpu_custom_call.1} parent=0
    _
  %s18 = ssub.s32 1, %s16
  %s19 = scalar_select 0, %s18, %s16
  $region1: #{tpu_custom_call.1} parent=0
    #allocation2 [shape = 'u8[28672]{0}', space=vmem, size = 0x7000, scoped, tag = 'input window, operand 0, single buffered']
    #allocation3 [shape = 's32[1]{0}', space=sflag, size = 0x4, scoped, tag = 'scoped memory for tpu_custom_call.1']
    #allocation4 [shape = 's32[1]{0}', space=sflag, size = 0x4, scoped, tag = 'scoped memory for tpu_custom_call.1']
    #allocation5 [shape = 'u8[16384]{0}', space=vmem, size = 0x4000, scoped, tag = 'input window, operand 1, single buffered']
    #allocation6 [shape = 's32[1]{0}', space=sflag, size = 0x4, scoped, tag = 'scoped memory for tpu_custom_call.1']
    #allocation7 [shape = 'u8[1146880]{0}', space=vmem, size = 0x118000, scoped, tag = 'input window, operand 2, single buffered']
    #allocation8 [shape = 'u8[2560]{0}', space=vmem, size = 0xc00, scoped, tag = 'input window, operand 3, single buffered']
    #allocation9 [shape = 's32[1]{0}', space=sflag, size = 0x4, scoped, tag = 'scoped memory for tpu_custom_call.1']
    #allocation10 [shape = 'u8[655360]{0}', space=vmem, size = 0xa0000, scoped, tag = 'input window, operand 4, single buffered']
    #allocation11 [shape = 'u8[2048]{0}', space=vmem, size = 0x800, scoped, tag = 'input window, operand 5, single buffered']
    #allocation12 [shape = 's32[1]{0}', space=sflag, size = 0x4, scoped, tag = 'scoped memory for tpu_custom_call.1']
    #allocation13 [shape = 'u8[1048576]{0}', space=vmem, size = 0x100000, scoped, tag = 'input window, operand 6, single buffered']
    #allocation14 [shape = 'u8[4096]{0}', space=vmem, size = 0x1000, scoped, tag = 'input window, operand 7, single buffered']
    #allocation15 [shape = 's32[1]{0}', space=sflag, size = 0x4, scoped, tag = 'scoped memory for tpu_custom_call.1']
    #allocation16 [shape = 'u8[655360]{0}', space=vmem, size = 0xa0000, scoped, tag = 'input window, operand 8, single buffered']
    #allocation17 [shape = 'u8[2560]{0}', space=vmem, size = 0xc00, scoped, tag = 'input window, operand 9, single buffered']
    #allocation18 [shape = 's32[1]{0}', space=sflag, size = 0x4, scoped, tag = 'scoped memory for tpu_custom_call.1']
    #allocation19 [shape = 'u8[1146880]{0}', space=vmem, size = 0x118000, scoped, tag = 'input window, operand 10, single buffered']
    #allocation20 [shape = 'u8[3584]{0}', space=vmem, size = 0x1000, scoped, tag = 'input window, operand 11, single buffered']
    #allocation21 [shape = 's32[1]{0}', space=sflag, size = 0x4, scoped, tag = 'scoped memory for tpu_custom_call.1']
    #allocation22 [shape = 'u8[28672]{0}', space=vmem, size = 0x7000, scoped, tag = 'output window, operand 0, single buffered']
    #allocation23 [shape = 'u8[16384]{0}', space=vmem, size = 0x4000, scoped, tag = 'output window, operand 1, single buffered']
    #allocation24 [shape = 's32[1]{0}', space=sflag, size = 0x4, scoped, tag = 'scoped memory for tpu_custom_call.1']
    #allocation25 [shape = 'u8[16384]{0}', space=vmem, size = 0x4000, scoped, tag = 'output window, operand 2, single buffered']
    %20 = vsyncpa [#allocation3], 0
    %21 = vsyncpa [#allocation6], 0
    %22 = vsyncpa [#allocation9], 0
    %23 = vsyncpa [#allocation12], 0
    %24 = vsyncpa [#allocation15], 0
    %25 = vsyncpa [#allocation18], 0
    %26 = vsyncpa [#allocation21], 0
    %27 = vsyncpa [#allocation4], 0
    %28 = vsyncpa [#allocation24], 0
    // Predicated region
    $region2: #{tpu_custom_call.1} parent=1 // pred_check
      _
    $region3: #{tpu_custom_call.1} parent=1 // pred_check_branch
      %30 = sbr.rel (0) target = $region5
    $region4: #{tpu_custom_call.1} parent=1 // pred_region
      %s32 = ssub.s32 896, 896
      %33 = vsyncadd [#allocation3], %s32
      %s35 = sshll.u32 [#allocation2], 4
      %s36 = int_to_ptr.vmem [resolvable:$true] %s35
      %38 = dma.hbm_to_vmem [thread:$0]  %s0, 896, %s36, [#allocation3]
    $region5: #{tpu_custom_call.1} parent=1 // pred_fallthru
      _
    // Predicated region
    $region6: #{tpu_custom_call.1} parent=1 // pred_check
      _
    $region7: #{tpu_custom_call.1} parent=1 // pred_check_branch
      %40 = sbr.rel (0) target = $region9
    $region8: #{tpu_custom_call.1} parent=1 // pred_region
      %s42 = ssub.s32 512, 512
      %43 = vsyncadd [#allocation6], %s42
      %s45 = sshll.u32 [#allocation5], 4
      %s46 = int_to_ptr.vmem [resolvable:$true] %s45
      %48 = dma.hbm_to_vmem [thread:$0]  %s1, 512, %s46, [#allocation6]
    $region9: #{tpu_custom_call.1} parent=1 // pred_fallthru
      _
    // Predicated region
    $region10: #{tpu_custom_call.1} parent=1 // pred_check
      _
    $region11: #{tpu_custom_call.1} parent=1 // pred_check_branch
      %50 = sbr.rel (0) target = $region13
    $region12: #{tpu_custom_call.1} parent=1 // pred_region
      %s52 = ssub.s32 35840, 35840
      %53 = vsyncadd [#allocation6], %s52
      %s54 = sshll.u32 [#allocation7], 4
      %s55 = int_to_ptr.vmem [resolvable:$true] %s54
      %60 = dma.hbm_to_vmem [thread:$0]  %s2, 35840, %s55, [#allocation6], 320, 320, 20
    $region13: #{tpu_custom_call.1} parent=1 // pred_fallthru
      _
    // Predicated region
    $region14: #{tpu_custom_call.1} parent=1 // pred_check
      _
    $region15: #{tpu_custom_call.1} parent=1 // pred_check_branch
      %62 = sbr.rel (0) target = $region17
    $region16: #{tpu_custom_call.1} parent=1 // pred_region
      %s64 = ssub.s32 80, 80
      %65 = vsyncadd [#allocation9], %s64
      %s67 = sshll.u32 [#allocation8], 4
      %s68 = int_to_ptr.vmem [resolvable:$true] %s67
      %70 = dma.hbm_to_vmem [thread:$0]  %s3, 80, %s68, [#allocation9]
    $region17: #{tpu_custom_call.1} parent=1 // pred_fallthru
      _
    // Predicated region
    $region18: #{tpu_custom_call.1} parent=1 // pred_check
      _
    $region19: #{tpu_custom_call.1} parent=1 // pred_check_branch
      %72 = sbr.rel (0) target = $region21
    $region20: #{tpu_custom_call.1} parent=1 // pred_region
      %s74 = ssub.s32 20480, 20480
      %75 = vsyncadd [#allocation9], %s74
      %s76 = sshll.u32 [#allocation10], 4
      %s77 = int_to_ptr.vmem [resolvable:$true] %s76
      %82 = dma.hbm_to_vmem [thread:$0]  %s4, 20480, %s77, [#allocation9], 256, 256, 16
    $region21: #{tpu_custom_call.1} parent=1 // pred_fallthru
      _
    // Predicated region
    $region22: #{tpu_custom_call.1} parent=1 // pred_check
      _
    $region23: #{tpu_custom_call.1} parent=1 // pred_check_branch
      %84 = sbr.rel (0) target = $region25
    $region24: #{tpu_custom_call.1} parent=1 // pred_region
      %s86 = ssub.s32 64, 64
      %87 = vsyncadd [#allocation12], %s86
      %s89 = sshll.u32 [#allocation11], 4
      %s90 = int_to_ptr.vmem [resolvable:$true] %s89
      %92 = dma.hbm_to_vmem [thread:$0]  %s5, 64, %s90, [#allocation12]
    $region25: #{tpu_custom_call.1} parent=1 // pred_fallthru
      _
    // Predicated region
    $region26: #{tpu_custom_call.1} parent=1 // pred_check
      _
    $region27: #{tpu_custom_call.1} parent=1 // pred_check_branch
      %94 = sbr.rel (0) target = $region29
    $region28: #{tpu_custom_call.1} parent=1 // pred_region
      %s96 = ssub.s32 32768, 32768
      %97 = vsyncadd [#allocation12], %s96
      %s98 = sshll.u32 [#allocation13], 4
      %s99 = int_to_ptr.vmem [resolvable:$true] %s98
      %104 = dma.hbm_to_vmem [thread:$0]  %s6, 32768, %s99, [#allocation12], 512, 512, 32
    $region29: #{tpu_custom_call.1} parent=1 // pred_fallthru
      _
    // Predicated region
    $region30: #{tpu_custom_call.1} parent=1 // pred_check
      _
    $region31: #{tpu_custom_call.1} parent=1 // pred_check_branch
      %106 = sbr.rel (0) target = $region33
    $region32: #{tpu_custom_call.1} parent=1 // pred_region
      %s108 = ssub.s32 128, 128
      %109 = vsyncadd [#allocation15], %s108
      %s111 = sshll.u32 [#allocation14], 4
      %s112 = int_to_ptr.vmem [resolvable:$true] %s111
      %114 = dma.hbm_to_vmem [thread:$0]  %s7, 128, %s112, [#allocation15]
    $region33: #{tpu_custom_call.1} parent=1 // pred_fallthru
      _
    // Predicated region
    $region34: #{tpu_custom_call.1} parent=1 // pred_check
      _
    $region35: #{tpu_custom_call.1} parent=1 // pred_check_branch
      %116 = sbr.rel (0) target = $region37
    $region36: #{tpu_custom_call.1} parent=1 // pred_region
      %s118 = ssub.s32 20480, 20480
      %119 = vsyncadd [#allocation15], %s118
      %s120 = sshll.u32 [#allocation16], 4
      %s121 = int_to_ptr.vmem [resolvable:$true] %s120
      %126 = dma.hbm_to_vmem [thread:$0]  %s8, 20480, %s121, [#allocation15], 320, 320, 20
    $region37: #{tpu_custom_call.1} parent=1 // pred_fallthru
      _
    // Predicated region
    $region38: #{tpu_custom_call.1} parent=1 // pred_check
      _
    $region39: #{tpu_custom_call.1} parent=1 // pred_check_branch
      %128 = sbr.rel (0) target = $region41
    $region40: #{tpu_custom_call.1} parent=1 // pred_region
      %s130 = ssub.s32 80, 80
      %131 = vsyncadd [#allocation18], %s130
      %s133 = sshll.u32 [#allocation17], 4
      %s134 = int_to_ptr.vmem [resolvable:$true] %s133
      %136 = dma.hbm_to_vmem [thread:$0]  %s9, 80, %s134, [#allocation18]
    $region41: #{tpu_custom_call.1} parent=1 // pred_fallthru
      _
    // Predicated region
    $region42: #{tpu_custom_call.1} parent=1 // pred_check
      _
    $region43: #{tpu_custom_call.1} parent=1 // pred_check_branch
      %138 = sbr.rel (0) target = $region45
    $region44: #{tpu_custom_call.1} parent=1 // pred_region
      %s140 = ssub.s32 35840, 35840
      %141 = vsyncadd [#allocation18], %s140
      %s142 = sshll.u32 [#allocation19], 4
      %s143 = int_to_ptr.vmem [resolvable:$true] %s142
      %148 = dma.hbm_to_vmem [thread:$0]  %s10, 35840, %s143, [#allocation18], 448, 448, 28
    $region45: #{tpu_custom_call.1} parent=1 // pred_fallthru
      _
    // Predicated region
    $region46: #{tpu_custom_call.1} parent=1 // pred_check
      _
    $region47: #{tpu_custom_call.1} parent=1 // pred_check_branch
      %150 = sbr.rel (0) target = $region49
    $region48: #{tpu_custom_call.1} parent=1 // pred_region
      %s152 = ssub.s32 112, 112
      %153 = vsyncadd [#allocation21], %s152
      %s155 = sshll.u32 [#allocation20], 4
      %s156 = int_to_ptr.vmem [resolvable:$true] %s155
      %158 = dma.hbm_to_vmem [thread:$0]  %s11, 112, %s156, [#allocation21]
    $region49: #{tpu_custom_call.1} parent=1 // pred_fallthru
      _
    // Predicated region
    $region50: #{tpu_custom_call.1} parent=1 // pred_check
      _
    $region51: #{tpu_custom_call.1} parent=1 // pred_check_branch
      %160 = sbr.rel (0) target = $region53
    $region52: #{tpu_custom_call.1} parent=1 // pred_region
      %161 = dma.done [#allocation3], 896
    $region53: #{tpu_custom_call.1} parent=1 // pred_fallthru
      _
    // Predicated region
    $region54: #{tpu_custom_call.1} parent=1 // pred_check
      _
    $region55: #{tpu_custom_call.1} parent=1 // pred_check_branch
      %163 = sbr.rel (0) target = $region57
    $region56: #{tpu_custom_call.1} parent=1 // pred_region
      %164 = dma.done [#allocation6], 512
    $region57: #{tpu_custom_call.1} parent=1 // pred_fallthru
      _
    // Predicated region
    $region58: #{tpu_custom_call.1} parent=1 // pred_check
      _
    $region59: #{tpu_custom_call.1} parent=1 // pred_check_branch
      %166 = sbr.rel (0) target = $region61
    $region60: #{tpu_custom_call.1} parent=1 // pred_region
      %167 = dma.done [#allocation6], 35840
    $region61: #{tpu_custom_call.1} parent=1 // pred_fallthru
      _
    // Predicated region
    $region62: #{tpu_custom_call.1} parent=1 // pred_check
      _
    $region63: #{tpu_custom_call.1} parent=1 // pred_check_branch
      %169 = sbr.rel (0) target = $region65
    $region64: #{tpu_custom_call.1} parent=1 // pred_region
      %170 = dma.done [#allocation9], 80
    $region65: #{tpu_custom_call.1} parent=1 // pred_fallthru
      _
    // Predicated region
    $region66: #{tpu_custom_call.1} parent=1 // pred_check
      _
    $region67: #{tpu_custom_call.1} parent=1 // pred_check_branch
      %172 = sbr.rel (0) target = $region69
    $region68: #{tpu_custom_call.1} parent=1 // pred_region
      %173 = dma.done [#allocation9], 20480
    $region69: #{tpu_custom_call.1} parent=1 // pred_fallthru
      _
    // Predicated region
    $region70: #{tpu_custom_call.1} parent=1 // pred_check
      _
    $region71: #{tpu_custom_call.1} parent=1 // pred_check_branch
      %175 = sbr.rel (0) target = $region73
    $region72: #{tpu_custom_call.1} parent=1 // pred_region
      %176 = dma.done [#allocation12], 64
    $region73: #{tpu_custom_call.1} parent=1 // pred_fallthru
      _
    // Predicated region
    $region74: #{tpu_custom_call.1} parent=1 // pred_check
      _
    $region75: #{tpu_custom_call.1} parent=1 // pred_check_branch
      %178 = sbr.rel (0) target = $region77
    $region76: #{tpu_custom_call.1} parent=1 // pred_region
      %179 = dma.done [#allocation12], 32768
    $region77: #{tpu_custom_call.1} parent=1 // pred_fallthru
      _
    // Predicated region
    $region78: #{tpu_custom_call.1} parent=1 // pred_check
      _
    $region79: #{tpu_custom_call.1} parent=1 // pred_check_branch
      %181 = sbr.rel (0) target = $region81
    $region80: #{tpu_custom_call.1} parent=1 // pred_region
      %182 = dma.done [#allocation15], 128
    $region81: #{tpu_custom_call.1} parent=1 // pred_fallthru
      _
    // Predicated region
    $region82: #{tpu_custom_call.1} parent=1 // pred_check
      _
    $region83: #{tpu_custom_call.1} parent=1 // pred_check_branch
      %184 = sbr.rel (0) target = $region85
    $region84: #{tpu_custom_call.1} parent=1 // pred_region
      %185 = dma.done [#allocation15], 20480
    $region85: #{tpu_custom_call.1} parent=1 // pred_fallthru
      _
    // Predicated region
    $region86: #{tpu_custom_call.1} parent=1 // pred_check
      _
    $region87: #{tpu_custom_call.1} parent=1 // pred_check_branch
      %187 = sbr.rel (0) target = $region89
    $region88: #{tpu_custom_call.1} parent=1 // pred_region
      %188 = dma.done [#allocation18], 80
    $region89: #{tpu_custom_call.1} parent=1 // pred_fallthru
      _
    // Predicated region
    $region90: #{tpu_custom_call.1} parent=1 // pred_check
      _
    $region91: #{tpu_custom_call.1} parent=1 // pred_check_branch
      %190 = sbr.rel (0) target = $region93
    $region92: #{tpu_custom_call.1} parent=1 // pred_region
      %191 = dma.done [#allocation18], 35840
    $region93: #{tpu_custom_call.1} parent=1 // pred_fallthru
      _
    // Predicated region
    $region94: #{tpu_custom_call.1} parent=1 // pred_check
      _
    $region95: #{tpu_custom_call.1} parent=1 // pred_check_branch
      %193 = sbr.rel (0) target = $region97
    $region96: #{tpu_custom_call.1} parent=1 // pred_region
      %194 = dma.done [#allocation21], 112
    $region97: #{tpu_custom_call.1} parent=1 // pred_fallthru
      _
    %v196 = vld [vmem:[#allocation2] sm:$0xff]
    %v197 = vld [vmem:[#allocation2 + $0x8] sm:$0xff]
    %v198 = vld [vmem:[#allocation2 + $0x10] sm:$0xff]
    %v199 = vld [vmem:[#allocation2 + $0x18] sm:$0xff]
    %v200 = vld [vmem:[#allocation2 + $0x20] sm:$0xff]
    %v201 = vld [vmem:[#allocation2 + $0x28] sm:$0xff]
    %v202 = vld [vmem:[#allocation2 + $0x30] sm:$0xff]
    %v203 = vpack.c.bf16 %v196, %v196
    %v204 = vpack.c.bf16 %v197, %v197
    %v205 = vpack.c.bf16 %v198, %v198
    %v206 = vpack.c.bf16 %v199, %v199
    %v207 = vpack.c.bf16 %v200, %v200
    %v208 = vpack.c.bf16 %v201, %v201
    %v209 = vpack.c.bf16 %v202, %v202
    %v210 = vld [vmem:[#allocation7] sm:$0xff]
    %v211 = vld [vmem:[#allocation7 + $0x8] sm:$0xff]
    %v212 = vld [vmem:[#allocation7 + $0x10] sm:$0xf]
    %v213 = vld [vmem:[#allocation7 + $0x14] sm:$0xff]
    %v214 = vld [vmem:[#allocation7 + $0x1c] sm:$0xff]
    %v215 = vld [vmem:[#allocation7 + $0x24] sm:$0xf]
    %v216 = vld [vmem:[#allocation7 + $0x28] sm:$0xff]
    %v217 = vld [vmem:[#allocation7 + $0x30] sm:$0xff]
    %v218 = vld [vmem:[#allocation7 + $0x38] sm:$0xf]
    %v219 = vld [vmem:[#allocation7 + $0x3c] sm:$0xff]
    %v220 = vld [vmem:[#allocation7 + $0x44] sm:$0xff]
    %v221 = vld [vmem:[#allocation7 + $0x4c] sm:$0xf]
    %v222 = vld [vmem:[#allocation7 + $0x50] sm:$0xff]
    %v223 = vld [vmem:[#allocation7 + $0x58] sm:$0xff]
    %v224 = vld [vmem:[#allocation7 + $0x60] sm:$0xf]
    %v225 = vld [vmem:[#allocation7 + $0x64] sm:$0xff]
    %v226 = vld [vmem:[#allocation7 + $0x6c] sm:$0xff]
    %v227 = vld [vmem:[#allocation7 + $0x74] sm:$0xf]
    %v228 = vld [vmem:[#allocation7 + $0x78] sm:$0xff]
    %v229 = vld [vmem:[#allocation7 + $0x80] sm:$0xff]
    %v230 = vld [vmem:[#allocation7 + $0x88] sm:$0xf]
    %v231 = vld [vmem:[#allocation7 + $0x8c] sm:$0xff]
    %v232 = vld [vmem:[#allocation7 + $0x94] sm:$0xff]
    %v233 = vld [vmem:[#allocation7 + $0x9c] sm:$0xf]
    %v234 = vld [vmem:[#allocation7 + $0xa0] sm:$0xff]
    %v235 = vld [vmem:[#allocation7 + $0xa8] sm:$0xff]
    %v236 = vld [vmem:[#allocation7 + $0xb0] sm:$0xf]
    %v237 = vld [vmem:[#allocation7 + $0xb4] sm:$0xff]
    %v238 = vld [vmem:[#allocation7 + $0xbc] sm:$0xff]
    %v239 = vld [vmem:[#allocation7 + $0xc4] sm:$0xf]
    %v240 = vld [vmem:[#allocation7 + $0xc8] sm:$0xff]
    %v241 = vld [vmem:[#allocation7 + $0xd0] sm:$0xff]
    %v242 = vld [vmem:[#allocation7 + $0xd8] sm:$0xf]
    %v243 = vld [vmem:[#allocation7 + $0xdc] sm:$0xff]
    %v244 = vld [vmem:[#allocation7 + $0xe4] sm:$0xff]
    %v245 = vld [vmem:[#allocation7 + $0xec] sm:$0xf]
    %v246 = vld [vmem:[#allocation7 + $0xf0] sm:$0xff]
    %v247 = vld [vmem:[#allocation7 + $0xf8] sm:$0xff]
    %v248 = vld [vmem:[#allocation7 + $0x100] sm:$0xf]
    %v249 = vld [vmem:[#allocation7 + $0x104] sm:$0xff]
    %v250 = vld [vmem:[#allocation7 + $0x10c] sm:$0xff]
    %v251 = vld [vmem:[#allocation7 + $0x114] sm:$0xf]
    %v252 = vld [vmem:[#allocation7 + $0x118] sm:$0xff]
    %v253 = vld [vmem:[#allocation7 + $0x120] sm:$0xff]
    %v254 = vld [vmem:[#allocation7 + $0x128] sm:$0xf]
    %v255 = vld [vmem:[#allocation7 + $0x12c] sm:$0xff]
    %v256 = vld [vmem:[#allocation7 + $0x134] sm:$0xff]
    %v257 = vld [vmem:[#allocation7 + $0x13c] sm:$0xf]
    %v258 = vld [vmem:[#allocation7 + $0x140] sm:$0xff]
    %v259 = vld [vmem:[#allocation7 + $0x148] sm:$0xff]
    %v260 = vld [vmem:[#allocation7 + $0x150] sm:$0xf]
    %v261 = vld [vmem:[#allocation7 + $0x154] sm:$0xff]
    %v262 = vld [vmem:[#allocation7 + $0x15c] sm:$0xff]
    %v263 = vld [vmem:[#allocation7 + $0x164] sm:$0xf]
    %v264 = vld [vmem:[#allocation7 + $0x168] sm:$0xff]
    %v265 = vld [vmem:[#allocation7 + $0x170] sm:$0xff]
    %v266 = vld [vmem:[#allocation7 + $0x178] sm:$0xf]
    %v267 = vld [vmem:[#allocation7 + $0x17c] sm:$0xff]
    %v268 = vld [vmem:[#allocation7 + $0x184] sm:$0xff]
    %v269 = vld [vmem:[#allocation7 + $0x18c] sm:$0xf]
    %v270 = vld [vmem:[#allocation7 + $0x190] sm:$0xff]
    %v271 = vld [vmem:[#allocation7 + $0x198] sm:$0xff]
    %v272 = vld [vmem:[#allocation7 + $0x1a0] sm:$0xf]
    %v273 = vld [vmem:[#allocation7 + $0x1a4] sm:$0xff]
    %v274 = vld [vmem:[#allocation7 + $0x1ac] sm:$0xff]
    %v275 = vld [vmem:[#allocation7 + $0x1b4] sm:$0xf]
    %v276 = vld [vmem:[#allocation7 + $0x1b8] sm:$0xff]
    %v277 = vld [vmem:[#allocation7 + $0x1c0] sm:$0xff]
    %v278 = vld [vmem:[#allocation7 + $0x1c8] sm:$0xf]
    %v279 = vld [vmem:[#allocation7 + $0x1cc] sm:$0xff]
    %v280 = vld [vmem:[#allocation7 + $0x1d4] sm:$0xff]
    %v281 = vld [vmem:[#allocation7 + $0x1dc] sm:$0xf]
    %v282 = vld [vmem:[#allocation7 + $0x1e0] sm:$0xff]
    %v283 = vld [vmem:[#allocation7 + $0x1e8] sm:$0xff]
    %v284 = vld [vmem:[#allocation7 + $0x1f0] sm:$0xf]
    %v285 = vld [vmem:[#allocation7 + $0x1f4] sm:$0xff]
    %v286 = vld [vmem:[#allocation7 + $0x1fc] sm:$0xff]
    %v287 = vld [vmem:[#allocation7 + $0x204] sm:$0xf]
    %v288 = vld [vmem:[#allocation7 + $0x208] sm:$0xff]
    %v289 = vld [vmem:[#allocation7 + $0x210] sm:$0xff]
    %v290 = vld [vmem:[#allocation7 + $0x218] sm:$0xf]
    %v291 = vld [vmem:[#allocation7 + $0x21c] sm:$0xff]
    %v292 = vld [vmem:[#allocation7 + $0x224] sm:$0xff]
    %v293 = vld [vmem:[#allocation7 + $0x22c] sm:$0xf]
    %v294 = vld [vmem:[#allocation7 + $0x230] sm:$0xff]
    %v295 = vld [vmem:[#allocation7 + $0x238] sm:$0xff]
    %v296 = vld [vmem:[#allocation7 + $0x240] sm:$0xf]
    %v297 = vld [vmem:[#allocation7 + $0x244] sm:$0xff]
    %v298 = vld [vmem:[#allocation7 + $0x24c] sm:$0xff]
    %v299 = vld [vmem:[#allocation7 + $0x254] sm:$0xf]
    %v300 = vld [vmem:[#allocation7 + $0x258] sm:$0xff]
    %v301 = vld [vmem:[#allocation7 + $0x260] sm:$0xff]
    %v302 = vld [vmem:[#allocation7 + $0x268] sm:$0xf]
    %v303 = vld [vmem:[#allocation7 + $0x26c] sm:$0xff]
    %v304 = vld [vmem:[#allocation7 + $0x274] sm:$0xff]
    %v305 = vld [vmem:[#allocation7 + $0x27c] sm:$0xf]
    %v306 = vld [vmem:[#allocation7 + $0x280] sm:$0xff]
    %v307 = vld [vmem:[#allocation7 + $0x288] sm:$0xff]
    %v308 = vld [vmem:[#allocation7 + $0x290] sm:$0xf]
    %v309 = vld [vmem:[#allocation7 + $0x294] sm:$0xff]
    %v310 = vld [vmem:[#allocation7 + $0x29c] sm:$0xff]
    %v311 = vld [vmem:[#allocation7 + $0x2a4] sm:$0xf]
    %v312 = vld [vmem:[#allocation7 + $0x2a8] sm:$0xff]
    %v313 = vld [vmem:[#allocation7 + $0x2b0] sm:$0xff]
    %v314 = vld [vmem:[#allocation7 + $0x2b8] sm:$0xf]
    %v315 = vld [vmem:[#allocation7 + $0x2bc] sm:$0xff]
    %v316 = vld [vmem:[#allocation7 + $0x2c4] sm:$0xff]
    %v317 = vld [vmem:[#allocation7 + $0x2cc] sm:$0xf]
    %v318 = vld [vmem:[#allocation7 + $0x2d0] sm:$0xff]
    %v319 = vld [vmem:[#allocation7 + $0x2d8] sm:$0xff]
    %v320 = vld [vmem:[#allocation7 + $0x2e0] sm:$0xf]
    %v321 = vld [vmem:[#allocation7 + $0x2e4] sm:$0xff]
    %v322 = vld [vmem:[#allocation7 + $0x2ec] sm:$0xff]
    %v323 = vld [vmem:[#allocation7 + $0x2f4] sm:$0xf]
    %v324 = vld [vmem:[#allocation7 + $0x2f8] sm:$0xff]
    %v325 = vld [vmem:[#allocation7 + $0x300] sm:$0xff]
    %v326 = vld [vmem:[#allocation7 + $0x308] sm:$0xf]
    %v327 = vld [vmem:[#allocation7 + $0x30c] sm:$0xff]
    %v328 = vld [vmem:[#allocation7 + $0x314] sm:$0xff]
    %v329 = vld [vmem:[#allocation7 + $0x31c] sm:$0xf]
    %v330 = vld [vmem:[#allocation7 + $0x320] sm:$0xff]
    %v331 = vld [vmem:[#allocation7 + $0x328] sm:$0xff]
    %v332 = vld [vmem:[#allocation7 + $0x330] sm:$0xf]
    %v333 = vld [vmem:[#allocation7 + $0x334] sm:$0xff]
    %v334 = vld [vmem:[#allocation7 + $0x33c] sm:$0xff]
    %v335 = vld [vmem:[#allocation7 + $0x344] sm:$0xf]
    %v336 = vld [vmem:[#allocation7 + $0x348] sm:$0xff]
    %v337 = vld [vmem:[#allocation7 + $0x350] sm:$0xff]
    %v338 = vld [vmem:[#allocation7 + $0x358] sm:$0xf]
    %v339 = vld [vmem:[#allocation7 + $0x35c] sm:$0xff]
    %v340 = vld [vmem:[#allocation7 + $0x364] sm:$0xff]
    %v341 = vld [vmem:[#allocation7 + $0x36c] sm:$0xf]
    %v342 = vld [vmem:[#allocation7 + $0x370] sm:$0xff]
    %v343 = vld [vmem:[#allocation7 + $0x378] sm:$0xff]
    %v344 = vld [vmem:[#allocation7 + $0x380] sm:$0xf]
    %v345 = vld [vmem:[#allocation7 + $0x384] sm:$0xff]
    %v346 = vld [vmem:[#allocation7 + $0x38c] sm:$0xff]
    %v347 = vld [vmem:[#allocation7 + $0x394] sm:$0xf]
    %v348 = vld [vmem:[#allocation7 + $0x398] sm:$0xff]
    %v349 = vld [vmem:[#allocation7 + $0x3a0] sm:$0xff]
    %v350 = vld [vmem:[#allocation7 + $0x3a8] sm:$0xf]
    %v351 = vld [vmem:[#allocation7 + $0x3ac] sm:$0xff]
    %v352 = vld [vmem:[#allocation7 + $0x3b4] sm:$0xff]
    %v353 = vld [vmem:[#allocation7 + $0x3bc] sm:$0xf]
    %v354 = vld [vmem:[#allocation7 + $0x3c0] sm:$0xff]
    %v355 = vld [vmem:[#allocation7 + $0x3c8] sm:$0xff]
    %v356 = vld [vmem:[#allocation7 + $0x3d0] sm:$0xf]
    %v357 = vld [vmem:[#allocation7 + $0x3d4] sm:$0xff]
    %v358 = vld [vmem:[#allocation7 + $0x3dc] sm:$0xff]
    %v359 = vld [vmem:[#allocation7 + $0x3e4] sm:$0xf]
    %v360 = vld [vmem:[#allocation7 + $0x3e8] sm:$0xff]
    %v361 = vld [vmem:[#allocation7 + $0x3f0] sm:$0xff]
    %v362 = vld [vmem:[#allocation7 + $0x3f8] sm:$0xf]
    %v363 = vld [vmem:[#allocation7 + $0x3fc] sm:$0xff]
    %v364 = vld [vmem:[#allocation7 + $0x404] sm:$0xff]
    %v365 = vld [vmem:[#allocation7 + $0x40c] sm:$0xf]
    %v366 = vld [vmem:[#allocation7 + $0x410] sm:$0xff]
    %v367 = vld [vmem:[#allocation7 + $0x418] sm:$0xff]
    %v368 = vld [vmem:[#allocation7 + $0x420] sm:$0xf]
    %v369 = vld [vmem:[#allocation7 + $0x424] sm:$0xff]
    %v370 = vld [vmem:[#allocation7 + $0x42c] sm:$0xff]
    %v371 = vld [vmem:[#allocation7 + $0x434] sm:$0xf]
    %v372 = vld [vmem:[#allocation7 + $0x438] sm:$0xff]
    %v373 = vld [vmem:[#allocation7 + $0x440] sm:$0xff]
    %v374 = vld [vmem:[#allocation7 + $0x448] sm:$0xf]
    %v375 = vld [vmem:[#allocation7 + $0x44c] sm:$0xff]
    %v376 = vld [vmem:[#allocation7 + $0x454] sm:$0xff]
    %v377 = vld [vmem:[#allocation7 + $0x45c] sm:$0xf]
    %v378 = vld [vmem:[#allocation7 + $0x460] sm:$0xff]
    %v379 = vld [vmem:[#allocation7 + $0x468] sm:$0xff]
    %v380 = vld [vmem:[#allocation7 + $0x470] sm:$0xf]
    %v381 = vld [vmem:[#allocation7 + $0x474] sm:$0xff]
    %v382 = vld [vmem:[#allocation7 + $0x47c] sm:$0xff]
    %v383 = vld [vmem:[#allocation7 + $0x484] sm:$0xf]
    %v384 = vld [vmem:[#allocation7 + $0x488] sm:$0xff]
    %v385 = vld [vmem:[#allocation7 + $0x490] sm:$0xff]
    %v386 = vld [vmem:[#allocation7 + $0x498] sm:$0xf]
    %v387 = vld [vmem:[#allocation7 + $0x49c] sm:$0xff]
    %v388 = vld [vmem:[#allocation7 + $0x4a4] sm:$0xff]
    %v389 = vld [vmem:[#allocation7 + $0x4ac] sm:$0xf]
    %v390 = vld [vmem:[#allocation7 + $0x4b0] sm:$0xff]
    %v391 = vld [vmem:[#allocation7 + $0x4b8] sm:$0xff]
    %v392 = vld [vmem:[#allocation7 + $0x4c0] sm:$0xf]
    %v393 = vld [vmem:[#allocation7 + $0x4c4] sm:$0xff]
    %v394 = vld [vmem:[#allocation7 + $0x4cc] sm:$0xff]
    %v395 = vld [vmem:[#allocation7 + $0x4d4] sm:$0xf]
    %v396 = vld [vmem:[#allocation7 + $0x4d8] sm:$0xff]
    %v397 = vld [vmem:[#allocation7 + $0x4e0] sm:$0xff]
    %v398 = vld [vmem:[#allocation7 + $0x4e8] sm:$0xf]
    %v399 = vld [vmem:[#allocation7 + $0x4ec] sm:$0xff]
    %v400 = vld [vmem:[#allocation7 + $0x4f4] sm:$0xff]
    %v401 = vld [vmem:[#allocation7 + $0x4fc] sm:$0xf]
    %v402 = vld [vmem:[#allocation7 + $0x500] sm:$0xff]
    %v403 = vld [vmem:[#allocation7 + $0x508] sm:$0xff]
    %v404 = vld [vmem:[#allocation7 + $0x510] sm:$0xf]
    %v405 = vld [vmem:[#allocation7 + $0x514] sm:$0xff]
    %v406 = vld [vmem:[#allocation7 + $0x51c] sm:$0xff]
    %v407 = vld [vmem:[#allocation7 + $0x524] sm:$0xf]
    %v408 = vld [vmem:[#allocation7 + $0x528] sm:$0xff]
    %v409 = vld [vmem:[#allocation7 + $0x530] sm:$0xff]
    %v410 = vld [vmem:[#allocation7 + $0x538] sm:$0xf]
    %v411 = vld [vmem:[#allocation7 + $0x53c] sm:$0xff]
    %v412 = vld [vmem:[#allocation7 + $0x544] sm:$0xff]
    %v413 = vld [vmem:[#allocation7 + $0x54c] sm:$0xf]
    %v414 = vld [vmem:[#allocation7 + $0x550] sm:$0xff]
    %v415 = vld [vmem:[#allocation7 + $0x558] sm:$0xff]
    %v416 = vld [vmem:[#allocation7 + $0x560] sm:$0xf]
    %v417 = vld [vmem:[#allocation7 + $0x564] sm:$0xff]
    %v418 = vld [vmem:[#allocation7 + $0x56c] sm:$0xff]
    %v419 = vld [vmem:[#allocation7 + $0x574] sm:$0xf]
    %v420 = vld [vmem:[#allocation7 + $0x578] sm:$0xff]
    %v421 = vld [vmem:[#allocation7 + $0x580] sm:$0xff]
    %v422 = vld [vmem:[#allocation7 + $0x588] sm:$0xf]
    %v423 = vld [vmem:[#allocation7 + $0x58c] sm:$0xff]
    %v424 = vld [vmem:[#allocation7 + $0x594] sm:$0xff]
    %v425 = vld [vmem:[#allocation7 + $0x59c] sm:$0xf]
    %v426 = vld [vmem:[#allocation7 + $0x5a0] sm:$0xff]
    %v427 = vld [vmem:[#allocation7 + $0x5a8] sm:$0xff]
    %v428 = vld [vmem:[#allocation7 + $0x5b0] sm:$0xf]
    %v429 = vld [vmem:[#allocation7 + $0x5b4] sm:$0xff]
    %v430 = vld [vmem:[#allocation7 + $0x5bc] sm:$0xff]
    %v431 = vld [vmem:[#allocation7 + $0x5c4] sm:$0xf]
    %v432 = vld [vmem:[#allocation7 + $0x5c8] sm:$0xff]
    %v433 = vld [vmem:[#allocation7 + $0x5d0] sm:$0xff]
    %v434 = vld [vmem:[#allocation7 + $0x5d8] sm:$0xf]
    %v435 = vld [vmem:[#allocation7 + $0x5dc] sm:$0xff]
    %v436 = vld [vmem:[#allocation7 + $0x5e4] sm:$0xff]
    %v437 = vld [vmem:[#allocation7 + $0x5ec] sm:$0xf]
    %v438 = vld [vmem:[#allocation7 + $0x5f0] sm:$0xff]
    %v439 = vld [vmem:[#allocation7 + $0x5f8] sm:$0xff]
    %v440 = vld [vmem:[#allocation7 + $0x600] sm:$0xf]
    %v441 = vld [vmem:[#allocation7 + $0x604] sm:$0xff]
    %v442 = vld [vmem:[#allocation7 + $0x60c] sm:$0xff]
    %v443 = vld [vmem:[#allocation7 + $0x614] sm:$0xf]
    %v444 = vld [vmem:[#allocation7 + $0x618] sm:$0xff]
    %v445 = vld [vmem:[#allocation7 + $0x620] sm:$0xff]
    %v446 = vld [vmem:[#allocation7 + $0x628] sm:$0xf]
    %v447 = vld [vmem:[#allocation7 + $0x62c] sm:$0xff]
    %v448 = vld [vmem:[#allocation7 + $0x634] sm:$0xff]
    %v449 = vld [vmem:[#allocation7 + $0x63c] sm:$0xf]
    %v450 = vld [vmem:[#allocation7 + $0x640] sm:$0xff]
    %v451 = vld [vmem:[#allocation7 + $0x648] sm:$0xff]
    %v452 = vld [vmem:[#allocation7 + $0x650] sm:$0xf]
    %v453 = vld [vmem:[#allocation7 + $0x654] sm:$0xff]
    %v454 = vld [vmem:[#allocation7 + $0x65c] sm:$0xff]
    %v455 = vld [vmem:[#allocation7 + $0x664] sm:$0xf]
    %v456 = vld [vmem:[#allocation7 + $0x668] sm:$0xff]
    %v457 = vld [vmem:[#allocation7 + $0x670] sm:$0xff]
    %v458 = vld [vmem:[#allocation7 + $0x678] sm:$0xf]
    %v459 = vld [vmem:[#allocation7 + $0x67c] sm:$0xff]
    %v460 = vld [vmem:[#allocation7 + $0x684] sm:$0xff]
    %v461 = vld [vmem:[#allocation7 + $0x68c] sm:$0xf]
    %v462 = vld [vmem:[#allocation7 + $0x690] sm:$0xff]
    %v463 = vld [vmem:[#allocation7 + $0x698] sm:$0xff]
    %v464 = vld [vmem:[#allocation7 + $0x6a0] sm:$0xf]
    %v465 = vld [vmem:[#allocation7 + $0x6a4] sm:$0xff]
    %v466 = vld [vmem:[#allocation7 + $0x6ac] sm:$0xff]
    %v467 = vld [vmem:[#allocation7 + $0x6b4] sm:$0xf]
    %v468 = vld [vmem:[#allocation7 + $0x6b8] sm:$0xff]
    %v469 = vld [vmem:[#allocation7 + $0x6c0] sm:$0xff]
    %v470 = vld [vmem:[#allocation7 + $0x6c8] sm:$0xf]
    %v471 = vld [vmem:[#allocation7 + $0x6cc] sm:$0xff]
    %v472 = vld [vmem:[#allocation7 + $0x6d4] sm:$0xff]
    %v473 = vld [vmem:[#allocation7 + $0x6dc] sm:$0xf]
    %v474 = vld [vmem:[#allocation7 + $0x6e0] sm:$0xff]
    %v475 = vld [vmem:[#allocation7 + $0x6e8] sm:$0xff]
    %v476 = vld [vmem:[#allocation7 + $0x6f0] sm:$0xf]
    %v477 = vld [vmem:[#allocation7 + $0x6f4] sm:$0xff]
    %v478 = vld [vmem:[#allocation7 + $0x6fc] sm:$0xff]
    %v479 = vld [vmem:[#allocation7 + $0x704] sm:$0xf]
    %v480 = vld [vmem:[#allocation7 + $0x708] sm:$0xff]
    %v481 = vld [vmem:[#allocation7 + $0x710] sm:$0xff]
    %v482 = vld [vmem:[#allocation7 + $0x718] sm:$0xf]
    %v483 = vld [vmem:[#allocation7 + $0x71c] sm:$0xff]
    %v484 = vld [vmem:[#allocation7 + $0x724] sm:$0xff]
    %v485 = vld [vmem:[#allocation7 + $0x72c] sm:$0xf]
    %v486 = vld [vmem:[#allocation7 + $0x730] sm:$0xff]
    %v487 = vld [vmem:[#allocation7 + $0x738] sm:$0xff]
    %v488 = vld [vmem:[#allocation7 + $0x740] sm:$0xf]
    %v489 = vld [vmem:[#allocation7 + $0x744] sm:$0xff]
    %v490 = vld [vmem:[#allocation7 + $0x74c] sm:$0xff]
    %v491 = vld [vmem:[#allocation7 + $0x754] sm:$0xf]
    %v492 = vld [vmem:[#allocation7 + $0x758] sm:$0xff]
    %v493 = vld [vmem:[#allocation7 + $0x760] sm:$0xff]
    %v494 = vld [vmem:[#allocation7 + $0x768] sm:$0xf]
    %v495 = vld [vmem:[#allocation7 + $0x76c] sm:$0xff]
    %v496 = vld [vmem:[#allocation7 + $0x774] sm:$0xff]
    %v497 = vld [vmem:[#allocation7 + $0x77c] sm:$0xf]
    %v498 = vld [vmem:[#allocation7 + $0x780] sm:$0xff]
    %v499 = vld [vmem:[#allocation7 + $0x788] sm:$0xff]
    %v500 = vld [vmem:[#allocation7 + $0x790] sm:$0xf]
    %v501 = vld [vmem:[#allocation7 + $0x794] sm:$0xff]
    %v502 = vld [vmem:[#allocation7 + $0x79c] sm:$0xff]
    %v503 = vld [vmem:[#allocation7 + $0x7a4] sm:$0xf]
    %v504 = vld [vmem:[#allocation7 + $0x7a8] sm:$0xff]
    %v505 = vld [vmem:[#allocation7 + $0x7b0] sm:$0xff]
    %v506 = vld [vmem:[#allocation7 + $0x7b8] sm:$0xf]
    %v507 = vld [vmem:[#allocation7 + $0x7bc] sm:$0xff]
    %v508 = vld [vmem:[#allocation7 + $0x7c4] sm:$0xff]
    %v509 = vld [vmem:[#allocation7 + $0x7cc] sm:$0xf]
    %v510 = vld [vmem:[#allocation7 + $0x7d0] sm:$0xff]
    %v511 = vld [vmem:[#allocation7 + $0x7d8] sm:$0xff]
    %v512 = vld [vmem:[#allocation7 + $0x7e0] sm:$0xf]
    %v513 = vld [vmem:[#allocation7 + $0x7e4] sm:$0xff]
    %v514 = vld [vmem:[#allocation7 + $0x7ec] sm:$0xff]
    %v515 = vld [vmem:[#allocation7 + $0x7f4] sm:$0xf]
    %v516 = vld [vmem:[#allocation7 + $0x7f8] sm:$0xff]
    %v517 = vld [vmem:[#allocation7 + $0x800] sm:$0xff]
    %v518 = vld [vmem:[#allocation7 + $0x808] sm:$0xf]
    %v519 = vld [vmem:[#allocation7 + $0x80c] sm:$0xff]
    %v520 = vld [vmem:[#allocation7 + $0x814] sm:$0xff]
    %v521 = vld [vmem:[#allocation7 + $0x81c] sm:$0xf]
    %v522 = vld [vmem:[#allocation7 + $0x820] sm:$0xff]
    %v523 = vld [vmem:[#allocation7 + $0x828] sm:$0xff]
    %v524 = vld [vmem:[#allocation7 + $0x830] sm:$0xf]
    %v525 = vld [vmem:[#allocation7 + $0x834] sm:$0xff]
    %v526 = vld [vmem:[#allocation7 + $0x83c] sm:$0xff]
    %v527 = vld [vmem:[#allocation7 + $0x844] sm:$0xf]
    %v528 = vld [vmem:[#allocation7 + $0x848] sm:$0xff]
    %v529 = vld [vmem:[#allocation7 + $0x850] sm:$0xff]
    %v530 = vld [vmem:[#allocation7 + $0x858] sm:$0xf]
    %v531 = vld [vmem:[#allocation7 + $0x85c] sm:$0xff]
    %v532 = vld [vmem:[#allocation7 + $0x864] sm:$0xff]
    %v533 = vld [vmem:[#allocation7 + $0x86c] sm:$0xf]
    %v534 = vld [vmem:[#allocation7 + $0x870] sm:$0xff]
    %v535 = vld [vmem:[#allocation7 + $0x878] sm:$0xff]
    %v536 = vld [vmem:[#allocation7 + $0x880] sm:$0xf]
    %v537 = vld [vmem:[#allocation7 + $0x884] sm:$0xff]
    %v538 = vld [vmem:[#allocation7 + $0x88c] sm:$0xff]
    %v539 = vld [vmem:[#allocation7 + $0x894] sm:$0xf]
    %v540 = vld [vmem:[#allocation7 + $0x898] sm:$0xff]
    %v541 = vld [vmem:[#allocation7 + $0x8a0] sm:$0xff]
    %v542 = vld [vmem:[#allocation7 + $0x8a8] sm:$0xf]
    %v543 = vld [vmem:[#allocation7 + $0x8ac] sm:$0xff]
    %v544 = vld [vmem:[#allocation7 + $0x8b4] sm:$0xff]
    %v545 = vld [vmem:[#allocation7 + $0x8bc] sm:$0xf]
    %v546 = vld [vmem:[#allocation8] sm:$0x1f]
    %v548 = vlaneseq
    %v549 = vshrl.u32 %v548, 7
    %v550 = vsub.s32 0, %v549
    %v551 = vrot.slane %v546, %v550
    %v552 = vlaneseq
    %v553 = vshrl.u32 %v552, 7
    %v554 = vsub.s32 1, %v553
    %v555 = vrot.slane %v546, %v554
    %v556 = vlaneseq
    %v557 = vshrl.u32 %v556, 7
    %v558 = vsub.s32 2, %v557
    %v559 = vrot.slane %v546, %v558
    %v560 = vlaneseq
    %v561 = vshrl.u32 %v560, 7
    %v562 = vsub.s32 3, %v561
    %v563 = vrot.slane %v546, %v562
    %v564 = vlaneseq
    %v565 = vshrl.u32 %v564, 7
    %v566 = vsub.s32 4, %v565
    %v567 = vrot.slane %v546, %v566
    %v909 = vunpack.c.l.b16 %v210
    %v910 = vunpack.c.h.b16 %v210
    %v911 = vunpack.c.l.b16 %v211
    %v912 = vunpack.c.h.b16 %v211
    %v913 = vunpack.c.l.b16 %v212
    %v914 = vunpack.c.l.b16 %v213
    %v915 = vunpack.c.h.b16 %v213
    %v916 = vunpack.c.l.b16 %v214
    %v917 = vunpack.c.h.b16 %v214
    %v918 = vunpack.c.l.b16 %v215
    %v919 = vunpack.c.l.b16 %v216
    %v920 = vunpack.c.h.b16 %v216
    %v921 = vunpack.c.l.b16 %v217
    %v922 = vunpack.c.h.b16 %v217
    %v923 = vunpack.c.l.b16 %v218
    %v924 = vunpack.c.l.b16 %v219
    %v925 = vunpack.c.h.b16 %v219
    %v926 = vunpack.c.l.b16 %v220
    %v927 = vunpack.c.h.b16 %v220
    %v928 = vunpack.c.l.b16 %v221
    %v929 = vunpack.c.l.b16 %v222
    %v930 = vunpack.c.h.b16 %v222
    %v931 = vunpack.c.l.b16 %v223
    %v932 = vunpack.c.h.b16 %v223
    %v933 = vunpack.c.l.b16 %v224
    %v934 = vunpack.c.l.b16 %v225
    %v935 = vunpack.c.h.b16 %v225
    %v936 = vunpack.c.l.b16 %v226
    %v937 = vunpack.c.h.b16 %v226
    %v938 = vunpack.c.l.b16 %v227
    %v939 = vunpack.c.l.b16 %v228
    %v940 = vunpack.c.h.b16 %v228
    %v941 = vunpack.c.l.b16 %v229
    %v942 = vunpack.c.h.b16 %v229
    %v943 = vunpack.c.l.b16 %v230
    %v944 = vunpack.c.l.b16 %v231
    %v945 = vunpack.c.h.b16 %v231
    %v946 = vunpack.c.l.b16 %v232
    %v947 = vunpack.c.h.b16 %v232
    %v948 = vunpack.c.l.b16 %v233
    %v949 = vunpack.c.l.b16 %v234
    %v950 = vunpack.c.h.b16 %v234
    %v951 = vunpack.c.l.b16 %v235
    %v952 = vunpack.c.h.b16 %v235
    %v953 = vunpack.c.l.b16 %v236
    %v954 = vunpack.c.l.b16 %v237
    %v955 = vunpack.c.h.b16 %v237
    %v956 = vunpack.c.l.b16 %v238
    %v957 = vunpack.c.h.b16 %v238
    %v958 = vunpack.c.l.b16 %v239
    %v959 = vunpack.c.l.b16 %v240
    %v960 = vunpack.c.h.b16 %v240
    %v961 = vunpack.c.l.b16 %v241
    %v962 = vunpack.c.h.b16 %v241
    %v963 = vunpack.c.l.b16 %v242
    %v964 = vunpack.c.l.b16 %v243
    %v965 = vunpack.c.h.b16 %v243
    %v966 = vunpack.c.l.b16 %v244
    %v967 = vunpack.c.h.b16 %v244
    %v968 = vunpack.c.l.b16 %v245
    %v969 = vunpack.c.l.b16 %v246
    %v970 = vunpack.c.h.b16 %v246
    %v971 = vunpack.c.l.b16 %v247
    %v972 = vunpack.c.h.b16 %v247
    %v973 = vunpack.c.l.b16 %v248
    %v974 = vunpack.c.l.b16 %v249
    %v975 = vunpack.c.h.b16 %v249
    %v976 = vunpack.c.l.b16 %v250
    %v977 = vunpack.c.h.b16 %v250
    %v978 = vunpack.c.l.b16 %v251
    %v979 = vunpack.c.l.b16 %v252
    %v980 = vunpack.c.h.b16 %v252
    %v981 = vunpack.c.l.b16 %v253
    %v982 = vunpack.c.h.b16 %v253
    %v983 = vunpack.c.l.b16 %v254
    %v984 = vunpack.c.l.b16 %v255
    %v985 = vunpack.c.h.b16 %v255
    %v986 = vunpack.c.l.b16 %v256
    %v987 = vunpack.c.h.b16 %v256
    %v988 = vunpack.c.l.b16 %v257
    %v989 = vunpack.c.l.b16 %v258
    %v990 = vunpack.c.h.b16 %v258
    %v991 = vunpack.c.l.b16 %v259
    %v992 = vunpack.c.h.b16 %v259
    %v993 = vunpack.c.l.b16 %v260
    %v994 = vunpack.c.l.b16 %v261
    %v995 = vunpack.c.h.b16 %v261
    %v996 = vunpack.c.l.b16 %v262
    %v997 = vunpack.c.h.b16 %v262
    %v998 = vunpack.c.l.b16 %v263
    %v999 = vunpack.c.l.b16 %v264
    %v1000 = vunpack.c.h.b16 %v264
    %v1001 = vunpack.c.l.b16 %v265
    %v1002 = vunpack.c.h.b16 %v265
    %v1003 = vunpack.c.l.b16 %v266
    %v1004 = vunpack.c.l.b16 %v267
    %v1005 = vunpack.c.h.b16 %v267
    %v1006 = vunpack.c.l.b16 %v268
    %v1007 = vunpack.c.h.b16 %v268
    %v1008 = vunpack.c.l.b16 %v269
    %v1009 = vunpack.c.l.b16 %v270
    %v1010 = vunpack.c.h.b16 %v270
    %v1011 = vunpack.c.l.b16 %v271
    %v1012 = vunpack.c.h.b16 %v271
    %v1013 = vunpack.c.l.b16 %v272
    %v1014 = vunpack.c.l.b16 %v273
    %v1015 = vunpack.c.h.b16 %v273
    %v1016 = vunpack.c.l.b16 %v274
    %v1017 = vunpack.c.h.b16 %v274
    %v1018 = vunpack.c.l.b16 %v275
    %v1019 = vunpack.c.l.b16 %v276
    %v1020 = vunpack.c.h.b16 %v276
    %v1021 = vunpack.c.l.b16 %v277
    %v1022 = vunpack.c.h.b16 %v277
    %v1023 = vunpack.c.l.b16 %v278
    %v1024 = vunpack.c.l.b16 %v279
    %v1025 = vunpack.c.h.b16 %v279
    %v1026 = vunpack.c.l.b16 %v280
    %v1027 = vunpack.c.h.b16 %v280
    %v1028 = vunpack.c.l.b16 %v281
    %v1029 = vunpack.c.l.b16 %v282
    %v1030 = vunpack.c.h.b16 %v282
    %v1031 = vunpack.c.l.b16 %v283
    %v1032 = vunpack.c.h.b16 %v283
    %v1033 = vunpack.c.l.b16 %v284
    %v1034 = vunpack.c.l.b16 %v285
    %v1035 = vunpack.c.h.b16 %v285
    %v1036 = vunpack.c.l.b16 %v286
    %v1037 = vunpack.c.h.b16 %v286
    %v1038 = vunpack.c.l.b16 %v287
    %v1039 = vunpack.c.l.b16 %v288
    %v1040 = vunpack.c.h.b16 %v288
    %v1041 = vunpack.c.l.b16 %v289
    %v1042 = vunpack.c.h.b16 %v289
    %v1043 = vunpack.c.l.b16 %v290
    %v1044 = vunpack.c.l.b16 %v291
    %v1045 = vunpack.c.h.b16 %v291
    %v1046 = vunpack.c.l.b16 %v292
    %v1047 = vunpack.c.h.b16 %v292
    %v1048 = vunpack.c.l.b16 %v293
    %v1049 = vunpack.c.l.b16 %v294
    %v1050 = vunpack.c.h.b16 %v294
    %v1051 = vunpack.c.l.b16 %v295
    %v1052 = vunpack.c.h.b16 %v295
    %v1053 = vunpack.c.l.b16 %v296
    %v1054 = vunpack.c.l.b16 %v297
    %v1055 = vunpack.c.h.b16 %v297
    %v1056 = vunpack.c.l.b16 %v298
    %v1057 = vunpack.c.h.b16 %v298
    %v1058 = vunpack.c.l.b16 %v299
    %v1059 = vunpack.c.l.b16 %v300
    %v1060 = vunpack.c.h.b16 %v300
    %v1061 = vunpack.c.l.b16 %v301
    %v1062 = vunpack.c.h.b16 %v301
    %v1063 = vunpack.c.l.b16 %v302
    %v1064 = vunpack.c.l.b16 %v303
    %v1065 = vunpack.c.h.b16 %v303
    %v1066 = vunpack.c.l.b16 %v304
    %v1067 = vunpack.c.h.b16 %v304
    %v1068 = vunpack.c.l.b16 %v305
    %v1069 = vunpack.c.l.b16 %v306
    %v1070 = vunpack.c.h.b16 %v306
    %v1071 = vunpack.c.l.b16 %v307
    %v1072 = vunpack.c.h.b16 %v307
    %v1073 = vunpack.c.l.b16 %v308
    %v1074 = vunpack.c.l.b16 %v309
    %v1075 = vunpack.c.h.b16 %v309
    %v1076 = vunpack.c.l.b16 %v310
    %v1077 = vunpack.c.h.b16 %v310
    %v1078 = vunpack.c.l.b16 %v311
    %v1079 = vunpack.c.l.b16 %v312
    %v1080 = vunpack.c.h.b16 %v312
    %v1081 = vunpack.c.l.b16 %v313
    %v1082 = vunpack.c.h.b16 %v313
    %v1083 = vunpack.c.l.b16 %v314
    %v1084 = vunpack.c.l.b16 %v315
    %v1085 = vunpack.c.h.b16 %v315
    %v1086 = vunpack.c.l.b16 %v316
    %v1087 = vunpack.c.h.b16 %v316
    %v1088 = vunpack.c.l.b16 %v317
    %v1089 = vunpack.c.l.b16 %v318
    %v1090 = vunpack.c.h.b16 %v318
    %v1091 = vunpack.c.l.b16 %v319
    %v1092 = vunpack.c.h.b16 %v319
    %v1093 = vunpack.c.l.b16 %v320
    %v1094 = vunpack.c.l.b16 %v321
    %v1095 = vunpack.c.h.b16 %v321
    %v1096 = vunpack.c.l.b16 %v322
    %v1097 = vunpack.c.h.b16 %v322
    %v1098 = vunpack.c.l.b16 %v323
    %v1099 = vunpack.c.l.b16 %v324
    %v1100 = vunpack.c.h.b16 %v324
    %v1101 = vunpack.c.l.b16 %v325
    %v1102 = vunpack.c.h.b16 %v325
    %v1103 = vunpack.c.l.b16 %v326
    %v1104 = vunpack.c.l.b16 %v327
    %v1105 = vunpack.c.h.b16 %v327
    %v1106 = vunpack.c.l.b16 %v328
    %v1107 = vunpack.c.h.b16 %v328
    %v1108 = vunpack.c.l.b16 %v329
    %v1109 = vunpack.c.l.b16 %v330
    %v1110 = vunpack.c.h.b16 %v330
    %v1111 = vunpack.c.l.b16 %v331
    %v1112 = vunpack.c.h.b16 %v331
    %v1113 = vunpack.c.l.b16 %v332
    %v1114 = vunpack.c.l.b16 %v333
    %v1115 = vunpack.c.h.b16 %v333
    %v1116 = vunpack.c.l.b16 %v334
    %v1117 = vunpack.c.h.b16 %v334
    %v1118 = vunpack.c.l.b16 %v335
    %v1119 = vunpack.c.l.b16 %v336
    %v1120 = vunpack.c.h.b16 %v336
    %v1121 = vunpack.c.l.b16 %v337
    %v1122 = vunpack.c.h.b16 %v337
    %v1123 = vunpack.c.l.b16 %v338
    %v1124 = vunpack.c.l.b16 %v339
    %v1125 = vunpack.c.h.b16 %v339
    %v1126 = vunpack.c.l.b16 %v340
    %v1127 = vunpack.c.h.b16 %v340
    %v1128 = vunpack.c.l.b16 %v341
    %v1129 = vunpack.c.l.b16 %v342
    %v1130 = vunpack.c.h.b16 %v342
    %v1131 = vunpack.c.l.b16 %v343
    %v1132 = vunpack.c.h.b16 %v343
    %v1133 = vunpack.c.l.b16 %v344
    %v1134 = vunpack.c.l.b16 %v345
    %v1135 = vunpack.c.h.b16 %v345
    %v1136 = vunpack.c.l.b16 %v346
    %v1137 = vunpack.c.h.b16 %v346
    %v1138 = vunpack.c.l.b16 %v347
    %v1139 = vunpack.c.l.b16 %v348
    %v1140 = vunpack.c.h.b16 %v348
    %v1141 = vunpack.c.l.b16 %v349
    %v1142 = vunpack.c.h.b16 %v349
    %v1143 = vunpack.c.l.b16 %v350
    %v1144 = vunpack.c.l.b16 %v351
    %v1145 = vunpack.c.h.b16 %v351
    %v1146 = vunpack.c.l.b16 %v352
    %v1147 = vunpack.c.h.b16 %v352
    %v1148 = vunpack.c.l.b16 %v353
    %v1149 = vunpack.c.l.b16 %v354
    %v1150 = vunpack.c.h.b16 %v354
    %v1151 = vunpack.c.l.b16 %v355
    %v1152 = vunpack.c.h.b16 %v355
    %v1153 = vunpack.c.l.b16 %v356
    %v1154 = vunpack.c.l.b16 %v357
    %v1155 = vunpack.c.h.b16 %v357
    %v1156 = vunpack.c.l.b16 %v358
    %v1157 = vunpack.c.h.b16 %v358
    %v1158 = vunpack.c.l.b16 %v359
    %v1159 = vunpack.c.l.b16 %v360
    %v1160 = vunpack.c.h.b16 %v360
    %v1161 = vunpack.c.l.b16 %v361
    %v1162 = vunpack.c.h.b16 %v361
    %v1163 = vunpack.c.l.b16 %v362
    %v1164 = vunpack.c.l.b16 %v363
    %v1165 = vunpack.c.h.b16 %v363
    %v1166 = vunpack.c.l.b16 %v364
    %v1167 = vunpack.c.h.b16 %v364
    %v1168 = vunpack.c.l.b16 %v365
    %v1169 = vunpack.c.l.b16 %v366
    %v1170 = vunpack.c.h.b16 %v366
    %v1171 = vunpack.c.l.b16 %v367
    %v1172 = vunpack.c.h.b16 %v367
    %v1173 = vunpack.c.l.b16 %v368
    %v1174 = vunpack.c.l.b16 %v369
    %v1175 = vunpack.c.h.b16 %v369
    %v1176 = vunpack.c.l.b16 %v370
    %v1177 = vunpack.c.h.b16 %v370
    %v1178 = vunpack.c.l.b16 %v371
    %v1179 = vunpack.c.l.b16 %v372
    %v1180 = vunpack.c.h.b16 %v372
    %v1181 = vunpack.c.l.b16 %v373
    %v1182 = vunpack.c.h.b16 %v373
    %v1183 = vunpack.c.l.b16 %v374
    %v1184 = vunpack.c.l.b16 %v375
    %v1185 = vunpack.c.h.b16 %v375
    %v1186 = vunpack.c.l.b16 %v376
    %v1187 = vunpack.c.h.b16 %v376
    %v1188 = vunpack.c.l.b16 %v377
    %v1189 = vunpack.c.l.b16 %v378
    %v1190 = vunpack.c.h.b16 %v378
    %v1191 = vunpack.c.l.b16 %v379
    %v1192 = vunpack.c.h.b16 %v379
    %v1193 = vunpack.c.l.b16 %v380
    %v1194 = vunpack.c.l.b16 %v381
    %v1195 = vunpack.c.h.b16 %v381
    %v1196 = vunpack.c.l.b16 %v382
    %v1197 = vunpack.c.h.b16 %v382
    %v1198 = vunpack.c.l.b16 %v383
    %v1199 = vunpack.c.l.b16 %v384
    %v1200 = vunpack.c.h.b16 %v384
    %v1201 = vunpack.c.l.b16 %v385
    %v1202 = vunpack.c.h.b16 %v385
    %v1203 = vunpack.c.l.b16 %v386
    %v1204 = vunpack.c.l.b16 %v387
    %v1205 = vunpack.c.h.b16 %v387
    %v1206 = vunpack.c.l.b16 %v388
    %v1207 = vunpack.c.h.b16 %v388
    %v1208 = vunpack.c.l.b16 %v389
    %v1209 = vunpack.c.l.b16 %v390
    %v1210 = vunpack.c.h.b16 %v390
    %v1211 = vunpack.c.l.b16 %v391
    %v1212 = vunpack.c.h.b16 %v391
    %v1213 = vunpack.c.l.b16 %v392
    %v1214 = vunpack.c.l.b16 %v393
    %v1215 = vunpack.c.h.b16 %v393
    %v1216 = vunpack.c.l.b16 %v394
    %v1217 = vunpack.c.h.b16 %v394
    %v1218 = vunpack.c.l.b16 %v395
    %v1219 = vunpack.c.l.b16 %v396
    %v1220 = vunpack.c.h.b16 %v396
    %v1221 = vunpack.c.l.b16 %v397
    %v1222 = vunpack.c.h.b16 %v397
    %v1223 = vunpack.c.l.b16 %v398
    %v1224 = vunpack.c.l.b16 %v399
    %v1225 = vunpack.c.h.b16 %v399
    %v1226 = vunpack.c.l.b16 %v400
    %v1227 = vunpack.c.h.b16 %v400
    %v1228 = vunpack.c.l.b16 %v401
    %v1229 = vunpack.c.l.b16 %v402
    %v1230 = vunpack.c.h.b16 %v402
    %v1231 = vunpack.c.l.b16 %v403
    %v1232 = vunpack.c.h.b16 %v403
    %v1233 = vunpack.c.l.b16 %v404
    %v1234 = vunpack.c.l.b16 %v405
    %v1235 = vunpack.c.h.b16 %v405
    %v1236 = vunpack.c.l.b16 %v406
    %v1237 = vunpack.c.h.b16 %v406
    %v1238 = vunpack.c.l.b16 %v407
    %v1239 = vunpack.c.l.b16 %v408
    %v1240 = vunpack.c.h.b16 %v408
    %v1241 = vunpack.c.l.b16 %v409
    %v1242 = vunpack.c.h.b16 %v409
    %v1243 = vunpack.c.l.b16 %v410
    %v1244 = vunpack.c.l.b16 %v411
    %v1245 = vunpack.c.h.b16 %v411
    %v1246 = vunpack.c.l.b16 %v412
    %v1247 = vunpack.c.h.b16 %v412
    %v1248 = vunpack.c.l.b16 %v413
    %v1249 = vunpack.c.l.b16 %v414
    %v1250 = vunpack.c.h.b16 %v414
    %v1251 = vunpack.c.l.b16 %v415
    %v1252 = vunpack.c.h.b16 %v415
    %v1253 = vunpack.c.l.b16 %v416
    %v1254 = vunpack.c.l.b16 %v417
    %v1255 = vunpack.c.h.b16 %v417
    %v1256 = vunpack.c.l.b16 %v418
    %v1257 = vunpack.c.h.b16 %v418
    %v1258 = vunpack.c.l.b16 %v419
    %v1259 = vunpack.c.l.b16 %v420
    %v1260 = vunpack.c.h.b16 %v420
    %v1261 = vunpack.c.l.b16 %v421
    %v1262 = vunpack.c.h.b16 %v421
    %v1263 = vunpack.c.l.b16 %v422
    %v1264 = vunpack.c.l.b16 %v423
    %v1265 = vunpack.c.h.b16 %v423
    %v1266 = vunpack.c.l.b16 %v424
    %v1267 = vunpack.c.h.b16 %v424
    %v1268 = vunpack.c.l.b16 %v425
    %v1269 = vunpack.c.l.b16 %v426
    %v1270 = vunpack.c.h.b16 %v426
    %v1271 = vunpack.c.l.b16 %v427
    %v1272 = vunpack.c.h.b16 %v427
    %v1273 = vunpack.c.l.b16 %v428
    %v1274 = vunpack.c.l.b16 %v429
    %v1275 = vunpack.c.h.b16 %v429
    %v1276 = vunpack.c.l.b16 %v430
    %v1277 = vunpack.c.h.b16 %v430
    %v1278 = vunpack.c.l.b16 %v431
    %v1279 = vunpack.c.l.b16 %v432
    %v1280 = vunpack.c.h.b16 %v432
    %v1281 = vunpack.c.l.b16 %v433
    %v1282 = vunpack.c.h.b16 %v433
    %v1283 = vunpack.c.l.b16 %v434
    %v1284 = vunpack.c.l.b16 %v435
    %v1285 = vunpack.c.h.b16 %v435
    %v1286 = vunpack.c.l.b16 %v436
    %v1287 = vunpack.c.h.b16 %v436
    %v1288 = vunpack.c.l.b16 %v437
    %v1289 = vunpack.c.l.b16 %v438
    %v1290 = vunpack.c.h.b16 %v438
    %v1291 = vunpack.c.l.b16 %v439
    %v1292 = vunpack.c.h.b16 %v439
    %v1293 = vunpack.c.l.b16 %v440
    %v1294 = vunpack.c.l.b16 %v441
    %v1295 = vunpack.c.h.b16 %v441
    %v1296 = vunpack.c.l.b16 %v442
    %v1297 = vunpack.c.h.b16 %v442
    %v1298 = vunpack.c.l.b16 %v443
    %v1299 = vunpack.c.l.b16 %v444
    %v1300 = vunpack.c.h.b16 %v444
    %v1301 = vunpack.c.l.b16 %v445
    %v1302 = vunpack.c.h.b16 %v445
    %v1303 = vunpack.c.l.b16 %v446
    %v1304 = vunpack.c.l.b16 %v447
    %v1305 = vunpack.c.h.b16 %v447
    %v1306 = vunpack.c.l.b16 %v448
    %v1307 = vunpack.c.h.b16 %v448
    %v1308 = vunpack.c.l.b16 %v449
    %v1309 = vunpack.c.l.b16 %v450
    %v1310 = vunpack.c.h.b16 %v450
    %v1311 = vunpack.c.l.b16 %v451
    %v1312 = vunpack.c.h.b16 %v451
    %v1313 = vunpack.c.l.b16 %v452
    %v1314 = vunpack.c.l.b16 %v453
    %v1315 = vunpack.c.h.b16 %v453
    %v1316 = vunpack.c.l.b16 %v454
    %v1317 = vunpack.c.h.b16 %v454
    %v1318 = vunpack.c.l.b16 %v455
    %v1319 = vunpack.c.l.b16 %v456
    %v1320 = vunpack.c.h.b16 %v456
    %v1321 = vunpack.c.l.b16 %v457
    %v1322 = vunpack.c.h.b16 %v457
    %v1323 = vunpack.c.l.b16 %v458
    %v1324 = vunpack.c.l.b16 %v459
    %v1325 = vunpack.c.h.b16 %v459
    %v1326 = vunpack.c.l.b16 %v460
    %v1327 = vunpack.c.h.b16 %v460
    %v1328 = vunpack.c.l.b16 %v461
    %v1329 = vunpack.c.l.b16 %v462
    %v1330 = vunpack.c.h.b16 %v462
    %v1331 = vunpack.c.l.b16 %v463
    %v1332 = vunpack.c.h.b16 %v463
    %v1333 = vunpack.c.l.b16 %v464
    %v1334 = vunpack.c.l.b16 %v465
    %v1335 = vunpack.c.h.b16 %v465
    %v1336 = vunpack.c.l.b16 %v466
    %v1337 = vunpack.c.h.b16 %v466
    %v1338 = vunpack.c.l.b16 %v467
    %v1339 = vunpack.c.l.b16 %v468
    %v1340 = vunpack.c.h.b16 %v468
    %v1341 = vunpack.c.l.b16 %v469
    %v1342 = vunpack.c.h.b16 %v469
    %v1343 = vunpack.c.l.b16 %v470
    %v1344 = vunpack.c.l.b16 %v471
    %v1345 = vunpack.c.h.b16 %v471
    %v1346 = vunpack.c.l.b16 %v472
    %v1347 = vunpack.c.h.b16 %v472
    %v1348 = vunpack.c.l.b16 %v473
    %v1349 = vunpack.c.l.b16 %v474
    %v1350 = vunpack.c.h.b16 %v474
    %v1351 = vunpack.c.l.b16 %v475
    %v1352 = vunpack.c.h.b16 %v475
    %v1353 = vunpack.c.l.b16 %v476
    %v1354 = vunpack.c.l.b16 %v477
    %v1355 = vunpack.c.h.b16 %v477
    %v1356 = vunpack.c.l.b16 %v478
    %v1357 = vunpack.c.h.b16 %v478
    %v1358 = vunpack.c.l.b16 %v479
    %v1359 = vunpack.c.l.b16 %v480
    %v1360 = vunpack.c.h.b16 %v480
    %v1361 = vunpack.c.l.b16 %v481
    %v1362 = vunpack.c.h.b16 %v481
    %v1363 = vunpack.c.l.b16 %v482
    %v1364 = vunpack.c.l.b16 %v483
    %v1365 = vunpack.c.h.b16 %v483
    %v1366 = vunpack.c.l.b16 %v484
    %v1367 = vunpack.c.h.b16 %v484
    %v1368 = vunpack.c.l.b16 %v485
    %v1369 = vunpack.c.l.b16 %v486
    %v1370 = vunpack.c.h.b16 %v486
    %v1371 = vunpack.c.l.b16 %v487
    %v1372 = vunpack.c.h.b16 %v487
    %v1373 = vunpack.c.l.b16 %v488
    %v1374 = vunpack.c.l.b16 %v489
    %v1375 = vunpack.c.h.b16 %v489
    %v1376 = vunpack.c.l.b16 %v490
    %v1377 = vunpack.c.h.b16 %v490
    %v1378 = vunpack.c.l.b16 %v491
    %v1379 = vunpack.c.l.b16 %v492
    %v1380 = vunpack.c.h.b16 %v492
    %v1381 = vunpack.c.l.b16 %v493
    %v1382 = vunpack.c.h.b16 %v493
    %v1383 = vunpack.c.l.b16 %v494
    %v1384 = vunpack.c.l.b16 %v495
    %v1385 = vunpack.c.h.b16 %v495
    %v1386 = vunpack.c.l.b16 %v496
    %v1387 = vunpack.c.h.b16 %v496
    %v1388 = vunpack.c.l.b16 %v497
    %v1389 = vunpack.c.l.b16 %v498
    %v1390 = vunpack.c.h.b16 %v498
    %v1391 = vunpack.c.l.b16 %v499
    %v1392 = vunpack.c.h.b16 %v499
    %v1393 = vunpack.c.l.b16 %v500
    %v1394 = vunpack.c.l.b16 %v501
    %v1395 = vunpack.c.h.b16 %v501
    %v1396 = vunpack.c.l.b16 %v502
    %v1397 = vunpack.c.h.b16 %v502
    %v1398 = vunpack.c.l.b16 %v503
    %v1399 = vunpack.c.l.b16 %v504
    %v1400 = vunpack.c.h.b16 %v504
    %v1401 = vunpack.c.l.b16 %v505
    %v1402 = vunpack.c.h.b16 %v505
    %v1403 = vunpack.c.l.b16 %v506
    %v1404 = vunpack.c.l.b16 %v507
    %v1405 = vunpack.c.h.b16 %v507
    %v1406 = vunpack.c.l.b16 %v508
    %v1407 = vunpack.c.h.b16 %v508
    %v1408 = vunpack.c.l.b16 %v509
    %v1409 = vunpack.c.l.b16 %v510
    %v1410 = vunpack.c.h.b16 %v510
    %v1411 = vunpack.c.l.b16 %v511
    %v1412 = vunpack.c.h.b16 %v511
    %v1413 = vunpack.c.l.b16 %v512
    %v1414 = vunpack.c.l.b16 %v513
    %v1415 = vunpack.c.h.b16 %v513
    %v1416 = vunpack.c.l.b16 %v514
    %v1417 = vunpack.c.h.b16 %v514
    %v1418 = vunpack.c.l.b16 %v515
    %v1419 = vunpack.c.l.b16 %v516
    %v1420 = vunpack.c.h.b16 %v516
    %v1421 = vunpack.c.l.b16 %v517
    %v1422 = vunpack.c.h.b16 %v517
    %v1423 = vunpack.c.l.b16 %v518
    %v1424 = vunpack.c.l.b16 %v519
    %v1425 = vunpack.c.h.b16 %v519
    %v1426 = vunpack.c.l.b16 %v520
    %v1427 = vunpack.c.h.b16 %v520
    %v1428 = vunpack.c.l.b16 %v521
    %v1429 = vunpack.c.l.b16 %v522
    %v1430 = vunpack.c.h.b16 %v522
    %v1431 = vunpack.c.l.b16 %v523
    %v1432 = vunpack.c.h.b16 %v523
    %v1433 = vunpack.c.l.b16 %v524
    %v1434 = vunpack.c.l.b16 %v525
    %v1435 = vunpack.c.h.b16 %v525
    %v1436 = vunpack.c.l.b16 %v526
    %v1437 = vunpack.c.h.b16 %v526
    %v1438 = vunpack.c.l.b16 %v527
    %v1439 = vunpack.c.l.b16 %v528
    %v1440 = vunpack.c.h.b16 %v528
    %v1441 = vunpack.c.l.b16 %v529
    %v1442 = vunpack.c.h.b16 %v529
    %v1443 = vunpack.c.l.b16 %v530
    %v1444 = vunpack.c.l.b16 %v531
    %v1445 = vunpack.c.h.b16 %v531
    %v1446 = vunpack.c.l.b16 %v532
    %v1447 = vunpack.c.h.b16 %v532
    %v1448 = vunpack.c.l.b16 %v533
    %v1449 = vunpack.c.l.b16 %v534
    %v1450 = vunpack.c.h.b16 %v534
    %v1451 = vunpack.c.l.b16 %v535
    %v1452 = vunpack.c.h.b16 %v535
    %v1453 = vunpack.c.l.b16 %v536
    %v1454 = vunpack.c.l.b16 %v537
    %v1455 = vunpack.c.h.b16 %v537
    %v1456 = vunpack.c.l.b16 %v538
    %v1457 = vunpack.c.h.b16 %v538
    %v1458 = vunpack.c.l.b16 %v539
    %v1459 = vunpack.c.l.b16 %v540
    %v1460 = vunpack.c.h.b16 %v540
    %v1461 = vunpack.c.l.b16 %v541
    %v1462 = vunpack.c.h.b16 %v541
    %v1463 = vunpack.c.l.b16 %v542
    %v1464 = vunpack.c.l.b16 %v543
    %v1465 = vunpack.c.h.b16 %v543
    %v1466 = vunpack.c.l.b16 %v544
    %v1467 = vunpack.c.h.b16 %v544
    %v1468 = vunpack.c.l.b16 %v545
    %v1469 = vpack.c.b16 %v914, %v909
    %v1470 = vpack.c.b16 %v915, %v910
    %v1471 = vpack.c.b16 %v916, %v911
    %v1472 = vpack.c.b16 %v917, %v912
    %v1473 = vpack.c.b16 %v918, %v913
    %v1474 = vpack.c.b16 %v924, %v919
    %v1475 = vpack.c.b16 %v925, %v920
    %v1476 = vpack.c.b16 %v926, %v921
    %v1477 = vpack.c.b16 %v927, %v922
    %v1478 = vpack.c.b16 %v928, %v923
    %v1479 = vpack.c.b16 %v934, %v929
    %v1480 = vpack.c.b16 %v935, %v930
    %v1481 = vpack.c.b16 %v936, %v931
    %v1482 = vpack.c.b16 %v937, %v932
    %v1483 = vpack.c.b16 %v938, %v933
    %v1484 = vpack.c.b16 %v944, %v939
    %v1485 = vpack.c.b16 %v945, %v940
    %v1486 = vpack.c.b16 %v946, %v941
    %v1487 = vpack.c.b16 %v947, %v942
    %v1488 = vpack.c.b16 %v948, %v943
    %v1489 = vpack.c.b16 %v954, %v949
    %v1490 = vpack.c.b16 %v955, %v950
    %v1491 = vpack.c.b16 %v956, %v951
    %v1492 = vpack.c.b16 %v957, %v952
    %v1493 = vpack.c.b16 %v958, %v953
    %v1494 = vpack.c.b16 %v964, %v959
    %v1495 = vpack.c.b16 %v965, %v960
    %v1496 = vpack.c.b16 %v966, %v961
    %v1497 = vpack.c.b16 %v967, %v962
    %v1498 = vpack.c.b16 %v968, %v963
    %v1499 = vpack.c.b16 %v974, %v969
    %v1500 = vpack.c.b16 %v975, %v970
    %v1501 = vpack.c.b16 %v976, %v971
    %v1502 = vpack.c.b16 %v977, %v972
    %v1503 = vpack.c.b16 %v978, %v973
    %v1504 = vpack.c.b16 %v984, %v979
    %v1505 = vpack.c.b16 %v985, %v980
    %v1506 = vpack.c.b16 %v986, %v981
    %v1507 = vpack.c.b16 %v987, %v982
    %v1508 = vpack.c.b16 %v988, %v983
    %v1509 = vpack.c.b16 %v994, %v989
    %v1510 = vpack.c.b16 %v995, %v990
    %v1511 = vpack.c.b16 %v996, %v991
    %v1512 = vpack.c.b16 %v997, %v992
    %v1513 = vpack.c.b16 %v998, %v993
    %v1514 = vpack.c.b16 %v1004, %v999
    %v1515 = vpack.c.b16 %v1005, %v1000
    %v1516 = vpack.c.b16 %v1006, %v1001
    %v1517 = vpack.c.b16 %v1007, %v1002
    %v1518 = vpack.c.b16 %v1008, %v1003
    %v1519 = vpack.c.b16 %v1014, %v1009
    %v1520 = vpack.c.b16 %v1015, %v1010
    %v1521 = vpack.c.b16 %v1016, %v1011
    %v1522 = vpack.c.b16 %v1017, %v1012
    %v1523 = vpack.c.b16 %v1018, %v1013
    %v1524 = vpack.c.b16 %v1024, %v1019
    %v1525 = vpack.c.b16 %v1025, %v1020
    %v1526 = vpack.c.b16 %v1026, %v1021
    %v1527 = vpack.c.b16 %v1027, %v1022
    %v1528 = vpack.c.b16 %v1028, %v1023
    %v1529 = vpack.c.b16 %v1034, %v1029
    %v1530 = vpack.c.b16 %v1035, %v1030
    %v1531 = vpack.c.b16 %v1036, %v1031
    %v1532 = vpack.c.b16 %v1037, %v1032
    %v1533 = vpack.c.b16 %v1038, %v1033
    %v1534 = vpack.c.b16 %v1044, %v1039
    %v1535 = vpack.c.b16 %v1045, %v1040
    %v1536 = vpack.c.b16 %v1046, %v1041
    %v1537 = vpack.c.b16 %v1047, %v1042
    %v1538 = vpack.c.b16 %v1048, %v1043
    %v1539 = vpack.c.b16 %v1054, %v1049
    %v1540 = vpack.c.b16 %v1055, %v1050
    %v1541 = vpack.c.b16 %v1056, %v1051
    %v1542 = vpack.c.b16 %v1057, %v1052
    %v1543 = vpack.c.b16 %v1058, %v1053
    %v1544 = vpack.c.b16 %v1064, %v1059
    %v1545 = vpack.c.b16 %v1065, %v1060
    %v1546 = vpack.c.b16 %v1066, %v1061
    %v1547 = vpack.c.b16 %v1067, %v1062
    %v1548 = vpack.c.b16 %v1068, %v1063
    %v1549 = vpack.c.b16 %v1074, %v1069
    %v1550 = vpack.c.b16 %v1075, %v1070
    %v1551 = vpack.c.b16 %v1076, %v1071
    %v1552 = vpack.c.b16 %v1077, %v1072
    %v1553 = vpack.c.b16 %v1078, %v1073
    %v1554 = vpack.c.b16 %v1084, %v1079
    %v1555 = vpack.c.b16 %v1085, %v1080
    %v1556 = vpack.c.b16 %v1086, %v1081
    %v1557 = vpack.c.b16 %v1087, %v1082
    %v1558 = vpack.c.b16 %v1088, %v1083
    %v1559 = vpack.c.b16 %v1094, %v1089
    %v1560 = vpack.c.b16 %v1095, %v1090
    %v1561 = vpack.c.b16 %v1096, %v1091
    %v1562 = vpack.c.b16 %v1097, %v1092
    %v1563 = vpack.c.b16 %v1098, %v1093
    %v1564 = vpack.c.b16 %v1104, %v1099
    %v1565 = vpack.c.b16 %v1105, %v1100
    %v1566 = vpack.c.b16 %v1106, %v1101
    %v1567 = vpack.c.b16 %v1107, %v1102
    %v1568 = vpack.c.b16 %v1108, %v1103
    %v1569 = vpack.c.b16 %v1114, %v1109
    %v1570 = vpack.c.b16 %v1115, %v1110
    %v1571 = vpack.c.b16 %v1116, %v1111
    %v1572 = vpack.c.b16 %v1117, %v1112
    %v1573 = vpack.c.b16 %v1118, %v1113
    %v1574 = vpack.c.b16 %v1124, %v1119
    %v1575 = vpack.c.b16 %v1125, %v1120
    %v1576 = vpack.c.b16 %v1126, %v1121
    %v1577 = vpack.c.b16 %v1127, %v1122
    %v1578 = vpack.c.b16 %v1128, %v1123
    %v1579 = vpack.c.b16 %v1134, %v1129
    %v1580 = vpack.c.b16 %v1135, %v1130
    %v1581 = vpack.c.b16 %v1136, %v1131
    %v1582 = vpack.c.b16 %v1137, %v1132
    %v1583 = vpack.c.b16 %v1138, %v1133
    %v1584 = vpack.c.b16 %v1144, %v1139
    %v1585 = vpack.c.b16 %v1145, %v1140
    %v1586 = vpack.c.b16 %v1146, %v1141
    %v1587 = vpack.c.b16 %v1147, %v1142
    %v1588 = vpack.c.b16 %v1148, %v1143
    %v1589 = vpack.c.b16 %v1154, %v1149
    %v1590 = vpack.c.b16 %v1155, %v1150
    %v1591 = vpack.c.b16 %v1156, %v1151
    %v1592 = vpack.c.b16 %v1157, %v1152
    %v1593 = vpack.c.b16 %v1158, %v1153
    %v1594 = vpack.c.b16 %v1164, %v1159
    %v1595 = vpack.c.b16 %v1165, %v1160
    %v1596 = vpack.c.b16 %v1166, %v1161
    %v1597 = vpack.c.b16 %v1167, %v1162
    %v1598 = vpack.c.b16 %v1168, %v1163
    %v1599 = vpack.c.b16 %v1174, %v1169
    %v1600 = vpack.c.b16 %v1175, %v1170
    %v1601 = vpack.c.b16 %v1176, %v1171
    %v1602 = vpack.c.b16 %v1177, %v1172
    %v1603 = vpack.c.b16 %v1178, %v1173
    %v1604 = vpack.c.b16 %v1184, %v1179
    %v1605 = vpack.c.b16 %v1185, %v1180
    %v1606 = vpack.c.b16 %v1186, %v1181
    %v1607 = vpack.c.b16 %v1187, %v1182
    %v1608 = vpack.c.b16 %v1188, %v1183
    %v1609 = vpack.c.b16 %v1194, %v1189
    %v1610 = vpack.c.b16 %v1195, %v1190
    %v1611 = vpack.c.b16 %v1196, %v1191
    %v1612 = vpack.c.b16 %v1197, %v1192
    %v1613 = vpack.c.b16 %v1198, %v1193
    %v1614 = vpack.c.b16 %v1204, %v1199
    %v1615 = vpack.c.b16 %v1205, %v1200
    %v1616 = vpack.c.b16 %v1206, %v1201
    %v1617 = vpack.c.b16 %v1207, %v1202
    %v1618 = vpack.c.b16 %v1208, %v1203
    %v1619 = vpack.c.b16 %v1214, %v1209
    %v1620 = vpack.c.b16 %v1215, %v1210
    %v1621 = vpack.c.b16 %v1216, %v1211
    %v1622 = vpack.c.b16 %v1217, %v1212
    %v1623 = vpack.c.b16 %v1218, %v1213
    %v1624 = vpack.c.b16 %v1224, %v1219
    %v1625 = vpack.c.b16 %v1225, %v1220
    %v1626 = vpack.c.b16 %v1226, %v1221
    %v1627 = vpack.c.b16 %v1227, %v1222
    %v1628 = vpack.c.b16 %v1228, %v1223
    %v1629 = vpack.c.b16 %v1234, %v1229
    %v1630 = vpack.c.b16 %v1235, %v1230
    %v1631 = vpack.c.b16 %v1236, %v1231
    %v1632 = vpack.c.b16 %v1237, %v1232
    %v1633 = vpack.c.b16 %v1238, %v1233
    %v1634 = vpack.c.b16 %v1244, %v1239
    %v1635 = vpack.c.b16 %v1245, %v1240
    %v1636 = vpack.c.b16 %v1246, %v1241
    %v1637 = vpack.c.b16 %v1247, %v1242
    %v1638 = vpack.c.b16 %v1248, %v1243
    %v1639 = vpack.c.b16 %v1254, %v1249
    %v1640 = vpack.c.b16 %v1255, %v1250
    %v1641 = vpack.c.b16 %v1256, %v1251
    %v1642 = vpack.c.b16 %v1257, %v1252
    %v1643 = vpack.c.b16 %v1258, %v1253
    %v1644 = vpack.c.b16 %v1264, %v1259
    %v1645 = vpack.c.b16 %v1265, %v1260
    %v1646 = vpack.c.b16 %v1266, %v1261
    %v1647 = vpack.c.b16 %v1267, %v1262
    %v1648 = vpack.c.b16 %v1268, %v1263
    %v1649 = vpack.c.b16 %v1274, %v1269
    %v1650 = vpack.c.b16 %v1275, %v1270
    %v1651 = vpack.c.b16 %v1276, %v1271
    %v1652 = vpack.c.b16 %v1277, %v1272
    %v1653 = vpack.c.b16 %v1278, %v1273
    %v1654 = vpack.c.b16 %v1284, %v1279
    %v1655 = vpack.c.b16 %v1285, %v1280
    %v1656 = vpack.c.b16 %v1286, %v1281
    %v1657 = vpack.c.b16 %v1287, %v1282
    %v1658 = vpack.c.b16 %v1288, %v1283
    %v1659 = vpack.c.b16 %v1294, %v1289
    %v1660 = vpack.c.b16 %v1295, %v1290
    %v1661 = vpack.c.b16 %v1296, %v1291
    %v1662 = vpack.c.b16 %v1297, %v1292
    %v1663 = vpack.c.b16 %v1298, %v1293
    %v1664 = vpack.c.b16 %v1304, %v1299
    %v1665 = vpack.c.b16 %v1305, %v1300
    %v1666 = vpack.c.b16 %v1306, %v1301
    %v1667 = vpack.c.b16 %v1307, %v1302
    %v1668 = vpack.c.b16 %v1308, %v1303
    %v1669 = vpack.c.b16 %v1314, %v1309
    %v1670 = vpack.c.b16 %v1315, %v1310
    %v1671 = vpack.c.b16 %v1316, %v1311
    %v1672 = vpack.c.b16 %v1317, %v1312
    %v1673 = vpack.c.b16 %v1318, %v1313
    %v1674 = vpack.c.b16 %v1324, %v1319
    %v1675 = vpack.c.b16 %v1325, %v1320
    %v1676 = vpack.c.b16 %v1326, %v1321
    %v1677 = vpack.c.b16 %v1327, %v1322
    %v1678 = vpack.c.b16 %v1328, %v1323
    %v1679 = vpack.c.b16 %v1334, %v1329
    %v1680 = vpack.c.b16 %v1335, %v1330
    %v1681 = vpack.c.b16 %v1336, %v1331
    %v1682 = vpack.c.b16 %v1337, %v1332
    %v1683 = vpack.c.b16 %v1338, %v1333
    %v1684 = vpack.c.b16 %v1344, %v1339
    %v1685 = vpack.c.b16 %v1345, %v1340
    %v1686 = vpack.c.b16 %v1346, %v1341
    %v1687 = vpack.c.b16 %v1347, %v1342
    %v1688 = vpack.c.b16 %v1348, %v1343
    %v1689 = vpack.c.b16 %v1354, %v1349
    %v1690 = vpack.c.b16 %v1355, %v1350
    %v1691 = vpack.c.b16 %v1356, %v1351
    %v1692 = vpack.c.b16 %v1357, %v1352
    %v1693 = vpack.c.b16 %v1358, %v1353
    %v1694 = vpack.c.b16 %v1364, %v1359
    %v1695 = vpack.c.b16 %v1365, %v1360
    %v1696 = vpack.c.b16 %v1366, %v1361
    %v1697 = vpack.c.b16 %v1367, %v1362
    %v1698 = vpack.c.b16 %v1368, %v1363
    %v1699 = vpack.c.b16 %v1374, %v1369
    %v1700 = vpack.c.b16 %v1375, %v1370
    %v1701 = vpack.c.b16 %v1376, %v1371
    %v1702 = vpack.c.b16 %v1377, %v1372
    %v1703 = vpack.c.b16 %v1378, %v1373
    %v1704 = vpack.c.b16 %v1384, %v1379
    %v1705 = vpack.c.b16 %v1385, %v1380
    %v1706 = vpack.c.b16 %v1386, %v1381
    %v1707 = vpack.c.b16 %v1387, %v1382
    %v1708 = vpack.c.b16 %v1388, %v1383
    %v1709 = vpack.c.b16 %v1394, %v1389
    %v1710 = vpack.c.b16 %v1395, %v1390
    %v1711 = vpack.c.b16 %v1396, %v1391
    %v1712 = vpack.c.b16 %v1397, %v1392
    %v1713 = vpack.c.b16 %v1398, %v1393
    %v1714 = vpack.c.b16 %v1404, %v1399
    %v1715 = vpack.c.b16 %v1405, %v1400
    %v1716 = vpack.c.b16 %v1406, %v1401
    %v1717 = vpack.c.b16 %v1407, %v1402
    %v1718 = vpack.c.b16 %v1408, %v1403
    %v1719 = vpack.c.b16 %v1414, %v1409
    %v1720 = vpack.c.b16 %v1415, %v1410
    %v1721 = vpack.c.b16 %v1416, %v1411
    %v1722 = vpack.c.b16 %v1417, %v1412
    %v1723 = vpack.c.b16 %v1418, %v1413
    %v1724 = vpack.c.b16 %v1424, %v1419
    %v1725 = vpack.c.b16 %v1425, %v1420
    %v1726 = vpack.c.b16 %v1426, %v1421
    %v1727 = vpack.c.b16 %v1427, %v1422
    %v1728 = vpack.c.b16 %v1428, %v1423
    %v1729 = vpack.c.b16 %v1434, %v1429
    %v1730 = vpack.c.b16 %v1435, %v1430
    %v1731 = vpack.c.b16 %v1436, %v1431
    %v1732 = vpack.c.b16 %v1437, %v1432
    %v1733 = vpack.c.b16 %v1438, %v1433
    %v1734 = vpack.c.b16 %v1444, %v1439
    %v1735 = vpack.c.b16 %v1445, %v1440
    %v1736 = vpack.c.b16 %v1446, %v1441
    %v1737 = vpack.c.b16 %v1447, %v1442
    %v1738 = vpack.c.b16 %v1448, %v1443
    %v1739 = vpack.c.b16 %v1454, %v1449
    %v1740 = vpack.c.b16 %v1455, %v1450
    %v1741 = vpack.c.b16 %v1456, %v1451
    %v1742 = vpack.c.b16 %v1457, %v1452
    %v1743 = vpack.c.b16 %v1458, %v1453
    %v1744 = vpack.c.b16 %v1464, %v1459
    %v1745 = vpack.c.b16 %v1465, %v1460
    %v1746 = vpack.c.b16 %v1466, %v1461
    %v1747 = vpack.c.b16 %v1467, %v1462
    %v1748 = vpack.c.b16 %v1468, %v1463
    %2029 = vmatprep.subr.bf16.mxu0 %v1470
    %2030 = vmatpush1.bf16.msra.mxu0 %v1469
    %2031 = vmatprep.subr.bf16.mxu0 %v1475
    %2032 = vmatpush1.bf16.msra.mxu0 %v1474
    %2033 = vmatprep.subr.bf16.mxu0 %v1480
    %2034 = vmatpush1.bf16.msra.mxu0 %v1479
    %2035 = vmatprep.subr.bf16.mxu0 %v1485
    %2036 = vmatpush1.bf16.msra.mxu0 %v1484
    %2037 = vmatprep.subr.bf16.mxu0 %v1490
    %2038 = vmatpush1.bf16.msra.mxu0 %v1489
    %2039 = vmatprep.subr.bf16.mxu0 %v1495
    %2040 = vmatpush1.bf16.msra.mxu0 %v1494
    %2041 = vmatprep.subr.bf16.mxu0 %v1500
    %2042 = vmatpush1.bf16.msra.mxu0 %v1499
    %2043 = vmatprep.subr.bf16.mxu0 %v1505
    %2044 = vmatpush1.bf16.msra.mxu0 %v1504
    %2045 = vmatprep.subr.bf16.mxu0 %v1510
    %2046 = vmatpush1.bf16.msra.mxu0 %v1509
    %2047 = vmatprep.subr.bf16.mxu0 %v1515
    %2048 = vmatpush1.bf16.msra.mxu0 %v1514
    %2049 = vmatprep.subr.bf16.mxu0 %v1520
    %2050 = vmatpush1.bf16.msra.mxu0 %v1519
    %2051 = vmatprep.subr.bf16.mxu0 %v1525
    %2052 = vmatpush1.bf16.msra.mxu0 %v1524
    %2053 = vmatprep.subr.bf16.mxu0 %v1530
    %2054 = vmatpush1.bf16.msra.mxu0 %v1529
    %2055 = vmatprep.subr.bf16.mxu0 %v1535
    %2056 = vmatpush1.bf16.msra.mxu0 %v1534
    %2057 = vmatprep.subr.bf16.mxu0 %v1540
    %2058 = vmatpush1.bf16.msra.mxu0 %v1539
    %2059 = vmatprep.subr.bf16.mxu0 %v1545
    %2060 = vmatpush1.bf16.msra.mxu0 %v1544
    %2061 = vmatprep.mubr.bf16.mxu0 %v204
    %2062 = vmatmul.mubr.bf16.gmra.mrb[0].mxu0 %v203
    %v2063 = vpop.f32.mrb[0].mxu0
    %v2064 = vadd.f32 %v551, %v2063
    %v2065 = vpop.f32.mrb[0].mxu0
    %v2066 = vadd.f32 %v555, %v2065
    %v2067 = vpop.f32.mrb[0].mxu0
    %v2068 = vpop.f32.mrb[0].mxu0
    %2069 = vdwg.mxu0
    %2070 = vmatprep.subr.bf16.mxu0 %v1550
    %2071 = vmatpush1.bf16.msra.mxu0 %v1549
    %2072 = vmatprep.subr.bf16.mxu0 %v1555
    %2073 = vmatpush1.bf16.msra.mxu0 %v1554
    %2074 = vmatprep.subr.bf16.mxu0 %v1560
    %2075 = vmatpush1.bf16.msra.mxu0 %v1559
    %2076 = vmatprep.subr.bf16.mxu0 %v1565
    %2077 = vmatpush1.bf16.msra.mxu0 %v1564
    %2078 = vmatprep.subr.bf16.mxu0 %v1570
    %2079 = vmatpush1.bf16.msra.mxu0 %v1569
    %2080 = vmatprep.subr.bf16.mxu0 %v1575
    %2081 = vmatpush1.bf16.msra.mxu0 %v1574
    %2082 = vmatprep.subr.bf16.mxu0 %v1580
    %2083 = vmatpush1.bf16.msra.mxu0 %v1579
    %2084 = vmatprep.subr.bf16.mxu0 %v1585
    %2085 = vmatpush1.bf16.msra.mxu0 %v1584
    %2086 = vmatprep.subr.bf16.mxu0 %v1590
    %2087 = vmatpush1.bf16.msra.mxu0 %v1589
    %2088 = vmatprep.subr.bf16.mxu0 %v1595
    %2089 = vmatpush1.bf16.msra.mxu0 %v1594
    %2090 = vmatprep.subr.bf16.mxu0 %v1600
    %2091 = vmatpush1.bf16.msra.mxu0 %v1599
    %2092 = vmatprep.subr.bf16.mxu0 %v1605
    %2093 = vmatpush1.bf16.msra.mxu0 %v1604
    %2094 = vmatprep.subr.bf16.mxu0 %v1610
    %2095 = vmatpush1.bf16.msra.mxu0 %v1609
    %2096 = vmatprep.subr.bf16.mxu0 %v1615
    %2097 = vmatpush1.bf16.msra.mxu0 %v1614
    %2098 = vmatprep.subr.bf16.mxu0 %v1620
    %2099 = vmatpush1.bf16.msra.mxu0 %v1619
    %2100 = vmatprep.subr.bf16.mxu0 %v1625
    %2101 = vmatpush1.bf16.msra.mxu0 %v1624
    %2102 = vmatprep.mubr.bf16.mxu0 %v206
    %2103 = vmatmul.mubr.bf16.gmra.mrb[0].mxu0 %v205
    %v2104 = vpop.f32.mrb[0].mxu0
    %v2105 = vadd.f32 %v2064, %v2104
    %v2106 = vpop.f32.mrb[0].mxu0
    %v2107 = vadd.f32 %v2066, %v2106
    %v2108 = vpop.f32.mrb[0].mxu0
    %v2109 = vpop.f32.mrb[0].mxu0
    %2110 = vdwg.mxu0
    %2111 = vmatprep.subr.bf16.mxu0 %v1630
    %2112 = vmatpush1.bf16.msra.mxu0 %v1629
    %2113 = vmatprep.subr.bf16.mxu0 %v1635
    %2114 = vmatpush1.bf16.msra.mxu0 %v1634
    %2115 = vmatprep.subr.bf16.mxu0 %v1640
    %2116 = vmatpush1.bf16.msra.mxu0 %v1639
    %2117 = vmatprep.subr.bf16.mxu0 %v1645
    %2118 = vmatpush1.bf16.msra.mxu0 %v1644
    %2119 = vmatprep.subr.bf16.mxu0 %v1650
    %2120 = vmatpush1.bf16.msra.mxu0 %v1649
    %2121 = vmatprep.subr.bf16.mxu0 %v1655
    %2122 = vmatpush1.bf16.msra.mxu0 %v1654
    %2123 = vmatprep.subr.bf16.mxu0 %v1660
    %2124 = vmatpush1.bf16.msra.mxu0 %v1659
    %2125 = vmatprep.subr.bf16.mxu0 %v1665
    %2126 = vmatpush1.bf16.msra.mxu0 %v1664
    %2127 = vmatprep.subr.bf16.mxu0 %v1670
    %2128 = vmatpush1.bf16.msra.mxu0 %v1669
    %2129 = vmatprep.subr.bf16.mxu0 %v1675
    %2130 = vmatpush1.bf16.msra.mxu0 %v1674
    %2131 = vmatprep.subr.bf16.mxu0 %v1680
    %2132 = vmatpush1.bf16.msra.mxu0 %v1679
    %2133 = vmatprep.subr.bf16.mxu0 %v1685
    %2134 = vmatpush1.bf16.msra.mxu0 %v1684
    %2135 = vmatprep.subr.bf16.mxu0 %v1690
    %2136 = vmatpush1.bf16.msra.mxu0 %v1689
    %2137 = vmatprep.subr.bf16.mxu0 %v1695
    %2138 = vmatpush1.bf16.msra.mxu0 %v1694
    %2139 = vmatprep.subr.bf16.mxu0 %v1700
    %2140 = vmatpush1.bf16.msra.mxu0 %v1699
    %2141 = vmatprep.subr.bf16.mxu0 %v1705
    %2142 = vmatpush1.bf16.msra.mxu0 %v1704
    %2143 = vmatprep.mubr.bf16.mxu0 %v208
    %2144 = vmatmul.mubr.bf16.gmra.mrb[0].mxu0 %v207
    %v2145 = vpop.f32.mrb[0].mxu0
    %v2146 = vadd.f32 %v2105, %v2145
    %v2147 = vpop.f32.mrb[0].mxu0
    %v2148 = vadd.f32 %v2107, %v2147
    %v2149 = vpop.f32.mrb[0].mxu0
    %v2150 = vpop.f32.mrb[0].mxu0
    %2151 = vdwg.mxu0
    %2152 = vmatprep.subr.bf16.mxu0 %v1710
    %2153 = vmatpush1.bf16.msra.mxu0 %v1709
    %2154 = vmatprep.subr.bf16.mxu0 %v1715
    %2155 = vmatpush1.bf16.msra.mxu0 %v1714
    %2156 = vmatprep.subr.bf16.mxu0 %v1720
    %2157 = vmatpush1.bf16.msra.mxu0 %v1719
    %2158 = vmatprep.subr.bf16.mxu0 %v1725
    %2159 = vmatpush1.bf16.msra.mxu0 %v1724
    %2160 = vmatprep.subr.bf16.mxu0 %v1730
    %2161 = vmatpush1.bf16.msra.mxu0 %v1729
    %2162 = vmatprep.subr.bf16.mxu0 %v1735
    %2163 = vmatpush1.bf16.msra.mxu0 %v1734
    %2164 = vmatprep.subr.bf16.mxu0 %v1740
    %2165 = vmatpush1.bf16.msra.mxu0 %v1739
    %2166 = vmatprep.subr.bf16.mxu0 %v1745
    %2167 = vmatpush1.bf16.msra.mxu0 %v1744
    %2168 = vmatprep.subr.bf16.mxu0 0
    %2169 = vmatpush1.bf16.msra.mxu0 0
    %2170 = vmatprep.subr.bf16.mxu0 0
    %2171 = vmatpush1.bf16.msra.mxu0 0
    %2172 = vmatprep.subr.bf16.mxu0 0
    %2173 = vmatpush1.bf16.msra.mxu0 0
    %2174 = vmatprep.subr.bf16.mxu0 0
    %2175 = vmatpush1.bf16.msra.mxu0 0
    %2176 = vmatprep.subr.bf16.mxu0 0
    %2177 = vmatpush1.bf16.msra.mxu0 0
    %2178 = vmatprep.subr.bf16.mxu0 0
    %2179 = vmatpush1.bf16.msra.mxu0 0
    %2180 = vmatprep.subr.bf16.mxu0 0
    %2181 = vmatpush1.bf16.msra.mxu0 0
    %2182 = vmatprep.subr.bf16.mxu0 0
    %2183 = vmatpush1.bf16.msra.mxu0 0
    %2184 = vmatprep.mubr.bf16.mxu0 0
    %2185 = vmatmul.mubr.bf16.gmra.mrb[0].mxu0 %v209
    %v2186 = vpop.f32.mrb[0].mxu0
    %v2187 = vadd.f32 %v2146, %v2186
    %v2188 = vpop.f32.mrb[0].mxu0
    %v2189 = vadd.f32 %v2148, %v2188
    %v2190 = vpop.f32.mrb[0].mxu0
    %v2191 = vpop.f32.mrb[0].mxu0
    %2192 = vdwg.mxu0
    %2193 = vmatprep.subr.bf16.mxu0 %v1472
    %2194 = vmatpush1.bf16.msra.mxu0 %v1471
    %2195 = vmatprep.subr.bf16.mxu0 %v1477
    %2196 = vmatpush1.bf16.msra.mxu0 %v1476
    %2197 = vmatprep.subr.bf16.mxu0 %v1482
    %2198 = vmatpush1.bf16.msra.mxu0 %v1481
    %2199 = vmatprep.subr.bf16.mxu0 %v1487
    %2200 = vmatpush1.bf16.msra.mxu0 %v1486
    %2201 = vmatprep.subr.bf16.mxu0 %v1492
    %2202 = vmatpush1.bf16.msra.mxu0 %v1491
    %2203 = vmatprep.subr.bf16.mxu0 %v1497
    %2204 = vmatpush1.bf16.msra.mxu0 %v1496
    %2205 = vmatprep.subr.bf16.mxu0 %v1502
    %2206 = vmatpush1.bf16.msra.mxu0 %v1501
    %2207 = vmatprep.subr.bf16.mxu0 %v1507
    %2208 = vmatpush1.bf16.msra.mxu0 %v1506
    %2209 = vmatprep.subr.bf16.mxu0 %v1512
    %2210 = vmatpush1.bf16.msra.mxu0 %v1511
    %2211 = vmatprep.subr.bf16.mxu0 %v1517
    %2212 = vmatpush1.bf16.msra.mxu0 %v1516
    %2213 = vmatprep.subr.bf16.mxu0 %v1522
    %2214 = vmatpush1.bf16.msra.mxu0 %v1521
    %2215 = vmatprep.subr.bf16.mxu0 %v1527
    %2216 = vmatpush1.bf16.msra.mxu0 %v1526
    %2217 = vmatprep.subr.bf16.mxu0 %v1532
    %2218 = vmatpush1.bf16.msra.mxu0 %v1531
    %2219 = vmatprep.subr.bf16.mxu0 %v1537
    %2220 = vmatpush1.bf16.msra.mxu0 %v1536
    %2221 = vmatprep.subr.bf16.mxu0 %v1542
    %2222 = vmatpush1.bf16.msra.mxu0 %v1541
    %2223 = vmatprep.subr.bf16.mxu0 %v1547
    %2224 = vmatpush1.bf16.msra.mxu0 %v1546
    %2225 = vmatprep.mubr.bf16.mxu0 %v204
    %2226 = vmatmul.mubr.bf16.gmra.mrb[0].mxu0 %v203
    %v2227 = vpop.f32.mrb[0].mxu0
    %v2228 = vadd.f32 %v559, %v2227
    %v2229 = vpop.f32.mrb[0].mxu0
    %v2230 = vadd.f32 %v563, %v2229
    %v2231 = vpop.f32.mrb[0].mxu0
    %v2232 = vpop.f32.mrb[0].mxu0
    %2233 = vdwg.mxu0
    %2234 = vmatprep.subr.bf16.mxu0 %v1552
    %2235 = vmatpush1.bf16.msra.mxu0 %v1551
    %2236 = vmatprep.subr.bf16.mxu0 %v1557
    %2237 = vmatpush1.bf16.msra.mxu0 %v1556
    %2238 = vmatprep.subr.bf16.mxu0 %v1562
    %2239 = vmatpush1.bf16.msra.mxu0 %v1561
    %2240 = vmatprep.subr.bf16.mxu0 %v1567
    %2241 = vmatpush1.bf16.msra.mxu0 %v1566
    %2242 = vmatprep.subr.bf16.mxu0 %v1572
    %2243 = vmatpush1.bf16.msra.mxu0 %v1571
    %2244 = vmatprep.subr.bf16.mxu0 %v1577
    %2245 = vmatpush1.bf16.msra.mxu0 %v1576
    %2246 = vmatprep.subr.bf16.mxu0 %v1582
    %2247 = vmatpush1.bf16.msra.mxu0 %v1581
    %2248 = vmatprep.subr.bf16.mxu0 %v1587
    %2249 = vmatpush1.bf16.msra.mxu0 %v1586
    %2250 = vmatprep.subr.bf16.mxu0 %v1592
    %2251 = vmatpush1.bf16.msra.mxu0 %v1591
    %2252 = vmatprep.subr.bf16.mxu0 %v1597
    %2253 = vmatpush1.bf16.msra.mxu0 %v1596
    %2254 = vmatprep.subr.bf16.mxu0 %v1602
    %2255 = vmatpush1.bf16.msra.mxu0 %v1601
    %2256 = vmatprep.subr.bf16.mxu0 %v1607
    %2257 = vmatpush1.bf16.msra.mxu0 %v1606
    %2258 = vmatprep.subr.bf16.mxu0 %v1612
    %2259 = vmatpush1.bf16.msra.mxu0 %v1611
    %2260 = vmatprep.subr.bf16.mxu0 %v1617
    %2261 = vmatpush1.bf16.msra.mxu0 %v1616
    %2262 = vmatprep.subr.bf16.mxu0 %v1622
    %2263 = vmatpush1.bf16.msra.mxu0 %v1621
    %2264 = vmatprep.subr.bf16.mxu0 %v1627
    %2265 = vmatpush1.bf16.msra.mxu0 %v1626
    %2266 = vmatprep.mubr.bf16.mxu0 %v206
    %2267 = vmatmul.mubr.bf16.gmra.mrb[0].mxu0 %v205
    %v2268 = vpop.f32.mrb[0].mxu0
    %v2269 = vadd.f32 %v2228, %v2268
    %v2270 = vpop.f32.mrb[0].mxu0
    %v2271 = vadd.f32 %v2230, %v2270
    %v2272 = vpop.f32.mrb[0].mxu0
    %v2273 = vpop.f32.mrb[0].mxu0
    %2274 = vdwg.mxu0
    %2275 = vmatprep.subr.bf16.mxu0 %v1632
    %2276 = vmatpush1.bf16.msra.mxu0 %v1631
    %2277 = vmatprep.subr.bf16.mxu0 %v1637
    %2278 = vmatpush1.bf16.msra.mxu0 %v1636
    %2279 = vmatprep.subr.bf16.mxu0 %v1642
    %2280 = vmatpush1.bf16.msra.mxu0 %v1641
    %2281 = vmatprep.subr.bf16.mxu0 %v1647
    %2282 = vmatpush1.bf16.msra.mxu0 %v1646
    %2283 = vmatprep.subr.bf16.mxu0 %v1652
    %2284 = vmatpush1.bf16.msra.mxu0 %v1651
    %2285 = vmatprep.subr.bf16.mxu0 %v1657
    %2286 = vmatpush1.bf16.msra.mxu0 %v1656
    %2287 = vmatprep.subr.bf16.mxu0 %v1662
    %2288 = vmatpush1.bf16.msra.mxu0 %v1661
    %2289 = vmatprep.subr.bf16.mxu0 %v1667
    %2290 = vmatpush1.bf16.msra.mxu0 %v1666
    %2291 = vmatprep.subr.bf16.mxu0 %v1672
    %2292 = vmatpush1.bf16.msra.mxu0 %v1671
    %2293 = vmatprep.subr.bf16.mxu0 %v1677
    %2294 = vmatpush1.bf16.msra.mxu0 %v1676
    %2295 = vmatprep.subr.bf16.mxu0 %v1682
    %2296 = vmatpush1.bf16.msra.mxu0 %v1681
    %2297 = vmatprep.subr.bf16.mxu0 %v1687
    %2298 = vmatpush1.bf16.msra.mxu0 %v1686
    %2299 = vmatprep.subr.bf16.mxu0 %v1692
    %2300 = vmatpush1.bf16.msra.mxu0 %v1691
    %2301 = vmatprep.subr.bf16.mxu0 %v1697
    %2302 = vmatpush1.bf16.msra.mxu0 %v1696
    %2303 = vmatprep.subr.bf16.mxu0 %v1702
    %2304 = vmatpush1.bf16.msra.mxu0 %v1701
    %2305 = vmatprep.subr.bf16.mxu0 %v1707
    %2306 = vmatpush1.bf16.msra.mxu0 %v1706
    %2307 = vmatprep.mubr.bf16.mxu0 %v208
    %2308 = vmatmul.mubr.bf16.gmra.mrb[0].mxu0 %v207
    %v2309 = vpop.f32.mrb[0].mxu0
    %v2310 = vadd.f32 %v2269, %v2309
    %v2311 = vpop.f32.mrb[0].mxu0
    %v2312 = vadd.f32 %v2271, %v2311
    %v2313 = vpop.f32.mrb[0].mxu0
    %v2314 = vpop.f32.mrb[0].mxu0
    %2315 = vdwg.mxu0
    %2316 = vmatprep.subr.bf16.mxu0 %v1712
    %2317 = vmatpush1.bf16.msra.mxu0 %v1711
    %2318 = vmatprep.subr.bf16.mxu0 %v1717
    %2319 = vmatpush1.bf16.msra.mxu0 %v1716
    %2320 = vmatprep.subr.bf16.mxu0 %v1722
    %2321 = vmatpush1.bf16.msra.mxu0 %v1721
    %2322 = vmatprep.subr.bf16.mxu0 %v1727
    %2323 = vmatpush1.bf16.msra.mxu0 %v1726
    %2324 = vmatprep.subr.bf16.mxu0 %v1732
    %2325 = vmatpush1.bf16.msra.mxu0 %v1731
    %2326 = vmatprep.subr.bf16.mxu0 %v1737
    %2327 = vmatpush1.bf16.msra.mxu0 %v1736
    %2328 = vmatprep.subr.bf16.mxu0 %v1742
    %2329 = vmatpush1.bf16.msra.mxu0 %v1741
    %2330 = vmatprep.subr.bf16.mxu0 %v1747
    %2331 = vmatpush1.bf16.msra.mxu0 %v1746
    %2332 = vmatprep.subr.bf16.mxu0 0
    %2333 = vmatpush1.bf16.msra.mxu0 0
    %2334 = vmatprep.subr.bf16.mxu0 0
    %2335 = vmatpush1.bf16.msra.mxu0 0
    %2336 = vmatprep.subr.bf16.mxu0 0
    %2337 = vmatpush1.bf16.msra.mxu0 0
    %2338 = vmatprep.subr.bf16.mxu0 0
    %2339 = vmatpush1.bf16.msra.mxu0 0
    %2340 = vmatprep.subr.bf16.mxu0 0
    %2341 = vmatpush1.bf16.msra.mxu0 0
    %2342 = vmatprep.subr.bf16.mxu0 0
    %2343 = vmatpush1.bf16.msra.mxu0 0
    %2344 = vmatprep.subr.bf16.mxu0 0
    %2345 = vmatpush1.bf16.msra.mxu0 0
    %2346 = vmatprep.subr.bf16.mxu0 0
    %2347 = vmatpush1.bf16.msra.mxu0 0
    %2348 = vmatprep.mubr.bf16.mxu0 0
    %2349 = vmatmul.mubr.bf16.gmra.mrb[0].mxu0 %v209
    %v2350 = vpop.f32.mrb[0].mxu0
    %v2351 = vadd.f32 %v2310, %v2350
    %v2352 = vpop.f32.mrb[0].mxu0
    %v2353 = vadd.f32 %v2312, %v2352
    %v2354 = vpop.f32.mrb[0].mxu0
    %v2355 = vpop.f32.mrb[0].mxu0
    %2356 = vdwg.mxu0
    %2357 = vmatprep.subr.bf16.mxu0 0
    %2358 = vmatpush1.bf16.msra.mxu0 %v1473
    %2359 = vmatprep.subr.bf16.mxu0 0
    %2360 = vmatpush1.bf16.msra.mxu0 %v1478
    %2361 = vmatprep.subr.bf16.mxu0 0
    %2362 = vmatpush1.bf16.msra.mxu0 %v1483
    %2363 = vmatprep.subr.bf16.mxu0 0
    %2364 = vmatpush1.bf16.msra.mxu0 %v1488
    %2365 = vmatprep.subr.bf16.mxu0 0
    %2366 = vmatpush1.bf16.msra.mxu0 %v1493
    %2367 = vmatprep.subr.bf16.mxu0 0
    %2368 = vmatpush1.bf16.msra.mxu0 %v1498
    %2369 = vmatprep.subr.bf16.mxu0 0
    %2370 = vmatpush1.bf16.msra.mxu0 %v1503
    %2371 = vmatprep.subr.bf16.mxu0 0
    %2372 = vmatpush1.bf16.msra.mxu0 %v1508
    %2373 = vmatprep.subr.bf16.mxu0 0
    %2374 = vmatpush1.bf16.msra.mxu0 %v1513
    %2375 = vmatprep.subr.bf16.mxu0 0
    %2376 = vmatpush1.bf16.msra.mxu0 %v1518
    %2377 = vmatprep.subr.bf16.mxu0 0
    %2378 = vmatpush1.bf16.msra.mxu0 %v1523
    %2379 = vmatprep.subr.bf16.mxu0 0
    %2380 = vmatpush1.bf16.msra.mxu0 %v1528
    %2381 = vmatprep.subr.bf16.mxu0 0
    %2382 = vmatpush1.bf16.msra.mxu0 %v1533
    %2383 = vmatprep.subr.bf16.mxu0 0
    %2384 = vmatpush1.bf16.msra.mxu0 %v1538
    %2385 = vmatprep.subr.bf16.mxu0 0
    %2386 = vmatpush1.bf16.msra.mxu0 %v1543
    %2387 = vmatprep.subr.bf16.mxu0 0
    %2388 = vmatpush1.bf16.msra.mxu0 %v1548
    %2389 = vmatprep.mubr.bf16.mxu0 %v204
    %2390 = vmatmul.mubr.bf16.gmra.mrb[0].mxu0 %v203
    %v2391 = vpop.f32.mrb[0].mxu0
    %v2392 = vadd.f32 %v567, %v2391
    %v2393 = vpop.f32.mrb[0].mxu0
    %v2394 = vpop.f32.mrb[0].mxu0
    %v2395 = vpop.f32.mrb[0].mxu0
    %2396 = vdwg.mxu0
    %2397 = vmatprep.subr.bf16.mxu0 0
    %2398 = vmatpush1.bf16.msra.mxu0 %v1553
    %2399 = vmatprep.subr.bf16.mxu0 0
    %2400 = vmatpush1.bf16.msra.mxu0 %v1558
    %2401 = vmatprep.subr.bf16.mxu0 0
    %2402 = vmatpush1.bf16.msra.mxu0 %v1563
    %2403 = vmatprep.subr.bf16.mxu0 0
    %2404 = vmatpush1.bf16.msra.mxu0 %v1568
    %2405 = vmatprep.subr.bf16.mxu0 0
    %2406 = vmatpush1.bf16.msra.mxu0 %v1573
    %2407 = vmatprep.subr.bf16.mxu0 0
    %2408 = vmatpush1.bf16.msra.mxu0 %v1578
    %2409 = vmatprep.subr.bf16.mxu0 0
    %2410 = vmatpush1.bf16.msra.mxu0 %v1583
    %2411 = vmatprep.subr.bf16.mxu0 0
    %2412 = vmatpush1.bf16.msra.mxu0 %v1588
    %2413 = vmatprep.subr.bf16.mxu0 0
    %2414 = vmatpush1.bf16.msra.mxu0 %v1593
    %2415 = vmatprep.subr.bf16.mxu0 0
    %2416 = vmatpush1.bf16.msra.mxu0 %v1598
    %2417 = vmatprep.subr.bf16.mxu0 0
    %2418 = vmatpush1.bf16.msra.mxu0 %v1603
    %2419 = vmatprep.subr.bf16.mxu0 0
    %2420 = vmatpush1.bf16.msra.mxu0 %v1608
    %2421 = vmatprep.subr.bf16.mxu0 0
    %2422 = vmatpush1.bf16.msra.mxu0 %v1613
    %2423 = vmatprep.subr.bf16.mxu0 0
    %2424 = vmatpush1.bf16.msra.mxu0 %v1618
    %2425 = vmatprep.subr.bf16.mxu0 0
    %2426 = vmatpush1.bf16.msra.mxu0 %v1623
    %2427 = vmatprep.subr.bf16.mxu0 0
    %2428 = vmatpush1.bf16.msra.mxu0 %v1628
    %2429 = vmatprep.mubr.bf16.mxu0 %v206
    %2430 = vmatmul.mubr.bf16.gmra.mrb[0].mxu0 %v205
    %v2431 = vpop.f32.mrb[0].mxu0
    %v2432 = vadd.f32 %v2392, %v2431
    %v2433 = vpop.f32.mrb[0].mxu0
    %v2434 = vpop.f32.mrb[0].mxu0
    %v2435 = vpop.f32.mrb[0].mxu0
    %2436 = vdwg.mxu0
    %2437 = vmatprep.subr.bf16.mxu0 0
    %2438 = vmatpush1.bf16.msra.mxu0 %v1633
    %2439 = vmatprep.subr.bf16.mxu0 0
    %2440 = vmatpush1.bf16.msra.mxu0 %v1638
    %2441 = vmatprep.subr.bf16.mxu0 0
    %2442 = vmatpush1.bf16.msra.mxu0 %v1643
    %2443 = vmatprep.subr.bf16.mxu0 0
    %2444 = vmatpush1.bf16.msra.mxu0 %v1648
    %2445 = vmatprep.subr.bf16.mxu0 0
    %2446 = vmatpush1.bf16.msra.mxu0 %v1653
    %2447 = vmatprep.subr.bf16.mxu0 0
    %2448 = vmatpush1.bf16.msra.mxu0 %v1658
    %2449 = vmatprep.subr.bf16.mxu0 0
    %2450 = vmatpush1.bf16.msra.mxu0 %v1663
    %2451 = vmatprep.subr.bf16.mxu0 0
    %2452 = vmatpush1.bf16.msra.mxu0 %v1668
    %2453 = vmatprep.subr.bf16.mxu0 0
    %2454 = vmatpush1.bf16.msra.mxu0 %v1673
    %2455 = vmatprep.subr.bf16.mxu0 0
    %2456 = vmatpush1.bf16.msra.mxu0 %v1678
    %2457 = vmatprep.subr.bf16.mxu0 0
    %2458 = vmatpush1.bf16.msra.mxu0 %v1683
    %2459 = vmatprep.subr.bf16.mxu0 0
    %2460 = vmatpush1.bf16.msra.mxu0 %v1688
    %2461 = vmatprep.subr.bf16.mxu0 0
    %2462 = vmatpush1.bf16.msra.mxu0 %v1693
    %2463 = vmatprep.subr.bf16.mxu0 0
    %2464 = vmatpush1.bf16.msra.mxu0 %v1698
    %2465 = vmatprep.subr.bf16.mxu0 0
    %2466 = vmatpush1.bf16.msra.mxu0 %v1703
    %2467 = vmatprep.subr.bf16.mxu0 0
    %2468 = vmatpush1.bf16.msra.mxu0 %v1708
    %2469 = vmatprep.mubr.bf16.mxu0 %v208
    %2470 = vmatmul.mubr.bf16.gmra.mrb[0].mxu0 %v207
    %v2471 = vpop.f32.mrb[0].mxu0
    %v2472 = vadd.f32 %v2432, %v2471
    %v2473 = vpop.f32.mrb[0].mxu0
    %v2474 = vpop.f32.mrb[0].mxu0
    %v2475 = vpop.f32.mrb[0].mxu0
    %2476 = vdwg.mxu0
    %2477 = vmatprep.subr.bf16.mxu0 0
    %2478 = vmatpush1.bf16.msra.mxu0 %v1713
    %2479 = vmatprep.subr.bf16.mxu0 0
    %2480 = vmatpush1.bf16.msra.mxu0 %v1718
    %2481 = vmatprep.subr.bf16.mxu0 0
    %2482 = vmatpush1.bf16.msra.mxu0 %v1723
    %2483 = vmatprep.subr.bf16.mxu0 0
    %2484 = vmatpush1.bf16.msra.mxu0 %v1728
    %2485 = vmatprep.subr.bf16.mxu0 0
    %2486 = vmatpush1.bf16.msra.mxu0 %v1733
    %2487 = vmatprep.subr.bf16.mxu0 0
    %2488 = vmatpush1.bf16.msra.mxu0 %v1738
    %2489 = vmatprep.subr.bf16.mxu0 0
    %2490 = vmatpush1.bf16.msra.mxu0 %v1743
    %2491 = vmatprep.subr.bf16.mxu0 0
    %2492 = vmatpush1.bf16.msra.mxu0 %v1748
    %2493 = vmatprep.subr.bf16.mxu0 0
    %2494 = vmatpush1.bf16.msra.mxu0 0
    %2495 = vmatprep.subr.bf16.mxu0 0
    %2496 = vmatpush1.bf16.msra.mxu0 0
    %2497 = vmatprep.subr.bf16.mxu0 0
    %2498 = vmatpush1.bf16.msra.mxu0 0
    %2499 = vmatprep.subr.bf16.mxu0 0
    %2500 = vmatpush1.bf16.msra.mxu0 0
    %2501 = vmatprep.subr.bf16.mxu0 0
    %2502 = vmatpush1.bf16.msra.mxu0 0
    %2503 = vmatprep.subr.bf16.mxu0 0
    %2504 = vmatpush1.bf16.msra.mxu0 0
    %2505 = vmatprep.subr.bf16.mxu0 0
    %2506 = vmatpush1.bf16.msra.mxu0 0
    %2507 = vmatprep.subr.bf16.mxu0 0
    %2508 = vmatpush1.bf16.msra.mxu0 0
    %2509 = vmatprep.mubr.bf16.mxu0 0
    %2510 = vmatmul.mubr.bf16.gmra.mrb[0].mxu0 %v209
    %v2511 = vpop.f32.mrb[0].mxu0
    %v2512 = vadd.f32 %v2472, %v2511
    %v2513 = vpop.f32.mrb[0].mxu0
    %v2514 = vpop.f32.mrb[0].mxu0
    %v2515 = vpop.f32.mrb[0].mxu0
    %2516 = vdwg.mxu0
    %v2517 = vtanh.pop %v2187
    %v2518 = vtanh.pop %v2189
    %v2519 = vtanh.pop %v2351
    %v2520 = vtanh.pop %v2353
    %v2521 = vtanh.pop %v2512
    %v2522 = vpack.c.bf16 %v2517, %v2517
    %v2523 = vpack.c.bf16 %v2518, %v2518
    %v2524 = vpack.c.bf16 %v2519, %v2519
    %v2525 = vpack.c.bf16 %v2520, %v2520
    %v2526 = vpack.c.bf16 %v2521, %v2521
    %v2527 = vld [vmem:[#allocation10] sm:$0xff]
    %v2528 = vld [vmem:[#allocation10 + $0x8] sm:$0xff]
    %v2529 = vld [vmem:[#allocation10 + $0x10] sm:$0xff]
    %v2530 = vld [vmem:[#allocation10 + $0x18] sm:$0xff]
    %v2531 = vld [vmem:[#allocation10 + $0x20] sm:$0xff]
    %v2532 = vld [vmem:[#allocation10 + $0x28] sm:$0xff]
    %v2533 = vld [vmem:[#allocation10 + $0x30] sm:$0xff]
    %v2534 = vld [vmem:[#allocation10 + $0x38] sm:$0xff]
    %v2535 = vld [vmem:[#allocation10 + $0x40] sm:$0xff]
    %v2536 = vld [vmem:[#allocation10 + $0x48] sm:$0xff]
    %v2537 = vld [vmem:[#allocation10 + $0x50] sm:$0xff]
    %v2538 = vld [vmem:[#allocation10 + $0x58] sm:$0xff]
    %v2539 = vld [vmem:[#allocation10 + $0x60] sm:$0xff]
    %v2540 = vld [vmem:[#allocation10 + $0x68] sm:$0xff]
    %v2541 = vld [vmem:[#allocation10 + $0x70] sm:$0xff]
    %v2542 = vld [vmem:[#allocation10 + $0x78] sm:$0xff]
    %v2543 = vld [vmem:[#allocation10 + $0x80] sm:$0xff]
    %v2544 = vld [vmem:[#allocation10 + $0x88] sm:$0xff]
    %v2545 = vld [vmem:[#allocation10 + $0x90] sm:$0xff]
    %v2546 = vld [vmem:[#allocation10 + $0x98] sm:$0xff]
    %v2547 = vld [vmem:[#allocation10 + $0xa0] sm:$0xff]
    %v2548 = vld [vmem:[#allocation10 + $0xa8] sm:$0xff]
    %v2549 = vld [vmem:[#allocation10 + $0xb0] sm:$0xff]
    %v2550 = vld [vmem:[#allocation10 + $0xb8] sm:$0xff]
    %v2551 = vld [vmem:[#allocation10 + $0xc0] sm:$0xff]
    %v2552 = vld [vmem:[#allocation10 + $0xc8] sm:$0xff]
    %v2553 = vld [vmem:[#allocation10 + $0xd0] sm:$0xff]
    %v2554 = vld [vmem:[#allocation10 + $0xd8] sm:$0xff]
    %v2555 = vld [vmem:[#allocation10 + $0xe0] sm:$0xff]
    %v2556 = vld [vmem:[#allocation10 + $0xe8] sm:$0xff]
    %v2557 = vld [vmem:[#allocation10 + $0xf0] sm:$0xff]
    %v2558 = vld [vmem:[#allocation10 + $0xf8] sm:$0xff]
    %v2559 = vld [vmem:[#allocation10 + $0x100] sm:$0xff]
    %v2560 = vld [vmem:[#allocation10 + $0x108] sm:$0xff]
    %v2561 = vld [vmem:[#allocation10 + $0x110] sm:$0xff]
    %v2562 = vld [vmem:[#allocation10 + $0x118] sm:$0xff]
    %v2563 = vld [vmem:[#allocation10 + $0x120] sm:$0xff]
    %v2564 = vld [vmem:[#allocation10 + $0x128] sm:$0xff]
    %v2565 = vld [vmem:[#allocation10 + $0x130] sm:$0xff]
    %v2566 = vld [vmem:[#allocation10 + $0x138] sm:$0xff]
    %v2567 = vld [vmem:[#allocation10 + $0x140] sm:$0xff]
    %v2568 = vld [vmem:[#allocation10 + $0x148] sm:$0xff]
    %v2569 = vld [vmem:[#allocation10 + $0x150] sm:$0xff]
    %v2570 = vld [vmem:[#allocation10 + $0x158] sm:$0xff]
    %v2571 = vld [vmem:[#allocation10 + $0x160] sm:$0xff]
    %v2572 = vld [vmem:[#allocation10 + $0x168] sm:$0xff]
    %v2573 = vld [vmem:[#allocation10 + $0x170] sm:$0xff]
    %v2574 = vld [vmem:[#allocation10 + $0x178] sm:$0xff]
    %v2575 = vld [vmem:[#allocation10 + $0x180] sm:$0xff]
    %v2576 = vld [vmem:[#allocation10 + $0x188] sm:$0xff]
    %v2577 = vld [vmem:[#allocation10 + $0x190] sm:$0xff]
    %v2578 = vld [vmem:[#allocation10 + $0x198] sm:$0xff]
    %v2579 = vld [vmem:[#allocation10 + $0x1a0] sm:$0xff]
    %v2580 = vld [vmem:[#allocation10 + $0x1a8] sm:$0xff]
    %v2581 = vld [vmem:[#allocation10 + $0x1b0] sm:$0xff]
    %v2582 = vld [vmem:[#allocation10 + $0x1b8] sm:$0xff]
    %v2583 = vld [vmem:[#allocation10 + $0x1c0] sm:$0xff]
    %v2584 = vld [vmem:[#allocation10 + $0x1c8] sm:$0xff]
    %v2585 = vld [vmem:[#allocation10 + $0x1d0] sm:$0xff]
    %v2586 = vld [vmem:[#allocation10 + $0x1d8] sm:$0xff]
    %v2587 = vld [vmem:[#allocation10 + $0x1e0] sm:$0xff]
    %v2588 = vld [vmem:[#allocation10 + $0x1e8] sm:$0xff]
    %v2589 = vld [vmem:[#allocation10 + $0x1f0] sm:$0xff]
    %v2590 = vld [vmem:[#allocation10 + $0x1f8] sm:$0xff]
    %v2591 = vld [vmem:[#allocation10 + $0x200] sm:$0xff]
    %v2592 = vld [vmem:[#allocation10 + $0x208] sm:$0xff]
    %v2593 = vld [vmem:[#allocation10 + $0x210] sm:$0xff]
    %v2594 = vld [vmem:[#allocation10 + $0x218] sm:$0xff]
    %v2595 = vld [vmem:[#allocation10 + $0x220] sm:$0xff]
    %v2596 = vld [vmem:[#allocation10 + $0x228] sm:$0xff]
    %v2597 = vld [vmem:[#allocation10 + $0x230] sm:$0xff]
    %v2598 = vld [vmem:[#allocation10 + $0x238] sm:$0xff]
    %v2599 = vld [vmem:[#allocation10 + $0x240] sm:$0xff]
    %v2600 = vld [vmem:[#allocation10 + $0x248] sm:$0xff]
    %v2601 = vld [vmem:[#allocation10 + $0x250] sm:$0xff]
    %v2602 = vld [vmem:[#allocation10 + $0x258] sm:$0xff]
    %v2603 = vld [vmem:[#allocation10 + $0x260] sm:$0xff]
    %v2604 = vld [vmem:[#allocation10 + $0x268] sm:$0xff]
    %v2605 = vld [vmem:[#allocation10 + $0x270] sm:$0xff]
    %v2606 = vld [vmem:[#allocation10 + $0x278] sm:$0xff]
    %v2607 = vld [vmem:[#allocation10 + $0x280] sm:$0xff]
    %v2608 = vld [vmem:[#allocation10 + $0x288] sm:$0xff]
    %v2609 = vld [vmem:[#allocation10 + $0x290] sm:$0xff]
    %v2610 = vld [vmem:[#allocation10 + $0x298] sm:$0xff]
    %v2611 = vld [vmem:[#allocation10 + $0x2a0] sm:$0xff]
    %v2612 = vld [vmem:[#allocation10 + $0x2a8] sm:$0xff]
    %v2613 = vld [vmem:[#allocation10 + $0x2b0] sm:$0xff]
    %v2614 = vld [vmem:[#allocation10 + $0x2b8] sm:$0xff]
    %v2615 = vld [vmem:[#allocation10 + $0x2c0] sm:$0xff]
    %v2616 = vld [vmem:[#allocation10 + $0x2c8] sm:$0xff]
    %v2617 = vld [vmem:[#allocation10 + $0x2d0] sm:$0xff]
    %v2618 = vld [vmem:[#allocation10 + $0x2d8] sm:$0xff]
    %v2619 = vld [vmem:[#allocation10 + $0x2e0] sm:$0xff]
    %v2620 = vld [vmem:[#allocation10 + $0x2e8] sm:$0xff]
    %v2621 = vld [vmem:[#allocation10 + $0x2f0] sm:$0xff]
    %v2622 = vld [vmem:[#allocation10 + $0x2f8] sm:$0xff]
    %v2623 = vld [vmem:[#allocation10 + $0x300] sm:$0xff]
    %v2624 = vld [vmem:[#allocation10 + $0x308] sm:$0xff]
    %v2625 = vld [vmem:[#allocation10 + $0x310] sm:$0xff]
    %v2626 = vld [vmem:[#allocation10 + $0x318] sm:$0xff]
    %v2627 = vld [vmem:[#allocation10 + $0x320] sm:$0xff]
    %v2628 = vld [vmem:[#allocation10 + $0x328] sm:$0xff]
    %v2629 = vld [vmem:[#allocation10 + $0x330] sm:$0xff]
    %v2630 = vld [vmem:[#allocation10 + $0x338] sm:$0xff]
    %v2631 = vld [vmem:[#allocation10 + $0x340] sm:$0xff]
    %v2632 = vld [vmem:[#allocation10 + $0x348] sm:$0xff]
    %v2633 = vld [vmem:[#allocation10 + $0x350] sm:$0xff]
    %v2634 = vld [vmem:[#allocation10 + $0x358] sm:$0xff]
    %v2635 = vld [vmem:[#allocation10 + $0x360] sm:$0xff]
    %v2636 = vld [vmem:[#allocation10 + $0x368] sm:$0xff]
    %v2637 = vld [vmem:[#allocation10 + $0x370] sm:$0xff]
    %v2638 = vld [vmem:[#allocation10 + $0x378] sm:$0xff]
    %v2639 = vld [vmem:[#allocation10 + $0x380] sm:$0xff]
    %v2640 = vld [vmem:[#allocation10 + $0x388] sm:$0xff]
    %v2641 = vld [vmem:[#allocation10 + $0x390] sm:$0xff]
    %v2642 = vld [vmem:[#allocation10 + $0x398] sm:$0xff]
    %v2643 = vld [vmem:[#allocation10 + $0x3a0] sm:$0xff]
    %v2644 = vld [vmem:[#allocation10 + $0x3a8] sm:$0xff]
    %v2645 = vld [vmem:[#allocation10 + $0x3b0] sm:$0xff]
    %v2646 = vld [vmem:[#allocation10 + $0x3b8] sm:$0xff]
    %v2647 = vld [vmem:[#allocation10 + $0x3c0] sm:$0xff]
    %v2648 = vld [vmem:[#allocation10 + $0x3c8] sm:$0xff]
    %v2649 = vld [vmem:[#allocation10 + $0x3d0] sm:$0xff]
    %v2650 = vld [vmem:[#allocation10 + $0x3d8] sm:$0xff]
    %v2651 = vld [vmem:[#allocation10 + $0x3e0] sm:$0xff]
    %v2652 = vld [vmem:[#allocation10 + $0x3e8] sm:$0xff]
    %v2653 = vld [vmem:[#allocation10 + $0x3f0] sm:$0xff]
    %v2654 = vld [vmem:[#allocation10 + $0x3f8] sm:$0xff]
    %v2655 = vld [vmem:[#allocation10 + $0x400] sm:$0xff]
    %v2656 = vld [vmem:[#allocation10 + $0x408] sm:$0xff]
    %v2657 = vld [vmem:[#allocation10 + $0x410] sm:$0xff]
    %v2658 = vld [vmem:[#allocation10 + $0x418] sm:$0xff]
    %v2659 = vld [vmem:[#allocation10 + $0x420] sm:$0xff]
    %v2660 = vld [vmem:[#allocation10 + $0x428] sm:$0xff]
    %v2661 = vld [vmem:[#allocation10 + $0x430] sm:$0xff]
    %v2662 = vld [vmem:[#allocation10 + $0x438] sm:$0xff]
    %v2663 = vld [vmem:[#allocation10 + $0x440] sm:$0xff]
    %v2664 = vld [vmem:[#allocation10 + $0x448] sm:$0xff]
    %v2665 = vld [vmem:[#allocation10 + $0x450] sm:$0xff]
    %v2666 = vld [vmem:[#allocation10 + $0x458] sm:$0xff]
    %v2667 = vld [vmem:[#allocation10 + $0x460] sm:$0xff]
    %v2668 = vld [vmem:[#allocation10 + $0x468] sm:$0xff]
    %v2669 = vld [vmem:[#allocation10 + $0x470] sm:$0xff]
    %v2670 = vld [vmem:[#allocation10 + $0x478] sm:$0xff]
    %v2671 = vld [vmem:[#allocation10 + $0x480] sm:$0xff]
    %v2672 = vld [vmem:[#allocation10 + $0x488] sm:$0xff]
    %v2673 = vld [vmem:[#allocation10 + $0x490] sm:$0xff]
    %v2674 = vld [vmem:[#allocation10 + $0x498] sm:$0xff]
    %v2675 = vld [vmem:[#allocation10 + $0x4a0] sm:$0xff]
    %v2676 = vld [vmem:[#allocation10 + $0x4a8] sm:$0xff]
    %v2677 = vld [vmem:[#allocation10 + $0x4b0] sm:$0xff]
    %v2678 = vld [vmem:[#allocation10 + $0x4b8] sm:$0xff]
    %v2679 = vld [vmem:[#allocation10 + $0x4c0] sm:$0xff]
    %v2680 = vld [vmem:[#allocation10 + $0x4c8] sm:$0xff]
    %v2681 = vld [vmem:[#allocation10 + $0x4d0] sm:$0xff]
    %v2682 = vld [vmem:[#allocation10 + $0x4d8] sm:$0xff]
    %v2683 = vld [vmem:[#allocation10 + $0x4e0] sm:$0xff]
    %v2684 = vld [vmem:[#allocation10 + $0x4e8] sm:$0xff]
    %v2685 = vld [vmem:[#allocation10 + $0x4f0] sm:$0xff]
    %v2686 = vld [vmem:[#allocation10 + $0x4f8] sm:$0xff]
    %v2687 = vld [vmem:[#allocation11] sm:$0xf]
    %v2689 = vlaneseq
    %v2690 = vshrl.u32 %v2689, 7
    %v2691 = vsub.s32 0, %v2690
    %v2692 = vrot.slane %v2687, %v2691
    %v2693 = vlaneseq
    %v2694 = vshrl.u32 %v2693, 7
    %v2695 = vsub.s32 1, %v2694
    %v2696 = vrot.slane %v2687, %v2695
    %v2697 = vlaneseq
    %v2698 = vshrl.u32 %v2697, 7
    %v2699 = vsub.s32 2, %v2698
    %v2700 = vrot.slane %v2687, %v2699
    %v2701 = vlaneseq
    %v2702 = vshrl.u32 %v2701, 7
    %v2703 = vsub.s32 3, %v2702
    %v2704 = vrot.slane %v2687, %v2703
    %v2869 = vunpack.c.l.b16 %v2527
    %v2870 = vunpack.c.h.b16 %v2527
    %v2871 = vunpack.c.l.b16 %v2528
    %v2872 = vunpack.c.h.b16 %v2528
    %v2873 = vunpack.c.l.b16 %v2529
    %v2874 = vunpack.c.h.b16 %v2529
    %v2875 = vunpack.c.l.b16 %v2530
    %v2876 = vunpack.c.h.b16 %v2530
    %v2877 = vunpack.c.l.b16 %v2531
    %v2878 = vunpack.c.h.b16 %v2531
    %v2879 = vunpack.c.l.b16 %v2532
    %v2880 = vunpack.c.h.b16 %v2532
    %v2881 = vunpack.c.l.b16 %v2533
    %v2882 = vunpack.c.h.b16 %v2533
    %v2883 = vunpack.c.l.b16 %v2534
    %v2884 = vunpack.c.h.b16 %v2534
    %v2885 = vunpack.c.l.b16 %v2535
    %v2886 = vunpack.c.h.b16 %v2535
    %v2887 = vunpack.c.l.b16 %v2536
    %v2888 = vunpack.c.h.b16 %v2536
    %v2889 = vunpack.c.l.b16 %v2537
    %v2890 = vunpack.c.h.b16 %v2537
    %v2891 = vunpack.c.l.b16 %v2538
    %v2892 = vunpack.c.h.b16 %v2538
    %v2893 = vunpack.c.l.b16 %v2539
    %v2894 = vunpack.c.h.b16 %v2539
    %v2895 = vunpack.c.l.b16 %v2540
    %v2896 = vunpack.c.h.b16 %v2540
    %v2897 = vunpack.c.l.b16 %v2541
    %v2898 = vunpack.c.h.b16 %v2541
    %v2899 = vunpack.c.l.b16 %v2542
    %v2900 = vunpack.c.h.b16 %v2542
    %v2901 = vunpack.c.l.b16 %v2543
    %v2902 = vunpack.c.h.b16 %v2543
    %v2903 = vunpack.c.l.b16 %v2544
    %v2904 = vunpack.c.h.b16 %v2544
    %v2905 = vunpack.c.l.b16 %v2545
    %v2906 = vunpack.c.h.b16 %v2545
    %v2907 = vunpack.c.l.b16 %v2546
    %v2908 = vunpack.c.h.b16 %v2546
    %v2909 = vunpack.c.l.b16 %v2547
    %v2910 = vunpack.c.h.b16 %v2547
    %v2911 = vunpack.c.l.b16 %v2548
    %v2912 = vunpack.c.h.b16 %v2548
    %v2913 = vunpack.c.l.b16 %v2549
    %v2914 = vunpack.c.h.b16 %v2549
    %v2915 = vunpack.c.l.b16 %v2550
    %v2916 = vunpack.c.h.b16 %v2550
    %v2917 = vunpack.c.l.b16 %v2551
    %v2918 = vunpack.c.h.b16 %v2551
    %v2919 = vunpack.c.l.b16 %v2552
    %v2920 = vunpack.c.h.b16 %v2552
    %v2921 = vunpack.c.l.b16 %v2553
    %v2922 = vunpack.c.h.b16 %v2553
    %v2923 = vunpack.c.l.b16 %v2554
    %v2924 = vunpack.c.h.b16 %v2554
    %v2925 = vunpack.c.l.b16 %v2555
    %v2926 = vunpack.c.h.b16 %v2555
    %v2927 = vunpack.c.l.b16 %v2556
    %v2928 = vunpack.c.h.b16 %v2556
    %v2929 = vunpack.c.l.b16 %v2557
    %v2930 = vunpack.c.h.b16 %v2557
    %v2931 = vunpack.c.l.b16 %v2558
    %v2932 = vunpack.c.h.b16 %v2558
    %v2933 = vunpack.c.l.b16 %v2559
    %v2934 = vunpack.c.h.b16 %v2559
    %v2935 = vunpack.c.l.b16 %v2560
    %v2936 = vunpack.c.h.b16 %v2560
    %v2937 = vunpack.c.l.b16 %v2561
    %v2938 = vunpack.c.h.b16 %v2561
    %v2939 = vunpack.c.l.b16 %v2562
    %v2940 = vunpack.c.h.b16 %v2562
    %v2941 = vunpack.c.l.b16 %v2563
    %v2942 = vunpack.c.h.b16 %v2563
    %v2943 = vunpack.c.l.b16 %v2564
    %v2944 = vunpack.c.h.b16 %v2564
    %v2945 = vunpack.c.l.b16 %v2565
    %v2946 = vunpack.c.h.b16 %v2565
    %v2947 = vunpack.c.l.b16 %v2566
    %v2948 = vunpack.c.h.b16 %v2566
    %v2949 = vunpack.c.l.b16 %v2567
    %v2950 = vunpack.c.h.b16 %v2567
    %v2951 = vunpack.c.l.b16 %v2568
    %v2952 = vunpack.c.h.b16 %v2568
    %v2953 = vunpack.c.l.b16 %v2569
    %v2954 = vunpack.c.h.b16 %v2569
    %v2955 = vunpack.c.l.b16 %v2570
    %v2956 = vunpack.c.h.b16 %v2570
    %v2957 = vunpack.c.l.b16 %v2571
    %v2958 = vunpack.c.h.b16 %v2571
    %v2959 = vunpack.c.l.b16 %v2572
    %v2960 = vunpack.c.h.b16 %v2572
    %v2961 = vunpack.c.l.b16 %v2573
    %v2962 = vunpack.c.h.b16 %v2573
    %v2963 = vunpack.c.l.b16 %v2574
    %v2964 = vunpack.c.h.b16 %v2574
    %v2965 = vunpack.c.l.b16 %v2575
    %v2966 = vunpack.c.h.b16 %v2575
    %v2967 = vunpack.c.l.b16 %v2576
    %v2968 = vunpack.c.h.b16 %v2576
    %v2969 = vunpack.c.l.b16 %v2577
    %v2970 = vunpack.c.h.b16 %v2577
    %v2971 = vunpack.c.l.b16 %v2578
    %v2972 = vunpack.c.h.b16 %v2578
    %v2973 = vunpack.c.l.b16 %v2579
    %v2974 = vunpack.c.h.b16 %v2579
    %v2975 = vunpack.c.l.b16 %v2580
    %v2976 = vunpack.c.h.b16 %v2580
    %v2977 = vunpack.c.l.b16 %v2581
    %v2978 = vunpack.c.h.b16 %v2581
    %v2979 = vunpack.c.l.b16 %v2582
    %v2980 = vunpack.c.h.b16 %v2582
    %v2981 = vunpack.c.l.b16 %v2583
    %v2982 = vunpack.c.h.b16 %v2583
    %v2983 = vunpack.c.l.b16 %v2584
    %v2984 = vunpack.c.h.b16 %v2584
    %v2985 = vunpack.c.l.b16 %v2585
    %v2986 = vunpack.c.h.b16 %v2585
    %v2987 = vunpack.c.l.b16 %v2586
    %v2988 = vunpack.c.h.b16 %v2586
    %v2989 = vunpack.c.l.b16 %v2587
    %v2990 = vunpack.c.h.b16 %v2587
    %v2991 = vunpack.c.l.b16 %v2588
    %v2992 = vunpack.c.h.b16 %v2588
    %v2993 = vunpack.c.l.b16 %v2589
    %v2994 = vunpack.c.h.b16 %v2589
    %v2995 = vunpack.c.l.b16 %v2590
    %v2996 = vunpack.c.h.b16 %v2590
    %v2997 = vunpack.c.l.b16 %v2591
    %v2998 = vunpack.c.h.b16 %v2591
    %v2999 = vunpack.c.l.b16 %v2592
    %v3000 = vunpack.c.h.b16 %v2592
    %v3001 = vunpack.c.l.b16 %v2593
    %v3002 = vunpack.c.h.b16 %v2593
    %v3003 = vunpack.c.l.b16 %v2594
    %v3004 = vunpack.c.h.b16 %v2594
    %v3005 = vunpack.c.l.b16 %v2595
    %v3006 = vunpack.c.h.b16 %v2595
    %v3007 = vunpack.c.l.b16 %v2596
    %v3008 = vunpack.c.h.b16 %v2596
    %v3009 = vunpack.c.l.b16 %v2597
    %v3010 = vunpack.c.h.b16 %v2597
    %v3011 = vunpack.c.l.b16 %v2598
    %v3012 = vunpack.c.h.b16 %v2598
    %v3013 = vunpack.c.l.b16 %v2599
    %v3014 = vunpack.c.h.b16 %v2599
    %v3015 = vunpack.c.l.b16 %v2600
    %v3016 = vunpack.c.h.b16 %v2600
    %v3017 = vunpack.c.l.b16 %v2601
    %v3018 = vunpack.c.h.b16 %v2601
    %v3019 = vunpack.c.l.b16 %v2602
    %v3020 = vunpack.c.h.b16 %v2602
    %v3021 = vunpack.c.l.b16 %v2603
    %v3022 = vunpack.c.h.b16 %v2603
    %v3023 = vunpack.c.l.b16 %v2604
    %v3024 = vunpack.c.h.b16 %v2604
    %v3025 = vunpack.c.l.b16 %v2605
    %v3026 = vunpack.c.h.b16 %v2605
    %v3027 = vunpack.c.l.b16 %v2606
    %v3028 = vunpack.c.h.b16 %v2606
    %v3029 = vunpack.c.l.b16 %v2607
    %v3030 = vunpack.c.h.b16 %v2607
    %v3031 = vunpack.c.l.b16 %v2608
    %v3032 = vunpack.c.h.b16 %v2608
    %v3033 = vunpack.c.l.b16 %v2609
    %v3034 = vunpack.c.h.b16 %v2609
    %v3035 = vunpack.c.l.b16 %v2610
    %v3036 = vunpack.c.h.b16 %v2610
    %v3037 = vunpack.c.l.b16 %v2611
    %v3038 = vunpack.c.h.b16 %v2611
    %v3039 = vunpack.c.l.b16 %v2612
    %v3040 = vunpack.c.h.b16 %v2612
    %v3041 = vunpack.c.l.b16 %v2613
    %v3042 = vunpack.c.h.b16 %v2613
    %v3043 = vunpack.c.l.b16 %v2614
    %v3044 = vunpack.c.h.b16 %v2614
    %v3045 = vunpack.c.l.b16 %v2615
    %v3046 = vunpack.c.h.b16 %v2615
    %v3047 = vunpack.c.l.b16 %v2616
    %v3048 = vunpack.c.h.b16 %v2616
    %v3049 = vunpack.c.l.b16 %v2617
    %v3050 = vunpack.c.h.b16 %v2617
    %v3051 = vunpack.c.l.b16 %v2618
    %v3052 = vunpack.c.h.b16 %v2618
    %v3053 = vunpack.c.l.b16 %v2619
    %v3054 = vunpack.c.h.b16 %v2619
    %v3055 = vunpack.c.l.b16 %v2620
    %v3056 = vunpack.c.h.b16 %v2620
    %v3057 = vunpack.c.l.b16 %v2621
    %v3058 = vunpack.c.h.b16 %v2621
    %v3059 = vunpack.c.l.b16 %v2622
    %v3060 = vunpack.c.h.b16 %v2622
    %v3061 = vunpack.c.l.b16 %v2623
    %v3062 = vunpack.c.h.b16 %v2623
    %v3063 = vunpack.c.l.b16 %v2624
    %v3064 = vunpack.c.h.b16 %v2624
    %v3065 = vunpack.c.l.b16 %v2625
    %v3066 = vunpack.c.h.b16 %v2625
    %v3067 = vunpack.c.l.b16 %v2626
    %v3068 = vunpack.c.h.b16 %v2626
    %v3069 = vunpack.c.l.b16 %v2627
    %v3070 = vunpack.c.h.b16 %v2627
    %v3071 = vunpack.c.l.b16 %v2628
    %v3072 = vunpack.c.h.b16 %v2628
    %v3073 = vunpack.c.l.b16 %v2629
    %v3074 = vunpack.c.h.b16 %v2629
    %v3075 = vunpack.c.l.b16 %v2630
    %v3076 = vunpack.c.h.b16 %v2630
    %v3077 = vunpack.c.l.b16 %v2631
    %v3078 = vunpack.c.h.b16 %v2631
    %v3079 = vunpack.c.l.b16 %v2632
    %v3080 = vunpack.c.h.b16 %v2632
    %v3081 = vunpack.c.l.b16 %v2633
    %v3082 = vunpack.c.h.b16 %v2633
    %v3083 = vunpack.c.l.b16 %v2634
    %v3084 = vunpack.c.h.b16 %v2634
    %v3085 = vunpack.c.l.b16 %v2635
    %v3086 = vunpack.c.h.b16 %v2635
    %v3087 = vunpack.c.l.b16 %v2636
    %v3088 = vunpack.c.h.b16 %v2636
    %v3089 = vunpack.c.l.b16 %v2637
    %v3090 = vunpack.c.h.b16 %v2637
    %v3091 = vunpack.c.l.b16 %v2638
    %v3092 = vunpack.c.h.b16 %v2638
    %v3093 = vunpack.c.l.b16 %v2639
    %v3094 = vunpack.c.h.b16 %v2639
    %v3095 = vunpack.c.l.b16 %v2640
    %v3096 = vunpack.c.h.b16 %v2640
    %v3097 = vunpack.c.l.b16 %v2641
    %v3098 = vunpack.c.h.b16 %v2641
    %v3099 = vunpack.c.l.b16 %v2642
    %v3100 = vunpack.c.h.b16 %v2642
    %v3101 = vunpack.c.l.b16 %v2643
    %v3102 = vunpack.c.h.b16 %v2643
    %v3103 = vunpack.c.l.b16 %v2644
    %v3104 = vunpack.c.h.b16 %v2644
    %v3105 = vunpack.c.l.b16 %v2645
    %v3106 = vunpack.c.h.b16 %v2645
    %v3107 = vunpack.c.l.b16 %v2646
    %v3108 = vunpack.c.h.b16 %v2646
    %v3109 = vunpack.c.l.b16 %v2647
    %v3110 = vunpack.c.h.b16 %v2647
    %v3111 = vunpack.c.l.b16 %v2648
    %v3112 = vunpack.c.h.b16 %v2648
    %v3113 = vunpack.c.l.b16 %v2649
    %v3114 = vunpack.c.h.b16 %v2649
    %v3115 = vunpack.c.l.b16 %v2650
    %v3116 = vunpack.c.h.b16 %v2650
    %v3117 = vunpack.c.l.b16 %v2651
    %v3118 = vunpack.c.h.b16 %v2651
    %v3119 = vunpack.c.l.b16 %v2652
    %v3120 = vunpack.c.h.b16 %v2652
    %v3121 = vunpack.c.l.b16 %v2653
    %v3122 = vunpack.c.h.b16 %v2653
    %v3123 = vunpack.c.l.b16 %v2654
    %v3124 = vunpack.c.h.b16 %v2654
    %v3125 = vunpack.c.l.b16 %v2655
    %v3126 = vunpack.c.h.b16 %v2655
    %v3127 = vunpack.c.l.b16 %v2656
    %v3128 = vunpack.c.h.b16 %v2656
    %v3129 = vunpack.c.l.b16 %v2657
    %v3130 = vunpack.c.h.b16 %v2657
    %v3131 = vunpack.c.l.b16 %v2658
    %v3132 = vunpack.c.h.b16 %v2658
    %v3133 = vunpack.c.l.b16 %v2659
    %v3134 = vunpack.c.h.b16 %v2659
    %v3135 = vunpack.c.l.b16 %v2660
    %v3136 = vunpack.c.h.b16 %v2660
    %v3137 = vunpack.c.l.b16 %v2661
    %v3138 = vunpack.c.h.b16 %v2661
    %v3139 = vunpack.c.l.b16 %v2662
    %v3140 = vunpack.c.h.b16 %v2662
    %v3141 = vunpack.c.l.b16 %v2663
    %v3142 = vunpack.c.h.b16 %v2663
    %v3143 = vunpack.c.l.b16 %v2664
    %v3144 = vunpack.c.h.b16 %v2664
    %v3145 = vunpack.c.l.b16 %v2665
    %v3146 = vunpack.c.h.b16 %v2665
    %v3147 = vunpack.c.l.b16 %v2666
    %v3148 = vunpack.c.h.b16 %v2666
    %v3149 = vunpack.c.l.b16 %v2667
    %v3150 = vunpack.c.h.b16 %v2667
    %v3151 = vunpack.c.l.b16 %v2668
    %v3152 = vunpack.c.h.b16 %v2668
    %v3153 = vunpack.c.l.b16 %v2669
    %v3154 = vunpack.c.h.b16 %v2669
    %v3155 = vunpack.c.l.b16 %v2670
    %v3156 = vunpack.c.h.b16 %v2670
    %v3157 = vunpack.c.l.b16 %v2671
    %v3158 = vunpack.c.h.b16 %v2671
    %v3159 = vunpack.c.l.b16 %v2672
    %v3160 = vunpack.c.h.b16 %v2672
    %v3161 = vunpack.c.l.b16 %v2673
    %v3162 = vunpack.c.h.b16 %v2673
    %v3163 = vunpack.c.l.b16 %v2674
    %v3164 = vunpack.c.h.b16 %v2674
    %v3165 = vunpack.c.l.b16 %v2675
    %v3166 = vunpack.c.h.b16 %v2675
    %v3167 = vunpack.c.l.b16 %v2676
    %v3168 = vunpack.c.h.b16 %v2676
    %v3169 = vunpack.c.l.b16 %v2677
    %v3170 = vunpack.c.h.b16 %v2677
    %v3171 = vunpack.c.l.b16 %v2678
    %v3172 = vunpack.c.h.b16 %v2678
    %v3173 = vunpack.c.l.b16 %v2679
    %v3174 = vunpack.c.h.b16 %v2679
    %v3175 = vunpack.c.l.b16 %v2680
    %v3176 = vunpack.c.h.b16 %v2680
    %v3177 = vunpack.c.l.b16 %v2681
    %v3178 = vunpack.c.h.b16 %v2681
    %v3179 = vunpack.c.l.b16 %v2682
    %v3180 = vunpack.c.h.b16 %v2682
    %v3181 = vunpack.c.l.b16 %v2683
    %v3182 = vunpack.c.h.b16 %v2683
    %v3183 = vunpack.c.l.b16 %v2684
    %v3184 = vunpack.c.h.b16 %v2684
    %v3185 = vunpack.c.l.b16 %v2685
    %v3186 = vunpack.c.h.b16 %v2685
    %v3187 = vunpack.c.l.b16 %v2686
    %v3188 = vunpack.c.h.b16 %v2686
    %v3189 = vpack.c.b16 %v2873, %v2869
    %v3190 = vpack.c.b16 %v2874, %v2870
    %v3191 = vpack.c.b16 %v2875, %v2871
    %v3192 = vpack.c.b16 %v2876, %v2872
    %v3193 = vpack.c.b16 %v2881, %v2877
    %v3194 = vpack.c.b16 %v2882, %v2878
    %v3195 = vpack.c.b16 %v2883, %v2879
    %v3196 = vpack.c.b16 %v2884, %v2880
    %v3197 = vpack.c.b16 %v2889, %v2885
    %v3198 = vpack.c.b16 %v2890, %v2886
    %v3199 = vpack.c.b16 %v2891, %v2887
    %v3200 = vpack.c.b16 %v2892, %v2888
    %v3201 = vpack.c.b16 %v2897, %v2893
    %v3202 = vpack.c.b16 %v2898, %v2894
    %v3203 = vpack.c.b16 %v2899, %v2895
    %v3204 = vpack.c.b16 %v2900, %v2896
    %v3205 = vpack.c.b16 %v2905, %v2901
    %v3206 = vpack.c.b16 %v2906, %v2902
    %v3207 = vpack.c.b16 %v2907, %v2903
    %v3208 = vpack.c.b16 %v2908, %v2904
    %v3209 = vpack.c.b16 %v2913, %v2909
    %v3210 = vpack.c.b16 %v2914, %v2910
    %v3211 = vpack.c.b16 %v2915, %v2911
    %v3212 = vpack.c.b16 %v2916, %v2912
    %v3213 = vpack.c.b16 %v2921, %v2917
    %v3214 = vpack.c.b16 %v2922, %v2918
    %v3215 = vpack.c.b16 %v2923, %v2919
    %v3216 = vpack.c.b16 %v2924, %v2920
    %v3217 = vpack.c.b16 %v2929, %v2925
    %v3218 = vpack.c.b16 %v2930, %v2926
    %v3219 = vpack.c.b16 %v2931, %v2927
    %v3220 = vpack.c.b16 %v2932, %v2928
    %v3221 = vpack.c.b16 %v2937, %v2933
    %v3222 = vpack.c.b16 %v2938, %v2934
    %v3223 = vpack.c.b16 %v2939, %v2935
    %v3224 = vpack.c.b16 %v2940, %v2936
    %v3225 = vpack.c.b16 %v2945, %v2941
    %v3226 = vpack.c.b16 %v2946, %v2942
    %v3227 = vpack.c.b16 %v2947, %v2943
    %v3228 = vpack.c.b16 %v2948, %v2944
    %v3229 = vpack.c.b16 %v2953, %v2949
    %v3230 = vpack.c.b16 %v2954, %v2950
    %v3231 = vpack.c.b16 %v2955, %v2951
    %v3232 = vpack.c.b16 %v2956, %v2952
    %v3233 = vpack.c.b16 %v2961, %v2957
    %v3234 = vpack.c.b16 %v2962, %v2958
    %v3235 = vpack.c.b16 %v2963, %v2959
    %v3236 = vpack.c.b16 %v2964, %v2960
    %v3237 = vpack.c.b16 %v2969, %v2965
    %v3238 = vpack.c.b16 %v2970, %v2966
    %v3239 = vpack.c.b16 %v2971, %v2967
    %v3240 = vpack.c.b16 %v2972, %v2968
    %v3241 = vpack.c.b16 %v2977, %v2973
    %v3242 = vpack.c.b16 %v2978, %v2974
    %v3243 = vpack.c.b16 %v2979, %v2975
    %v3244 = vpack.c.b16 %v2980, %v2976
    %v3245 = vpack.c.b16 %v2985, %v2981
    %v3246 = vpack.c.b16 %v2986, %v2982
    %v3247 = vpack.c.b16 %v2987, %v2983
    %v3248 = vpack.c.b16 %v2988, %v2984
    %v3249 = vpack.c.b16 %v2993, %v2989
    %v3250 = vpack.c.b16 %v2994, %v2990
    %v3251 = vpack.c.b16 %v2995, %v2991
    %v3252 = vpack.c.b16 %v2996, %v2992
    %v3253 = vpack.c.b16 %v3001, %v2997
    %v3254 = vpack.c.b16 %v3002, %v2998
    %v3255 = vpack.c.b16 %v3003, %v2999
    %v3256 = vpack.c.b16 %v3004, %v3000
    %v3257 = vpack.c.b16 %v3009, %v3005
    %v3258 = vpack.c.b16 %v3010, %v3006
    %v3259 = vpack.c.b16 %v3011, %v3007
    %v3260 = vpack.c.b16 %v3012, %v3008
    %v3261 = vpack.c.b16 %v3017, %v3013
    %v3262 = vpack.c.b16 %v3018, %v3014
    %v3263 = vpack.c.b16 %v3019, %v3015
    %v3264 = vpack.c.b16 %v3020, %v3016
    %v3265 = vpack.c.b16 %v3025, %v3021
    %v3266 = vpack.c.b16 %v3026, %v3022
    %v3267 = vpack.c.b16 %v3027, %v3023
    %v3268 = vpack.c.b16 %v3028, %v3024
    %v3269 = vpack.c.b16 %v3033, %v3029
    %v3270 = vpack.c.b16 %v3034, %v3030
    %v3271 = vpack.c.b16 %v3035, %v3031
    %v3272 = vpack.c.b16 %v3036, %v3032
    %v3273 = vpack.c.b16 %v3041, %v3037
    %v3274 = vpack.c.b16 %v3042, %v3038
    %v3275 = vpack.c.b16 %v3043, %v3039
    %v3276 = vpack.c.b16 %v3044, %v3040
    %v3277 = vpack.c.b16 %v3049, %v3045
    %v3278 = vpack.c.b16 %v3050, %v3046
    %v3279 = vpack.c.b16 %v3051, %v3047
    %v3280 = vpack.c.b16 %v3052, %v3048
    %v3281 = vpack.c.b16 %v3057, %v3053
    %v3282 = vpack.c.b16 %v3058, %v3054
    %v3283 = vpack.c.b16 %v3059, %v3055
    %v3284 = vpack.c.b16 %v3060, %v3056
    %v3285 = vpack.c.b16 %v3065, %v3061
    %v3286 = vpack.c.b16 %v3066, %v3062
    %v3287 = vpack.c.b16 %v3067, %v3063
    %v3288 = vpack.c.b16 %v3068, %v3064
    %v3289 = vpack.c.b16 %v3073, %v3069
    %v3290 = vpack.c.b16 %v3074, %v3070
    %v3291 = vpack.c.b16 %v3075, %v3071
    %v3292 = vpack.c.b16 %v3076, %v3072
    %v3293 = vpack.c.b16 %v3081, %v3077
    %v3294 = vpack.c.b16 %v3082, %v3078
    %v3295 = vpack.c.b16 %v3083, %v3079
    %v3296 = vpack.c.b16 %v3084, %v3080
    %v3297 = vpack.c.b16 %v3089, %v3085
    %v3298 = vpack.c.b16 %v3090, %v3086
    %v3299 = vpack.c.b16 %v3091, %v3087
    %v3300 = vpack.c.b16 %v3092, %v3088
    %v3301 = vpack.c.b16 %v3097, %v3093
    %v3302 = vpack.c.b16 %v3098, %v3094
    %v3303 = vpack.c.b16 %v3099, %v3095
    %v3304 = vpack.c.b16 %v3100, %v3096
    %v3305 = vpack.c.b16 %v3105, %v3101
    %v3306 = vpack.c.b16 %v3106, %v3102
    %v3307 = vpack.c.b16 %v3107, %v3103
    %v3308 = vpack.c.b16 %v3108, %v3104
    %v3309 = vpack.c.b16 %v3113, %v3109
    %v3310 = vpack.c.b16 %v3114, %v3110
    %v3311 = vpack.c.b16 %v3115, %v3111
    %v3312 = vpack.c.b16 %v3116, %v3112
    %v3313 = vpack.c.b16 %v3121, %v3117
    %v3314 = vpack.c.b16 %v3122, %v3118
    %v3315 = vpack.c.b16 %v3123, %v3119
    %v3316 = vpack.c.b16 %v3124, %v3120
    %v3317 = vpack.c.b16 %v3129, %v3125
    %v3318 = vpack.c.b16 %v3130, %v3126
    %v3319 = vpack.c.b16 %v3131, %v3127
    %v3320 = vpack.c.b16 %v3132, %v3128
    %v3321 = vpack.c.b16 %v3137, %v3133
    %v3322 = vpack.c.b16 %v3138, %v3134
    %v3323 = vpack.c.b16 %v3139, %v3135
    %v3324 = vpack.c.b16 %v3140, %v3136
    %v3325 = vpack.c.b16 %v3145, %v3141
    %v3326 = vpack.c.b16 %v3146, %v3142
    %v3327 = vpack.c.b16 %v3147, %v3143
    %v3328 = vpack.c.b16 %v3148, %v3144
    %v3329 = vpack.c.b16 %v3153, %v3149
    %v3330 = vpack.c.b16 %v3154, %v3150
    %v3331 = vpack.c.b16 %v3155, %v3151
    %v3332 = vpack.c.b16 %v3156, %v3152
    %v3333 = vpack.c.b16 %v3161, %v3157
    %v3334 = vpack.c.b16 %v3162, %v3158
    %v3335 = vpack.c.b16 %v3163, %v3159
    %v3336 = vpack.c.b16 %v3164, %v3160
    %v3337 = vpack.c.b16 %v3169, %v3165
    %v3338 = vpack.c.b16 %v3170, %v3166
    %v3339 = vpack.c.b16 %v3171, %v3167
    %v3340 = vpack.c.b16 %v3172, %v3168
    %v3341 = vpack.c.b16 %v3177, %v3173
    %v3342 = vpack.c.b16 %v3178, %v3174
    %v3343 = vpack.c.b16 %v3179, %v3175
    %v3344 = vpack.c.b16 %v3180, %v3176
    %v3345 = vpack.c.b16 %v3185, %v3181
    %v3346 = vpack.c.b16 %v3186, %v3182
    %v3347 = vpack.c.b16 %v3187, %v3183
    %v3348 = vpack.c.b16 %v3188, %v3184
    %3509 = vmatprep.subr.bf16.mxu0 %v3190
    %3510 = vmatpush1.bf16.msra.mxu0 %v3189
    %3511 = vmatprep.subr.bf16.mxu0 %v3194
    %3512 = vmatpush1.bf16.msra.mxu0 %v3193
    %3513 = vmatprep.subr.bf16.mxu0 %v3198
    %3514 = vmatpush1.bf16.msra.mxu0 %v3197
    %3515 = vmatprep.subr.bf16.mxu0 %v3202
    %3516 = vmatpush1.bf16.msra.mxu0 %v3201
    %3517 = vmatprep.subr.bf16.mxu0 %v3206
    %3518 = vmatpush1.bf16.msra.mxu0 %v3205
    %3519 = vmatprep.subr.bf16.mxu0 %v3210
    %3520 = vmatpush1.bf16.msra.mxu0 %v3209
    %3521 = vmatprep.subr.bf16.mxu0 %v3214
    %3522 = vmatpush1.bf16.msra.mxu0 %v3213
    %3523 = vmatprep.subr.bf16.mxu0 %v3218
    %3524 = vmatpush1.bf16.msra.mxu0 %v3217
    %3525 = vmatprep.subr.bf16.mxu0 %v3222
    %3526 = vmatpush1.bf16.msra.mxu0 %v3221
    %3527 = vmatprep.subr.bf16.mxu0 %v3226
    %3528 = vmatpush1.bf16.msra.mxu0 %v3225
    %3529 = vmatprep.subr.bf16.mxu0 %v3230
    %3530 = vmatpush1.bf16.msra.mxu0 %v3229
    %3531 = vmatprep.subr.bf16.mxu0 %v3234
    %3532 = vmatpush1.bf16.msra.mxu0 %v3233
    %3533 = vmatprep.subr.bf16.mxu0 %v3238
    %3534 = vmatpush1.bf16.msra.mxu0 %v3237
    %3535 = vmatprep.subr.bf16.mxu0 %v3242
    %3536 = vmatpush1.bf16.msra.mxu0 %v3241
    %3537 = vmatprep.subr.bf16.mxu0 %v3246
    %3538 = vmatpush1.bf16.msra.mxu0 %v3245
    %3539 = vmatprep.subr.bf16.mxu0 %v3250
    %3540 = vmatpush1.bf16.msra.mxu0 %v3249
    %3541 = vmatprep.mubr.bf16.mxu0 %v2523
    %3542 = vmatmul.mubr.bf16.gmra.mrb[0].mxu0 %v2522
    %v3543 = vpop.f32.mrb[0].mxu0
    %v3544 = vadd.f32 %v2692, %v3543
    %v3545 = vpop.f32.mrb[0].mxu0
    %v3546 = vadd.f32 %v2696, %v3545
    %v3547 = vpop.f32.mrb[0].mxu0
    %v3548 = vpop.f32.mrb[0].mxu0
    %3549 = vdwg.mxu0
    %3550 = vmatprep.subr.bf16.mxu0 %v3254
    %3551 = vmatpush1.bf16.msra.mxu0 %v3253
    %3552 = vmatprep.subr.bf16.mxu0 %v3258
    %3553 = vmatpush1.bf16.msra.mxu0 %v3257
    %3554 = vmatprep.subr.bf16.mxu0 %v3262
    %3555 = vmatpush1.bf16.msra.mxu0 %v3261
    %3556 = vmatprep.subr.bf16.mxu0 %v3266
    %3557 = vmatpush1.bf16.msra.mxu0 %v3265
    %3558 = vmatprep.subr.bf16.mxu0 %v3270
    %3559 = vmatpush1.bf16.msra.mxu0 %v3269
    %3560 = vmatprep.subr.bf16.mxu0 %v3274
    %3561 = vmatpush1.bf16.msra.mxu0 %v3273
    %3562 = vmatprep.subr.bf16.mxu0 %v3278
    %3563 = vmatpush1.bf16.msra.mxu0 %v3277
    %3564 = vmatprep.subr.bf16.mxu0 %v3282
    %3565 = vmatpush1.bf16.msra.mxu0 %v3281
    %3566 = vmatprep.subr.bf16.mxu0 %v3286
    %3567 = vmatpush1.bf16.msra.mxu0 %v3285
    %3568 = vmatprep.subr.bf16.mxu0 %v3290
    %3569 = vmatpush1.bf16.msra.mxu0 %v3289
    %3570 = vmatprep.subr.bf16.mxu0 %v3294
    %3571 = vmatpush1.bf16.msra.mxu0 %v3293
    %3572 = vmatprep.subr.bf16.mxu0 %v3298
    %3573 = vmatpush1.bf16.msra.mxu0 %v3297
    %3574 = vmatprep.subr.bf16.mxu0 %v3302
    %3575 = vmatpush1.bf16.msra.mxu0 %v3301
    %3576 = vmatprep.subr.bf16.mxu0 %v3306
    %3577 = vmatpush1.bf16.msra.mxu0 %v3305
    %3578 = vmatprep.subr.bf16.mxu0 %v3310
    %3579 = vmatpush1.bf16.msra.mxu0 %v3309
    %3580 = vmatprep.subr.bf16.mxu0 %v3314
    %3581 = vmatpush1.bf16.msra.mxu0 %v3313
    %3582 = vmatprep.mubr.bf16.mxu0 %v2525
    %3583 = vmatmul.mubr.bf16.gmra.mrb[0].mxu0 %v2524
    %v3584 = vpop.f32.mrb[0].mxu0
    %v3585 = vadd.f32 %v3544, %v3584
    %v3586 = vpop.f32.mrb[0].mxu0
    %v3587 = vadd.f32 %v3546, %v3586
    %v3588 = vpop.f32.mrb[0].mxu0
    %v3589 = vpop.f32.mrb[0].mxu0
    %3590 = vdwg.mxu0
    %3591 = vmatprep.subr.bf16.mxu0 %v3318
    %3592 = vmatpush1.bf16.msra.mxu0 %v3317
    %3593 = vmatprep.subr.bf16.mxu0 %v3322
    %3594 = vmatpush1.bf16.msra.mxu0 %v3321
    %3595 = vmatprep.subr.bf16.mxu0 %v3326
    %3596 = vmatpush1.bf16.msra.mxu0 %v3325
    %3597 = vmatprep.subr.bf16.mxu0 %v3330
    %3598 = vmatpush1.bf16.msra.mxu0 %v3329
    %3599 = vmatprep.subr.bf16.mxu0 %v3334
    %3600 = vmatpush1.bf16.msra.mxu0 %v3333
    %3601 = vmatprep.subr.bf16.mxu0 %v3338
    %3602 = vmatpush1.bf16.msra.mxu0 %v3337
    %3603 = vmatprep.subr.bf16.mxu0 %v3342
    %3604 = vmatpush1.bf16.msra.mxu0 %v3341
    %3605 = vmatprep.subr.bf16.mxu0 %v3346
    %3606 = vmatpush1.bf16.msra.mxu0 %v3345
    %3607 = vmatprep.subr.bf16.mxu0 0
    %3608 = vmatpush1.bf16.msra.mxu0 0
    %3609 = vmatprep.subr.bf16.mxu0 0
    %3610 = vmatpush1.bf16.msra.mxu0 0
    %3611 = vmatprep.subr.bf16.mxu0 0
    %3612 = vmatpush1.bf16.msra.mxu0 0
    %3613 = vmatprep.subr.bf16.mxu0 0
    %3614 = vmatpush1.bf16.msra.mxu0 0
    %3615 = vmatprep.subr.bf16.mxu0 0
    %3616 = vmatpush1.bf16.msra.mxu0 0
    %3617 = vmatprep.subr.bf16.mxu0 0
    %3618 = vmatpush1.bf16.msra.mxu0 0
    %3619 = vmatprep.subr.bf16.mxu0 0
    %3620 = vmatpush1.bf16.msra.mxu0 0
    %3621 = vmatprep.subr.bf16.mxu0 0
    %3622 = vmatpush1.bf16.msra.mxu0 0
    %3623 = vmatprep.mubr.bf16.mxu0 0
    %3624 = vmatmul.mubr.bf16.gmra.mrb[0].mxu0 %v2526
    %v3625 = vpop.f32.mrb[0].mxu0
    %v3626 = vadd.f32 %v3585, %v3625
    %v3627 = vpop.f32.mrb[0].mxu0
    %v3628 = vadd.f32 %v3587, %v3627
    %v3629 = vpop.f32.mrb[0].mxu0
    %v3630 = vpop.f32.mrb[0].mxu0
    %3631 = vdwg.mxu0
    %3632 = vmatprep.subr.bf16.mxu0 %v3192
    %3633 = vmatpush1.bf16.msra.mxu0 %v3191
    %3634 = vmatprep.subr.bf16.mxu0 %v3196
    %3635 = vmatpush1.bf16.msra.mxu0 %v3195
    %3636 = vmatprep.subr.bf16.mxu0 %v3200
    %3637 = vmatpush1.bf16.msra.mxu0 %v3199
    %3638 = vmatprep.subr.bf16.mxu0 %v3204
    %3639 = vmatpush1.bf16.msra.mxu0 %v3203
    %3640 = vmatprep.subr.bf16.mxu0 %v3208
    %3641 = vmatpush1.bf16.msra.mxu0 %v3207
    %3642 = vmatprep.subr.bf16.mxu0 %v3212
    %3643 = vmatpush1.bf16.msra.mxu0 %v3211
    %3644 = vmatprep.subr.bf16.mxu0 %v3216
    %3645 = vmatpush1.bf16.msra.mxu0 %v3215
    %3646 = vmatprep.subr.bf16.mxu0 %v3220
    %3647 = vmatpush1.bf16.msra.mxu0 %v3219
    %3648 = vmatprep.subr.bf16.mxu0 %v3224
    %3649 = vmatpush1.bf16.msra.mxu0 %v3223
    %3650 = vmatprep.subr.bf16.mxu0 %v3228
    %3651 = vmatpush1.bf16.msra.mxu0 %v3227
    %3652 = vmatprep.subr.bf16.mxu0 %v3232
    %3653 = vmatpush1.bf16.msra.mxu0 %v3231
    %3654 = vmatprep.subr.bf16.mxu0 %v3236
    %3655 = vmatpush1.bf16.msra.mxu0 %v3235
    %3656 = vmatprep.subr.bf16.mxu0 %v3240
    %3657 = vmatpush1.bf16.msra.mxu0 %v3239
    %3658 = vmatprep.subr.bf16.mxu0 %v3244
    %3659 = vmatpush1.bf16.msra.mxu0 %v3243
    %3660 = vmatprep.subr.bf16.mxu0 %v3248
    %3661 = vmatpush1.bf16.msra.mxu0 %v3247
    %3662 = vmatprep.subr.bf16.mxu0 %v3252
    %3663 = vmatpush1.bf16.msra.mxu0 %v3251
    %3664 = vmatprep.mubr.bf16.mxu0 %v2523
    %3665 = vmatmul.mubr.bf16.gmra.mrb[0].mxu0 %v2522
    %v3666 = vpop.f32.mrb[0].mxu0
    %v3667 = vadd.f32 %v2700, %v3666
    %v3668 = vpop.f32.mrb[0].mxu0
    %v3669 = vadd.f32 %v2704, %v3668
    %v3670 = vpop.f32.mrb[0].mxu0
    %v3671 = vpop.f32.mrb[0].mxu0
    %3672 = vdwg.mxu0
    %3673 = vmatprep.subr.bf16.mxu0 %v3256
    %3674 = vmatpush1.bf16.msra.mxu0 %v3255
    %3675 = vmatprep.subr.bf16.mxu0 %v3260
    %3676 = vmatpush1.bf16.msra.mxu0 %v3259
    %3677 = vmatprep.subr.bf16.mxu0 %v3264
    %3678 = vmatpush1.bf16.msra.mxu0 %v3263
    %3679 = vmatprep.subr.bf16.mxu0 %v3268
    %3680 = vmatpush1.bf16.msra.mxu0 %v3267
    %3681 = vmatprep.subr.bf16.mxu0 %v3272
    %3682 = vmatpush1.bf16.msra.mxu0 %v3271
    %3683 = vmatprep.subr.bf16.mxu0 %v3276
    %3684 = vmatpush1.bf16.msra.mxu0 %v3275
    %3685 = vmatprep.subr.bf16.mxu0 %v3280
    %3686 = vmatpush1.bf16.msra.mxu0 %v3279
    %3687 = vmatprep.subr.bf16.mxu0 %v3284
    %3688 = vmatpush1.bf16.msra.mxu0 %v3283
    %3689 = vmatprep.subr.bf16.mxu0 %v3288
    %3690 = vmatpush1.bf16.msra.mxu0 %v3287
    %3691 = vmatprep.subr.bf16.mxu0 %v3292
    %3692 = vmatpush1.bf16.msra.mxu0 %v3291
    %3693 = vmatprep.subr.bf16.mxu0 %v3296
    %3694 = vmatpush1.bf16.msra.mxu0 %v3295
    %3695 = vmatprep.subr.bf16.mxu0 %v3300
    %3696 = vmatpush1.bf16.msra.mxu0 %v3299
    %3697 = vmatprep.subr.bf16.mxu0 %v3304
    %3698 = vmatpush1.bf16.msra.mxu0 %v3303
    %3699 = vmatprep.subr.bf16.mxu0 %v3308
    %3700 = vmatpush1.bf16.msra.mxu0 %v3307
    %3701 = vmatprep.subr.bf16.mxu0 %v3312
    %3702 = vmatpush1.bf16.msra.mxu0 %v3311
    %3703 = vmatprep.subr.bf16.mxu0 %v3316
    %3704 = vmatpush1.bf16.msra.mxu0 %v3315
    %3705 = vmatprep.mubr.bf16.mxu0 %v2525
    %3706 = vmatmul.mubr.bf16.gmra.mrb[0].mxu0 %v2524
    %v3707 = vpop.f32.mrb[0].mxu0
    %v3708 = vadd.f32 %v3667, %v3707
    %v3709 = vpop.f32.mrb[0].mxu0
    %v3710 = vadd.f32 %v3669, %v3709
    %v3711 = vpop.f32.mrb[0].mxu0
    %v3712 = vpop.f32.mrb[0].mxu0
    %3713 = vdwg.mxu0
    %3714 = vmatprep.subr.bf16.mxu0 %v3320
    %3715 = vmatpush1.bf16.msra.mxu0 %v3319
    %3716 = vmatprep.subr.bf16.mxu0 %v3324
    %3717 = vmatpush1.bf16.msra.mxu0 %v3323
    %3718 = vmatprep.subr.bf16.mxu0 %v3328
    %3719 = vmatpush1.bf16.msra.mxu0 %v3327
    %3720 = vmatprep.subr.bf16.mxu0 %v3332
    %3721 = vmatpush1.bf16.msra.mxu0 %v3331
    %3722 = vmatprep.subr.bf16.mxu0 %v3336
    %3723 = vmatpush1.bf16.msra.mxu0 %v3335
    %3724 = vmatprep.subr.bf16.mxu0 %v3340
    %3725 = vmatpush1.bf16.msra.mxu0 %v3339
    %3726 = vmatprep.subr.bf16.mxu0 %v3344
    %3727 = vmatpush1.bf16.msra.mxu0 %v3343
    %3728 = vmatprep.subr.bf16.mxu0 %v3348
    %3729 = vmatpush1.bf16.msra.mxu0 %v3347
    %3730 = vmatprep.subr.bf16.mxu0 0
    %3731 = vmatpush1.bf16.msra.mxu0 0
    %3732 = vmatprep.subr.bf16.mxu0 0
    %3733 = vmatpush1.bf16.msra.mxu0 0
    %3734 = vmatprep.subr.bf16.mxu0 0
    %3735 = vmatpush1.bf16.msra.mxu0 0
    %3736 = vmatprep.subr.bf16.mxu0 0
    %3737 = vmatpush1.bf16.msra.mxu0 0
    %3738 = vmatprep.subr.bf16.mxu0 0
    %3739 = vmatpush1.bf16.msra.mxu0 0
    %3740 = vmatprep.subr.bf16.mxu0 0
    %3741 = vmatpush1.bf16.msra.mxu0 0
    %3742 = vmatprep.subr.bf16.mxu0 0
    %3743 = vmatpush1.bf16.msra.mxu0 0
    %3744 = vmatprep.subr.bf16.mxu0 0
    %3745 = vmatpush1.bf16.msra.mxu0 0
    %3746 = vmatprep.mubr.bf16.mxu0 0
    %3747 = vmatmul.mubr.bf16.gmra.mrb[0].mxu0 %v2526
    %v3748 = vpop.f32.mrb[0].mxu0
    %v3749 = vadd.f32 %v3708, %v3748
    %v3750 = vpop.f32.mrb[0].mxu0
    %v3751 = vadd.f32 %v3710, %v3750
    %v3752 = vpop.f32.mrb[0].mxu0
    %v3753 = vpop.f32.mrb[0].mxu0
    %3754 = vdwg.mxu0
    %v3755 = vtanh.pop %v3626
    %v3756 = vtanh.pop %v3628
    %v3757 = vtanh.pop %v3749
    %v3758 = vtanh.pop %v3751
    %v3759 = vpack.c.bf16 %v3755, %v3755
    %v3760 = vpack.c.bf16 %v3756, %v3756
    %v3761 = vpack.c.bf16 %v3757, %v3757
    %v3762 = vpack.c.bf16 %v3758, %v3758
    %v3763 = vld [vmem:[#allocation13] sm:$0xff]
    %v3764 = vld [vmem:[#allocation13 + $0x8] sm:$0xff]
    %v3765 = vld [vmem:[#allocation13 + $0x10] sm:$0xff]
    %v3766 = vld [vmem:[#allocation13 + $0x18] sm:$0xff]
    %v3767 = vld [vmem:[#allocation13 + $0x20] sm:$0xff]
    %v3768 = vld [vmem:[#allocation13 + $0x28] sm:$0xff]
    %v3769 = vld [vmem:[#allocation13 + $0x30] sm:$0xff]
    %v3770 = vld [vmem:[#allocation13 + $0x38] sm:$0xff]
    %v3771 = vld [vmem:[#allocation13 + $0x40] sm:$0xff]
    %v3772 = vld [vmem:[#allocation13 + $0x48] sm:$0xff]
    %v3773 = vld [vmem:[#allocation13 + $0x50] sm:$0xff]
    %v3774 = vld [vmem:[#allocation13 + $0x58] sm:$0xff]
    %v3775 = vld [vmem:[#allocation13 + $0x60] sm:$0xff]
    %v3776 = vld [vmem:[#allocation13 + $0x68] sm:$0xff]
    %v3777 = vld [vmem:[#allocation13 + $0x70] sm:$0xff]
    %v3778 = vld [vmem:[#allocation13 + $0x78] sm:$0xff]
    %v3779 = vld [vmem:[#allocation13 + $0x80] sm:$0xff]
    %v3780 = vld [vmem:[#allocation13 + $0x88] sm:$0xff]
    %v3781 = vld [vmem:[#allocation13 + $0x90] sm:$0xff]
    %v3782 = vld [vmem:[#allocation13 + $0x98] sm:$0xff]
    %v3783 = vld [vmem:[#allocation13 + $0xa0] sm:$0xff]
    %v3784 = vld [vmem:[#allocation13 + $0xa8] sm:$0xff]
    %v3785 = vld [vmem:[#allocation13 + $0xb0] sm:$0xff]
    %v3786 = vld [vmem:[#allocation13 + $0xb8] sm:$0xff]
    %v3787 = vld [vmem:[#allocation13 + $0xc0] sm:$0xff]
    %v3788 = vld [vmem:[#allocation13 + $0xc8] sm:$0xff]
    %v3789 = vld [vmem:[#allocation13 + $0xd0] sm:$0xff]
    %v3790 = vld [vmem:[#allocation13 + $0xd8] sm:$0xff]
    %v3791 = vld [vmem:[#allocation13 + $0xe0] sm:$0xff]
    %v3792 = vld [vmem:[#allocation13 + $0xe8] sm:$0xff]
    %v3793 = vld [vmem:[#allocation13 + $0xf0] sm:$0xff]
    %v3794 = vld [vmem:[#allocation13 + $0xf8] sm:$0xff]
    %v3795 = vld [vmem:[#allocation13 + $0x100] sm:$0xff]
    %v3796 = vld [vmem:[#allocation13 + $0x108] sm:$0xff]
    %v3797 = vld [vmem:[#allocation13 + $0x110] sm:$0xff]
    %v3798 = vld [vmem:[#allocation13 + $0x118] sm:$0xff]
    %v3799 = vld [vmem:[#allocation13 + $0x120] sm:$0xff]
    %v3800 = vld [vmem:[#allocation13 + $0x128] sm:$0xff]
    %v3801 = vld [vmem:[#allocation13 + $0x130] sm:$0xff]
    %v3802 = vld [vmem:[#allocation13 + $0x138] sm:$0xff]
    %v3803 = vld [vmem:[#allocation13 + $0x140] sm:$0xff]
    %v3804 = vld [vmem:[#allocation13 + $0x148] sm:$0xff]
    %v3805 = vld [vmem:[#allocation13 + $0x150] sm:$0xff]
    %v3806 = vld [vmem:[#allocation13 + $0x158] sm:$0xff]
    %v3807 = vld [vmem:[#allocation13 + $0x160] sm:$0xff]
    %v3808 = vld [vmem:[#allocation13 + $0x168] sm:$0xff]
    %v3809 = vld [vmem:[#allocation13 + $0x170] sm:$0xff]
    %v3810 = vld [vmem:[#allocation13 + $0x178] sm:$0xff]
    %v3811 = vld [vmem:[#allocation13 + $0x180] sm:$0xff]
    %v3812 = vld [vmem:[#allocation13 + $0x188] sm:$0xff]
    %v3813 = vld [vmem:[#allocation13 + $0x190] sm:$0xff]
    %v3814 = vld [vmem:[#allocation13 + $0x198] sm:$0xff]
    %v3815 = vld [vmem:[#allocation13 + $0x1a0] sm:$0xff]
    %v3816 = vld [vmem:[#allocation13 + $0x1a8] sm:$0xff]
    %v3817 = vld [vmem:[#allocation13 + $0x1b0] sm:$0xff]
    %v3818 = vld [vmem:[#allocation13 + $0x1b8] sm:$0xff]
    %v3819 = vld [vmem:[#allocation13 + $0x1c0] sm:$0xff]
    %v3820 = vld [vmem:[#allocation13 + $0x1c8] sm:$0xff]
    %v3821 = vld [vmem:[#allocation13 + $0x1d0] sm:$0xff]
    %v3822 = vld [vmem:[#allocation13 + $0x1d8] sm:$0xff]
    %v3823 = vld [vmem:[#allocation13 + $0x1e0] sm:$0xff]
    %v3824 = vld [vmem:[#allocation13 + $0x1e8] sm:$0xff]
    %v3825 = vld [vmem:[#allocation13 + $0x1f0] sm:$0xff]
    %v3826 = vld [vmem:[#allocation13 + $0x1f8] sm:$0xff]
    %v3827 = vld [vmem:[#allocation13 + $0x200] sm:$0xff]
    %v3828 = vld [vmem:[#allocation13 + $0x208] sm:$0xff]
    %v3829 = vld [vmem:[#allocation13 + $0x210] sm:$0xff]
    %v3830 = vld [vmem:[#allocation13 + $0x218] sm:$0xff]
    %v3831 = vld [vmem:[#allocation13 + $0x220] sm:$0xff]
    %v3832 = vld [vmem:[#allocation13 + $0x228] sm:$0xff]
    %v3833 = vld [vmem:[#allocation13 + $0x230] sm:$0xff]
    %v3834 = vld [vmem:[#allocation13 + $0x238] sm:$0xff]
    %v3835 = vld [vmem:[#allocation13 + $0x240] sm:$0xff]
    %v3836 = vld [vmem:[#allocation13 + $0x248] sm:$0xff]
    %v3837 = vld [vmem:[#allocation13 + $0x250] sm:$0xff]
    %v3838 = vld [vmem:[#allocation13 + $0x258] sm:$0xff]
    %v3839 = vld [vmem:[#allocation13 + $0x260] sm:$0xff]
    %v3840 = vld [vmem:[#allocation13 + $0x268] sm:$0xff]
    %v3841 = vld [vmem:[#allocation13 + $0x270] sm:$0xff]
    %v3842 = vld [vmem:[#allocation13 + $0x278] sm:$0xff]
    %v3843 = vld [vmem:[#allocation13 + $0x280] sm:$0xff]
    %v3844 = vld [vmem:[#allocation13 + $0x288] sm:$0xff]
    %v3845 = vld [vmem:[#allocation13 + $0x290] sm:$0xff]
    %v3846 = vld [vmem:[#allocation13 + $0x298] sm:$0xff]
    %v3847 = vld [vmem:[#allocation13 + $0x2a0] sm:$0xff]
    %v3848 = vld [vmem:[#allocation13 + $0x2a8] sm:$0xff]
    %v3849 = vld [vmem:[#allocation13 + $0x2b0] sm:$0xff]
    %v3850 = vld [vmem:[#allocation13 + $0x2b8] sm:$0xff]
    %v3851 = vld [vmem:[#allocation13 + $0x2c0] sm:$0xff]
    %v3852 = vld [vmem:[#allocation13 + $0x2c8] sm:$0xff]
    %v3853 = vld [vmem:[#allocation13 + $0x2d0] sm:$0xff]
    %v3854 = vld [vmem:[#allocation13 + $0x2d8] sm:$0xff]
    %v3855 = vld [vmem:[#allocation13 + $0x2e0] sm:$0xff]
    %v3856 = vld [vmem:[#allocation13 + $0x2e8] sm:$0xff]
    %v3857 = vld [vmem:[#allocation13 + $0x2f0] sm:$0xff]
    %v3858 = vld [vmem:[#allocation13 + $0x2f8] sm:$0xff]
    %v3859 = vld [vmem:[#allocation13 + $0x300] sm:$0xff]
    %v3860 = vld [vmem:[#allocation13 + $0x308] sm:$0xff]
    %v3861 = vld [vmem:[#allocation13 + $0x310] sm:$0xff]
    %v3862 = vld [vmem:[#allocation13 + $0x318] sm:$0xff]
    %v3863 = vld [vmem:[#allocation13 + $0x320] sm:$0xff]
    %v3864 = vld [vmem:[#allocation13 + $0x328] sm:$0xff]
    %v3865 = vld [vmem:[#allocation13 + $0x330] sm:$0xff]
    %v3866 = vld [vmem:[#allocation13 + $0x338] sm:$0xff]
    %v3867 = vld [vmem:[#allocation13 + $0x340] sm:$0xff]
    %v3868 = vld [vmem:[#allocation13 + $0x348] sm:$0xff]
    %v3869 = vld [vmem:[#allocation13 + $0x350] sm:$0xff]
    %v3870 = vld [vmem:[#allocation13 + $0x358] sm:$0xff]
    %v3871 = vld [vmem:[#allocation13 + $0x360] sm:$0xff]
    %v3872 = vld [vmem:[#allocation13 + $0x368] sm:$0xff]
    %v3873 = vld [vmem:[#allocation13 + $0x370] sm:$0xff]
    %v3874 = vld [vmem:[#allocation13 + $0x378] sm:$0xff]
    %v3875 = vld [vmem:[#allocation13 + $0x380] sm:$0xff]
    %v3876 = vld [vmem:[#allocation13 + $0x388] sm:$0xff]
    %v3877 = vld [vmem:[#allocation13 + $0x390] sm:$0xff]
    %v3878 = vld [vmem:[#allocation13 + $0x398] sm:$0xff]
    %v3879 = vld [vmem:[#allocation13 + $0x3a0] sm:$0xff]
    %v3880 = vld [vmem:[#allocation13 + $0x3a8] sm:$0xff]
    %v3881 = vld [vmem:[#allocation13 + $0x3b0] sm:$0xff]
    %v3882 = vld [vmem:[#allocation13 + $0x3b8] sm:$0xff]
    %v3883 = vld [vmem:[#allocation13 + $0x3c0] sm:$0xff]
    %v3884 = vld [vmem:[#allocation13 + $0x3c8] sm:$0xff]
    %v3885 = vld [vmem:[#allocation13 + $0x3d0] sm:$0xff]
    %v3886 = vld [vmem:[#allocation13 + $0x3d8] sm:$0xff]
    %v3887 = vld [vmem:[#allocation13 + $0x3e0] sm:$0xff]
    %v3888 = vld [vmem:[#allocation13 + $0x3e8] sm:$0xff]
    %v3889 = vld [vmem:[#allocation13 + $0x3f0] sm:$0xff]
    %v3890 = vld [vmem:[#allocation13 + $0x3f8] sm:$0xff]
    %v3891 = vld [vmem:[#allocation13 + $0x400] sm:$0xff]
    %v3892 = vld [vmem:[#allocation13 + $0x408] sm:$0xff]
    %v3893 = vld [vmem:[#allocation13 + $0x410] sm:$0xff]
    %v3894 = vld [vmem:[#allocation13 + $0x418] sm:$0xff]
    %v3895 = vld [vmem:[#allocation13 + $0x420] sm:$0xff]
    %v3896 = vld [vmem:[#allocation13 + $0x428] sm:$0xff]
    %v3897 = vld [vmem:[#allocation13 + $0x430] sm:$0xff]
    %v3898 = vld [vmem:[#allocation13 + $0x438] sm:$0xff]
    %v3899 = vld [vmem:[#allocation13 + $0x440] sm:$0xff]
    %v3900 = vld [vmem:[#allocation13 + $0x448] sm:$0xff]
    %v3901 = vld [vmem:[#allocation13 + $0x450] sm:$0xff]
    %v3902 = vld [vmem:[#allocation13 + $0x458] sm:$0xff]
    %v3903 = vld [vmem:[#allocation13 + $0x460] sm:$0xff]
    %v3904 = vld [vmem:[#allocation13 + $0x468] sm:$0xff]
    %v3905 = vld [vmem:[#allocation13 + $0x470] sm:$0xff]
    %v3906 = vld [vmem:[#allocation13 + $0x478] sm:$0xff]
    %v3907 = vld [vmem:[#allocation13 + $0x480] sm:$0xff]
    %v3908 = vld [vmem:[#allocation13 + $0x488] sm:$0xff]
    %v3909 = vld [vmem:[#allocation13 + $0x490] sm:$0xff]
    %v3910 = vld [vmem:[#allocation13 + $0x498] sm:$0xff]
    %v3911 = vld [vmem:[#allocation13 + $0x4a0] sm:$0xff]
    %v3912 = vld [vmem:[#allocation13 + $0x4a8] sm:$0xff]
    %v3913 = vld [vmem:[#allocation13 + $0x4b0] sm:$0xff]
    %v3914 = vld [vmem:[#allocation13 + $0x4b8] sm:$0xff]
    %v3915 = vld [vmem:[#allocation13 + $0x4c0] sm:$0xff]
    %v3916 = vld [vmem:[#allocation13 + $0x4c8] sm:$0xff]
    %v3917 = vld [vmem:[#allocation13 + $0x4d0] sm:$0xff]
    %v3918 = vld [vmem:[#allocation13 + $0x4d8] sm:$0xff]
    %v3919 = vld [vmem:[#allocation13 + $0x4e0] sm:$0xff]
    %v3920 = vld [vmem:[#allocation13 + $0x4e8] sm:$0xff]
    %v3921 = vld [vmem:[#allocation13 + $0x4f0] sm:$0xff]
    %v3922 = vld [vmem:[#allocation13 + $0x4f8] sm:$0xff]
    %v3923 = vld [vmem:[#allocation13 + $0x500] sm:$0xff]
    %v3924 = vld [vmem:[#allocation13 + $0x508] sm:$0xff]
    %v3925 = vld [vmem:[#allocation13 + $0x510] sm:$0xff]
    %v3926 = vld [vmem:[#allocation13 + $0x518] sm:$0xff]
    %v3927 = vld [vmem:[#allocation13 + $0x520] sm:$0xff]
    %v3928 = vld [vmem:[#allocation13 + $0x528] sm:$0xff]
    %v3929 = vld [vmem:[#allocation13 + $0x530] sm:$0xff]
    %v3930 = vld [vmem:[#allocation13 + $0x538] sm:$0xff]
    %v3931 = vld [vmem:[#allocation13 + $0x540] sm:$0xff]
    %v3932 = vld [vmem:[#allocation13 + $0x548] sm:$0xff]
    %v3933 = vld [vmem:[#allocation13 + $0x550] sm:$0xff]
    %v3934 = vld [vmem:[#allocation13 + $0x558] sm:$0xff]
    %v3935 = vld [vmem:[#allocation13 + $0x560] sm:$0xff]
    %v3936 = vld [vmem:[#allocation13 + $0x568] sm:$0xff]
    %v3937 = vld [vmem:[#allocation13 + $0x570] sm:$0xff]
    %v3938 = vld [vmem:[#allocation13 + $0x578] sm:$0xff]
    %v3939 = vld [vmem:[#allocation13 + $0x580] sm:$0xff]
    %v3940 = vld [vmem:[#allocation13 + $0x588] sm:$0xff]
    %v3941 = vld [vmem:[#allocation13 + $0x590] sm:$0xff]
    %v3942 = vld [vmem:[#allocation13 + $0x598] sm:$0xff]
    %v3943 = vld [vmem:[#allocation13 + $0x5a0] sm:$0xff]
    %v3944 = vld [vmem:[#allocation13 + $0x5a8] sm:$0xff]
    %v3945 = vld [vmem:[#allocation13 + $0x5b0] sm:$0xff]
    %v3946 = vld [vmem:[#allocation13 + $0x5b8] sm:$0xff]
    %v3947 = vld [vmem:[#allocation13 + $0x5c0] sm:$0xff]
    %v3948 = vld [vmem:[#allocation13 + $0x5c8] sm:$0xff]
    %v3949 = vld [vmem:[#allocation13 + $0x5d0] sm:$0xff]
    %v3950 = vld [vmem:[#allocation13 + $0x5d8] sm:$0xff]
    %v3951 = vld [vmem:[#allocation13 + $0x5e0] sm:$0xff]
    %v3952 = vld [vmem:[#allocation13 + $0x5e8] sm:$0xff]
    %v3953 = vld [vmem:[#allocation13 + $0x5f0] sm:$0xff]
    %v3954 = vld [vmem:[#allocation13 + $0x5f8] sm:$0xff]
    %v3955 = vld [vmem:[#allocation13 + $0x600] sm:$0xff]
    %v3956 = vld [vmem:[#allocation13 + $0x608] sm:$0xff]
    %v3957 = vld [vmem:[#allocation13 + $0x610] sm:$0xff]
    %v3958 = vld [vmem:[#allocation13 + $0x618] sm:$0xff]
    %v3959 = vld [vmem:[#allocation13 + $0x620] sm:$0xff]
    %v3960 = vld [vmem:[#allocation13 + $0x628] sm:$0xff]
    %v3961 = vld [vmem:[#allocation13 + $0x630] sm:$0xff]
    %v3962 = vld [vmem:[#allocation13 + $0x638] sm:$0xff]
    %v3963 = vld [vmem:[#allocation13 + $0x640] sm:$0xff]
    %v3964 = vld [vmem:[#allocation13 + $0x648] sm:$0xff]
    %v3965 = vld [vmem:[#allocation13 + $0x650] sm:$0xff]
    %v3966 = vld [vmem:[#allocation13 + $0x658] sm:$0xff]
    %v3967 = vld [vmem:[#allocation13 + $0x660] sm:$0xff]
    %v3968 = vld [vmem:[#allocation13 + $0x668] sm:$0xff]
    %v3969 = vld [vmem:[#allocation13 + $0x670] sm:$0xff]
    %v3970 = vld [vmem:[#allocation13 + $0x678] sm:$0xff]
    %v3971 = vld [vmem:[#allocation13 + $0x680] sm:$0xff]
    %v3972 = vld [vmem:[#allocation13 + $0x688] sm:$0xff]
    %v3973 = vld [vmem:[#allocation13 + $0x690] sm:$0xff]
    %v3974 = vld [vmem:[#allocation13 + $0x698] sm:$0xff]
    %v3975 = vld [vmem:[#allocation13 + $0x6a0] sm:$0xff]
    %v3976 = vld [vmem:[#allocation13 + $0x6a8] sm:$0xff]
    %v3977 = vld [vmem:[#allocation13 + $0x6b0] sm:$0xff]
    %v3978 = vld [vmem:[#allocation13 + $0x6b8] sm:$0xff]
    %v3979 = vld [vmem:[#allocation13 + $0x6c0] sm:$0xff]
    %v3980 = vld [vmem:[#allocation13 + $0x6c8] sm:$0xff]
    %v3981 = vld [vmem:[#allocation13 + $0x6d0] sm:$0xff]
    %v3982 = vld [vmem:[#allocation13 + $0x6d8] sm:$0xff]
    %v3983 = vld [vmem:[#allocation13 + $0x6e0] sm:$0xff]
    %v3984 = vld [vmem:[#allocation13 + $0x6e8] sm:$0xff]
    %v3985 = vld [vmem:[#allocation13 + $0x6f0] sm:$0xff]
    %v3986 = vld [vmem:[#allocation13 + $0x6f8] sm:$0xff]
    %v3987 = vld [vmem:[#allocation13 + $0x700] sm:$0xff]
    %v3988 = vld [vmem:[#allocation13 + $0x708] sm:$0xff]
    %v3989 = vld [vmem:[#allocation13 + $0x710] sm:$0xff]
    %v3990 = vld [vmem:[#allocation13 + $0x718] sm:$0xff]
    %v3991 = vld [vmem:[#allocation13 + $0x720] sm:$0xff]
    %v3992 = vld [vmem:[#allocation13 + $0x728] sm:$0xff]
    %v3993 = vld [vmem:[#allocation13 + $0x730] sm:$0xff]
    %v3994 = vld [vmem:[#allocation13 + $0x738] sm:$0xff]
    %v3995 = vld [vmem:[#allocation13 + $0x740] sm:$0xff]
    %v3996 = vld [vmem:[#allocation13 + $0x748] sm:$0xff]
    %v3997 = vld [vmem:[#allocation13 + $0x750] sm:$0xff]
    %v3998 = vld [vmem:[#allocation13 + $0x758] sm:$0xff]
    %v3999 = vld [vmem:[#allocation13 + $0x760] sm:$0xff]
    %v4000 = vld [vmem:[#allocation13 + $0x768] sm:$0xff]
    %v4001 = vld [vmem:[#allocation13 + $0x770] sm:$0xff]
    %v4002 = vld [vmem:[#allocation13 + $0x778] sm:$0xff]
    %v4003 = vld [vmem:[#allocation13 + $0x780] sm:$0xff]
    %v4004 = vld [vmem:[#allocation13 + $0x788] sm:$0xff]
    %v4005 = vld [vmem:[#allocation13 + $0x790] sm:$0xff]
    %v4006 = vld [vmem:[#allocation13 + $0x798] sm:$0xff]
    %v4007 = vld [vmem:[#allocation13 + $0x7a0] sm:$0xff]
    %v4008 = vld [vmem:[#allocation13 + $0x7a8] sm:$0xff]
    %v4009 = vld [vmem:[#allocation13 + $0x7b0] sm:$0xff]
    %v4010 = vld [vmem:[#allocation13 + $0x7b8] sm:$0xff]
    %v4011 = vld [vmem:[#allocation13 + $0x7c0] sm:$0xff]
    %v4012 = vld [vmem:[#allocation13 + $0x7c8] sm:$0xff]
    %v4013 = vld [vmem:[#allocation13 + $0x7d0] sm:$0xff]
    %v4014 = vld [vmem:[#allocation13 + $0x7d8] sm:$0xff]
    %v4015 = vld [vmem:[#allocation13 + $0x7e0] sm:$0xff]
    %v4016 = vld [vmem:[#allocation13 + $0x7e8] sm:$0xff]
    %v4017 = vld [vmem:[#allocation13 + $0x7f0] sm:$0xff]
    %v4018 = vld [vmem:[#allocation13 + $0x7f8] sm:$0xff]
    %v4019 = vld [vmem:[#allocation14] sm:$0xff]
    %v4021 = vlaneseq
    %v4022 = vshrl.u32 %v4021, 7
    %v4023 = vsub.s32 0, %v4022
    %v4024 = vrot.slane %v4019, %v4023
    %v4025 = vlaneseq
    %v4026 = vshrl.u32 %v4025, 7
    %v4027 = vsub.s32 1, %v4026
    %v4028 = vrot.slane %v4019, %v4027
    %v4029 = vlaneseq
    %v4030 = vshrl.u32 %v4029, 7
    %v4031 = vsub.s32 2, %v4030
    %v4032 = vrot.slane %v4019, %v4031
    %v4033 = vlaneseq
    %v4034 = vshrl.u32 %v4033, 7
    %v4035 = vsub.s32 3, %v4034
    %v4036 = vrot.slane %v4019, %v4035
    %v4037 = vlaneseq
    %v4038 = vshrl.u32 %v4037, 7
    %v4039 = vsub.s32 4, %v4038
    %v4040 = vrot.slane %v4019, %v4039
    %v4041 = vlaneseq
    %v4042 = vshrl.u32 %v4041, 7
    %v4043 = vsub.s32 5, %v4042
    %v4044 = vrot.slane %v4019, %v4043
    %v4045 = vlaneseq
    %v4046 = vshrl.u32 %v4045, 7
    %v4047 = vsub.s32 6, %v4046
    %v4048 = vrot.slane %v4019, %v4047
    %v4049 = vlaneseq
    %v4050 = vshrl.u32 %v4049, 7
    %v4051 = vsub.s32 7, %v4050
    %v4052 = vrot.slane %v4019, %v4051
    %v4317 = vunpack.c.l.b16 %v3763
    %v4318 = vunpack.c.h.b16 %v3763
    %v4319 = vunpack.c.l.b16 %v3764
    %v4320 = vunpack.c.h.b16 %v3764
    %v4321 = vunpack.c.l.b16 %v3765
    %v4322 = vunpack.c.h.b16 %v3765
    %v4323 = vunpack.c.l.b16 %v3766
    %v4324 = vunpack.c.h.b16 %v3766
    %v4325 = vunpack.c.l.b16 %v3767
    %v4326 = vunpack.c.h.b16 %v3767
    %v4327 = vunpack.c.l.b16 %v3768
    %v4328 = vunpack.c.h.b16 %v3768
    %v4329 = vunpack.c.l.b16 %v3769
    %v4330 = vunpack.c.h.b16 %v3769
    %v4331 = vunpack.c.l.b16 %v3770
    %v4332 = vunpack.c.h.b16 %v3770
    %v4333 = vunpack.c.l.b16 %v3771
    %v4334 = vunpack.c.h.b16 %v3771
    %v4335 = vunpack.c.l.b16 %v3772
    %v4336 = vunpack.c.h.b16 %v3772
    %v4337 = vunpack.c.l.b16 %v3773
    %v4338 = vunpack.c.h.b16 %v3773
    %v4339 = vunpack.c.l.b16 %v3774
    %v4340 = vunpack.c.h.b16 %v3774
    %v4341 = vunpack.c.l.b16 %v3775
    %v4342 = vunpack.c.h.b16 %v3775
    %v4343 = vunpack.c.l.b16 %v3776
    %v4344 = vunpack.c.h.b16 %v3776
    %v4345 = vunpack.c.l.b16 %v3777
    %v4346 = vunpack.c.h.b16 %v3777
    %v4347 = vunpack.c.l.b16 %v3778
    %v4348 = vunpack.c.h.b16 %v3778
    %v4349 = vunpack.c.l.b16 %v3779
    %v4350 = vunpack.c.h.b16 %v3779
    %v4351 = vunpack.c.l.b16 %v3780
    %v4352 = vunpack.c.h.b16 %v3780
    %v4353 = vunpack.c.l.b16 %v3781
    %v4354 = vunpack.c.h.b16 %v3781
    %v4355 = vunpack.c.l.b16 %v3782
    %v4356 = vunpack.c.h.b16 %v3782
    %v4357 = vunpack.c.l.b16 %v3783
    %v4358 = vunpack.c.h.b16 %v3783
    %v4359 = vunpack.c.l.b16 %v3784
    %v4360 = vunpack.c.h.b16 %v3784
    %v4361 = vunpack.c.l.b16 %v3785
    %v4362 = vunpack.c.h.b16 %v3785
    %v4363 = vunpack.c.l.b16 %v3786
    %v4364 = vunpack.c.h.b16 %v3786
    %v4365 = vunpack.c.l.b16 %v3787
    %v4366 = vunpack.c.h.b16 %v3787
    %v4367 = vunpack.c.l.b16 %v3788
    %v4368 = vunpack.c.h.b16 %v3788
    %v4369 = vunpack.c.l.b16 %v3789
    %v4370 = vunpack.c.h.b16 %v3789
    %v4371 = vunpack.c.l.b16 %v3790
    %v4372 = vunpack.c.h.b16 %v3790
    %v4373 = vunpack.c.l.b16 %v3791
    %v4374 = vunpack.c.h.b16 %v3791
    %v4375 = vunpack.c.l.b16 %v3792
    %v4376 = vunpack.c.h.b16 %v3792
    %v4377 = vunpack.c.l.b16 %v3793
    %v4378 = vunpack.c.h.b16 %v3793
    %v4379 = vunpack.c.l.b16 %v3794
    %v4380 = vunpack.c.h.b16 %v3794
    %v4381 = vunpack.c.l.b16 %v3795
    %v4382 = vunpack.c.h.b16 %v3795
    %v4383 = vunpack.c.l.b16 %v3796
    %v4384 = vunpack.c.h.b16 %v3796
    %v4385 = vunpack.c.l.b16 %v3797
    %v4386 = vunpack.c.h.b16 %v3797
    %v4387 = vunpack.c.l.b16 %v3798
    %v4388 = vunpack.c.h.b16 %v3798
    %v4389 = vunpack.c.l.b16 %v3799
    %v4390 = vunpack.c.h.b16 %v3799
    %v4391 = vunpack.c.l.b16 %v3800
    %v4392 = vunpack.c.h.b16 %v3800
    %v4393 = vunpack.c.l.b16 %v3801
    %v4394 = vunpack.c.h.b16 %v3801
    %v4395 = vunpack.c.l.b16 %v3802
    %v4396 = vunpack.c.h.b16 %v3802
    %v4397 = vunpack.c.l.b16 %v3803
    %v4398 = vunpack.c.h.b16 %v3803
    %v4399 = vunpack.c.l.b16 %v3804
    %v4400 = vunpack.c.h.b16 %v3804
    %v4401 = vunpack.c.l.b16 %v3805
    %v4402 = vunpack.c.h.b16 %v3805
    %v4403 = vunpack.c.l.b16 %v3806
    %v4404 = vunpack.c.h.b16 %v3806
    %v4405 = vunpack.c.l.b16 %v3807
    %v4406 = vunpack.c.h.b16 %v3807
    %v4407 = vunpack.c.l.b16 %v3808
    %v4408 = vunpack.c.h.b16 %v3808
    %v4409 = vunpack.c.l.b16 %v3809
    %v4410 = vunpack.c.h.b16 %v3809
    %v4411 = vunpack.c.l.b16 %v3810
    %v4412 = vunpack.c.h.b16 %v3810
    %v4413 = vunpack.c.l.b16 %v3811
    %v4414 = vunpack.c.h.b16 %v3811
    %v4415 = vunpack.c.l.b16 %v3812
    %v4416 = vunpack.c.h.b16 %v3812
    %v4417 = vunpack.c.l.b16 %v3813
    %v4418 = vunpack.c.h.b16 %v3813
    %v4419 = vunpack.c.l.b16 %v3814
    %v4420 = vunpack.c.h.b16 %v3814
    %v4421 = vunpack.c.l.b16 %v3815
    %v4422 = vunpack.c.h.b16 %v3815
    %v4423 = vunpack.c.l.b16 %v3816
    %v4424 = vunpack.c.h.b16 %v3816
    %v4425 = vunpack.c.l.b16 %v3817
    %v4426 = vunpack.c.h.b16 %v3817
    %v4427 = vunpack.c.l.b16 %v3818
    %v4428 = vunpack.c.h.b16 %v3818
    %v4429 = vunpack.c.l.b16 %v3819
    %v4430 = vunpack.c.h.b16 %v3819
    %v4431 = vunpack.c.l.b16 %v3820
    %v4432 = vunpack.c.h.b16 %v3820
    %v4433 = vunpack.c.l.b16 %v3821
    %v4434 = vunpack.c.h.b16 %v3821
    %v4435 = vunpack.c.l.b16 %v3822
    %v4436 = vunpack.c.h.b16 %v3822
    %v4437 = vunpack.c.l.b16 %v3823
    %v4438 = vunpack.c.h.b16 %v3823
    %v4439 = vunpack.c.l.b16 %v3824
    %v4440 = vunpack.c.h.b16 %v3824
    %v4441 = vunpack.c.l.b16 %v3825
    %v4442 = vunpack.c.h.b16 %v3825
    %v4443 = vunpack.c.l.b16 %v3826
    %v4444 = vunpack.c.h.b16 %v3826
    %v4445 = vunpack.c.l.b16 %v3827
    %v4446 = vunpack.c.h.b16 %v3827
    %v4447 = vunpack.c.l.b16 %v3828
    %v4448 = vunpack.c.h.b16 %v3828
    %v4449 = vunpack.c.l.b16 %v3829
    %v4450 = vunpack.c.h.b16 %v3829
    %v4451 = vunpack.c.l.b16 %v3830
    %v4452 = vunpack.c.h.b16 %v3830
    %v4453 = vunpack.c.l.b16 %v3831
    %v4454 = vunpack.c.h.b16 %v3831
    %v4455 = vunpack.c.l.b16 %v3832
    %v4456 = vunpack.c.h.b16 %v3832
    %v4457 = vunpack.c.l.b16 %v3833
    %v4458 = vunpack.c.h.b16 %v3833
    %v4459 = vunpack.c.l.b16 %v3834
    %v4460 = vunpack.c.h.b16 %v3834
    %v4461 = vunpack.c.l.b16 %v3835
    %v4462 = vunpack.c.h.b16 %v3835
    %v4463 = vunpack.c.l.b16 %v3836
    %v4464 = vunpack.c.h.b16 %v3836
    %v4465 = vunpack.c.l.b16 %v3837
    %v4466 = vunpack.c.h.b16 %v3837
    %v4467 = vunpack.c.l.b16 %v3838
    %v4468 = vunpack.c.h.b16 %v3838
    %v4469 = vunpack.c.l.b16 %v3839
    %v4470 = vunpack.c.h.b16 %v3839
    %v4471 = vunpack.c.l.b16 %v3840
    %v4472 = vunpack.c.h.b16 %v3840
    %v4473 = vunpack.c.l.b16 %v3841
    %v4474 = vunpack.c.h.b16 %v3841
    %v4475 = vunpack.c.l.b16 %v3842
    %v4476 = vunpack.c.h.b16 %v3842
    %v4477 = vunpack.c.l.b16 %v3843
    %v4478 = vunpack.c.h.b16 %v3843
    %v4479 = vunpack.c.l.b16 %v3844
    %v4480 = vunpack.c.h.b16 %v3844
    %v4481 = vunpack.c.l.b16 %v3845
    %v4482 = vunpack.c.h.b16 %v3845
    %v4483 = vunpack.c.l.b16 %v3846
    %v4484 = vunpack.c.h.b16 %v3846
    %v4485 = vunpack.c.l.b16 %v3847
    %v4486 = vunpack.c.h.b16 %v3847
    %v4487 = vunpack.c.l.b16 %v3848
    %v4488 = vunpack.c.h.b16 %v3848
    %v4489 = vunpack.c.l.b16 %v3849
    %v4490 = vunpack.c.h.b16 %v3849
    %v4491 = vunpack.c.l.b16 %v3850
    %v4492 = vunpack.c.h.b16 %v3850
    %v4493 = vunpack.c.l.b16 %v3851
    %v4494 = vunpack.c.h.b16 %v3851
    %v4495 = vunpack.c.l.b16 %v3852
    %v4496 = vunpack.c.h.b16 %v3852
    %v4497 = vunpack.c.l.b16 %v3853
    %v4498 = vunpack.c.h.b16 %v3853
    %v4499 = vunpack.c.l.b16 %v3854
    %v4500 = vunpack.c.h.b16 %v3854
    %v4501 = vunpack.c.l.b16 %v3855
    %v4502 = vunpack.c.h.b16 %v3855
    %v4503 = vunpack.c.l.b16 %v3856
    %v4504 = vunpack.c.h.b16 %v3856
    %v4505 = vunpack.c.l.b16 %v3857
    %v4506 = vunpack.c.h.b16 %v3857
    %v4507 = vunpack.c.l.b16 %v3858
    %v4508 = vunpack.c.h.b16 %v3858
    %v4509 = vunpack.c.l.b16 %v3859
    %v4510 = vunpack.c.h.b16 %v3859
    %v4511 = vunpack.c.l.b16 %v3860
    %v4512 = vunpack.c.h.b16 %v3860
    %v4513 = vunpack.c.l.b16 %v3861
    %v4514 = vunpack.c.h.b16 %v3861
    %v4515 = vunpack.c.l.b16 %v3862
    %v4516 = vunpack.c.h.b16 %v3862
    %v4517 = vunpack.c.l.b16 %v3863
    %v4518 = vunpack.c.h.b16 %v3863
    %v4519 = vunpack.c.l.b16 %v3864
    %v4520 = vunpack.c.h.b16 %v3864
    %v4521 = vunpack.c.l.b16 %v3865
    %v4522 = vunpack.c.h.b16 %v3865
    %v4523 = vunpack.c.l.b16 %v3866
    %v4524 = vunpack.c.h.b16 %v3866
    %v4525 = vunpack.c.l.b16 %v3867
    %v4526 = vunpack.c.h.b16 %v3867
    %v4527 = vunpack.c.l.b16 %v3868
    %v4528 = vunpack.c.h.b16 %v3868
    %v4529 = vunpack.c.l.b16 %v3869
    %v4530 = vunpack.c.h.b16 %v3869
    %v4531 = vunpack.c.l.b16 %v3870
    %v4532 = vunpack.c.h.b16 %v3870
    %v4533 = vunpack.c.l.b16 %v3871
    %v4534 = vunpack.c.h.b16 %v3871
    %v4535 = vunpack.c.l.b16 %v3872
    %v4536 = vunpack.c.h.b16 %v3872
    %v4537 = vunpack.c.l.b16 %v3873
    %v4538 = vunpack.c.h.b16 %v3873
    %v4539 = vunpack.c.l.b16 %v3874
    %v4540 = vunpack.c.h.b16 %v3874
    %v4541 = vunpack.c.l.b16 %v3875
    %v4542 = vunpack.c.h.b16 %v3875
    %v4543 = vunpack.c.l.b16 %v3876
    %v4544 = vunpack.c.h.b16 %v3876
    %v4545 = vunpack.c.l.b16 %v3877
    %v4546 = vunpack.c.h.b16 %v3877
    %v4547 = vunpack.c.l.b16 %v3878
    %v4548 = vunpack.c.h.b16 %v3878
    %v4549 = vunpack.c.l.b16 %v3879
    %v4550 = vunpack.c.h.b16 %v3879
    %v4551 = vunpack.c.l.b16 %v3880
    %v4552 = vunpack.c.h.b16 %v3880
    %v4553 = vunpack.c.l.b16 %v3881
    %v4554 = vunpack.c.h.b16 %v3881
    %v4555 = vunpack.c.l.b16 %v3882
    %v4556 = vunpack.c.h.b16 %v3882
    %v4557 = vunpack.c.l.b16 %v3883
    %v4558 = vunpack.c.h.b16 %v3883
    %v4559 = vunpack.c.l.b16 %v3884
    %v4560 = vunpack.c.h.b16 %v3884
    %v4561 = vunpack.c.l.b16 %v3885
    %v4562 = vunpack.c.h.b16 %v3885
    %v4563 = vunpack.c.l.b16 %v3886
    %v4564 = vunpack.c.h.b16 %v3886
    %v4565 = vunpack.c.l.b16 %v3887
    %v4566 = vunpack.c.h.b16 %v3887
    %v4567 = vunpack.c.l.b16 %v3888
    %v4568 = vunpack.c.h.b16 %v3888
    %v4569 = vunpack.c.l.b16 %v3889
    %v4570 = vunpack.c.h.b16 %v3889
    %v4571 = vunpack.c.l.b16 %v3890
    %v4572 = vunpack.c.h.b16 %v3890
    %v4573 = vunpack.c.l.b16 %v3891
    %v4574 = vunpack.c.h.b16 %v3891
    %v4575 = vunpack.c.l.b16 %v3892
    %v4576 = vunpack.c.h.b16 %v3892
    %v4577 = vunpack.c.l.b16 %v3893
    %v4578 = vunpack.c.h.b16 %v3893
    %v4579 = vunpack.c.l.b16 %v3894
    %v4580 = vunpack.c.h.b16 %v3894
    %v4581 = vunpack.c.l.b16 %v3895
    %v4582 = vunpack.c.h.b16 %v3895
    %v4583 = vunpack.c.l.b16 %v3896
    %v4584 = vunpack.c.h.b16 %v3896
    %v4585 = vunpack.c.l.b16 %v3897
    %v4586 = vunpack.c.h.b16 %v3897
    %v4587 = vunpack.c.l.b16 %v3898
    %v4588 = vunpack.c.h.b16 %v3898
    %v4589 = vunpack.c.l.b16 %v3899
    %v4590 = vunpack.c.h.b16 %v3899
    %v4591 = vunpack.c.l.b16 %v3900
    %v4592 = vunpack.c.h.b16 %v3900
    %v4593 = vunpack.c.l.b16 %v3901
    %v4594 = vunpack.c.h.b16 %v3901
    %v4595 = vunpack.c.l.b16 %v3902
    %v4596 = vunpack.c.h.b16 %v3902
    %v4597 = vunpack.c.l.b16 %v3903
    %v4598 = vunpack.c.h.b16 %v3903
    %v4599 = vunpack.c.l.b16 %v3904
    %v4600 = vunpack.c.h.b16 %v3904
    %v4601 = vunpack.c.l.b16 %v3905
    %v4602 = vunpack.c.h.b16 %v3905
    %v4603 = vunpack.c.l.b16 %v3906
    %v4604 = vunpack.c.h.b16 %v3906
    %v4605 = vunpack.c.l.b16 %v3907
    %v4606 = vunpack.c.h.b16 %v3907
    %v4607 = vunpack.c.l.b16 %v3908
    %v4608 = vunpack.c.h.b16 %v3908
    %v4609 = vunpack.c.l.b16 %v3909
    %v4610 = vunpack.c.h.b16 %v3909
    %v4611 = vunpack.c.l.b16 %v3910
    %v4612 = vunpack.c.h.b16 %v3910
    %v4613 = vunpack.c.l.b16 %v3911
    %v4614 = vunpack.c.h.b16 %v3911
    %v4615 = vunpack.c.l.b16 %v3912
    %v4616 = vunpack.c.h.b16 %v3912
    %v4617 = vunpack.c.l.b16 %v3913
    %v4618 = vunpack.c.h.b16 %v3913
    %v4619 = vunpack.c.l.b16 %v3914
    %v4620 = vunpack.c.h.b16 %v3914
    %v4621 = vunpack.c.l.b16 %v3915
    %v4622 = vunpack.c.h.b16 %v3915
    %v4623 = vunpack.c.l.b16 %v3916
    %v4624 = vunpack.c.h.b16 %v3916
    %v4625 = vunpack.c.l.b16 %v3917
    %v4626 = vunpack.c.h.b16 %v3917
    %v4627 = vunpack.c.l.b16 %v3918
    %v4628 = vunpack.c.h.b16 %v3918
    %v4629 = vunpack.c.l.b16 %v3919
    %v4630 = vunpack.c.h.b16 %v3919
    %v4631 = vunpack.c.l.b16 %v3920
    %v4632 = vunpack.c.h.b16 %v3920
    %v4633 = vunpack.c.l.b16 %v3921
    %v4634 = vunpack.c.h.b16 %v3921
    %v4635 = vunpack.c.l.b16 %v3922
    %v4636 = vunpack.c.h.b16 %v3922
    %v4637 = vunpack.c.l.b16 %v3923
    %v4638 = vunpack.c.h.b16 %v3923
    %v4639 = vunpack.c.l.b16 %v3924
    %v4640 = vunpack.c.h.b16 %v3924
    %v4641 = vunpack.c.l.b16 %v3925
    %v4642 = vunpack.c.h.b16 %v3925
    %v4643 = vunpack.c.l.b16 %v3926
    %v4644 = vunpack.c.h.b16 %v3926
    %v4645 = vunpack.c.l.b16 %v3927
    %v4646 = vunpack.c.h.b16 %v3927
    %v4647 = vunpack.c.l.b16 %v3928
    %v4648 = vunpack.c.h.b16 %v3928
    %v4649 = vunpack.c.l.b16 %v3929
    %v4650 = vunpack.c.h.b16 %v3929
    %v4651 = vunpack.c.l.b16 %v3930
    %v4652 = vunpack.c.h.b16 %v3930
    %v4653 = vunpack.c.l.b16 %v3931
    %v4654 = vunpack.c.h.b16 %v3931
    %v4655 = vunpack.c.l.b16 %v3932
    %v4656 = vunpack.c.h.b16 %v3932
    %v4657 = vunpack.c.l.b16 %v3933
    %v4658 = vunpack.c.h.b16 %v3933
    %v4659 = vunpack.c.l.b16 %v3934
    %v4660 = vunpack.c.h.b16 %v3934
    %v4661 = vunpack.c.l.b16 %v3935
    %v4662 = vunpack.c.h.b16 %v3935
    %v4663 = vunpack.c.l.b16 %v3936
    %v4664 = vunpack.c.h.b16 %v3936
    %v4665 = vunpack.c.l.b16 %v3937
    %v4666 = vunpack.c.h.b16 %v3937
    %v4667 = vunpack.c.l.b16 %v3938
    %v4668 = vunpack.c.h.b16 %v3938
    %v4669 = vunpack.c.l.b16 %v3939
    %v4670 = vunpack.c.h.b16 %v3939
    %v4671 = vunpack.c.l.b16 %v3940
    %v4672 = vunpack.c.h.b16 %v3940
    %v4673 = vunpack.c.l.b16 %v3941
    %v4674 = vunpack.c.h.b16 %v3941
    %v4675 = vunpack.c.l.b16 %v3942
    %v4676 = vunpack.c.h.b16 %v3942
    %v4677 = vunpack.c.l.b16 %v3943
    %v4678 = vunpack.c.h.b16 %v3943
    %v4679 = vunpack.c.l.b16 %v3944
    %v4680 = vunpack.c.h.b16 %v3944
    %v4681 = vunpack.c.l.b16 %v3945
    %v4682 = vunpack.c.h.b16 %v3945
    %v4683 = vunpack.c.l.b16 %v3946
    %v4684 = vunpack.c.h.b16 %v3946
    %v4685 = vunpack.c.l.b16 %v3947
    %v4686 = vunpack.c.h.b16 %v3947
    %v4687 = vunpack.c.l.b16 %v3948
    %v4688 = vunpack.c.h.b16 %v3948
    %v4689 = vunpack.c.l.b16 %v3949
    %v4690 = vunpack.c.h.b16 %v3949
    %v4691 = vunpack.c.l.b16 %v3950
    %v4692 = vunpack.c.h.b16 %v3950
    %v4693 = vunpack.c.l.b16 %v3951
    %v4694 = vunpack.c.h.b16 %v3951
    %v4695 = vunpack.c.l.b16 %v3952
    %v4696 = vunpack.c.h.b16 %v3952
    %v4697 = vunpack.c.l.b16 %v3953
    %v4698 = vunpack.c.h.b16 %v3953
    %v4699 = vunpack.c.l.b16 %v3954
    %v4700 = vunpack.c.h.b16 %v3954
    %v4701 = vunpack.c.l.b16 %v3955
    %v4702 = vunpack.c.h.b16 %v3955
    %v4703 = vunpack.c.l.b16 %v3956
    %v4704 = vunpack.c.h.b16 %v3956
    %v4705 = vunpack.c.l.b16 %v3957
    %v4706 = vunpack.c.h.b16 %v3957
    %v4707 = vunpack.c.l.b16 %v3958
    %v4708 = vunpack.c.h.b16 %v3958
    %v4709 = vunpack.c.l.b16 %v3959
    %v4710 = vunpack.c.h.b16 %v3959
    %v4711 = vunpack.c.l.b16 %v3960
    %v4712 = vunpack.c.h.b16 %v3960
    %v4713 = vunpack.c.l.b16 %v3961
    %v4714 = vunpack.c.h.b16 %v3961
    %v4715 = vunpack.c.l.b16 %v3962
    %v4716 = vunpack.c.h.b16 %v3962
    %v4717 = vunpack.c.l.b16 %v3963
    %v4718 = vunpack.c.h.b16 %v3963
    %v4719 = vunpack.c.l.b16 %v3964
    %v4720 = vunpack.c.h.b16 %v3964
    %v4721 = vunpack.c.l.b16 %v3965
    %v4722 = vunpack.c.h.b16 %v3965
    %v4723 = vunpack.c.l.b16 %v3966
    %v4724 = vunpack.c.h.b16 %v3966
    %v4725 = vunpack.c.l.b16 %v3967
    %v4726 = vunpack.c.h.b16 %v3967
    %v4727 = vunpack.c.l.b16 %v3968
    %v4728 = vunpack.c.h.b16 %v3968
    %v4729 = vunpack.c.l.b16 %v3969
    %v4730 = vunpack.c.h.b16 %v3969
    %v4731 = vunpack.c.l.b16 %v3970
    %v4732 = vunpack.c.h.b16 %v3970
    %v4733 = vunpack.c.l.b16 %v3971
    %v4734 = vunpack.c.h.b16 %v3971
    %v4735 = vunpack.c.l.b16 %v3972
    %v4736 = vunpack.c.h.b16 %v3972
    %v4737 = vunpack.c.l.b16 %v3973
    %v4738 = vunpack.c.h.b16 %v3973
    %v4739 = vunpack.c.l.b16 %v3974
    %v4740 = vunpack.c.h.b16 %v3974
    %v4741 = vunpack.c.l.b16 %v3975
    %v4742 = vunpack.c.h.b16 %v3975
    %v4743 = vunpack.c.l.b16 %v3976
    %v4744 = vunpack.c.h.b16 %v3976
    %v4745 = vunpack.c.l.b16 %v3977
    %v4746 = vunpack.c.h.b16 %v3977
    %v4747 = vunpack.c.l.b16 %v3978
    %v4748 = vunpack.c.h.b16 %v3978
    %v4749 = vunpack.c.l.b16 %v3979
    %v4750 = vunpack.c.h.b16 %v3979
    %v4751 = vunpack.c.l.b16 %v3980
    %v4752 = vunpack.c.h.b16 %v3980
    %v4753 = vunpack.c.l.b16 %v3981
    %v4754 = vunpack.c.h.b16 %v3981
    %v4755 = vunpack.c.l.b16 %v3982
    %v4756 = vunpack.c.h.b16 %v3982
    %v4757 = vunpack.c.l.b16 %v3983
    %v4758 = vunpack.c.h.b16 %v3983
    %v4759 = vunpack.c.l.b16 %v3984
    %v4760 = vunpack.c.h.b16 %v3984
    %v4761 = vunpack.c.l.b16 %v3985
    %v4762 = vunpack.c.h.b16 %v3985
    %v4763 = vunpack.c.l.b16 %v3986
    %v4764 = vunpack.c.h.b16 %v3986
    %v4765 = vunpack.c.l.b16 %v3987
    %v4766 = vunpack.c.h.b16 %v3987
    %v4767 = vunpack.c.l.b16 %v3988
    %v4768 = vunpack.c.h.b16 %v3988
    %v4769 = vunpack.c.l.b16 %v3989
    %v4770 = vunpack.c.h.b16 %v3989
    %v4771 = vunpack.c.l.b16 %v3990
    %v4772 = vunpack.c.h.b16 %v3990
    %v4773 = vunpack.c.l.b16 %v3991
    %v4774 = vunpack.c.h.b16 %v3991
    %v4775 = vunpack.c.l.b16 %v3992
    %v4776 = vunpack.c.h.b16 %v3992
    %v4777 = vunpack.c.l.b16 %v3993
    %v4778 = vunpack.c.h.b16 %v3993
    %v4779 = vunpack.c.l.b16 %v3994
    %v4780 = vunpack.c.h.b16 %v3994
    %v4781 = vunpack.c.l.b16 %v3995
    %v4782 = vunpack.c.h.b16 %v3995
    %v4783 = vunpack.c.l.b16 %v3996
    %v4784 = vunpack.c.h.b16 %v3996
    %v4785 = vunpack.c.l.b16 %v3997
    %v4786 = vunpack.c.h.b16 %v3997
    %v4787 = vunpack.c.l.b16 %v3998
    %v4788 = vunpack.c.h.b16 %v3998
    %v4789 = vunpack.c.l.b16 %v3999
    %v4790 = vunpack.c.h.b16 %v3999
    %v4791 = vunpack.c.l.b16 %v4000
    %v4792 = vunpack.c.h.b16 %v4000
    %v4793 = vunpack.c.l.b16 %v4001
    %v4794 = vunpack.c.h.b16 %v4001
    %v4795 = vunpack.c.l.b16 %v4002
    %v4796 = vunpack.c.h.b16 %v4002
    %v4797 = vunpack.c.l.b16 %v4003
    %v4798 = vunpack.c.h.b16 %v4003
    %v4799 = vunpack.c.l.b16 %v4004
    %v4800 = vunpack.c.h.b16 %v4004
    %v4801 = vunpack.c.l.b16 %v4005
    %v4802 = vunpack.c.h.b16 %v4005
    %v4803 = vunpack.c.l.b16 %v4006
    %v4804 = vunpack.c.h.b16 %v4006
    %v4805 = vunpack.c.l.b16 %v4007
    %v4806 = vunpack.c.h.b16 %v4007
    %v4807 = vunpack.c.l.b16 %v4008
    %v4808 = vunpack.c.h.b16 %v4008
    %v4809 = vunpack.c.l.b16 %v4009
    %v4810 = vunpack.c.h.b16 %v4009
    %v4811 = vunpack.c.l.b16 %v4010
    %v4812 = vunpack.c.h.b16 %v4010
    %v4813 = vunpack.c.l.b16 %v4011
    %v4814 = vunpack.c.h.b16 %v4011
    %v4815 = vunpack.c.l.b16 %v4012
    %v4816 = vunpack.c.h.b16 %v4012
    %v4817 = vunpack.c.l.b16 %v4013
    %v4818 = vunpack.c.h.b16 %v4013
    %v4819 = vunpack.c.l.b16 %v4014
    %v4820 = vunpack.c.h.b16 %v4014
    %v4821 = vunpack.c.l.b16 %v4015
    %v4822 = vunpack.c.h.b16 %v4015
    %v4823 = vunpack.c.l.b16 %v4016
    %v4824 = vunpack.c.h.b16 %v4016
    %v4825 = vunpack.c.l.b16 %v4017
    %v4826 = vunpack.c.h.b16 %v4017
    %v4827 = vunpack.c.l.b16 %v4018
    %v4828 = vunpack.c.h.b16 %v4018
    %v4829 = vpack.c.b16 %v4325, %v4317
    %v4830 = vpack.c.b16 %v4326, %v4318
    %v4831 = vpack.c.b16 %v4327, %v4319
    %v4832 = vpack.c.b16 %v4328, %v4320
    %v4833 = vpack.c.b16 %v4329, %v4321
    %v4834 = vpack.c.b16 %v4330, %v4322
    %v4835 = vpack.c.b16 %v4331, %v4323
    %v4836 = vpack.c.b16 %v4332, %v4324
    %v4837 = vpack.c.b16 %v4341, %v4333
    %v4838 = vpack.c.b16 %v4342, %v4334
    %v4839 = vpack.c.b16 %v4343, %v4335
    %v4840 = vpack.c.b16 %v4344, %v4336
    %v4841 = vpack.c.b16 %v4345, %v4337
    %v4842 = vpack.c.b16 %v4346, %v4338
    %v4843 = vpack.c.b16 %v4347, %v4339
    %v4844 = vpack.c.b16 %v4348, %v4340
    %v4845 = vpack.c.b16 %v4357, %v4349
    %v4846 = vpack.c.b16 %v4358, %v4350
    %v4847 = vpack.c.b16 %v4359, %v4351
    %v4848 = vpack.c.b16 %v4360, %v4352
    %v4849 = vpack.c.b16 %v4361, %v4353
    %v4850 = vpack.c.b16 %v4362, %v4354
    %v4851 = vpack.c.b16 %v4363, %v4355
    %v4852 = vpack.c.b16 %v4364, %v4356
    %v4853 = vpack.c.b16 %v4373, %v4365
    %v4854 = vpack.c.b16 %v4374, %v4366
    %v4855 = vpack.c.b16 %v4375, %v4367
    %v4856 = vpack.c.b16 %v4376, %v4368
    %v4857 = vpack.c.b16 %v4377, %v4369
    %v4858 = vpack.c.b16 %v4378, %v4370
    %v4859 = vpack.c.b16 %v4379, %v4371
    %v4860 = vpack.c.b16 %v4380, %v4372
    %v4861 = vpack.c.b16 %v4389, %v4381
    %v4862 = vpack.c.b16 %v4390, %v4382
    %v4863 = vpack.c.b16 %v4391, %v4383
    %v4864 = vpack.c.b16 %v4392, %v4384
    %v4865 = vpack.c.b16 %v4393, %v4385
    %v4866 = vpack.c.b16 %v4394, %v4386
    %v4867 = vpack.c.b16 %v4395, %v4387
    %v4868 = vpack.c.b16 %v4396, %v4388
    %v4869 = vpack.c.b16 %v4405, %v4397
    %v4870 = vpack.c.b16 %v4406, %v4398
    %v4871 = vpack.c.b16 %v4407, %v4399
    %v4872 = vpack.c.b16 %v4408, %v4400
    %v4873 = vpack.c.b16 %v4409, %v4401
    %v4874 = vpack.c.b16 %v4410, %v4402
    %v4875 = vpack.c.b16 %v4411, %v4403
    %v4876 = vpack.c.b16 %v4412, %v4404
    %v4877 = vpack.c.b16 %v4421, %v4413
    %v4878 = vpack.c.b16 %v4422, %v4414
    %v4879 = vpack.c.b16 %v4423, %v4415
    %v4880 = vpack.c.b16 %v4424, %v4416
    %v4881 = vpack.c.b16 %v4425, %v4417
    %v4882 = vpack.c.b16 %v4426, %v4418
    %v4883 = vpack.c.b16 %v4427, %v4419
    %v4884 = vpack.c.b16 %v4428, %v4420
    %v4885 = vpack.c.b16 %v4437, %v4429
    %v4886 = vpack.c.b16 %v4438, %v4430
    %v4887 = vpack.c.b16 %v4439, %v4431
    %v4888 = vpack.c.b16 %v4440, %v4432
    %v4889 = vpack.c.b16 %v4441, %v4433
    %v4890 = vpack.c.b16 %v4442, %v4434
    %v4891 = vpack.c.b16 %v4443, %v4435
    %v4892 = vpack.c.b16 %v4444, %v4436
    %v4893 = vpack.c.b16 %v4453, %v4445
    %v4894 = vpack.c.b16 %v4454, %v4446
    %v4895 = vpack.c.b16 %v4455, %v4447
    %v4896 = vpack.c.b16 %v4456, %v4448
    %v4897 = vpack.c.b16 %v4457, %v4449
    %v4898 = vpack.c.b16 %v4458, %v4450
    %v4899 = vpack.c.b16 %v4459, %v4451
    %v4900 = vpack.c.b16 %v4460, %v4452
    %v4901 = vpack.c.b16 %v4469, %v4461
    %v4902 = vpack.c.b16 %v4470, %v4462
    %v4903 = vpack.c.b16 %v4471, %v4463
    %v4904 = vpack.c.b16 %v4472, %v4464
    %v4905 = vpack.c.b16 %v4473, %v4465
    %v4906 = vpack.c.b16 %v4474, %v4466
    %v4907 = vpack.c.b16 %v4475, %v4467
    %v4908 = vpack.c.b16 %v4476, %v4468
    %v4909 = vpack.c.b16 %v4485, %v4477
    %v4910 = vpack.c.b16 %v4486, %v4478
    %v4911 = vpack.c.b16 %v4487, %v4479
    %v4912 = vpack.c.b16 %v4488, %v4480
    %v4913 = vpack.c.b16 %v4489, %v4481
    %v4914 = vpack.c.b16 %v4490, %v4482
    %v4915 = vpack.c.b16 %v4491, %v4483
    %v4916 = vpack.c.b16 %v4492, %v4484
    %v4917 = vpack.c.b16 %v4501, %v4493
    %v4918 = vpack.c.b16 %v4502, %v4494
    %v4919 = vpack.c.b16 %v4503, %v4495
    %v4920 = vpack.c.b16 %v4504, %v4496
    %v4921 = vpack.c.b16 %v4505, %v4497
    %v4922 = vpack.c.b16 %v4506, %v4498
    %v4923 = vpack.c.b16 %v4507, %v4499
    %v4924 = vpack.c.b16 %v4508, %v4500
    %v4925 = vpack.c.b16 %v4517, %v4509
    %v4926 = vpack.c.b16 %v4518, %v4510
    %v4927 = vpack.c.b16 %v4519, %v4511
    %v4928 = vpack.c.b16 %v4520, %v4512
    %v4929 = vpack.c.b16 %v4521, %v4513
    %v4930 = vpack.c.b16 %v4522, %v4514
    %v4931 = vpack.c.b16 %v4523, %v4515
    %v4932 = vpack.c.b16 %v4524, %v4516
    %v4933 = vpack.c.b16 %v4533, %v4525
    %v4934 = vpack.c.b16 %v4534, %v4526
    %v4935 = vpack.c.b16 %v4535, %v4527
    %v4936 = vpack.c.b16 %v4536, %v4528
    %v4937 = vpack.c.b16 %v4537, %v4529
    %v4938 = vpack.c.b16 %v4538, %v4530
    %v4939 = vpack.c.b16 %v4539, %v4531
    %v4940 = vpack.c.b16 %v4540, %v4532
    %v4941 = vpack.c.b16 %v4549, %v4541
    %v4942 = vpack.c.b16 %v4550, %v4542
    %v4943 = vpack.c.b16 %v4551, %v4543
    %v4944 = vpack.c.b16 %v4552, %v4544
    %v4945 = vpack.c.b16 %v4553, %v4545
    %v4946 = vpack.c.b16 %v4554, %v4546
    %v4947 = vpack.c.b16 %v4555, %v4547
    %v4948 = vpack.c.b16 %v4556, %v4548
    %v4949 = vpack.c.b16 %v4565, %v4557
    %v4950 = vpack.c.b16 %v4566, %v4558
    %v4951 = vpack.c.b16 %v4567, %v4559
    %v4952 = vpack.c.b16 %v4568, %v4560
    %v4953 = vpack.c.b16 %v4569, %v4561
    %v4954 = vpack.c.b16 %v4570, %v4562
    %v4955 = vpack.c.b16 %v4571, %v4563
    %v4956 = vpack.c.b16 %v4572, %v4564
    %v4957 = vpack.c.b16 %v4581, %v4573
    %v4958 = vpack.c.b16 %v4582, %v4574
    %v4959 = vpack.c.b16 %v4583, %v4575
    %v4960 = vpack.c.b16 %v4584, %v4576
    %v4961 = vpack.c.b16 %v4585, %v4577
    %v4962 = vpack.c.b16 %v4586, %v4578
    %v4963 = vpack.c.b16 %v4587, %v4579
    %v4964 = vpack.c.b16 %v4588, %v4580
    %v4965 = vpack.c.b16 %v4597, %v4589
    %v4966 = vpack.c.b16 %v4598, %v4590
    %v4967 = vpack.c.b16 %v4599, %v4591
    %v4968 = vpack.c.b16 %v4600, %v4592
    %v4969 = vpack.c.b16 %v4601, %v4593
    %v4970 = vpack.c.b16 %v4602, %v4594
    %v4971 = vpack.c.b16 %v4603, %v4595
    %v4972 = vpack.c.b16 %v4604, %v4596
    %v4973 = vpack.c.b16 %v4613, %v4605
    %v4974 = vpack.c.b16 %v4614, %v4606
    %v4975 = vpack.c.b16 %v4615, %v4607
    %v4976 = vpack.c.b16 %v4616, %v4608
    %v4977 = vpack.c.b16 %v4617, %v4609
    %v4978 = vpack.c.b16 %v4618, %v4610
    %v4979 = vpack.c.b16 %v4619, %v4611
    %v4980 = vpack.c.b16 %v4620, %v4612
    %v4981 = vpack.c.b16 %v4629, %v4621
    %v4982 = vpack.c.b16 %v4630, %v4622
    %v4983 = vpack.c.b16 %v4631, %v4623
    %v4984 = vpack.c.b16 %v4632, %v4624
    %v4985 = vpack.c.b16 %v4633, %v4625
    %v4986 = vpack.c.b16 %v4634, %v4626
    %v4987 = vpack.c.b16 %v4635, %v4627
    %v4988 = vpack.c.b16 %v4636, %v4628
    %v4989 = vpack.c.b16 %v4645, %v4637
    %v4990 = vpack.c.b16 %v4646, %v4638
    %v4991 = vpack.c.b16 %v4647, %v4639
    %v4992 = vpack.c.b16 %v4648, %v4640
    %v4993 = vpack.c.b16 %v4649, %v4641
    %v4994 = vpack.c.b16 %v4650, %v4642
    %v4995 = vpack.c.b16 %v4651, %v4643
    %v4996 = vpack.c.b16 %v4652, %v4644
    %v4997 = vpack.c.b16 %v4661, %v4653
    %v4998 = vpack.c.b16 %v4662, %v4654
    %v4999 = vpack.c.b16 %v4663, %v4655
    %v5000 = vpack.c.b16 %v4664, %v4656
    %v5001 = vpack.c.b16 %v4665, %v4657
    %v5002 = vpack.c.b16 %v4666, %v4658
    %v5003 = vpack.c.b16 %v4667, %v4659
    %v5004 = vpack.c.b16 %v4668, %v4660
    %v5005 = vpack.c.b16 %v4677, %v4669
    %v5006 = vpack.c.b16 %v4678, %v4670
    %v5007 = vpack.c.b16 %v4679, %v4671
    %v5008 = vpack.c.b16 %v4680, %v4672
    %v5009 = vpack.c.b16 %v4681, %v4673
    %v5010 = vpack.c.b16 %v4682, %v4674
    %v5011 = vpack.c.b16 %v4683, %v4675
    %v5012 = vpack.c.b16 %v4684, %v4676
    %v5013 = vpack.c.b16 %v4693, %v4685
    %v5014 = vpack.c.b16 %v4694, %v4686
    %v5015 = vpack.c.b16 %v4695, %v4687
    %v5016 = vpack.c.b16 %v4696, %v4688
    %v5017 = vpack.c.b16 %v4697, %v4689
    %v5018 = vpack.c.b16 %v4698, %v4690
    %v5019 = vpack.c.b16 %v4699, %v4691
    %v5020 = vpack.c.b16 %v4700, %v4692
    %v5021 = vpack.c.b16 %v4709, %v4701
    %v5022 = vpack.c.b16 %v4710, %v4702
    %v5023 = vpack.c.b16 %v4711, %v4703
    %v5024 = vpack.c.b16 %v4712, %v4704
    %v5025 = vpack.c.b16 %v4713, %v4705
    %v5026 = vpack.c.b16 %v4714, %v4706
    %v5027 = vpack.c.b16 %v4715, %v4707
    %v5028 = vpack.c.b16 %v4716, %v4708
    %v5029 = vpack.c.b16 %v4725, %v4717
    %v5030 = vpack.c.b16 %v4726, %v4718
    %v5031 = vpack.c.b16 %v4727, %v4719
    %v5032 = vpack.c.b16 %v4728, %v4720
    %v5033 = vpack.c.b16 %v4729, %v4721
    %v5034 = vpack.c.b16 %v4730, %v4722
    %v5035 = vpack.c.b16 %v4731, %v4723
    %v5036 = vpack.c.b16 %v4732, %v4724
    %v5037 = vpack.c.b16 %v4741, %v4733
    %v5038 = vpack.c.b16 %v4742, %v4734
    %v5039 = vpack.c.b16 %v4743, %v4735
    %v5040 = vpack.c.b16 %v4744, %v4736
    %v5041 = vpack.c.b16 %v4745, %v4737
    %v5042 = vpack.c.b16 %v4746, %v4738
    %v5043 = vpack.c.b16 %v4747, %v4739
    %v5044 = vpack.c.b16 %v4748, %v4740
    %v5045 = vpack.c.b16 %v4757, %v4749
    %v5046 = vpack.c.b16 %v4758, %v4750
    %v5047 = vpack.c.b16 %v4759, %v4751
    %v5048 = vpack.c.b16 %v4760, %v4752
    %v5049 = vpack.c.b16 %v4761, %v4753
    %v5050 = vpack.c.b16 %v4762, %v4754
    %v5051 = vpack.c.b16 %v4763, %v4755
    %v5052 = vpack.c.b16 %v4764, %v4756
    %v5053 = vpack.c.b16 %v4773, %v4765
    %v5054 = vpack.c.b16 %v4774, %v4766
    %v5055 = vpack.c.b16 %v4775, %v4767
    %v5056 = vpack.c.b16 %v4776, %v4768
    %v5057 = vpack.c.b16 %v4777, %v4769
    %v5058 = vpack.c.b16 %v4778, %v4770
    %v5059 = vpack.c.b16 %v4779, %v4771
    %v5060 = vpack.c.b16 %v4780, %v4772
    %v5061 = vpack.c.b16 %v4789, %v4781
    %v5062 = vpack.c.b16 %v4790, %v4782
    %v5063 = vpack.c.b16 %v4791, %v4783
    %v5064 = vpack.c.b16 %v4792, %v4784
    %v5065 = vpack.c.b16 %v4793, %v4785
    %v5066 = vpack.c.b16 %v4794, %v4786
    %v5067 = vpack.c.b16 %v4795, %v4787
    %v5068 = vpack.c.b16 %v4796, %v4788
    %v5069 = vpack.c.b16 %v4805, %v4797
    %v5070 = vpack.c.b16 %v4806, %v4798
    %v5071 = vpack.c.b16 %v4807, %v4799
    %v5072 = vpack.c.b16 %v4808, %v4800
    %v5073 = vpack.c.b16 %v4809, %v4801
    %v5074 = vpack.c.b16 %v4810, %v4802
    %v5075 = vpack.c.b16 %v4811, %v4803
    %v5076 = vpack.c.b16 %v4812, %v4804
    %v5077 = vpack.c.b16 %v4821, %v4813
    %v5078 = vpack.c.b16 %v4822, %v4814
    %v5079 = vpack.c.b16 %v4823, %v4815
    %v5080 = vpack.c.b16 %v4824, %v4816
    %v5081 = vpack.c.b16 %v4825, %v4817
    %v5082 = vpack.c.b16 %v4826, %v4818
    %v5083 = vpack.c.b16 %v4827, %v4819
    %v5084 = vpack.c.b16 %v4828, %v4820
    %5341 = vmatprep.subr.bf16.mxu0 %v4830
    %5342 = vmatpush1.bf16.msra.mxu0 %v4829
    %5343 = vmatprep.subr.bf16.mxu0 %v4838
    %5344 = vmatpush1.bf16.msra.mxu0 %v4837
    %5345 = vmatprep.subr.bf16.mxu0 %v4846
    %5346 = vmatpush1.bf16.msra.mxu0 %v4845
    %5347 = vmatprep.subr.bf16.mxu0 %v4854
    %5348 = vmatpush1.bf16.msra.mxu0 %v4853
    %5349 = vmatprep.subr.bf16.mxu0 %v4862
    %5350 = vmatpush1.bf16.msra.mxu0 %v4861
    %5351 = vmatprep.subr.bf16.mxu0 %v4870
    %5352 = vmatpush1.bf16.msra.mxu0 %v4869
    %5353 = vmatprep.subr.bf16.mxu0 %v4878
    %5354 = vmatpush1.bf16.msra.mxu0 %v4877
    %5355 = vmatprep.subr.bf16.mxu0 %v4886
    %5356 = vmatpush1.bf16.msra.mxu0 %v4885
    %5357 = vmatprep.subr.bf16.mxu0 %v4894
    %5358 = vmatpush1.bf16.msra.mxu0 %v4893
    %5359 = vmatprep.subr.bf16.mxu0 %v4902
    %5360 = vmatpush1.bf16.msra.mxu0 %v4901
    %5361 = vmatprep.subr.bf16.mxu0 %v4910
    %5362 = vmatpush1.bf16.msra.mxu0 %v4909
    %5363 = vmatprep.subr.bf16.mxu0 %v4918
    %5364 = vmatpush1.bf16.msra.mxu0 %v4917
    %5365 = vmatprep.subr.bf16.mxu0 %v4926
    %5366 = vmatpush1.bf16.msra.mxu0 %v4925
    %5367 = vmatprep.subr.bf16.mxu0 %v4934
    %5368 = vmatpush1.bf16.msra.mxu0 %v4933
    %5369 = vmatprep.subr.bf16.mxu0 %v4942
    %5370 = vmatpush1.bf16.msra.mxu0 %v4941
    %5371 = vmatprep.subr.bf16.mxu0 %v4950
    %5372 = vmatpush1.bf16.msra.mxu0 %v4949
    %5373 = vmatprep.mubr.bf16.mxu0 %v3760
    %5374 = vmatmul.mubr.bf16.gmra.mrb[0].mxu0 %v3759
    %v5375 = vpop.f32.mrb[0].mxu0
    %v5376 = vadd.f32 %v4024, %v5375
    %v5377 = vpop.f32.mrb[0].mxu0
    %v5378 = vadd.f32 %v4028, %v5377
    %v5379 = vpop.f32.mrb[0].mxu0
    %v5380 = vpop.f32.mrb[0].mxu0
    %5381 = vdwg.mxu0
    %5382 = vmatprep.subr.bf16.mxu0 %v4958
    %5383 = vmatpush1.bf16.msra.mxu0 %v4957
    %5384 = vmatprep.subr.bf16.mxu0 %v4966
    %5385 = vmatpush1.bf16.msra.mxu0 %v4965
    %5386 = vmatprep.subr.bf16.mxu0 %v4974
    %5387 = vmatpush1.bf16.msra.mxu0 %v4973
    %5388 = vmatprep.subr.bf16.mxu0 %v4982
    %5389 = vmatpush1.bf16.msra.mxu0 %v4981
    %5390 = vmatprep.subr.bf16.mxu0 %v4990
    %5391 = vmatpush1.bf16.msra.mxu0 %v4989
    %5392 = vmatprep.subr.bf16.mxu0 %v4998
    %5393 = vmatpush1.bf16.msra.mxu0 %v4997
    %5394 = vmatprep.subr.bf16.mxu0 %v5006
    %5395 = vmatpush1.bf16.msra.mxu0 %v5005
    %5396 = vmatprep.subr.bf16.mxu0 %v5014
    %5397 = vmatpush1.bf16.msra.mxu0 %v5013
    %5398 = vmatprep.subr.bf16.mxu0 %v5022
    %5399 = vmatpush1.bf16.msra.mxu0 %v5021
    %5400 = vmatprep.subr.bf16.mxu0 %v5030
    %5401 = vmatpush1.bf16.msra.mxu0 %v5029
    %5402 = vmatprep.subr.bf16.mxu0 %v5038
    %5403 = vmatpush1.bf16.msra.mxu0 %v5037
    %5404 = vmatprep.subr.bf16.mxu0 %v5046
    %5405 = vmatpush1.bf16.msra.mxu0 %v5045
    %5406 = vmatprep.subr.bf16.mxu0 %v5054
    %5407 = vmatpush1.bf16.msra.mxu0 %v5053
    %5408 = vmatprep.subr.bf16.mxu0 %v5062
    %5409 = vmatpush1.bf16.msra.mxu0 %v5061
    %5410 = vmatprep.subr.bf16.mxu0 %v5070
    %5411 = vmatpush1.bf16.msra.mxu0 %v5069
    %5412 = vmatprep.subr.bf16.mxu0 %v5078
    %5413 = vmatpush1.bf16.msra.mxu0 %v5077
    %5414 = vmatprep.mubr.bf16.mxu0 %v3762
    %5415 = vmatmul.mubr.bf16.gmra.mrb[0].mxu0 %v3761
    %v5416 = vpop.f32.mrb[0].mxu0
    %v5417 = vadd.f32 %v5376, %v5416
    %v5418 = vpop.f32.mrb[0].mxu0
    %v5419 = vadd.f32 %v5378, %v5418
    %v5420 = vpop.f32.mrb[0].mxu0
    %v5421 = vpop.f32.mrb[0].mxu0
    %5422 = vdwg.mxu0
    %5423 = vmatprep.subr.bf16.mxu0 %v4832
    %5424 = vmatpush1.bf16.msra.mxu0 %v4831
    %5425 = vmatprep.subr.bf16.mxu0 %v4840
    %5426 = vmatpush1.bf16.msra.mxu0 %v4839
    %5427 = vmatprep.subr.bf16.mxu0 %v4848
    %5428 = vmatpush1.bf16.msra.mxu0 %v4847
    %5429 = vmatprep.subr.bf16.mxu0 %v4856
    %5430 = vmatpush1.bf16.msra.mxu0 %v4855
    %5431 = vmatprep.subr.bf16.mxu0 %v4864
    %5432 = vmatpush1.bf16.msra.mxu0 %v4863
    %5433 = vmatprep.subr.bf16.mxu0 %v4872
    %5434 = vmatpush1.bf16.msra.mxu0 %v4871
    %5435 = vmatprep.subr.bf16.mxu0 %v4880
    %5436 = vmatpush1.bf16.msra.mxu0 %v4879
    %5437 = vmatprep.subr.bf16.mxu0 %v4888
    %5438 = vmatpush1.bf16.msra.mxu0 %v4887
    %5439 = vmatprep.subr.bf16.mxu0 %v4896
    %5440 = vmatpush1.bf16.msra.mxu0 %v4895
    %5441 = vmatprep.subr.bf16.mxu0 %v4904
    %5442 = vmatpush1.bf16.msra.mxu0 %v4903
    %5443 = vmatprep.subr.bf16.mxu0 %v4912
    %5444 = vmatpush1.bf16.msra.mxu0 %v4911
    %5445 = vmatprep.subr.bf16.mxu0 %v4920
    %5446 = vmatpush1.bf16.msra.mxu0 %v4919
    %5447 = vmatprep.subr.bf16.mxu0 %v4928
    %5448 = vmatpush1.bf16.msra.mxu0 %v4927
    %5449 = vmatprep.subr.bf16.mxu0 %v4936
    %5450 = vmatpush1.bf16.msra.mxu0 %v4935
    %5451 = vmatprep.subr.bf16.mxu0 %v4944
    %5452 = vmatpush1.bf16.msra.mxu0 %v4943
    %5453 = vmatprep.subr.bf16.mxu0 %v4952
    %5454 = vmatpush1.bf16.msra.mxu0 %v4951
    %5455 = vmatprep.mubr.bf16.mxu0 %v3760
    %5456 = vmatmul.mubr.bf16.gmra.mrb[0].mxu0 %v3759
    %v5457 = vpop.f32.mrb[0].mxu0
    %v5458 = vadd.f32 %v4032, %v5457
    %v5459 = vpop.f32.mrb[0].mxu0
    %v5460 = vadd.f32 %v4036, %v5459
    %v5461 = vpop.f32.mrb[0].mxu0
    %v5462 = vpop.f32.mrb[0].mxu0
    %5463 = vdwg.mxu0
    %5464 = vmatprep.subr.bf16.mxu0 %v4960
    %5465 = vmatpush1.bf16.msra.mxu0 %v4959
    %5466 = vmatprep.subr.bf16.mxu0 %v4968
    %5467 = vmatpush1.bf16.msra.mxu0 %v4967
    %5468 = vmatprep.subr.bf16.mxu0 %v4976
    %5469 = vmatpush1.bf16.msra.mxu0 %v4975
    %5470 = vmatprep.subr.bf16.mxu0 %v4984
    %5471 = vmatpush1.bf16.msra.mxu0 %v4983
    %5472 = vmatprep.subr.bf16.mxu0 %v4992
    %5473 = vmatpush1.bf16.msra.mxu0 %v4991
    %5474 = vmatprep.subr.bf16.mxu0 %v5000
    %5475 = vmatpush1.bf16.msra.mxu0 %v4999
    %5476 = vmatprep.subr.bf16.mxu0 %v5008
    %5477 = vmatpush1.bf16.msra.mxu0 %v5007
    %5478 = vmatprep.subr.bf16.mxu0 %v5016
    %5479 = vmatpush1.bf16.msra.mxu0 %v5015
    %5480 = vmatprep.subr.bf16.mxu0 %v5024
    %5481 = vmatpush1.bf16.msra.mxu0 %v5023
    %5482 = vmatprep.subr.bf16.mxu0 %v5032
    %5483 = vmatpush1.bf16.msra.mxu0 %v5031
    %5484 = vmatprep.subr.bf16.mxu0 %v5040
    %5485 = vmatpush1.bf16.msra.mxu0 %v5039
    %5486 = vmatprep.subr.bf16.mxu0 %v5048
    %5487 = vmatpush1.bf16.msra.mxu0 %v5047
    %5488 = vmatprep.subr.bf16.mxu0 %v5056
    %5489 = vmatpush1.bf16.msra.mxu0 %v5055
    %5490 = vmatprep.subr.bf16.mxu0 %v5064
    %5491 = vmatpush1.bf16.msra.mxu0 %v5063
    %5492 = vmatprep.subr.bf16.mxu0 %v5072
    %5493 = vmatpush1.bf16.msra.mxu0 %v5071
    %5494 = vmatprep.subr.bf16.mxu0 %v5080
    %5495 = vmatpush1.bf16.msra.mxu0 %v5079
    %5496 = vmatprep.mubr.bf16.mxu0 %v3762
    %5497 = vmatmul.mubr.bf16.gmra.mrb[0].mxu0 %v3761
    %v5498 = vpop.f32.mrb[0].mxu0
    %v5499 = vadd.f32 %v5458, %v5498
    %v5500 = vpop.f32.mrb[0].mxu0
    %v5501 = vadd.f32 %v5460, %v5500
    %v5502 = vpop.f32.mrb[0].mxu0
    %v5503 = vpop.f32.mrb[0].mxu0
    %5504 = vdwg.mxu0
    %5505 = vmatprep.subr.bf16.mxu0 %v4834
    %5506 = vmatpush1.bf16.msra.mxu0 %v4833
    %5507 = vmatprep.subr.bf16.mxu0 %v4842
    %5508 = vmatpush1.bf16.msra.mxu0 %v4841
    %5509 = vmatprep.subr.bf16.mxu0 %v4850
    %5510 = vmatpush1.bf16.msra.mxu0 %v4849
    %5511 = vmatprep.subr.bf16.mxu0 %v4858
    %5512 = vmatpush1.bf16.msra.mxu0 %v4857
    %5513 = vmatprep.subr.bf16.mxu0 %v4866
    %5514 = vmatpush1.bf16.msra.mxu0 %v4865
    %5515 = vmatprep.subr.bf16.mxu0 %v4874
    %5516 = vmatpush1.bf16.msra.mxu0 %v4873
    %5517 = vmatprep.subr.bf16.mxu0 %v4882
    %5518 = vmatpush1.bf16.msra.mxu0 %v4881
    %5519 = vmatprep.subr.bf16.mxu0 %v4890
    %5520 = vmatpush1.bf16.msra.mxu0 %v4889
    %5521 = vmatprep.subr.bf16.mxu0 %v4898
    %5522 = vmatpush1.bf16.msra.mxu0 %v4897
    %5523 = vmatprep.subr.bf16.mxu0 %v4906
    %5524 = vmatpush1.bf16.msra.mxu0 %v4905
    %5525 = vmatprep.subr.bf16.mxu0 %v4914
    %5526 = vmatpush1.bf16.msra.mxu0 %v4913
    %5527 = vmatprep.subr.bf16.mxu0 %v4922
    %5528 = vmatpush1.bf16.msra.mxu0 %v4921
    %5529 = vmatprep.subr.bf16.mxu0 %v4930
    %5530 = vmatpush1.bf16.msra.mxu0 %v4929
    %5531 = vmatprep.subr.bf16.mxu0 %v4938
    %5532 = vmatpush1.bf16.msra.mxu0 %v4937
    %5533 = vmatprep.subr.bf16.mxu0 %v4946
    %5534 = vmatpush1.bf16.msra.mxu0 %v4945
    %5535 = vmatprep.subr.bf16.mxu0 %v4954
    %5536 = vmatpush1.bf16.msra.mxu0 %v4953
    %5537 = vmatprep.mubr.bf16.mxu0 %v3760
    %5538 = vmatmul.mubr.bf16.gmra.mrb[0].mxu0 %v3759
    %v5539 = vpop.f32.mrb[0].mxu0
    %v5540 = vadd.f32 %v4040, %v5539
    %v5541 = vpop.f32.mrb[0].mxu0
    %v5542 = vadd.f32 %v4044, %v5541
    %v5543 = vpop.f32.mrb[0].mxu0
    %v5544 = vpop.f32.mrb[0].mxu0
    %5545 = vdwg.mxu0
    %5546 = vmatprep.subr.bf16.mxu0 %v4962
    %5547 = vmatpush1.bf16.msra.mxu0 %v4961
    %5548 = vmatprep.subr.bf16.mxu0 %v4970
    %5549 = vmatpush1.bf16.msra.mxu0 %v4969
    %5550 = vmatprep.subr.bf16.mxu0 %v4978
    %5551 = vmatpush1.bf16.msra.mxu0 %v4977
    %5552 = vmatprep.subr.bf16.mxu0 %v4986
    %5553 = vmatpush1.bf16.msra.mxu0 %v4985
    %5554 = vmatprep.subr.bf16.mxu0 %v4994
    %5555 = vmatpush1.bf16.msra.mxu0 %v4993
    %5556 = vmatprep.subr.bf16.mxu0 %v5002
    %5557 = vmatpush1.bf16.msra.mxu0 %v5001
    %5558 = vmatprep.subr.bf16.mxu0 %v5010
    %5559 = vmatpush1.bf16.msra.mxu0 %v5009
    %5560 = vmatprep.subr.bf16.mxu0 %v5018
    %5561 = vmatpush1.bf16.msra.mxu0 %v5017
    %5562 = vmatprep.subr.bf16.mxu0 %v5026
    %5563 = vmatpush1.bf16.msra.mxu0 %v5025
    %5564 = vmatprep.subr.bf16.mxu0 %v5034
    %5565 = vmatpush1.bf16.msra.mxu0 %v5033
    %5566 = vmatprep.subr.bf16.mxu0 %v5042
    %5567 = vmatpush1.bf16.msra.mxu0 %v5041
    %5568 = vmatprep.subr.bf16.mxu0 %v5050
    %5569 = vmatpush1.bf16.msra.mxu0 %v5049
    %5570 = vmatprep.subr.bf16.mxu0 %v5058
    %5571 = vmatpush1.bf16.msra.mxu0 %v5057
    %5572 = vmatprep.subr.bf16.mxu0 %v5066
    %5573 = vmatpush1.bf16.msra.mxu0 %v5065
    %5574 = vmatprep.subr.bf16.mxu0 %v5074
    %5575 = vmatpush1.bf16.msra.mxu0 %v5073
    %5576 = vmatprep.subr.bf16.mxu0 %v5082
    %5577 = vmatpush1.bf16.msra.mxu0 %v5081
    %5578 = vmatprep.mubr.bf16.mxu0 %v3762
    %5579 = vmatmul.mubr.bf16.gmra.mrb[0].mxu0 %v3761
    %v5580 = vpop.f32.mrb[0].mxu0
    %v5581 = vadd.f32 %v5540, %v5580
    %v5582 = vpop.f32.mrb[0].mxu0
    %v5583 = vadd.f32 %v5542, %v5582
    %v5584 = vpop.f32.mrb[0].mxu0
    %v5585 = vpop.f32.mrb[0].mxu0
    %5586 = vdwg.mxu0
    %5587 = vmatprep.subr.bf16.mxu0 %v4836
    %5588 = vmatpush1.bf16.msra.mxu0 %v4835
    %5589 = vmatprep.subr.bf16.mxu0 %v4844
    %5590 = vmatpush1.bf16.msra.mxu0 %v4843
    %5591 = vmatprep.subr.bf16.mxu0 %v4852
    %5592 = vmatpush1.bf16.msra.mxu0 %v4851
    %5593 = vmatprep.subr.bf16.mxu0 %v4860
    %5594 = vmatpush1.bf16.msra.mxu0 %v4859
    %5595 = vmatprep.subr.bf16.mxu0 %v4868
    %5596 = vmatpush1.bf16.msra.mxu0 %v4867
    %5597 = vmatprep.subr.bf16.mxu0 %v4876
    %5598 = vmatpush1.bf16.msra.mxu0 %v4875
    %5599 = vmatprep.subr.bf16.mxu0 %v4884
    %5600 = vmatpush1.bf16.msra.mxu0 %v4883
    %5601 = vmatprep.subr.bf16.mxu0 %v4892
    %5602 = vmatpush1.bf16.msra.mxu0 %v4891
    %5603 = vmatprep.subr.bf16.mxu0 %v4900
    %5604 = vmatpush1.bf16.msra.mxu0 %v4899
    %5605 = vmatprep.subr.bf16.mxu0 %v4908
    %5606 = vmatpush1.bf16.msra.mxu0 %v4907
    %5607 = vmatprep.subr.bf16.mxu0 %v4916
    %5608 = vmatpush1.bf16.msra.mxu0 %v4915
    %5609 = vmatprep.subr.bf16.mxu0 %v4924
    %5610 = vmatpush1.bf16.msra.mxu0 %v4923
    %5611 = vmatprep.subr.bf16.mxu0 %v4932
    %5612 = vmatpush1.bf16.msra.mxu0 %v4931
    %5613 = vmatprep.subr.bf16.mxu0 %v4940
    %5614 = vmatpush1.bf16.msra.mxu0 %v4939
    %5615 = vmatprep.subr.bf16.mxu0 %v4948
    %5616 = vmatpush1.bf16.msra.mxu0 %v4947
    %5617 = vmatprep.subr.bf16.mxu0 %v4956
    %5618 = vmatpush1.bf16.msra.mxu0 %v4955
    %5619 = vmatprep.mubr.bf16.mxu0 %v3760
    %5620 = vmatmul.mubr.bf16.gmra.mrb[0].mxu0 %v3759
    %v5621 = vpop.f32.mrb[0].mxu0
    %v5622 = vadd.f32 %v4048, %v5621
    %v5623 = vpop.f32.mrb[0].mxu0
    %v5624 = vadd.f32 %v4052, %v5623
    %v5625 = vpop.f32.mrb[0].mxu0
    %v5626 = vpop.f32.mrb[0].mxu0
    %5627 = vdwg.mxu0
    %5628 = vmatprep.subr.bf16.mxu0 %v4964
    %5629 = vmatpush1.bf16.msra.mxu0 %v4963
    %5630 = vmatprep.subr.bf16.mxu0 %v4972
    %5631 = vmatpush1.bf16.msra.mxu0 %v4971
    %5632 = vmatprep.subr.bf16.mxu0 %v4980
    %5633 = vmatpush1.bf16.msra.mxu0 %v4979
    %5634 = vmatprep.subr.bf16.mxu0 %v4988
    %5635 = vmatpush1.bf16.msra.mxu0 %v4987
    %5636 = vmatprep.subr.bf16.mxu0 %v4996
    %5637 = vmatpush1.bf16.msra.mxu0 %v4995
    %5638 = vmatprep.subr.bf16.mxu0 %v5004
    %5639 = vmatpush1.bf16.msra.mxu0 %v5003
    %5640 = vmatprep.subr.bf16.mxu0 %v5012
    %5641 = vmatpush1.bf16.msra.mxu0 %v5011
    %5642 = vmatprep.subr.bf16.mxu0 %v5020
    %5643 = vmatpush1.bf16.msra.mxu0 %v5019
    %5644 = vmatprep.subr.bf16.mxu0 %v5028
    %5645 = vmatpush1.bf16.msra.mxu0 %v5027
    %5646 = vmatprep.subr.bf16.mxu0 %v5036
    %5647 = vmatpush1.bf16.msra.mxu0 %v5035
    %5648 = vmatprep.subr.bf16.mxu0 %v5044
    %5649 = vmatpush1.bf16.msra.mxu0 %v5043
    %5650 = vmatprep.subr.bf16.mxu0 %v5052
    %5651 = vmatpush1.bf16.msra.mxu0 %v5051
    %5652 = vmatprep.subr.bf16.mxu0 %v5060
    %5653 = vmatpush1.bf16.msra.mxu0 %v5059
    %5654 = vmatprep.subr.bf16.mxu0 %v5068
    %5655 = vmatpush1.bf16.msra.mxu0 %v5067
    %5656 = vmatprep.subr.bf16.mxu0 %v5076
    %5657 = vmatpush1.bf16.msra.mxu0 %v5075
    %5658 = vmatprep.subr.bf16.mxu0 %v5084
    %5659 = vmatpush1.bf16.msra.mxu0 %v5083
    %5660 = vmatprep.mubr.bf16.mxu0 %v3762
    %5661 = vmatmul.mubr.bf16.gmra.mrb[0].mxu0 %v3761
    %v5662 = vpop.f32.mrb[0].mxu0
    %v5663 = vadd.f32 %v5622, %v5662
    %v5664 = vpop.f32.mrb[0].mxu0
    %v5665 = vadd.f32 %v5624, %v5664
    %v5666 = vpop.f32.mrb[0].mxu0
    %v5667 = vpop.f32.mrb[0].mxu0
    %5668 = vdwg.mxu0
    %v5669 = vmul.f32 %v5581, 0.5
    %v5670 = vmul.f32 %v5583, 0.5
    %v5671 = vmul.f32 %v5663, 0.5
    %v5672 = vmul.f32 %v5665, 0.5
    %v5673 = vmul.f32 %v5669, 1.442695
    %v5674 = vpow.pop %v5673
    %v5675 = vmul.f32 %v5670, 1.442695
    %v5676 = vpow.pop %v5675
    %v5677 = vmul.f32 %v5671, 1.442695
    %v5678 = vpow.pop %v5677
    %v5679 = vmul.f32 %v5672, 1.442695
    %v5680 = vpow.pop %v5679
    %v5681 = vld [vmem:[#allocation5] sm:$0xff]
    %v5682 = vld [vmem:[#allocation5 + $0x8] sm:$0xff]
    %v5683 = vld [vmem:[#allocation5 + $0x10] sm:$0xff]
    %v5684 = vld [vmem:[#allocation5 + $0x18] sm:$0xff]
    %v5685 = vmul.f32 %v5681, %v5674
    %v5686 = vmul.f32 %v5682, %v5676
    %v5687 = vmul.f32 %v5683, %v5678
    %v5688 = vmul.f32 %v5684, %v5680
    %v5689 = vadd.f32 %v5685, %v5417
    %v5690 = vadd.f32 %v5686, %v5419
    %v5691 = vadd.f32 %v5687, %v5499
    %v5692 = vadd.f32 %v5688, %v5501
    %v5693 = vpack.c.bf16 %v5689, %v5689
    %v5694 = vpack.c.bf16 %v5690, %v5690
    %v5695 = vpack.c.bf16 %v5691, %v5691
    %v5696 = vpack.c.bf16 %v5692, %v5692
    %v5697 = vld [vmem:[#allocation16] sm:$0xff]
    %v5698 = vld [vmem:[#allocation16 + $0x8] sm:$0xff]
    %v5699 = vld [vmem:[#allocation16 + $0x10] sm:$0xf]
    %v5700 = vld [vmem:[#allocation16 + $0x14] sm:$0xff]
    %v5701 = vld [vmem:[#allocation16 + $0x1c] sm:$0xff]
    %v5702 = vld [vmem:[#allocation16 + $0x24] sm:$0xf]
    %v5703 = vld [vmem:[#allocation16 + $0x28] sm:$0xff]
    %v5704 = vld [vmem:[#allocation16 + $0x30] sm:$0xff]
    %v5705 = vld [vmem:[#allocation16 + $0x38] sm:$0xf]
    %v5706 = vld [vmem:[#allocation16 + $0x3c] sm:$0xff]
    %v5707 = vld [vmem:[#allocation16 + $0x44] sm:$0xff]
    %v5708 = vld [vmem:[#allocation16 + $0x4c] sm:$0xf]
    %v5709 = vld [vmem:[#allocation16 + $0x50] sm:$0xff]
    %v5710 = vld [vmem:[#allocation16 + $0x58] sm:$0xff]
    %v5711 = vld [vmem:[#allocation16 + $0x60] sm:$0xf]
    %v5712 = vld [vmem:[#allocation16 + $0x64] sm:$0xff]
    %v5713 = vld [vmem:[#allocation16 + $0x6c] sm:$0xff]
    %v5714 = vld [vmem:[#allocation16 + $0x74] sm:$0xf]
    %v5715 = vld [vmem:[#allocation16 + $0x78] sm:$0xff]
    %v5716 = vld [vmem:[#allocation16 + $0x80] sm:$0xff]
    %v5717 = vld [vmem:[#allocation16 + $0x88] sm:$0xf]
    %v5718 = vld [vmem:[#allocation16 + $0x8c] sm:$0xff]
    %v5719 = vld [vmem:[#allocation16 + $0x94] sm:$0xff]
    %v5720 = vld [vmem:[#allocation16 + $0x9c] sm:$0xf]
    %v5721 = vld [vmem:[#allocation16 + $0xa0] sm:$0xff]
    %v5722 = vld [vmem:[#allocation16 + $0xa8] sm:$0xff]
    %v5723 = vld [vmem:[#allocation16 + $0xb0] sm:$0xf]
    %v5724 = vld [vmem:[#allocation16 + $0xb4] sm:$0xff]
    %v5725 = vld [vmem:[#allocation16 + $0xbc] sm:$0xff]
    %v5726 = vld [vmem:[#allocation16 + $0xc4] sm:$0xf]
    %v5727 = vld [vmem:[#allocation16 + $0xc8] sm:$0xff]
    %v5728 = vld [vmem:[#allocation16 + $0xd0] sm:$0xff]
    %v5729 = vld [vmem:[#allocation16 + $0xd8] sm:$0xf]
    %v5730 = vld [vmem:[#allocation16 + $0xdc] sm:$0xff]
    %v5731 = vld [vmem:[#allocation16 + $0xe4] sm:$0xff]
    %v5732 = vld [vmem:[#allocation16 + $0xec] sm:$0xf]
    %v5733 = vld [vmem:[#allocation16 + $0xf0] sm:$0xff]
    %v5734 = vld [vmem:[#allocation16 + $0xf8] sm:$0xff]
    %v5735 = vld [vmem:[#allocation16 + $0x100] sm:$0xf]
    %v5736 = vld [vmem:[#allocation16 + $0x104] sm:$0xff]
    %v5737 = vld [vmem:[#allocation16 + $0x10c] sm:$0xff]
    %v5738 = vld [vmem:[#allocation16 + $0x114] sm:$0xf]
    %v5739 = vld [vmem:[#allocation16 + $0x118] sm:$0xff]
    %v5740 = vld [vmem:[#allocation16 + $0x120] sm:$0xff]
    %v5741 = vld [vmem:[#allocation16 + $0x128] sm:$0xf]
    %v5742 = vld [vmem:[#allocation16 + $0x12c] sm:$0xff]
    %v5743 = vld [vmem:[#allocation16 + $0x134] sm:$0xff]
    %v5744 = vld [vmem:[#allocation16 + $0x13c] sm:$0xf]
    %v5745 = vld [vmem:[#allocation16 + $0x140] sm:$0xff]
    %v5746 = vld [vmem:[#allocation16 + $0x148] sm:$0xff]
    %v5747 = vld [vmem:[#allocation16 + $0x150] sm:$0xf]
    %v5748 = vld [vmem:[#allocation16 + $0x154] sm:$0xff]
    %v5749 = vld [vmem:[#allocation16 + $0x15c] sm:$0xff]
    %v5750 = vld [vmem:[#allocation16 + $0x164] sm:$0xf]
    %v5751 = vld [vmem:[#allocation16 + $0x168] sm:$0xff]
    %v5752 = vld [vmem:[#allocation16 + $0x170] sm:$0xff]
    %v5753 = vld [vmem:[#allocation16 + $0x178] sm:$0xf]
    %v5754 = vld [vmem:[#allocation16 + $0x17c] sm:$0xff]
    %v5755 = vld [vmem:[#allocation16 + $0x184] sm:$0xff]
    %v5756 = vld [vmem:[#allocation16 + $0x18c] sm:$0xf]
    %v5757 = vld [vmem:[#allocation16 + $0x190] sm:$0xff]
    %v5758 = vld [vmem:[#allocation16 + $0x198] sm:$0xff]
    %v5759 = vld [vmem:[#allocation16 + $0x1a0] sm:$0xf]
    %v5760 = vld [vmem:[#allocation16 + $0x1a4] sm:$0xff]
    %v5761 = vld [vmem:[#allocation16 + $0x1ac] sm:$0xff]
    %v5762 = vld [vmem:[#allocation16 + $0x1b4] sm:$0xf]
    %v5763 = vld [vmem:[#allocation16 + $0x1b8] sm:$0xff]
    %v5764 = vld [vmem:[#allocation16 + $0x1c0] sm:$0xff]
    %v5765 = vld [vmem:[#allocation16 + $0x1c8] sm:$0xf]
    %v5766 = vld [vmem:[#allocation16 + $0x1cc] sm:$0xff]
    %v5767 = vld [vmem:[#allocation16 + $0x1d4] sm:$0xff]
    %v5768 = vld [vmem:[#allocation16 + $0x1dc] sm:$0xf]
    %v5769 = vld [vmem:[#allocation16 + $0x1e0] sm:$0xff]
    %v5770 = vld [vmem:[#allocation16 + $0x1e8] sm:$0xff]
    %v5771 = vld [vmem:[#allocation16 + $0x1f0] sm:$0xf]
    %v5772 = vld [vmem:[#allocation16 + $0x1f4] sm:$0xff]
    %v5773 = vld [vmem:[#allocation16 + $0x1fc] sm:$0xff]
    %v5774 = vld [vmem:[#allocation16 + $0x204] sm:$0xf]
    %v5775 = vld [vmem:[#allocation16 + $0x208] sm:$0xff]
    %v5776 = vld [vmem:[#allocation16 + $0x210] sm:$0xff]
    %v5777 = vld [vmem:[#allocation16 + $0x218] sm:$0xf]
    %v5778 = vld [vmem:[#allocation16 + $0x21c] sm:$0xff]
    %v5779 = vld [vmem:[#allocation16 + $0x224] sm:$0xff]
    %v5780 = vld [vmem:[#allocation16 + $0x22c] sm:$0xf]
    %v5781 = vld [vmem:[#allocation16 + $0x230] sm:$0xff]
    %v5782 = vld [vmem:[#allocation16 + $0x238] sm:$0xff]
    %v5783 = vld [vmem:[#allocation16 + $0x240] sm:$0xf]
    %v5784 = vld [vmem:[#allocation16 + $0x244] sm:$0xff]
    %v5785 = vld [vmem:[#allocation16 + $0x24c] sm:$0xff]
    %v5786 = vld [vmem:[#allocation16 + $0x254] sm:$0xf]
    %v5787 = vld [vmem:[#allocation16 + $0x258] sm:$0xff]
    %v5788 = vld [vmem:[#allocation16 + $0x260] sm:$0xff]
    %v5789 = vld [vmem:[#allocation16 + $0x268] sm:$0xf]
    %v5790 = vld [vmem:[#allocation16 + $0x26c] sm:$0xff]
    %v5791 = vld [vmem:[#allocation16 + $0x274] sm:$0xff]
    %v5792 = vld [vmem:[#allocation16 + $0x27c] sm:$0xf]
    %v5793 = vld [vmem:[#allocation16 + $0x280] sm:$0xff]
    %v5794 = vld [vmem:[#allocation16 + $0x288] sm:$0xff]
    %v5795 = vld [vmem:[#allocation16 + $0x290] sm:$0xf]
    %v5796 = vld [vmem:[#allocation16 + $0x294] sm:$0xff]
    %v5797 = vld [vmem:[#allocation16 + $0x29c] sm:$0xff]
    %v5798 = vld [vmem:[#allocation16 + $0x2a4] sm:$0xf]
    %v5799 = vld [vmem:[#allocation16 + $0x2a8] sm:$0xff]
    %v5800 = vld [vmem:[#allocation16 + $0x2b0] sm:$0xff]
    %v5801 = vld [vmem:[#allocation16 + $0x2b8] sm:$0xf]
    %v5802 = vld [vmem:[#allocation16 + $0x2bc] sm:$0xff]
    %v5803 = vld [vmem:[#allocation16 + $0x2c4] sm:$0xff]
    %v5804 = vld [vmem:[#allocation16 + $0x2cc] sm:$0xf]
    %v5805 = vld [vmem:[#allocation16 + $0x2d0] sm:$0xff]
    %v5806 = vld [vmem:[#allocation16 + $0x2d8] sm:$0xff]
    %v5807 = vld [vmem:[#allocation16 + $0x2e0] sm:$0xf]
    %v5808 = vld [vmem:[#allocation16 + $0x2e4] sm:$0xff]
    %v5809 = vld [vmem:[#allocation16 + $0x2ec] sm:$0xff]
    %v5810 = vld [vmem:[#allocation16 + $0x2f4] sm:$0xf]
    %v5811 = vld [vmem:[#allocation16 + $0x2f8] sm:$0xff]
    %v5812 = vld [vmem:[#allocation16 + $0x300] sm:$0xff]
    %v5813 = vld [vmem:[#allocation16 + $0x308] sm:$0xf]
    %v5814 = vld [vmem:[#allocation16 + $0x30c] sm:$0xff]
    %v5815 = vld [vmem:[#allocation16 + $0x314] sm:$0xff]
    %v5816 = vld [vmem:[#allocation16 + $0x31c] sm:$0xf]
    %v5817 = vld [vmem:[#allocation16 + $0x320] sm:$0xff]
    %v5818 = vld [vmem:[#allocation16 + $0x328] sm:$0xff]
    %v5819 = vld [vmem:[#allocation16 + $0x330] sm:$0xf]
    %v5820 = vld [vmem:[#allocation16 + $0x334] sm:$0xff]
    %v5821 = vld [vmem:[#allocation16 + $0x33c] sm:$0xff]
    %v5822 = vld [vmem:[#allocation16 + $0x344] sm:$0xf]
    %v5823 = vld [vmem:[#allocation16 + $0x348] sm:$0xff]
    %v5824 = vld [vmem:[#allocation16 + $0x350] sm:$0xff]
    %v5825 = vld [vmem:[#allocation16 + $0x358] sm:$0xf]
    %v5826 = vld [vmem:[#allocation16 + $0x35c] sm:$0xff]
    %v5827 = vld [vmem:[#allocation16 + $0x364] sm:$0xff]
    %v5828 = vld [vmem:[#allocation16 + $0x36c] sm:$0xf]
    %v5829 = vld [vmem:[#allocation16 + $0x370] sm:$0xff]
    %v5830 = vld [vmem:[#allocation16 + $0x378] sm:$0xff]
    %v5831 = vld [vmem:[#allocation16 + $0x380] sm:$0xf]
    %v5832 = vld [vmem:[#allocation16 + $0x384] sm:$0xff]
    %v5833 = vld [vmem:[#allocation16 + $0x38c] sm:$0xff]
    %v5834 = vld [vmem:[#allocation16 + $0x394] sm:$0xf]
    %v5835 = vld [vmem:[#allocation16 + $0x398] sm:$0xff]
    %v5836 = vld [vmem:[#allocation16 + $0x3a0] sm:$0xff]
    %v5837 = vld [vmem:[#allocation16 + $0x3a8] sm:$0xf]
    %v5838 = vld [vmem:[#allocation16 + $0x3ac] sm:$0xff]
    %v5839 = vld [vmem:[#allocation16 + $0x3b4] sm:$0xff]
    %v5840 = vld [vmem:[#allocation16 + $0x3bc] sm:$0xf]
    %v5841 = vld [vmem:[#allocation16 + $0x3c0] sm:$0xff]
    %v5842 = vld [vmem:[#allocation16 + $0x3c8] sm:$0xff]
    %v5843 = vld [vmem:[#allocation16 + $0x3d0] sm:$0xf]
    %v5844 = vld [vmem:[#allocation16 + $0x3d4] sm:$0xff]
    %v5845 = vld [vmem:[#allocation16 + $0x3dc] sm:$0xff]
    %v5846 = vld [vmem:[#allocation16 + $0x3e4] sm:$0xf]
    %v5847 = vld [vmem:[#allocation16 + $0x3e8] sm:$0xff]
    %v5848 = vld [vmem:[#allocation16 + $0x3f0] sm:$0xff]
    %v5849 = vld [vmem:[#allocation16 + $0x3f8] sm:$0xf]
    %v5850 = vld [vmem:[#allocation16 + $0x3fc] sm:$0xff]
    %v5851 = vld [vmem:[#allocation16 + $0x404] sm:$0xff]
    %v5852 = vld [vmem:[#allocation16 + $0x40c] sm:$0xf]
    %v5853 = vld [vmem:[#allocation16 + $0x410] sm:$0xff]
    %v5854 = vld [vmem:[#allocation16 + $0x418] sm:$0xff]
    %v5855 = vld [vmem:[#allocation16 + $0x420] sm:$0xf]
    %v5856 = vld [vmem:[#allocation16 + $0x424] sm:$0xff]
    %v5857 = vld [vmem:[#allocation16 + $0x42c] sm:$0xff]
    %v5858 = vld [vmem:[#allocation16 + $0x434] sm:$0xf]
    %v5859 = vld [vmem:[#allocation16 + $0x438] sm:$0xff]
    %v5860 = vld [vmem:[#allocation16 + $0x440] sm:$0xff]
    %v5861 = vld [vmem:[#allocation16 + $0x448] sm:$0xf]
    %v5862 = vld [vmem:[#allocation16 + $0x44c] sm:$0xff]
    %v5863 = vld [vmem:[#allocation16 + $0x454] sm:$0xff]
    %v5864 = vld [vmem:[#allocation16 + $0x45c] sm:$0xf]
    %v5865 = vld [vmem:[#allocation16 + $0x460] sm:$0xff]
    %v5866 = vld [vmem:[#allocation16 + $0x468] sm:$0xff]
    %v5867 = vld [vmem:[#allocation16 + $0x470] sm:$0xf]
    %v5868 = vld [vmem:[#allocation16 + $0x474] sm:$0xff]
    %v5869 = vld [vmem:[#allocation16 + $0x47c] sm:$0xff]
    %v5870 = vld [vmem:[#allocation16 + $0x484] sm:$0xf]
    %v5871 = vld [vmem:[#allocation16 + $0x488] sm:$0xff]
    %v5872 = vld [vmem:[#allocation16 + $0x490] sm:$0xff]
    %v5873 = vld [vmem:[#allocation16 + $0x498] sm:$0xf]
    %v5874 = vld [vmem:[#allocation16 + $0x49c] sm:$0xff]
    %v5875 = vld [vmem:[#allocation16 + $0x4a4] sm:$0xff]
    %v5876 = vld [vmem:[#allocation16 + $0x4ac] sm:$0xf]
    %v5877 = vld [vmem:[#allocation16 + $0x4b0] sm:$0xff]
    %v5878 = vld [vmem:[#allocation16 + $0x4b8] sm:$0xff]
    %v5879 = vld [vmem:[#allocation16 + $0x4c0] sm:$0xf]
    %v5880 = vld [vmem:[#allocation16 + $0x4c4] sm:$0xff]
    %v5881 = vld [vmem:[#allocation16 + $0x4cc] sm:$0xff]
    %v5882 = vld [vmem:[#allocation16 + $0x4d4] sm:$0xf]
    %v5883 = vld [vmem:[#allocation16 + $0x4d8] sm:$0xff]
    %v5884 = vld [vmem:[#allocation16 + $0x4e0] sm:$0xff]
    %v5885 = vld [vmem:[#allocation16 + $0x4e8] sm:$0xf]
    %v5886 = vld [vmem:[#allocation16 + $0x4ec] sm:$0xff]
    %v5887 = vld [vmem:[#allocation16 + $0x4f4] sm:$0xff]
    %v5888 = vld [vmem:[#allocation16 + $0x4fc] sm:$0xf]
    %v5889 = vld [vmem:[#allocation17] sm:$0x1f]
    %v5891 = vlaneseq
    %v5892 = vshrl.u32 %v5891, 7
    %v5893 = vsub.s32 0, %v5892
    %v5894 = vrot.slane %v5889, %v5893
    %v5895 = vlaneseq
    %v5896 = vshrl.u32 %v5895, 7
    %v5897 = vsub.s32 1, %v5896
    %v5898 = vrot.slane %v5889, %v5897
    %v5899 = vlaneseq
    %v5900 = vshrl.u32 %v5899, 7
    %v5901 = vsub.s32 2, %v5900
    %v5902 = vrot.slane %v5889, %v5901
    %v5903 = vlaneseq
    %v5904 = vshrl.u32 %v5903, 7
    %v5905 = vsub.s32 3, %v5904
    %v5906 = vrot.slane %v5889, %v5905
    %v5907 = vlaneseq
    %v5908 = vshrl.u32 %v5907, 7
    %v5909 = vsub.s32 4, %v5908
    %v5910 = vrot.slane %v5889, %v5909
    %v6108 = vunpack.c.l.b16 %v5697
    %v6109 = vunpack.c.h.b16 %v5697
    %v6110 = vunpack.c.l.b16 %v5698
    %v6111 = vunpack.c.h.b16 %v5698
    %v6112 = vunpack.c.l.b16 %v5699
    %v6113 = vunpack.c.l.b16 %v5700
    %v6114 = vunpack.c.h.b16 %v5700
    %v6115 = vunpack.c.l.b16 %v5701
    %v6116 = vunpack.c.h.b16 %v5701
    %v6117 = vunpack.c.l.b16 %v5702
    %v6118 = vunpack.c.l.b16 %v5703
    %v6119 = vunpack.c.h.b16 %v5703
    %v6120 = vunpack.c.l.b16 %v5704
    %v6121 = vunpack.c.h.b16 %v5704
    %v6122 = vunpack.c.l.b16 %v5705
    %v6123 = vunpack.c.l.b16 %v5706
    %v6124 = vunpack.c.h.b16 %v5706
    %v6125 = vunpack.c.l.b16 %v5707
    %v6126 = vunpack.c.h.b16 %v5707
    %v6127 = vunpack.c.l.b16 %v5708
    %v6128 = vunpack.c.l.b16 %v5709
    %v6129 = vunpack.c.h.b16 %v5709
    %v6130 = vunpack.c.l.b16 %v5710
    %v6131 = vunpack.c.h.b16 %v5710
    %v6132 = vunpack.c.l.b16 %v5711
    %v6133 = vunpack.c.l.b16 %v5712
    %v6134 = vunpack.c.h.b16 %v5712
    %v6135 = vunpack.c.l.b16 %v5713
    %v6136 = vunpack.c.h.b16 %v5713
    %v6137 = vunpack.c.l.b16 %v5714
    %v6138 = vunpack.c.l.b16 %v5715
    %v6139 = vunpack.c.h.b16 %v5715
    %v6140 = vunpack.c.l.b16 %v5716
    %v6141 = vunpack.c.h.b16 %v5716
    %v6142 = vunpack.c.l.b16 %v5717
    %v6143 = vunpack.c.l.b16 %v5718
    %v6144 = vunpack.c.h.b16 %v5718
    %v6145 = vunpack.c.l.b16 %v5719
    %v6146 = vunpack.c.h.b16 %v5719
    %v6147 = vunpack.c.l.b16 %v5720
    %v6148 = vunpack.c.l.b16 %v5721
    %v6149 = vunpack.c.h.b16 %v5721
    %v6150 = vunpack.c.l.b16 %v5722
    %v6151 = vunpack.c.h.b16 %v5722
    %v6152 = vunpack.c.l.b16 %v5723
    %v6153 = vunpack.c.l.b16 %v5724
    %v6154 = vunpack.c.h.b16 %v5724
    %v6155 = vunpack.c.l.b16 %v5725
    %v6156 = vunpack.c.h.b16 %v5725
    %v6157 = vunpack.c.l.b16 %v5726
    %v6158 = vunpack.c.l.b16 %v5727
    %v6159 = vunpack.c.h.b16 %v5727
    %v6160 = vunpack.c.l.b16 %v5728
    %v6161 = vunpack.c.h.b16 %v5728
    %v6162 = vunpack.c.l.b16 %v5729
    %v6163 = vunpack.c.l.b16 %v5730
    %v6164 = vunpack.c.h.b16 %v5730
    %v6165 = vunpack.c.l.b16 %v5731
    %v6166 = vunpack.c.h.b16 %v5731
    %v6167 = vunpack.c.l.b16 %v5732
    %v6168 = vunpack.c.l.b16 %v5733
    %v6169 = vunpack.c.h.b16 %v5733
    %v6170 = vunpack.c.l.b16 %v5734
    %v6171 = vunpack.c.h.b16 %v5734
    %v6172 = vunpack.c.l.b16 %v5735
    %v6173 = vunpack.c.l.b16 %v5736
    %v6174 = vunpack.c.h.b16 %v5736
    %v6175 = vunpack.c.l.b16 %v5737
    %v6176 = vunpack.c.h.b16 %v5737
    %v6177 = vunpack.c.l.b16 %v5738
    %v6178 = vunpack.c.l.b16 %v5739
    %v6179 = vunpack.c.h.b16 %v5739
    %v6180 = vunpack.c.l.b16 %v5740
    %v6181 = vunpack.c.h.b16 %v5740
    %v6182 = vunpack.c.l.b16 %v5741
    %v6183 = vunpack.c.l.b16 %v5742
    %v6184 = vunpack.c.h.b16 %v5742
    %v6185 = vunpack.c.l.b16 %v5743
    %v6186 = vunpack.c.h.b16 %v5743
    %v6187 = vunpack.c.l.b16 %v5744
    %v6188 = vunpack.c.l.b16 %v5745
    %v6189 = vunpack.c.h.b16 %v5745
    %v6190 = vunpack.c.l.b16 %v5746
    %v6191 = vunpack.c.h.b16 %v5746
    %v6192 = vunpack.c.l.b16 %v5747
    %v6193 = vunpack.c.l.b16 %v5748
    %v6194 = vunpack.c.h.b16 %v5748
    %v6195 = vunpack.c.l.b16 %v5749
    %v6196 = vunpack.c.h.b16 %v5749
    %v6197 = vunpack.c.l.b16 %v5750
    %v6198 = vunpack.c.l.b16 %v5751
    %v6199 = vunpack.c.h.b16 %v5751
    %v6200 = vunpack.c.l.b16 %v5752
    %v6201 = vunpack.c.h.b16 %v5752
    %v6202 = vunpack.c.l.b16 %v5753
    %v6203 = vunpack.c.l.b16 %v5754
    %v6204 = vunpack.c.h.b16 %v5754
    %v6205 = vunpack.c.l.b16 %v5755
    %v6206 = vunpack.c.h.b16 %v5755
    %v6207 = vunpack.c.l.b16 %v5756
    %v6208 = vunpack.c.l.b16 %v5757
    %v6209 = vunpack.c.h.b16 %v5757
    %v6210 = vunpack.c.l.b16 %v5758
    %v6211 = vunpack.c.h.b16 %v5758
    %v6212 = vunpack.c.l.b16 %v5759
    %v6213 = vunpack.c.l.b16 %v5760
    %v6214 = vunpack.c.h.b16 %v5760
    %v6215 = vunpack.c.l.b16 %v5761
    %v6216 = vunpack.c.h.b16 %v5761
    %v6217 = vunpack.c.l.b16 %v5762
    %v6218 = vunpack.c.l.b16 %v5763
    %v6219 = vunpack.c.h.b16 %v5763
    %v6220 = vunpack.c.l.b16 %v5764
    %v6221 = vunpack.c.h.b16 %v5764
    %v6222 = vunpack.c.l.b16 %v5765
    %v6223 = vunpack.c.l.b16 %v5766
    %v6224 = vunpack.c.h.b16 %v5766
    %v6225 = vunpack.c.l.b16 %v5767
    %v6226 = vunpack.c.h.b16 %v5767
    %v6227 = vunpack.c.l.b16 %v5768
    %v6228 = vunpack.c.l.b16 %v5769
    %v6229 = vunpack.c.h.b16 %v5769
    %v6230 = vunpack.c.l.b16 %v5770
    %v6231 = vunpack.c.h.b16 %v5770
    %v6232 = vunpack.c.l.b16 %v5771
    %v6233 = vunpack.c.l.b16 %v5772
    %v6234 = vunpack.c.h.b16 %v5772
    %v6235 = vunpack.c.l.b16 %v5773
    %v6236 = vunpack.c.h.b16 %v5773
    %v6237 = vunpack.c.l.b16 %v5774
    %v6238 = vunpack.c.l.b16 %v5775
    %v6239 = vunpack.c.h.b16 %v5775
    %v6240 = vunpack.c.l.b16 %v5776
    %v6241 = vunpack.c.h.b16 %v5776
    %v6242 = vunpack.c.l.b16 %v5777
    %v6243 = vunpack.c.l.b16 %v5778
    %v6244 = vunpack.c.h.b16 %v5778
    %v6245 = vunpack.c.l.b16 %v5779
    %v6246 = vunpack.c.h.b16 %v5779
    %v6247 = vunpack.c.l.b16 %v5780
    %v6248 = vunpack.c.l.b16 %v5781
    %v6249 = vunpack.c.h.b16 %v5781
    %v6250 = vunpack.c.l.b16 %v5782
    %v6251 = vunpack.c.h.b16 %v5782
    %v6252 = vunpack.c.l.b16 %v5783
    %v6253 = vunpack.c.l.b16 %v5784
    %v6254 = vunpack.c.h.b16 %v5784
    %v6255 = vunpack.c.l.b16 %v5785
    %v6256 = vunpack.c.h.b16 %v5785
    %v6257 = vunpack.c.l.b16 %v5786
    %v6258 = vunpack.c.l.b16 %v5787
    %v6259 = vunpack.c.h.b16 %v5787
    %v6260 = vunpack.c.l.b16 %v5788
    %v6261 = vunpack.c.h.b16 %v5788
    %v6262 = vunpack.c.l.b16 %v5789
    %v6263 = vunpack.c.l.b16 %v5790
    %v6264 = vunpack.c.h.b16 %v5790
    %v6265 = vunpack.c.l.b16 %v5791
    %v6266 = vunpack.c.h.b16 %v5791
    %v6267 = vunpack.c.l.b16 %v5792
    %v6268 = vunpack.c.l.b16 %v5793
    %v6269 = vunpack.c.h.b16 %v5793
    %v6270 = vunpack.c.l.b16 %v5794
    %v6271 = vunpack.c.h.b16 %v5794
    %v6272 = vunpack.c.l.b16 %v5795
    %v6273 = vunpack.c.l.b16 %v5796
    %v6274 = vunpack.c.h.b16 %v5796
    %v6275 = vunpack.c.l.b16 %v5797
    %v6276 = vunpack.c.h.b16 %v5797
    %v6277 = vunpack.c.l.b16 %v5798
    %v6278 = vunpack.c.l.b16 %v5799
    %v6279 = vunpack.c.h.b16 %v5799
    %v6280 = vunpack.c.l.b16 %v5800
    %v6281 = vunpack.c.h.b16 %v5800
    %v6282 = vunpack.c.l.b16 %v5801
    %v6283 = vunpack.c.l.b16 %v5802
    %v6284 = vunpack.c.h.b16 %v5802
    %v6285 = vunpack.c.l.b16 %v5803
    %v6286 = vunpack.c.h.b16 %v5803
    %v6287 = vunpack.c.l.b16 %v5804
    %v6288 = vunpack.c.l.b16 %v5805
    %v6289 = vunpack.c.h.b16 %v5805
    %v6290 = vunpack.c.l.b16 %v5806
    %v6291 = vunpack.c.h.b16 %v5806
    %v6292 = vunpack.c.l.b16 %v5807
    %v6293 = vunpack.c.l.b16 %v5808
    %v6294 = vunpack.c.h.b16 %v5808
    %v6295 = vunpack.c.l.b16 %v5809
    %v6296 = vunpack.c.h.b16 %v5809
    %v6297 = vunpack.c.l.b16 %v5810
    %v6298 = vunpack.c.l.b16 %v5811
    %v6299 = vunpack.c.h.b16 %v5811
    %v6300 = vunpack.c.l.b16 %v5812
    %v6301 = vunpack.c.h.b16 %v5812
    %v6302 = vunpack.c.l.b16 %v5813
    %v6303 = vunpack.c.l.b16 %v5814
    %v6304 = vunpack.c.h.b16 %v5814
    %v6305 = vunpack.c.l.b16 %v5815
    %v6306 = vunpack.c.h.b16 %v5815
    %v6307 = vunpack.c.l.b16 %v5816
    %v6308 = vunpack.c.l.b16 %v5817
    %v6309 = vunpack.c.h.b16 %v5817
    %v6310 = vunpack.c.l.b16 %v5818
    %v6311 = vunpack.c.h.b16 %v5818
    %v6312 = vunpack.c.l.b16 %v5819
    %v6313 = vunpack.c.l.b16 %v5820
    %v6314 = vunpack.c.h.b16 %v5820
    %v6315 = vunpack.c.l.b16 %v5821
    %v6316 = vunpack.c.h.b16 %v5821
    %v6317 = vunpack.c.l.b16 %v5822
    %v6318 = vunpack.c.l.b16 %v5823
    %v6319 = vunpack.c.h.b16 %v5823
    %v6320 = vunpack.c.l.b16 %v5824
    %v6321 = vunpack.c.h.b16 %v5824
    %v6322 = vunpack.c.l.b16 %v5825
    %v6323 = vunpack.c.l.b16 %v5826
    %v6324 = vunpack.c.h.b16 %v5826
    %v6325 = vunpack.c.l.b16 %v5827
    %v6326 = vunpack.c.h.b16 %v5827
    %v6327 = vunpack.c.l.b16 %v5828
    %v6328 = vunpack.c.l.b16 %v5829
    %v6329 = vunpack.c.h.b16 %v5829
    %v6330 = vunpack.c.l.b16 %v5830
    %v6331 = vunpack.c.h.b16 %v5830
    %v6332 = vunpack.c.l.b16 %v5831
    %v6333 = vunpack.c.l.b16 %v5832
    %v6334 = vunpack.c.h.b16 %v5832
    %v6335 = vunpack.c.l.b16 %v5833
    %v6336 = vunpack.c.h.b16 %v5833
    %v6337 = vunpack.c.l.b16 %v5834
    %v6338 = vunpack.c.l.b16 %v5835
    %v6339 = vunpack.c.h.b16 %v5835
    %v6340 = vunpack.c.l.b16 %v5836
    %v6341 = vunpack.c.h.b16 %v5836
    %v6342 = vunpack.c.l.b16 %v5837
    %v6343 = vunpack.c.l.b16 %v5838
    %v6344 = vunpack.c.h.b16 %v5838
    %v6345 = vunpack.c.l.b16 %v5839
    %v6346 = vunpack.c.h.b16 %v5839
    %v6347 = vunpack.c.l.b16 %v5840
    %v6348 = vunpack.c.l.b16 %v5841
    %v6349 = vunpack.c.h.b16 %v5841
    %v6350 = vunpack.c.l.b16 %v5842
    %v6351 = vunpack.c.h.b16 %v5842
    %v6352 = vunpack.c.l.b16 %v5843
    %v6353 = vunpack.c.l.b16 %v5844
    %v6354 = vunpack.c.h.b16 %v5844
    %v6355 = vunpack.c.l.b16 %v5845
    %v6356 = vunpack.c.h.b16 %v5845
    %v6357 = vunpack.c.l.b16 %v5846
    %v6358 = vunpack.c.l.b16 %v5847
    %v6359 = vunpack.c.h.b16 %v5847
    %v6360 = vunpack.c.l.b16 %v5848
    %v6361 = vunpack.c.h.b16 %v5848
    %v6362 = vunpack.c.l.b16 %v5849
    %v6363 = vunpack.c.l.b16 %v5850
    %v6364 = vunpack.c.h.b16 %v5850
    %v6365 = vunpack.c.l.b16 %v5851
    %v6366 = vunpack.c.h.b16 %v5851
    %v6367 = vunpack.c.l.b16 %v5852
    %v6368 = vunpack.c.l.b16 %v5853
    %v6369 = vunpack.c.h.b16 %v5853
    %v6370 = vunpack.c.l.b16 %v5854
    %v6371 = vunpack.c.h.b16 %v5854
    %v6372 = vunpack.c.l.b16 %v5855
    %v6373 = vunpack.c.l.b16 %v5856
    %v6374 = vunpack.c.h.b16 %v5856
    %v6375 = vunpack.c.l.b16 %v5857
    %v6376 = vunpack.c.h.b16 %v5857
    %v6377 = vunpack.c.l.b16 %v5858
    %v6378 = vunpack.c.l.b16 %v5859
    %v6379 = vunpack.c.h.b16 %v5859
    %v6380 = vunpack.c.l.b16 %v5860
    %v6381 = vunpack.c.h.b16 %v5860
    %v6382 = vunpack.c.l.b16 %v5861
    %v6383 = vunpack.c.l.b16 %v5862
    %v6384 = vunpack.c.h.b16 %v5862
    %v6385 = vunpack.c.l.b16 %v5863
    %v6386 = vunpack.c.h.b16 %v5863
    %v6387 = vunpack.c.l.b16 %v5864
    %v6388 = vunpack.c.l.b16 %v5865
    %v6389 = vunpack.c.h.b16 %v5865
    %v6390 = vunpack.c.l.b16 %v5866
    %v6391 = vunpack.c.h.b16 %v5866
    %v6392 = vunpack.c.l.b16 %v5867
    %v6393 = vunpack.c.l.b16 %v5868
    %v6394 = vunpack.c.h.b16 %v5868
    %v6395 = vunpack.c.l.b16 %v5869
    %v6396 = vunpack.c.h.b16 %v5869
    %v6397 = vunpack.c.l.b16 %v5870
    %v6398 = vunpack.c.l.b16 %v5871
    %v6399 = vunpack.c.h.b16 %v5871
    %v6400 = vunpack.c.l.b16 %v5872
    %v6401 = vunpack.c.h.b16 %v5872
    %v6402 = vunpack.c.l.b16 %v5873
    %v6403 = vunpack.c.l.b16 %v5874
    %v6404 = vunpack.c.h.b16 %v5874
    %v6405 = vunpack.c.l.b16 %v5875
    %v6406 = vunpack.c.h.b16 %v5875
    %v6407 = vunpack.c.l.b16 %v5876
    %v6408 = vunpack.c.l.b16 %v5877
    %v6409 = vunpack.c.h.b16 %v5877
    %v6410 = vunpack.c.l.b16 %v5878
    %v6411 = vunpack.c.h.b16 %v5878
    %v6412 = vunpack.c.l.b16 %v5879
    %v6413 = vunpack.c.l.b16 %v5880
    %v6414 = vunpack.c.h.b16 %v5880
    %v6415 = vunpack.c.l.b16 %v5881
    %v6416 = vunpack.c.h.b16 %v5881
    %v6417 = vunpack.c.l.b16 %v5882
    %v6418 = vunpack.c.l.b16 %v5883
    %v6419 = vunpack.c.h.b16 %v5883
    %v6420 = vunpack.c.l.b16 %v5884
    %v6421 = vunpack.c.h.b16 %v5884
    %v6422 = vunpack.c.l.b16 %v5885
    %v6423 = vunpack.c.l.b16 %v5886
    %v6424 = vunpack.c.h.b16 %v5886
    %v6425 = vunpack.c.l.b16 %v5887
    %v6426 = vunpack.c.h.b16 %v5887
    %v6427 = vunpack.c.l.b16 %v5888
    %v6428 = vpack.c.b16 %v6113, %v6108
    %v6429 = vpack.c.b16 %v6114, %v6109
    %v6430 = vpack.c.b16 %v6115, %v6110
    %v6431 = vpack.c.b16 %v6116, %v6111
    %v6432 = vpack.c.b16 %v6117, %v6112
    %v6433 = vpack.c.b16 %v6123, %v6118
    %v6434 = vpack.c.b16 %v6124, %v6119
    %v6435 = vpack.c.b16 %v6125, %v6120
    %v6436 = vpack.c.b16 %v6126, %v6121
    %v6437 = vpack.c.b16 %v6127, %v6122
    %v6438 = vpack.c.b16 %v6133, %v6128
    %v6439 = vpack.c.b16 %v6134, %v6129
    %v6440 = vpack.c.b16 %v6135, %v6130
    %v6441 = vpack.c.b16 %v6136, %v6131
    %v6442 = vpack.c.b16 %v6137, %v6132
    %v6443 = vpack.c.b16 %v6143, %v6138
    %v6444 = vpack.c.b16 %v6144, %v6139
    %v6445 = vpack.c.b16 %v6145, %v6140
    %v6446 = vpack.c.b16 %v6146, %v6141
    %v6447 = vpack.c.b16 %v6147, %v6142
    %v6448 = vpack.c.b16 %v6153, %v6148
    %v6449 = vpack.c.b16 %v6154, %v6149
    %v6450 = vpack.c.b16 %v6155, %v6150
    %v6451 = vpack.c.b16 %v6156, %v6151
    %v6452 = vpack.c.b16 %v6157, %v6152
    %v6453 = vpack.c.b16 %v6163, %v6158
    %v6454 = vpack.c.b16 %v6164, %v6159
    %v6455 = vpack.c.b16 %v6165, %v6160
    %v6456 = vpack.c.b16 %v6166, %v6161
    %v6457 = vpack.c.b16 %v6167, %v6162
    %v6458 = vpack.c.b16 %v6173, %v6168
    %v6459 = vpack.c.b16 %v6174, %v6169
    %v6460 = vpack.c.b16 %v6175, %v6170
    %v6461 = vpack.c.b16 %v6176, %v6171
    %v6462 = vpack.c.b16 %v6177, %v6172
    %v6463 = vpack.c.b16 %v6183, %v6178
    %v6464 = vpack.c.b16 %v6184, %v6179
    %v6465 = vpack.c.b16 %v6185, %v6180
    %v6466 = vpack.c.b16 %v6186, %v6181
    %v6467 = vpack.c.b16 %v6187, %v6182
    %v6468 = vpack.c.b16 %v6193, %v6188
    %v6469 = vpack.c.b16 %v6194, %v6189
    %v6470 = vpack.c.b16 %v6195, %v6190
    %v6471 = vpack.c.b16 %v6196, %v6191
    %v6472 = vpack.c.b16 %v6197, %v6192
    %v6473 = vpack.c.b16 %v6203, %v6198
    %v6474 = vpack.c.b16 %v6204, %v6199
    %v6475 = vpack.c.b16 %v6205, %v6200
    %v6476 = vpack.c.b16 %v6206, %v6201
    %v6477 = vpack.c.b16 %v6207, %v6202
    %v6478 = vpack.c.b16 %v6213, %v6208
    %v6479 = vpack.c.b16 %v6214, %v6209
    %v6480 = vpack.c.b16 %v6215, %v6210
    %v6481 = vpack.c.b16 %v6216, %v6211
    %v6482 = vpack.c.b16 %v6217, %v6212
    %v6483 = vpack.c.b16 %v6223, %v6218
    %v6484 = vpack.c.b16 %v6224, %v6219
    %v6485 = vpack.c.b16 %v6225, %v6220
    %v6486 = vpack.c.b16 %v6226, %v6221
    %v6487 = vpack.c.b16 %v6227, %v6222
    %v6488 = vpack.c.b16 %v6233, %v6228
    %v6489 = vpack.c.b16 %v6234, %v6229
    %v6490 = vpack.c.b16 %v6235, %v6230
    %v6491 = vpack.c.b16 %v6236, %v6231
    %v6492 = vpack.c.b16 %v6237, %v6232
    %v6493 = vpack.c.b16 %v6243, %v6238
    %v6494 = vpack.c.b16 %v6244, %v6239
    %v6495 = vpack.c.b16 %v6245, %v6240
    %v6496 = vpack.c.b16 %v6246, %v6241
    %v6497 = vpack.c.b16 %v6247, %v6242
    %v6498 = vpack.c.b16 %v6253, %v6248
    %v6499 = vpack.c.b16 %v6254, %v6249
    %v6500 = vpack.c.b16 %v6255, %v6250
    %v6501 = vpack.c.b16 %v6256, %v6251
    %v6502 = vpack.c.b16 %v6257, %v6252
    %v6503 = vpack.c.b16 %v6263, %v6258
    %v6504 = vpack.c.b16 %v6264, %v6259
    %v6505 = vpack.c.b16 %v6265, %v6260
    %v6506 = vpack.c.b16 %v6266, %v6261
    %v6507 = vpack.c.b16 %v6267, %v6262
    %v6508 = vpack.c.b16 %v6273, %v6268
    %v6509 = vpack.c.b16 %v6274, %v6269
    %v6510 = vpack.c.b16 %v6275, %v6270
    %v6511 = vpack.c.b16 %v6276, %v6271
    %v6512 = vpack.c.b16 %v6277, %v6272
    %v6513 = vpack.c.b16 %v6283, %v6278
    %v6514 = vpack.c.b16 %v6284, %v6279
    %v6515 = vpack.c.b16 %v6285, %v6280
    %v6516 = vpack.c.b16 %v6286, %v6281
    %v6517 = vpack.c.b16 %v6287, %v6282
    %v6518 = vpack.c.b16 %v6293, %v6288
    %v6519 = vpack.c.b16 %v6294, %v6289
    %v6520 = vpack.c.b16 %v6295, %v6290
    %v6521 = vpack.c.b16 %v6296, %v6291
    %v6522 = vpack.c.b16 %v6297, %v6292
    %v6523 = vpack.c.b16 %v6303, %v6298
    %v6524 = vpack.c.b16 %v6304, %v6299
    %v6525 = vpack.c.b16 %v6305, %v6300
    %v6526 = vpack.c.b16 %v6306, %v6301
    %v6527 = vpack.c.b16 %v6307, %v6302
    %v6528 = vpack.c.b16 %v6313, %v6308
    %v6529 = vpack.c.b16 %v6314, %v6309
    %v6530 = vpack.c.b16 %v6315, %v6310
    %v6531 = vpack.c.b16 %v6316, %v6311
    %v6532 = vpack.c.b16 %v6317, %v6312
    %v6533 = vpack.c.b16 %v6323, %v6318
    %v6534 = vpack.c.b16 %v6324, %v6319
    %v6535 = vpack.c.b16 %v6325, %v6320
    %v6536 = vpack.c.b16 %v6326, %v6321
    %v6537 = vpack.c.b16 %v6327, %v6322
    %v6538 = vpack.c.b16 %v6333, %v6328
    %v6539 = vpack.c.b16 %v6334, %v6329
    %v6540 = vpack.c.b16 %v6335, %v6330
    %v6541 = vpack.c.b16 %v6336, %v6331
    %v6542 = vpack.c.b16 %v6337, %v6332
    %v6543 = vpack.c.b16 %v6343, %v6338
    %v6544 = vpack.c.b16 %v6344, %v6339
    %v6545 = vpack.c.b16 %v6345, %v6340
    %v6546 = vpack.c.b16 %v6346, %v6341
    %v6547 = vpack.c.b16 %v6347, %v6342
    %v6548 = vpack.c.b16 %v6353, %v6348
    %v6549 = vpack.c.b16 %v6354, %v6349
    %v6550 = vpack.c.b16 %v6355, %v6350
    %v6551 = vpack.c.b16 %v6356, %v6351
    %v6552 = vpack.c.b16 %v6357, %v6352
    %v6553 = vpack.c.b16 %v6363, %v6358
    %v6554 = vpack.c.b16 %v6364, %v6359
    %v6555 = vpack.c.b16 %v6365, %v6360
    %v6556 = vpack.c.b16 %v6366, %v6361
    %v6557 = vpack.c.b16 %v6367, %v6362
    %v6558 = vpack.c.b16 %v6373, %v6368
    %v6559 = vpack.c.b16 %v6374, %v6369
    %v6560 = vpack.c.b16 %v6375, %v6370
    %v6561 = vpack.c.b16 %v6376, %v6371
    %v6562 = vpack.c.b16 %v6377, %v6372
    %v6563 = vpack.c.b16 %v6383, %v6378
    %v6564 = vpack.c.b16 %v6384, %v6379
    %v6565 = vpack.c.b16 %v6385, %v6380
    %v6566 = vpack.c.b16 %v6386, %v6381
    %v6567 = vpack.c.b16 %v6387, %v6382
    %v6568 = vpack.c.b16 %v6393, %v6388
    %v6569 = vpack.c.b16 %v6394, %v6389
    %v6570 = vpack.c.b16 %v6395, %v6390
    %v6571 = vpack.c.b16 %v6396, %v6391
    %v6572 = vpack.c.b16 %v6397, %v6392
    %v6573 = vpack.c.b16 %v6403, %v6398
    %v6574 = vpack.c.b16 %v6404, %v6399
    %v6575 = vpack.c.b16 %v6405, %v6400
    %v6576 = vpack.c.b16 %v6406, %v6401
    %v6577 = vpack.c.b16 %v6407, %v6402
    %v6578 = vpack.c.b16 %v6413, %v6408
    %v6579 = vpack.c.b16 %v6414, %v6409
    %v6580 = vpack.c.b16 %v6415, %v6410
    %v6581 = vpack.c.b16 %v6416, %v6411
    %v6582 = vpack.c.b16 %v6417, %v6412
    %v6583 = vpack.c.b16 %v6423, %v6418
    %v6584 = vpack.c.b16 %v6424, %v6419
    %v6585 = vpack.c.b16 %v6425, %v6420
    %v6586 = vpack.c.b16 %v6426, %v6421
    %v6587 = vpack.c.b16 %v6427, %v6422
    %6748 = vmatprep.subr.bf16.mxu0 %v6429
    %6749 = vmatpush1.bf16.msra.mxu0 %v6428
    %6750 = vmatprep.subr.bf16.mxu0 %v6434
    %6751 = vmatpush1.bf16.msra.mxu0 %v6433
    %6752 = vmatprep.subr.bf16.mxu0 %v6439
    %6753 = vmatpush1.bf16.msra.mxu0 %v6438
    %6754 = vmatprep.subr.bf16.mxu0 %v6444
    %6755 = vmatpush1.bf16.msra.mxu0 %v6443
    %6756 = vmatprep.subr.bf16.mxu0 %v6449
    %6757 = vmatpush1.bf16.msra.mxu0 %v6448
    %6758 = vmatprep.subr.bf16.mxu0 %v6454
    %6759 = vmatpush1.bf16.msra.mxu0 %v6453
    %6760 = vmatprep.subr.bf16.mxu0 %v6459
    %6761 = vmatpush1.bf16.msra.mxu0 %v6458
    %6762 = vmatprep.subr.bf16.mxu0 %v6464
    %6763 = vmatpush1.bf16.msra.mxu0 %v6463
    %6764 = vmatprep.subr.bf16.mxu0 %v6469
    %6765 = vmatpush1.bf16.msra.mxu0 %v6468
    %6766 = vmatprep.subr.bf16.mxu0 %v6474
    %6767 = vmatpush1.bf16.msra.mxu0 %v6473
    %6768 = vmatprep.subr.bf16.mxu0 %v6479
    %6769 = vmatpush1.bf16.msra.mxu0 %v6478
    %6770 = vmatprep.subr.bf16.mxu0 %v6484
    %6771 = vmatpush1.bf16.msra.mxu0 %v6483
    %6772 = vmatprep.subr.bf16.mxu0 %v6489
    %6773 = vmatpush1.bf16.msra.mxu0 %v6488
    %6774 = vmatprep.subr.bf16.mxu0 %v6494
    %6775 = vmatpush1.bf16.msra.mxu0 %v6493
    %6776 = vmatprep.subr.bf16.mxu0 %v6499
    %6777 = vmatpush1.bf16.msra.mxu0 %v6498
    %6778 = vmatprep.subr.bf16.mxu0 %v6504
    %6779 = vmatpush1.bf16.msra.mxu0 %v6503
    %6780 = vmatprep.mubr.bf16.mxu0 %v5694
    %6781 = vmatmul.mubr.bf16.gmra.mrb[0].mxu0 %v5693
    %v6782 = vpop.f32.mrb[0].mxu0
    %v6783 = vadd.f32 %v5894, %v6782
    %v6784 = vpop.f32.mrb[0].mxu0
    %v6785 = vadd.f32 %v5898, %v6784
    %v6786 = vpop.f32.mrb[0].mxu0
    %v6787 = vpop.f32.mrb[0].mxu0
    %6788 = vdwg.mxu0
    %6789 = vmatprep.subr.bf16.mxu0 %v6509
    %6790 = vmatpush1.bf16.msra.mxu0 %v6508
    %6791 = vmatprep.subr.bf16.mxu0 %v6514
    %6792 = vmatpush1.bf16.msra.mxu0 %v6513
    %6793 = vmatprep.subr.bf16.mxu0 %v6519
    %6794 = vmatpush1.bf16.msra.mxu0 %v6518
    %6795 = vmatprep.subr.bf16.mxu0 %v6524
    %6796 = vmatpush1.bf16.msra.mxu0 %v6523
    %6797 = vmatprep.subr.bf16.mxu0 %v6529
    %6798 = vmatpush1.bf16.msra.mxu0 %v6528
    %6799 = vmatprep.subr.bf16.mxu0 %v6534
    %6800 = vmatpush1.bf16.msra.mxu0 %v6533
    %6801 = vmatprep.subr.bf16.mxu0 %v6539
    %6802 = vmatpush1.bf16.msra.mxu0 %v6538
    %6803 = vmatprep.subr.bf16.mxu0 %v6544
    %6804 = vmatpush1.bf16.msra.mxu0 %v6543
    %6805 = vmatprep.subr.bf16.mxu0 %v6549
    %6806 = vmatpush1.bf16.msra.mxu0 %v6548
    %6807 = vmatprep.subr.bf16.mxu0 %v6554
    %6808 = vmatpush1.bf16.msra.mxu0 %v6553
    %6809 = vmatprep.subr.bf16.mxu0 %v6559
    %6810 = vmatpush1.bf16.msra.mxu0 %v6558
    %6811 = vmatprep.subr.bf16.mxu0 %v6564
    %6812 = vmatpush1.bf16.msra.mxu0 %v6563
    %6813 = vmatprep.subr.bf16.mxu0 %v6569
    %6814 = vmatpush1.bf16.msra.mxu0 %v6568
    %6815 = vmatprep.subr.bf16.mxu0 %v6574
    %6816 = vmatpush1.bf16.msra.mxu0 %v6573
    %6817 = vmatprep.subr.bf16.mxu0 %v6579
    %6818 = vmatpush1.bf16.msra.mxu0 %v6578
    %6819 = vmatprep.subr.bf16.mxu0 %v6584
    %6820 = vmatpush1.bf16.msra.mxu0 %v6583
    %6821 = vmatprep.mubr.bf16.mxu0 %v5696
    %6822 = vmatmul.mubr.bf16.gmra.mrb[0].mxu0 %v5695
    %v6823 = vpop.f32.mrb[0].mxu0
    %v6824 = vadd.f32 %v6783, %v6823
    %v6825 = vpop.f32.mrb[0].mxu0
    %v6826 = vadd.f32 %v6785, %v6825
    %v6827 = vpop.f32.mrb[0].mxu0
    %v6828 = vpop.f32.mrb[0].mxu0
    %6829 = vdwg.mxu0
    %6830 = vmatprep.subr.bf16.mxu0 %v6431
    %6831 = vmatpush1.bf16.msra.mxu0 %v6430
    %6832 = vmatprep.subr.bf16.mxu0 %v6436
    %6833 = vmatpush1.bf16.msra.mxu0 %v6435
    %6834 = vmatprep.subr.bf16.mxu0 %v6441
    %6835 = vmatpush1.bf16.msra.mxu0 %v6440
    %6836 = vmatprep.subr.bf16.mxu0 %v6446
    %6837 = vmatpush1.bf16.msra.mxu0 %v6445
    %6838 = vmatprep.subr.bf16.mxu0 %v6451
    %6839 = vmatpush1.bf16.msra.mxu0 %v6450
    %6840 = vmatprep.subr.bf16.mxu0 %v6456
    %6841 = vmatpush1.bf16.msra.mxu0 %v6455
    %6842 = vmatprep.subr.bf16.mxu0 %v6461
    %6843 = vmatpush1.bf16.msra.mxu0 %v6460
    %6844 = vmatprep.subr.bf16.mxu0 %v6466
    %6845 = vmatpush1.bf16.msra.mxu0 %v6465
    %6846 = vmatprep.subr.bf16.mxu0 %v6471
    %6847 = vmatpush1.bf16.msra.mxu0 %v6470
    %6848 = vmatprep.subr.bf16.mxu0 %v6476
    %6849 = vmatpush1.bf16.msra.mxu0 %v6475
    %6850 = vmatprep.subr.bf16.mxu0 %v6481
    %6851 = vmatpush1.bf16.msra.mxu0 %v6480
    %6852 = vmatprep.subr.bf16.mxu0 %v6486
    %6853 = vmatpush1.bf16.msra.mxu0 %v6485
    %6854 = vmatprep.subr.bf16.mxu0 %v6491
    %6855 = vmatpush1.bf16.msra.mxu0 %v6490
    %6856 = vmatprep.subr.bf16.mxu0 %v6496
    %6857 = vmatpush1.bf16.msra.mxu0 %v6495
    %6858 = vmatprep.subr.bf16.mxu0 %v6501
    %6859 = vmatpush1.bf16.msra.mxu0 %v6500
    %6860 = vmatprep.subr.bf16.mxu0 %v6506
    %6861 = vmatpush1.bf16.msra.mxu0 %v6505
    %6862 = vmatprep.mubr.bf16.mxu0 %v5694
    %6863 = vmatmul.mubr.bf16.gmra.mrb[0].mxu0 %v5693
    %v6864 = vpop.f32.mrb[0].mxu0
    %v6865 = vadd.f32 %v5902, %v6864
    %v6866 = vpop.f32.mrb[0].mxu0
    %v6867 = vadd.f32 %v5906, %v6866
    %v6868 = vpop.f32.mrb[0].mxu0
    %v6869 = vpop.f32.mrb[0].mxu0
    %6870 = vdwg.mxu0
    %6871 = vmatprep.subr.bf16.mxu0 %v6511
    %6872 = vmatpush1.bf16.msra.mxu0 %v6510
    %6873 = vmatprep.subr.bf16.mxu0 %v6516
    %6874 = vmatpush1.bf16.msra.mxu0 %v6515
    %6875 = vmatprep.subr.bf16.mxu0 %v6521
    %6876 = vmatpush1.bf16.msra.mxu0 %v6520
    %6877 = vmatprep.subr.bf16.mxu0 %v6526
    %6878 = vmatpush1.bf16.msra.mxu0 %v6525
    %6879 = vmatprep.subr.bf16.mxu0 %v6531
    %6880 = vmatpush1.bf16.msra.mxu0 %v6530
    %6881 = vmatprep.subr.bf16.mxu0 %v6536
    %6882 = vmatpush1.bf16.msra.mxu0 %v6535
    %6883 = vmatprep.subr.bf16.mxu0 %v6541
    %6884 = vmatpush1.bf16.msra.mxu0 %v6540
    %6885 = vmatprep.subr.bf16.mxu0 %v6546
    %6886 = vmatpush1.bf16.msra.mxu0 %v6545
    %6887 = vmatprep.subr.bf16.mxu0 %v6551
    %6888 = vmatpush1.bf16.msra.mxu0 %v6550
    %6889 = vmatprep.subr.bf16.mxu0 %v6556
    %6890 = vmatpush1.bf16.msra.mxu0 %v6555
    %6891 = vmatprep.subr.bf16.mxu0 %v6561
    %6892 = vmatpush1.bf16.msra.mxu0 %v6560
    %6893 = vmatprep.subr.bf16.mxu0 %v6566
    %6894 = vmatpush1.bf16.msra.mxu0 %v6565
    %6895 = vmatprep.subr.bf16.mxu0 %v6571
    %6896 = vmatpush1.bf16.msra.mxu0 %v6570
    %6897 = vmatprep.subr.bf16.mxu0 %v6576
    %6898 = vmatpush1.bf16.msra.mxu0 %v6575
    %6899 = vmatprep.subr.bf16.mxu0 %v6581
    %6900 = vmatpush1.bf16.msra.mxu0 %v6580
    %6901 = vmatprep.subr.bf16.mxu0 %v6586
    %6902 = vmatpush1.bf16.msra.mxu0 %v6585
    %6903 = vmatprep.mubr.bf16.mxu0 %v5696
    %6904 = vmatmul.mubr.bf16.gmra.mrb[0].mxu0 %v5695
    %v6905 = vpop.f32.mrb[0].mxu0
    %v6906 = vadd.f32 %v6865, %v6905
    %v6907 = vpop.f32.mrb[0].mxu0
    %v6908 = vadd.f32 %v6867, %v6907
    %v6909 = vpop.f32.mrb[0].mxu0
    %v6910 = vpop.f32.mrb[0].mxu0
    %6911 = vdwg.mxu0
    %6912 = vmatprep.subr.bf16.mxu0 0
    %6913 = vmatpush1.bf16.msra.mxu0 %v6432
    %6914 = vmatprep.subr.bf16.mxu0 0
    %6915 = vmatpush1.bf16.msra.mxu0 %v6437
    %6916 = vmatprep.subr.bf16.mxu0 0
    %6917 = vmatpush1.bf16.msra.mxu0 %v6442
    %6918 = vmatprep.subr.bf16.mxu0 0
    %6919 = vmatpush1.bf16.msra.mxu0 %v6447
    %6920 = vmatprep.subr.bf16.mxu0 0
    %6921 = vmatpush1.bf16.msra.mxu0 %v6452
    %6922 = vmatprep.subr.bf16.mxu0 0
    %6923 = vmatpush1.bf16.msra.mxu0 %v6457
    %6924 = vmatprep.subr.bf16.mxu0 0
    %6925 = vmatpush1.bf16.msra.mxu0 %v6462
    %6926 = vmatprep.subr.bf16.mxu0 0
    %6927 = vmatpush1.bf16.msra.mxu0 %v6467
    %6928 = vmatprep.subr.bf16.mxu0 0
    %6929 = vmatpush1.bf16.msra.mxu0 %v6472
    %6930 = vmatprep.subr.bf16.mxu0 0
    %6931 = vmatpush1.bf16.msra.mxu0 %v6477
    %6932 = vmatprep.subr.bf16.mxu0 0
    %6933 = vmatpush1.bf16.msra.mxu0 %v6482
    %6934 = vmatprep.subr.bf16.mxu0 0
    %6935 = vmatpush1.bf16.msra.mxu0 %v6487
    %6936 = vmatprep.subr.bf16.mxu0 0
    %6937 = vmatpush1.bf16.msra.mxu0 %v6492
    %6938 = vmatprep.subr.bf16.mxu0 0
    %6939 = vmatpush1.bf16.msra.mxu0 %v6497
    %6940 = vmatprep.subr.bf16.mxu0 0
    %6941 = vmatpush1.bf16.msra.mxu0 %v6502
    %6942 = vmatprep.subr.bf16.mxu0 0
    %6943 = vmatpush1.bf16.msra.mxu0 %v6507
    %6944 = vmatprep.mubr.bf16.mxu0 %v5694
    %6945 = vmatmul.mubr.bf16.gmra.mrb[0].mxu0 %v5693
    %v6946 = vpop.f32.mrb[0].mxu0
    %v6947 = vadd.f32 %v5910, %v6946
    %v6948 = vpop.f32.mrb[0].mxu0
    %v6949 = vpop.f32.mrb[0].mxu0
    %v6950 = vpop.f32.mrb[0].mxu0
    %6951 = vdwg.mxu0
    %6952 = vmatprep.subr.bf16.mxu0 0
    %6953 = vmatpush1.bf16.msra.mxu0 %v6512
    %6954 = vmatprep.subr.bf16.mxu0 0
    %6955 = vmatpush1.bf16.msra.mxu0 %v6517
    %6956 = vmatprep.subr.bf16.mxu0 0
    %6957 = vmatpush1.bf16.msra.mxu0 %v6522
    %6958 = vmatprep.subr.bf16.mxu0 0
    %6959 = vmatpush1.bf16.msra.mxu0 %v6527
    %6960 = vmatprep.subr.bf16.mxu0 0
    %6961 = vmatpush1.bf16.msra.mxu0 %v6532
    %6962 = vmatprep.subr.bf16.mxu0 0
    %6963 = vmatpush1.bf16.msra.mxu0 %v6537
    %6964 = vmatprep.subr.bf16.mxu0 0
    %6965 = vmatpush1.bf16.msra.mxu0 %v6542
    %6966 = vmatprep.subr.bf16.mxu0 0
    %6967 = vmatpush1.bf16.msra.mxu0 %v6547
    %6968 = vmatprep.subr.bf16.mxu0 0
    %6969 = vmatpush1.bf16.msra.mxu0 %v6552
    %6970 = vmatprep.subr.bf16.mxu0 0
    %6971 = vmatpush1.bf16.msra.mxu0 %v6557
    %6972 = vmatprep.subr.bf16.mxu0 0
    %6973 = vmatpush1.bf16.msra.mxu0 %v6562
    %6974 = vmatprep.subr.bf16.mxu0 0
    %6975 = vmatpush1.bf16.msra.mxu0 %v6567
    %6976 = vmatprep.subr.bf16.mxu0 0
    %6977 = vmatpush1.bf16.msra.mxu0 %v6572
    %6978 = vmatprep.subr.bf16.mxu0 0
    %6979 = vmatpush1.bf16.msra.mxu0 %v6577
    %6980 = vmatprep.subr.bf16.mxu0 0
    %6981 = vmatpush1.bf16.msra.mxu0 %v6582
    %6982 = vmatprep.subr.bf16.mxu0 0
    %6983 = vmatpush1.bf16.msra.mxu0 %v6587
    %6984 = vmatprep.mubr.bf16.mxu0 %v5696
    %6985 = vmatmul.mubr.bf16.gmra.mrb[0].mxu0 %v5695
    %v6986 = vpop.f32.mrb[0].mxu0
    %v6987 = vadd.f32 %v6947, %v6986
    %v6988 = vpop.f32.mrb[0].mxu0
    %v6989 = vpop.f32.mrb[0].mxu0
    %v6990 = vpop.f32.mrb[0].mxu0
    %6991 = vdwg.mxu0
    %v6992 = vtanh.pop %v6824
    %v6993 = vtanh.pop %v6826
    %v6994 = vtanh.pop %v6906
    %v6995 = vtanh.pop %v6908
    %v6996 = vtanh.pop %v6987
    %v6997 = vpack.c.bf16 %v6992, %v6992
    %v6998 = vpack.c.bf16 %v6993, %v6993
    %v6999 = vpack.c.bf16 %v6994, %v6994
    %v7000 = vpack.c.bf16 %v6995, %v6995
    %v7001 = vpack.c.bf16 %v6996, %v6996
    %v7002 = vld [vmem:[#allocation19] sm:$0xff]
    %v7003 = vld [vmem:[#allocation19 + $0x8] sm:$0xff]
    %v7004 = vld [vmem:[#allocation19 + $0x10] sm:$0xff]
    %v7005 = vld [vmem:[#allocation19 + $0x18] sm:$0xf]
    %v7006 = vld [vmem:[#allocation19 + $0x1c] sm:$0xff]
    %v7007 = vld [vmem:[#allocation19 + $0x24] sm:$0xff]
    %v7008 = vld [vmem:[#allocation19 + $0x2c] sm:$0xff]
    %v7009 = vld [vmem:[#allocation19 + $0x34] sm:$0xf]
    %v7010 = vld [vmem:[#allocation19 + $0x38] sm:$0xff]
    %v7011 = vld [vmem:[#allocation19 + $0x40] sm:$0xff]
    %v7012 = vld [vmem:[#allocation19 + $0x48] sm:$0xff]
    %v7013 = vld [vmem:[#allocation19 + $0x50] sm:$0xf]
    %v7014 = vld [vmem:[#allocation19 + $0x54] sm:$0xff]
    %v7015 = vld [vmem:[#allocation19 + $0x5c] sm:$0xff]
    %v7016 = vld [vmem:[#allocation19 + $0x64] sm:$0xff]
    %v7017 = vld [vmem:[#allocation19 + $0x6c] sm:$0xf]
    %v7018 = vld [vmem:[#allocation19 + $0x70] sm:$0xff]
    %v7019 = vld [vmem:[#allocation19 + $0x78] sm:$0xff]
    %v7020 = vld [vmem:[#allocation19 + $0x80] sm:$0xff]
    %v7021 = vld [vmem:[#allocation19 + $0x88] sm:$0xf]
    %v7022 = vld [vmem:[#allocation19 + $0x8c] sm:$0xff]
    %v7023 = vld [vmem:[#allocation19 + $0x94] sm:$0xff]
    %v7024 = vld [vmem:[#allocation19 + $0x9c] sm:$0xff]
    %v7025 = vld [vmem:[#allocation19 + $0xa4] sm:$0xf]
    %v7026 = vld [vmem:[#allocation19 + $0xa8] sm:$0xff]
    %v7027 = vld [vmem:[#allocation19 + $0xb0] sm:$0xff]
    %v7028 = vld [vmem:[#allocation19 + $0xb8] sm:$0xff]
    %v7029 = vld [vmem:[#allocation19 + $0xc0] sm:$0xf]
    %v7030 = vld [vmem:[#allocation19 + $0xc4] sm:$0xff]
    %v7031 = vld [vmem:[#allocation19 + $0xcc] sm:$0xff]
    %v7032 = vld [vmem:[#allocation19 + $0xd4] sm:$0xff]
    %v7033 = vld [vmem:[#allocation19 + $0xdc] sm:$0xf]
    %v7034 = vld [vmem:[#allocation19 + $0xe0] sm:$0xff]
    %v7035 = vld [vmem:[#allocation19 + $0xe8] sm:$0xff]
    %v7036 = vld [vmem:[#allocation19 + $0xf0] sm:$0xff]
    %v7037 = vld [vmem:[#allocation19 + $0xf8] sm:$0xf]
    %v7038 = vld [vmem:[#allocation19 + $0xfc] sm:$0xff]
    %v7039 = vld [vmem:[#allocation19 + $0x104] sm:$0xff]
    %v7040 = vld [vmem:[#allocation19 + $0x10c] sm:$0xff]
    %v7041 = vld [vmem:[#allocation19 + $0x114] sm:$0xf]
    %v7042 = vld [vmem:[#allocation19 + $0x118] sm:$0xff]
    %v7043 = vld [vmem:[#allocation19 + $0x120] sm:$0xff]
    %v7044 = vld [vmem:[#allocation19 + $0x128] sm:$0xff]
    %v7045 = vld [vmem:[#allocation19 + $0x130] sm:$0xf]
    %v7046 = vld [vmem:[#allocation19 + $0x134] sm:$0xff]
    %v7047 = vld [vmem:[#allocation19 + $0x13c] sm:$0xff]
    %v7048 = vld [vmem:[#allocation19 + $0x144] sm:$0xff]
    %v7049 = vld [vmem:[#allocation19 + $0x14c] sm:$0xf]
    %v7050 = vld [vmem:[#allocation19 + $0x150] sm:$0xff]
    %v7051 = vld [vmem:[#allocation19 + $0x158] sm:$0xff]
    %v7052 = vld [vmem:[#allocation19 + $0x160] sm:$0xff]
    %v7053 = vld [vmem:[#allocation19 + $0x168] sm:$0xf]
    %v7054 = vld [vmem:[#allocation19 + $0x16c] sm:$0xff]
    %v7055 = vld [vmem:[#allocation19 + $0x174] sm:$0xff]
    %v7056 = vld [vmem:[#allocation19 + $0x17c] sm:$0xff]
    %v7057 = vld [vmem:[#allocation19 + $0x184] sm:$0xf]
    %v7058 = vld [vmem:[#allocation19 + $0x188] sm:$0xff]
    %v7059 = vld [vmem:[#allocation19 + $0x190] sm:$0xff]
    %v7060 = vld [vmem:[#allocation19 + $0x198] sm:$0xff]
    %v7061 = vld [vmem:[#allocation19 + $0x1a0] sm:$0xf]
    %v7062 = vld [vmem:[#allocation19 + $0x1a4] sm:$0xff]
    %v7063 = vld [vmem:[#allocation19 + $0x1ac] sm:$0xff]
    %v7064 = vld [vmem:[#allocation19 + $0x1b4] sm:$0xff]
    %v7065 = vld [vmem:[#allocation19 + $0x1bc] sm:$0xf]
    %v7066 = vld [vmem:[#allocation19 + $0x1c0] sm:$0xff]
    %v7067 = vld [vmem:[#allocation19 + $0x1c8] sm:$0xff]
    %v7068 = vld [vmem:[#allocation19 + $0x1d0] sm:$0xff]
    %v7069 = vld [vmem:[#allocation19 + $0x1d8] sm:$0xf]
    %v7070 = vld [vmem:[#allocation19 + $0x1dc] sm:$0xff]
    %v7071 = vld [vmem:[#allocation19 + $0x1e4] sm:$0xff]
    %v7072 = vld [vmem:[#allocation19 + $0x1ec] sm:$0xff]
    %v7073 = vld [vmem:[#allocation19 + $0x1f4] sm:$0xf]
    %v7074 = vld [vmem:[#allocation19 + $0x1f8] sm:$0xff]
    %v7075 = vld [vmem:[#allocation19 + $0x200] sm:$0xff]
    %v7076 = vld [vmem:[#allocation19 + $0x208] sm:$0xff]
    %v7077 = vld [vmem:[#allocation19 + $0x210] sm:$0xf]
    %v7078 = vld [vmem:[#allocation19 + $0x214] sm:$0xff]
    %v7079 = vld [vmem:[#allocation19 + $0x21c] sm:$0xff]
    %v7080 = vld [vmem:[#allocation19 + $0x224] sm:$0xff]
    %v7081 = vld [vmem:[#allocation19 + $0x22c] sm:$0xf]
    %v7082 = vld [vmem:[#allocation19 + $0x230] sm:$0xff]
    %v7083 = vld [vmem:[#allocation19 + $0x238] sm:$0xff]
    %v7084 = vld [vmem:[#allocation19 + $0x240] sm:$0xff]
    %v7085 = vld [vmem:[#allocation19 + $0x248] sm:$0xf]
    %v7086 = vld [vmem:[#allocation19 + $0x24c] sm:$0xff]
    %v7087 = vld [vmem:[#allocation19 + $0x254] sm:$0xff]
    %v7088 = vld [vmem:[#allocation19 + $0x25c] sm:$0xff]
    %v7089 = vld [vmem:[#allocation19 + $0x264] sm:$0xf]
    %v7090 = vld [vmem:[#allocation19 + $0x268] sm:$0xff]
    %v7091 = vld [vmem:[#allocation19 + $0x270] sm:$0xff]
    %v7092 = vld [vmem:[#allocation19 + $0x278] sm:$0xff]
    %v7093 = vld [vmem:[#allocation19 + $0x280] sm:$0xf]
    %v7094 = vld [vmem:[#allocation19 + $0x284] sm:$0xff]
    %v7095 = vld [vmem:[#allocation19 + $0x28c] sm:$0xff]
    %v7096 = vld [vmem:[#allocation19 + $0x294] sm:$0xff]
    %v7097 = vld [vmem:[#allocation19 + $0x29c] sm:$0xf]
    %v7098 = vld [vmem:[#allocation19 + $0x2a0] sm:$0xff]
    %v7099 = vld [vmem:[#allocation19 + $0x2a8] sm:$0xff]
    %v7100 = vld [vmem:[#allocation19 + $0x2b0] sm:$0xff]
    %v7101 = vld [vmem:[#allocation19 + $0x2b8] sm:$0xf]
    %v7102 = vld [vmem:[#allocation19 + $0x2bc] sm:$0xff]
    %v7103 = vld [vmem:[#allocation19 + $0x2c4] sm:$0xff]
    %v7104 = vld [vmem:[#allocation19 + $0x2cc] sm:$0xff]
    %v7105 = vld [vmem:[#allocation19 + $0x2d4] sm:$0xf]
    %v7106 = vld [vmem:[#allocation19 + $0x2d8] sm:$0xff]
    %v7107 = vld [vmem:[#allocation19 + $0x2e0] sm:$0xff]
    %v7108 = vld [vmem:[#allocation19 + $0x2e8] sm:$0xff]
    %v7109 = vld [vmem:[#allocation19 + $0x2f0] sm:$0xf]
    %v7110 = vld [vmem:[#allocation19 + $0x2f4] sm:$0xff]
    %v7111 = vld [vmem:[#allocation19 + $0x2fc] sm:$0xff]
    %v7112 = vld [vmem:[#allocation19 + $0x304] sm:$0xff]
    %v7113 = vld [vmem:[#allocation19 + $0x30c] sm:$0xf]
    %v7114 = vld [vmem:[#allocation19 + $0x310] sm:$0xff]
    %v7115 = vld [vmem:[#allocation19 + $0x318] sm:$0xff]
    %v7116 = vld [vmem:[#allocation19 + $0x320] sm:$0xff]
    %v7117 = vld [vmem:[#allocation19 + $0x328] sm:$0xf]
    %v7118 = vld [vmem:[#allocation19 + $0x32c] sm:$0xff]
    %v7119 = vld [vmem:[#allocation19 + $0x334] sm:$0xff]
    %v7120 = vld [vmem:[#allocation19 + $0x33c] sm:$0xff]
    %v7121 = vld [vmem:[#allocation19 + $0x344] sm:$0xf]
    %v7122 = vld [vmem:[#allocation19 + $0x348] sm:$0xff]
    %v7123 = vld [vmem:[#allocation19 + $0x350] sm:$0xff]
    %v7124 = vld [vmem:[#allocation19 + $0x358] sm:$0xff]
    %v7125 = vld [vmem:[#allocation19 + $0x360] sm:$0xf]
    %v7126 = vld [vmem:[#allocation19 + $0x364] sm:$0xff]
    %v7127 = vld [vmem:[#allocation19 + $0x36c] sm:$0xff]
    %v7128 = vld [vmem:[#allocation19 + $0x374] sm:$0xff]
    %v7129 = vld [vmem:[#allocation19 + $0x37c] sm:$0xf]
    %v7130 = vld [vmem:[#allocation19 + $0x380] sm:$0xff]
    %v7131 = vld [vmem:[#allocation19 + $0x388] sm:$0xff]
    %v7132 = vld [vmem:[#allocation19 + $0x390] sm:$0xff]
    %v7133 = vld [vmem:[#allocation19 + $0x398] sm:$0xf]
    %v7134 = vld [vmem:[#allocation19 + $0x39c] sm:$0xff]
    %v7135 = vld [vmem:[#allocation19 + $0x3a4] sm:$0xff]
    %v7136 = vld [vmem:[#allocation19 + $0x3ac] sm:$0xff]
    %v7137 = vld [vmem:[#allocation19 + $0x3b4] sm:$0xf]
    %v7138 = vld [vmem:[#allocation19 + $0x3b8] sm:$0xff]
    %v7139 = vld [vmem:[#allocation19 + $0x3c0] sm:$0xff]
    %v7140 = vld [vmem:[#allocation19 + $0x3c8] sm:$0xff]
    %v7141 = vld [vmem:[#allocation19 + $0x3d0] sm:$0xf]
    %v7142 = vld [vmem:[#allocation19 + $0x3d4] sm:$0xff]
    %v7143 = vld [vmem:[#allocation19 + $0x3dc] sm:$0xff]
    %v7144 = vld [vmem:[#allocation19 + $0x3e4] sm:$0xff]
    %v7145 = vld [vmem:[#allocation19 + $0x3ec] sm:$0xf]
    %v7146 = vld [vmem:[#allocation19 + $0x3f0] sm:$0xff]
    %v7147 = vld [vmem:[#allocation19 + $0x3f8] sm:$0xff]
    %v7148 = vld [vmem:[#allocation19 + $0x400] sm:$0xff]
    %v7149 = vld [vmem:[#allocation19 + $0x408] sm:$0xf]
    %v7150 = vld [vmem:[#allocation19 + $0x40c] sm:$0xff]
    %v7151 = vld [vmem:[#allocation19 + $0x414] sm:$0xff]
    %v7152 = vld [vmem:[#allocation19 + $0x41c] sm:$0xff]
    %v7153 = vld [vmem:[#allocation19 + $0x424] sm:$0xf]
    %v7154 = vld [vmem:[#allocation19 + $0x428] sm:$0xff]
    %v7155 = vld [vmem:[#allocation19 + $0x430] sm:$0xff]
    %v7156 = vld [vmem:[#allocation19 + $0x438] sm:$0xff]
    %v7157 = vld [vmem:[#allocation19 + $0x440] sm:$0xf]
    %v7158 = vld [vmem:[#allocation19 + $0x444] sm:$0xff]
    %v7159 = vld [vmem:[#allocation19 + $0x44c] sm:$0xff]
    %v7160 = vld [vmem:[#allocation19 + $0x454] sm:$0xff]
    %v7161 = vld [vmem:[#allocation19 + $0x45c] sm:$0xf]
    %v7162 = vld [vmem:[#allocation19 + $0x460] sm:$0xff]
    %v7163 = vld [vmem:[#allocation19 + $0x468] sm:$0xff]
    %v7164 = vld [vmem:[#allocation19 + $0x470] sm:$0xff]
    %v7165 = vld [vmem:[#allocation19 + $0x478] sm:$0xf]
    %v7166 = vld [vmem:[#allocation19 + $0x47c] sm:$0xff]
    %v7167 = vld [vmem:[#allocation19 + $0x484] sm:$0xff]
    %v7168 = vld [vmem:[#allocation19 + $0x48c] sm:$0xff]
    %v7169 = vld [vmem:[#allocation19 + $0x494] sm:$0xf]
    %v7170 = vld [vmem:[#allocation19 + $0x498] sm:$0xff]
    %v7171 = vld [vmem:[#allocation19 + $0x4a0] sm:$0xff]
    %v7172 = vld [vmem:[#allocation19 + $0x4a8] sm:$0xff]
    %v7173 = vld [vmem:[#allocation19 + $0x4b0] sm:$0xf]
    %v7174 = vld [vmem:[#allocation19 + $0x4b4] sm:$0xff]
    %v7175 = vld [vmem:[#allocation19 + $0x4bc] sm:$0xff]
    %v7176 = vld [vmem:[#allocation19 + $0x4c4] sm:$0xff]
    %v7177 = vld [vmem:[#allocation19 + $0x4cc] sm:$0xf]
    %v7178 = vld [vmem:[#allocation19 + $0x4d0] sm:$0xff]
    %v7179 = vld [vmem:[#allocation19 + $0x4d8] sm:$0xff]
    %v7180 = vld [vmem:[#allocation19 + $0x4e0] sm:$0xff]
    %v7181 = vld [vmem:[#allocation19 + $0x4e8] sm:$0xf]
    %v7182 = vld [vmem:[#allocation19 + $0x4ec] sm:$0xff]
    %v7183 = vld [vmem:[#allocation19 + $0x4f4] sm:$0xff]
    %v7184 = vld [vmem:[#allocation19 + $0x4fc] sm:$0xff]
    %v7185 = vld [vmem:[#allocation19 + $0x504] sm:$0xf]
    %v7186 = vld [vmem:[#allocation19 + $0x508] sm:$0xff]
    %v7187 = vld [vmem:[#allocation19 + $0x510] sm:$0xff]
    %v7188 = vld [vmem:[#allocation19 + $0x518] sm:$0xff]
    %v7189 = vld [vmem:[#allocation19 + $0x520] sm:$0xf]
    %v7190 = vld [vmem:[#allocation19 + $0x524] sm:$0xff]
    %v7191 = vld [vmem:[#allocation19 + $0x52c] sm:$0xff]
    %v7192 = vld [vmem:[#allocation19 + $0x534] sm:$0xff]
    %v7193 = vld [vmem:[#allocation19 + $0x53c] sm:$0xf]
    %v7194 = vld [vmem:[#allocation19 + $0x540] sm:$0xff]
    %v7195 = vld [vmem:[#allocation19 + $0x548] sm:$0xff]
    %v7196 = vld [vmem:[#allocation19 + $0x550] sm:$0xff]
    %v7197 = vld [vmem:[#allocation19 + $0x558] sm:$0xf]
    %v7198 = vld [vmem:[#allocation19 + $0x55c] sm:$0xff]
    %v7199 = vld [vmem:[#allocation19 + $0x564] sm:$0xff]
    %v7200 = vld [vmem:[#allocation19 + $0x56c] sm:$0xff]
    %v7201 = vld [vmem:[#allocation19 + $0x574] sm:$0xf]
    %v7202 = vld [vmem:[#allocation19 + $0x578] sm:$0xff]
    %v7203 = vld [vmem:[#allocation19 + $0x580] sm:$0xff]
    %v7204 = vld [vmem:[#allocation19 + $0x588] sm:$0xff]
    %v7205 = vld [vmem:[#allocation19 + $0x590] sm:$0xf]
    %v7206 = vld [vmem:[#allocation19 + $0x594] sm:$0xff]
    %v7207 = vld [vmem:[#allocation19 + $0x59c] sm:$0xff]
    %v7208 = vld [vmem:[#allocation19 + $0x5a4] sm:$0xff]
    %v7209 = vld [vmem:[#allocation19 + $0x5ac] sm:$0xf]
    %v7210 = vld [vmem:[#allocation19 + $0x5b0] sm:$0xff]
    %v7211 = vld [vmem:[#allocation19 + $0x5b8] sm:$0xff]
    %v7212 = vld [vmem:[#allocation19 + $0x5c0] sm:$0xff]
    %v7213 = vld [vmem:[#allocation19 + $0x5c8] sm:$0xf]
    %v7214 = vld [vmem:[#allocation19 + $0x5cc] sm:$0xff]
    %v7215 = vld [vmem:[#allocation19 + $0x5d4] sm:$0xff]
    %v7216 = vld [vmem:[#allocation19 + $0x5dc] sm:$0xff]
    %v7217 = vld [vmem:[#allocation19 + $0x5e4] sm:$0xf]
    %v7218 = vld [vmem:[#allocation19 + $0x5e8] sm:$0xff]
    %v7219 = vld [vmem:[#allocation19 + $0x5f0] sm:$0xff]
    %v7220 = vld [vmem:[#allocation19 + $0x5f8] sm:$0xff]
    %v7221 = vld [vmem:[#allocation19 + $0x600] sm:$0xf]
    %v7222 = vld [vmem:[#allocation19 + $0x604] sm:$0xff]
    %v7223 = vld [vmem:[#allocation19 + $0x60c] sm:$0xff]
    %v7224 = vld [vmem:[#allocation19 + $0x614] sm:$0xff]
    %v7225 = vld [vmem:[#allocation19 + $0x61c] sm:$0xf]
    %v7226 = vld [vmem:[#allocation19 + $0x620] sm:$0xff]
    %v7227 = vld [vmem:[#allocation19 + $0x628] sm:$0xff]
    %v7228 = vld [vmem:[#allocation19 + $0x630] sm:$0xff]
    %v7229 = vld [vmem:[#allocation19 + $0x638] sm:$0xf]
    %v7230 = vld [vmem:[#allocation19 + $0x63c] sm:$0xff]
    %v7231 = vld [vmem:[#allocation19 + $0x644] sm:$0xff]
    %v7232 = vld [vmem:[#allocation19 + $0x64c] sm:$0xff]
    %v7233 = vld [vmem:[#allocation19 + $0x654] sm:$0xf]
    %v7234 = vld [vmem:[#allocation19 + $0x658] sm:$0xff]
    %v7235 = vld [vmem:[#allocation19 + $0x660] sm:$0xff]
    %v7236 = vld [vmem:[#allocation19 + $0x668] sm:$0xff]
    %v7237 = vld [vmem:[#allocation19 + $0x670] sm:$0xf]
    %v7238 = vld [vmem:[#allocation19 + $0x674] sm:$0xff]
    %v7239 = vld [vmem:[#allocation19 + $0x67c] sm:$0xff]
    %v7240 = vld [vmem:[#allocation19 + $0x684] sm:$0xff]
    %v7241 = vld [vmem:[#allocation19 + $0x68c] sm:$0xf]
    %v7242 = vld [vmem:[#allocation19 + $0x690] sm:$0xff]
    %v7243 = vld [vmem:[#allocation19 + $0x698] sm:$0xff]
    %v7244 = vld [vmem:[#allocation19 + $0x6a0] sm:$0xff]
    %v7245 = vld [vmem:[#allocation19 + $0x6a8] sm:$0xf]
    %v7246 = vld [vmem:[#allocation19 + $0x6ac] sm:$0xff]
    %v7247 = vld [vmem:[#allocation19 + $0x6b4] sm:$0xff]
    %v7248 = vld [vmem:[#allocation19 + $0x6bc] sm:$0xff]
    %v7249 = vld [vmem:[#allocation19 + $0x6c4] sm:$0xf]
    %v7250 = vld [vmem:[#allocation19 + $0x6c8] sm:$0xff]
    %v7251 = vld [vmem:[#allocation19 + $0x6d0] sm:$0xff]
    %v7252 = vld [vmem:[#allocation19 + $0x6d8] sm:$0xff]
    %v7253 = vld [vmem:[#allocation19 + $0x6e0] sm:$0xf]
    %v7254 = vld [vmem:[#allocation19 + $0x6e4] sm:$0xff]
    %v7255 = vld [vmem:[#allocation19 + $0x6ec] sm:$0xff]
    %v7256 = vld [vmem:[#allocation19 + $0x6f4] sm:$0xff]
    %v7257 = vld [vmem:[#allocation19 + $0x6fc] sm:$0xf]
    %v7258 = vld [vmem:[#allocation19 + $0x700] sm:$0xff]
    %v7259 = vld [vmem:[#allocation19 + $0x708] sm:$0xff]
    %v7260 = vld [vmem:[#allocation19 + $0x710] sm:$0xff]
    %v7261 = vld [vmem:[#allocation19 + $0x718] sm:$0xf]
    %v7262 = vld [vmem:[#allocation19 + $0x71c] sm:$0xff]
    %v7263 = vld [vmem:[#allocation19 + $0x724] sm:$0xff]
    %v7264 = vld [vmem:[#allocation19 + $0x72c] sm:$0xff]
    %v7265 = vld [vmem:[#allocation19 + $0x734] sm:$0xf]
    %v7266 = vld [vmem:[#allocation19 + $0x738] sm:$0xff]
    %v7267 = vld [vmem:[#allocation19 + $0x740] sm:$0xff]
    %v7268 = vld [vmem:[#allocation19 + $0x748] sm:$0xff]
    %v7269 = vld [vmem:[#allocation19 + $0x750] sm:$0xf]
    %v7270 = vld [vmem:[#allocation19 + $0x754] sm:$0xff]
    %v7271 = vld [vmem:[#allocation19 + $0x75c] sm:$0xff]
    %v7272 = vld [vmem:[#allocation19 + $0x764] sm:$0xff]
    %v7273 = vld [vmem:[#allocation19 + $0x76c] sm:$0xf]
    %v7274 = vld [vmem:[#allocation19 + $0x770] sm:$0xff]
    %v7275 = vld [vmem:[#allocation19 + $0x778] sm:$0xff]
    %v7276 = vld [vmem:[#allocation19 + $0x780] sm:$0xff]
    %v7277 = vld [vmem:[#allocation19 + $0x788] sm:$0xf]
    %v7278 = vld [vmem:[#allocation19 + $0x78c] sm:$0xff]
    %v7279 = vld [vmem:[#allocation19 + $0x794] sm:$0xff]
    %v7280 = vld [vmem:[#allocation19 + $0x79c] sm:$0xff]
    %v7281 = vld [vmem:[#allocation19 + $0x7a4] sm:$0xf]
    %v7282 = vld [vmem:[#allocation19 + $0x7a8] sm:$0xff]
    %v7283 = vld [vmem:[#allocation19 + $0x7b0] sm:$0xff]
    %v7284 = vld [vmem:[#allocation19 + $0x7b8] sm:$0xff]
    %v7285 = vld [vmem:[#allocation19 + $0x7c0] sm:$0xf]
    %v7286 = vld [vmem:[#allocation19 + $0x7c4] sm:$0xff]
    %v7287 = vld [vmem:[#allocation19 + $0x7cc] sm:$0xff]
    %v7288 = vld [vmem:[#allocation19 + $0x7d4] sm:$0xff]
    %v7289 = vld [vmem:[#allocation19 + $0x7dc] sm:$0xf]
    %v7290 = vld [vmem:[#allocation19 + $0x7e0] sm:$0xff]
    %v7291 = vld [vmem:[#allocation19 + $0x7e8] sm:$0xff]
    %v7292 = vld [vmem:[#allocation19 + $0x7f0] sm:$0xff]
    %v7293 = vld [vmem:[#allocation19 + $0x7f8] sm:$0xf]
    %v7294 = vld [vmem:[#allocation19 + $0x7fc] sm:$0xff]
    %v7295 = vld [vmem:[#allocation19 + $0x804] sm:$0xff]
    %v7296 = vld [vmem:[#allocation19 + $0x80c] sm:$0xff]
    %v7297 = vld [vmem:[#allocation19 + $0x814] sm:$0xf]
    %v7298 = vld [vmem:[#allocation19 + $0x818] sm:$0xff]
    %v7299 = vld [vmem:[#allocation19 + $0x820] sm:$0xff]
    %v7300 = vld [vmem:[#allocation19 + $0x828] sm:$0xff]
    %v7301 = vld [vmem:[#allocation19 + $0x830] sm:$0xf]
    %v7302 = vld [vmem:[#allocation19 + $0x834] sm:$0xff]
    %v7303 = vld [vmem:[#allocation19 + $0x83c] sm:$0xff]
    %v7304 = vld [vmem:[#allocation19 + $0x844] sm:$0xff]
    %v7305 = vld [vmem:[#allocation19 + $0x84c] sm:$0xf]
    %v7306 = vld [vmem:[#allocation19 + $0x850] sm:$0xff]
    %v7307 = vld [vmem:[#allocation19 + $0x858] sm:$0xff]
    %v7308 = vld [vmem:[#allocation19 + $0x860] sm:$0xff]
    %v7309 = vld [vmem:[#allocation19 + $0x868] sm:$0xf]
    %v7310 = vld [vmem:[#allocation19 + $0x86c] sm:$0xff]
    %v7311 = vld [vmem:[#allocation19 + $0x874] sm:$0xff]
    %v7312 = vld [vmem:[#allocation19 + $0x87c] sm:$0xff]
    %v7313 = vld [vmem:[#allocation19 + $0x884] sm:$0xf]
    %v7314 = vld [vmem:[#allocation19 + $0x888] sm:$0xff]
    %v7315 = vld [vmem:[#allocation19 + $0x890] sm:$0xff]
    %v7316 = vld [vmem:[#allocation19 + $0x898] sm:$0xff]
    %v7317 = vld [vmem:[#allocation19 + $0x8a0] sm:$0xf]
    %v7318 = vld [vmem:[#allocation19 + $0x8a4] sm:$0xff]
    %v7319 = vld [vmem:[#allocation19 + $0x8ac] sm:$0xff]
    %v7320 = vld [vmem:[#allocation19 + $0x8b4] sm:$0xff]
    %v7321 = vld [vmem:[#allocation19 + $0x8bc] sm:$0xf]
    %v7322 = vld [vmem:[#allocation20] sm:$0xff]
    %v7324 = vlaneseq
    %v7325 = vshrl.u32 %v7324, 7
    %v7326 = vsub.s32 0, %v7325
    %v7327 = vrot.slane %v7322, %v7326
    %v7328 = vlaneseq
    %v7329 = vshrl.u32 %v7328, 7
    %v7330 = vsub.s32 1, %v7329
    %v7331 = vrot.slane %v7322, %v7330
    %v7332 = vlaneseq
    %v7333 = vshrl.u32 %v7332, 7
    %v7334 = vsub.s32 2, %v7333
    %v7335 = vrot.slane %v7322, %v7334
    %v7336 = vlaneseq
    %v7337 = vshrl.u32 %v7336, 7
    %v7338 = vsub.s32 3, %v7337
    %v7339 = vrot.slane %v7322, %v7338
    %v7340 = vlaneseq
    %v7341 = vshrl.u32 %v7340, 7
    %v7342 = vsub.s32 4, %v7341
    %v7343 = vrot.slane %v7322, %v7342
    %v7344 = vlaneseq
    %v7345 = vshrl.u32 %v7344, 7
    %v7346 = vsub.s32 5, %v7345
    %v7347 = vrot.slane %v7322, %v7346
    %v7348 = vlaneseq
    %v7349 = vshrl.u32 %v7348, 7
    %v7350 = vsub.s32 6, %v7349
    %v7351 = vrot.slane %v7322, %v7350
    %v7679 = vunpack.c.l.b16 %v7002
    %v7680 = vunpack.c.h.b16 %v7002
    %v7681 = vunpack.c.l.b16 %v7003
    %v7682 = vunpack.c.h.b16 %v7003
    %v7683 = vunpack.c.l.b16 %v7004
    %v7684 = vunpack.c.h.b16 %v7004
    %v7685 = vunpack.c.l.b16 %v7005
    %v7686 = vunpack.c.l.b16 %v7006
    %v7687 = vunpack.c.h.b16 %v7006
    %v7688 = vunpack.c.l.b16 %v7007
    %v7689 = vunpack.c.h.b16 %v7007
    %v7690 = vunpack.c.l.b16 %v7008
    %v7691 = vunpack.c.h.b16 %v7008
    %v7692 = vunpack.c.l.b16 %v7009
    %v7693 = vunpack.c.l.b16 %v7010
    %v7694 = vunpack.c.h.b16 %v7010
    %v7695 = vunpack.c.l.b16 %v7011
    %v7696 = vunpack.c.h.b16 %v7011
    %v7697 = vunpack.c.l.b16 %v7012
    %v7698 = vunpack.c.h.b16 %v7012
    %v7699 = vunpack.c.l.b16 %v7013
    %v7700 = vunpack.c.l.b16 %v7014
    %v7701 = vunpack.c.h.b16 %v7014
    %v7702 = vunpack.c.l.b16 %v7015
    %v7703 = vunpack.c.h.b16 %v7015
    %v7704 = vunpack.c.l.b16 %v7016
    %v7705 = vunpack.c.h.b16 %v7016
    %v7706 = vunpack.c.l.b16 %v7017
    %v7707 = vunpack.c.l.b16 %v7018
    %v7708 = vunpack.c.h.b16 %v7018
    %v7709 = vunpack.c.l.b16 %v7019
    %v7710 = vunpack.c.h.b16 %v7019
    %v7711 = vunpack.c.l.b16 %v7020
    %v7712 = vunpack.c.h.b16 %v7020
    %v7713 = vunpack.c.l.b16 %v7021
    %v7714 = vunpack.c.l.b16 %v7022
    %v7715 = vunpack.c.h.b16 %v7022
    %v7716 = vunpack.c.l.b16 %v7023
    %v7717 = vunpack.c.h.b16 %v7023
    %v7718 = vunpack.c.l.b16 %v7024
    %v7719 = vunpack.c.h.b16 %v7024
    %v7720 = vunpack.c.l.b16 %v7025
    %v7721 = vunpack.c.l.b16 %v7026
    %v7722 = vunpack.c.h.b16 %v7026
    %v7723 = vunpack.c.l.b16 %v7027
    %v7724 = vunpack.c.h.b16 %v7027
    %v7725 = vunpack.c.l.b16 %v7028
    %v7726 = vunpack.c.h.b16 %v7028
    %v7727 = vunpack.c.l.b16 %v7029
    %v7728 = vunpack.c.l.b16 %v7030
    %v7729 = vunpack.c.h.b16 %v7030
    %v7730 = vunpack.c.l.b16 %v7031
    %v7731 = vunpack.c.h.b16 %v7031
    %v7732 = vunpack.c.l.b16 %v7032
    %v7733 = vunpack.c.h.b16 %v7032
    %v7734 = vunpack.c.l.b16 %v7033
    %v7735 = vunpack.c.l.b16 %v7034
    %v7736 = vunpack.c.h.b16 %v7034
    %v7737 = vunpack.c.l.b16 %v7035
    %v7738 = vunpack.c.h.b16 %v7035
    %v7739 = vunpack.c.l.b16 %v7036
    %v7740 = vunpack.c.h.b16 %v7036
    %v7741 = vunpack.c.l.b16 %v7037
    %v7742 = vunpack.c.l.b16 %v7038
    %v7743 = vunpack.c.h.b16 %v7038
    %v7744 = vunpack.c.l.b16 %v7039
    %v7745 = vunpack.c.h.b16 %v7039
    %v7746 = vunpack.c.l.b16 %v7040
    %v7747 = vunpack.c.h.b16 %v7040
    %v7748 = vunpack.c.l.b16 %v7041
    %v7749 = vunpack.c.l.b16 %v7042
    %v7750 = vunpack.c.h.b16 %v7042
    %v7751 = vunpack.c.l.b16 %v7043
    %v7752 = vunpack.c.h.b16 %v7043
    %v7753 = vunpack.c.l.b16 %v7044
    %v7754 = vunpack.c.h.b16 %v7044
    %v7755 = vunpack.c.l.b16 %v7045
    %v7756 = vunpack.c.l.b16 %v7046
    %v7757 = vunpack.c.h.b16 %v7046
    %v7758 = vunpack.c.l.b16 %v7047
    %v7759 = vunpack.c.h.b16 %v7047
    %v7760 = vunpack.c.l.b16 %v7048
    %v7761 = vunpack.c.h.b16 %v7048
    %v7762 = vunpack.c.l.b16 %v7049
    %v7763 = vunpack.c.l.b16 %v7050
    %v7764 = vunpack.c.h.b16 %v7050
    %v7765 = vunpack.c.l.b16 %v7051
    %v7766 = vunpack.c.h.b16 %v7051
    %v7767 = vunpack.c.l.b16 %v7052
    %v7768 = vunpack.c.h.b16 %v7052
    %v7769 = vunpack.c.l.b16 %v7053
    %v7770 = vunpack.c.l.b16 %v7054
    %v7771 = vunpack.c.h.b16 %v7054
    %v7772 = vunpack.c.l.b16 %v7055
    %v7773 = vunpack.c.h.b16 %v7055
    %v7774 = vunpack.c.l.b16 %v7056
    %v7775 = vunpack.c.h.b16 %v7056
    %v7776 = vunpack.c.l.b16 %v7057
    %v7777 = vunpack.c.l.b16 %v7058
    %v7778 = vunpack.c.h.b16 %v7058
    %v7779 = vunpack.c.l.b16 %v7059
    %v7780 = vunpack.c.h.b16 %v7059
    %v7781 = vunpack.c.l.b16 %v7060
    %v7782 = vunpack.c.h.b16 %v7060
    %v7783 = vunpack.c.l.b16 %v7061
    %v7784 = vunpack.c.l.b16 %v7062
    %v7785 = vunpack.c.h.b16 %v7062
    %v7786 = vunpack.c.l.b16 %v7063
    %v7787 = vunpack.c.h.b16 %v7063
    %v7788 = vunpack.c.l.b16 %v7064
    %v7789 = vunpack.c.h.b16 %v7064
    %v7790 = vunpack.c.l.b16 %v7065
    %v7791 = vunpack.c.l.b16 %v7066
    %v7792 = vunpack.c.h.b16 %v7066
    %v7793 = vunpack.c.l.b16 %v7067
    %v7794 = vunpack.c.h.b16 %v7067
    %v7795 = vunpack.c.l.b16 %v7068
    %v7796 = vunpack.c.h.b16 %v7068
    %v7797 = vunpack.c.l.b16 %v7069
    %v7798 = vunpack.c.l.b16 %v7070
    %v7799 = vunpack.c.h.b16 %v7070
    %v7800 = vunpack.c.l.b16 %v7071
    %v7801 = vunpack.c.h.b16 %v7071
    %v7802 = vunpack.c.l.b16 %v7072
    %v7803 = vunpack.c.h.b16 %v7072
    %v7804 = vunpack.c.l.b16 %v7073
    %v7805 = vunpack.c.l.b16 %v7074
    %v7806 = vunpack.c.h.b16 %v7074
    %v7807 = vunpack.c.l.b16 %v7075
    %v7808 = vunpack.c.h.b16 %v7075
    %v7809 = vunpack.c.l.b16 %v7076
    %v7810 = vunpack.c.h.b16 %v7076
    %v7811 = vunpack.c.l.b16 %v7077
    %v7812 = vunpack.c.l.b16 %v7078
    %v7813 = vunpack.c.h.b16 %v7078
    %v7814 = vunpack.c.l.b16 %v7079
    %v7815 = vunpack.c.h.b16 %v7079
    %v7816 = vunpack.c.l.b16 %v7080
    %v7817 = vunpack.c.h.b16 %v7080
    %v7818 = vunpack.c.l.b16 %v7081
    %v7819 = vunpack.c.l.b16 %v7082
    %v7820 = vunpack.c.h.b16 %v7082
    %v7821 = vunpack.c.l.b16 %v7083
    %v7822 = vunpack.c.h.b16 %v7083
    %v7823 = vunpack.c.l.b16 %v7084
    %v7824 = vunpack.c.h.b16 %v7084
    %v7825 = vunpack.c.l.b16 %v7085
    %v7826 = vunpack.c.l.b16 %v7086
    %v7827 = vunpack.c.h.b16 %v7086
    %v7828 = vunpack.c.l.b16 %v7087
    %v7829 = vunpack.c.h.b16 %v7087
    %v7830 = vunpack.c.l.b16 %v7088
    %v7831 = vunpack.c.h.b16 %v7088
    %v7832 = vunpack.c.l.b16 %v7089
    %v7833 = vunpack.c.l.b16 %v7090
    %v7834 = vunpack.c.h.b16 %v7090
    %v7835 = vunpack.c.l.b16 %v7091
    %v7836 = vunpack.c.h.b16 %v7091
    %v7837 = vunpack.c.l.b16 %v7092
    %v7838 = vunpack.c.h.b16 %v7092
    %v7839 = vunpack.c.l.b16 %v7093
    %v7840 = vunpack.c.l.b16 %v7094
    %v7841 = vunpack.c.h.b16 %v7094
    %v7842 = vunpack.c.l.b16 %v7095
    %v7843 = vunpack.c.h.b16 %v7095
    %v7844 = vunpack.c.l.b16 %v7096
    %v7845 = vunpack.c.h.b16 %v7096
    %v7846 = vunpack.c.l.b16 %v7097
    %v7847 = vunpack.c.l.b16 %v7098
    %v7848 = vunpack.c.h.b16 %v7098
    %v7849 = vunpack.c.l.b16 %v7099
    %v7850 = vunpack.c.h.b16 %v7099
    %v7851 = vunpack.c.l.b16 %v7100
    %v7852 = vunpack.c.h.b16 %v7100
    %v7853 = vunpack.c.l.b16 %v7101
    %v7854 = vunpack.c.l.b16 %v7102
    %v7855 = vunpack.c.h.b16 %v7102
    %v7856 = vunpack.c.l.b16 %v7103
    %v7857 = vunpack.c.h.b16 %v7103
    %v7858 = vunpack.c.l.b16 %v7104
    %v7859 = vunpack.c.h.b16 %v7104
    %v7860 = vunpack.c.l.b16 %v7105
    %v7861 = vunpack.c.l.b16 %v7106
    %v7862 = vunpack.c.h.b16 %v7106
    %v7863 = vunpack.c.l.b16 %v7107
    %v7864 = vunpack.c.h.b16 %v7107
    %v7865 = vunpack.c.l.b16 %v7108
    %v7866 = vunpack.c.h.b16 %v7108
    %v7867 = vunpack.c.l.b16 %v7109
    %v7868 = vunpack.c.l.b16 %v7110
    %v7869 = vunpack.c.h.b16 %v7110
    %v7870 = vunpack.c.l.b16 %v7111
    %v7871 = vunpack.c.h.b16 %v7111
    %v7872 = vunpack.c.l.b16 %v7112
    %v7873 = vunpack.c.h.b16 %v7112
    %v7874 = vunpack.c.l.b16 %v7113
    %v7875 = vunpack.c.l.b16 %v7114
    %v7876 = vunpack.c.h.b16 %v7114
    %v7877 = vunpack.c.l.b16 %v7115
    %v7878 = vunpack.c.h.b16 %v7115
    %v7879 = vunpack.c.l.b16 %v7116
    %v7880 = vunpack.c.h.b16 %v7116
    %v7881 = vunpack.c.l.b16 %v7117
    %v7882 = vunpack.c.l.b16 %v7118
    %v7883 = vunpack.c.h.b16 %v7118
    %v7884 = vunpack.c.l.b16 %v7119
    %v7885 = vunpack.c.h.b16 %v7119
    %v7886 = vunpack.c.l.b16 %v7120
    %v7887 = vunpack.c.h.b16 %v7120
    %v7888 = vunpack.c.l.b16 %v7121
    %v7889 = vunpack.c.l.b16 %v7122
    %v7890 = vunpack.c.h.b16 %v7122
    %v7891 = vunpack.c.l.b16 %v7123
    %v7892 = vunpack.c.h.b16 %v7123
    %v7893 = vunpack.c.l.b16 %v7124
    %v7894 = vunpack.c.h.b16 %v7124
    %v7895 = vunpack.c.l.b16 %v7125
    %v7896 = vunpack.c.l.b16 %v7126
    %v7897 = vunpack.c.h.b16 %v7126
    %v7898 = vunpack.c.l.b16 %v7127
    %v7899 = vunpack.c.h.b16 %v7127
    %v7900 = vunpack.c.l.b16 %v7128
    %v7901 = vunpack.c.h.b16 %v7128
    %v7902 = vunpack.c.l.b16 %v7129
    %v7903 = vunpack.c.l.b16 %v7130
    %v7904 = vunpack.c.h.b16 %v7130
    %v7905 = vunpack.c.l.b16 %v7131
    %v7906 = vunpack.c.h.b16 %v7131
    %v7907 = vunpack.c.l.b16 %v7132
    %v7908 = vunpack.c.h.b16 %v7132
    %v7909 = vunpack.c.l.b16 %v7133
    %v7910 = vunpack.c.l.b16 %v7134
    %v7911 = vunpack.c.h.b16 %v7134
    %v7912 = vunpack.c.l.b16 %v7135
    %v7913 = vunpack.c.h.b16 %v7135
    %v7914 = vunpack.c.l.b16 %v7136
    %v7915 = vunpack.c.h.b16 %v7136
    %v7916 = vunpack.c.l.b16 %v7137
    %v7917 = vunpack.c.l.b16 %v7138
    %v7918 = vunpack.c.h.b16 %v7138
    %v7919 = vunpack.c.l.b16 %v7139
    %v7920 = vunpack.c.h.b16 %v7139
    %v7921 = vunpack.c.l.b16 %v7140
    %v7922 = vunpack.c.h.b16 %v7140
    %v7923 = vunpack.c.l.b16 %v7141
    %v7924 = vunpack.c.l.b16 %v7142
    %v7925 = vunpack.c.h.b16 %v7142
    %v7926 = vunpack.c.l.b16 %v7143
    %v7927 = vunpack.c.h.b16 %v7143
    %v7928 = vunpack.c.l.b16 %v7144
    %v7929 = vunpack.c.h.b16 %v7144
    %v7930 = vunpack.c.l.b16 %v7145
    %v7931 = vunpack.c.l.b16 %v7146
    %v7932 = vunpack.c.h.b16 %v7146
    %v7933 = vunpack.c.l.b16 %v7147
    %v7934 = vunpack.c.h.b16 %v7147
    %v7935 = vunpack.c.l.b16 %v7148
    %v7936 = vunpack.c.h.b16 %v7148
    %v7937 = vunpack.c.l.b16 %v7149
    %v7938 = vunpack.c.l.b16 %v7150
    %v7939 = vunpack.c.h.b16 %v7150
    %v7940 = vunpack.c.l.b16 %v7151
    %v7941 = vunpack.c.h.b16 %v7151
    %v7942 = vunpack.c.l.b16 %v7152
    %v7943 = vunpack.c.h.b16 %v7152
    %v7944 = vunpack.c.l.b16 %v7153
    %v7945 = vunpack.c.l.b16 %v7154
    %v7946 = vunpack.c.h.b16 %v7154
    %v7947 = vunpack.c.l.b16 %v7155
    %v7948 = vunpack.c.h.b16 %v7155
    %v7949 = vunpack.c.l.b16 %v7156
    %v7950 = vunpack.c.h.b16 %v7156
    %v7951 = vunpack.c.l.b16 %v7157
    %v7952 = vunpack.c.l.b16 %v7158
    %v7953 = vunpack.c.h.b16 %v7158
    %v7954 = vunpack.c.l.b16 %v7159
    %v7955 = vunpack.c.h.b16 %v7159
    %v7956 = vunpack.c.l.b16 %v7160
    %v7957 = vunpack.c.h.b16 %v7160
    %v7958 = vunpack.c.l.b16 %v7161
    %v7959 = vunpack.c.l.b16 %v7162
    %v7960 = vunpack.c.h.b16 %v7162
    %v7961 = vunpack.c.l.b16 %v7163
    %v7962 = vunpack.c.h.b16 %v7163
    %v7963 = vunpack.c.l.b16 %v7164
    %v7964 = vunpack.c.h.b16 %v7164
    %v7965 = vunpack.c.l.b16 %v7165
    %v7966 = vunpack.c.l.b16 %v7166
    %v7967 = vunpack.c.h.b16 %v7166
    %v7968 = vunpack.c.l.b16 %v7167
    %v7969 = vunpack.c.h.b16 %v7167
    %v7970 = vunpack.c.l.b16 %v7168
    %v7971 = vunpack.c.h.b16 %v7168
    %v7972 = vunpack.c.l.b16 %v7169
    %v7973 = vunpack.c.l.b16 %v7170
    %v7974 = vunpack.c.h.b16 %v7170
    %v7975 = vunpack.c.l.b16 %v7171
    %v7976 = vunpack.c.h.b16 %v7171
    %v7977 = vunpack.c.l.b16 %v7172
    %v7978 = vunpack.c.h.b16 %v7172
    %v7979 = vunpack.c.l.b16 %v7173
    %v7980 = vunpack.c.l.b16 %v7174
    %v7981 = vunpack.c.h.b16 %v7174
    %v7982 = vunpack.c.l.b16 %v7175
    %v7983 = vunpack.c.h.b16 %v7175
    %v7984 = vunpack.c.l.b16 %v7176
    %v7985 = vunpack.c.h.b16 %v7176
    %v7986 = vunpack.c.l.b16 %v7177
    %v7987 = vunpack.c.l.b16 %v7178
    %v7988 = vunpack.c.h.b16 %v7178
    %v7989 = vunpack.c.l.b16 %v7179
    %v7990 = vunpack.c.h.b16 %v7179
    %v7991 = vunpack.c.l.b16 %v7180
    %v7992 = vunpack.c.h.b16 %v7180
    %v7993 = vunpack.c.l.b16 %v7181
    %v7994 = vunpack.c.l.b16 %v7182
    %v7995 = vunpack.c.h.b16 %v7182
    %v7996 = vunpack.c.l.b16 %v7183
    %v7997 = vunpack.c.h.b16 %v7183
    %v7998 = vunpack.c.l.b16 %v7184
    %v7999 = vunpack.c.h.b16 %v7184
    %v8000 = vunpack.c.l.b16 %v7185
    %v8001 = vunpack.c.l.b16 %v7186
    %v8002 = vunpack.c.h.b16 %v7186
    %v8003 = vunpack.c.l.b16 %v7187
    %v8004 = vunpack.c.h.b16 %v7187
    %v8005 = vunpack.c.l.b16 %v7188
    %v8006 = vunpack.c.h.b16 %v7188
    %v8007 = vunpack.c.l.b16 %v7189
    %v8008 = vunpack.c.l.b16 %v7190
    %v8009 = vunpack.c.h.b16 %v7190
    %v8010 = vunpack.c.l.b16 %v7191
    %v8011 = vunpack.c.h.b16 %v7191
    %v8012 = vunpack.c.l.b16 %v7192
    %v8013 = vunpack.c.h.b16 %v7192
    %v8014 = vunpack.c.l.b16 %v7193
    %v8015 = vunpack.c.l.b16 %v7194
    %v8016 = vunpack.c.h.b16 %v7194
    %v8017 = vunpack.c.l.b16 %v7195
    %v8018 = vunpack.c.h.b16 %v7195
    %v8019 = vunpack.c.l.b16 %v7196
    %v8020 = vunpack.c.h.b16 %v7196
    %v8021 = vunpack.c.l.b16 %v7197
    %v8022 = vunpack.c.l.b16 %v7198
    %v8023 = vunpack.c.h.b16 %v7198
    %v8024 = vunpack.c.l.b16 %v7199
    %v8025 = vunpack.c.h.b16 %v7199
    %v8026 = vunpack.c.l.b16 %v7200
    %v8027 = vunpack.c.h.b16 %v7200
    %v8028 = vunpack.c.l.b16 %v7201
    %v8029 = vunpack.c.l.b16 %v7202
    %v8030 = vunpack.c.h.b16 %v7202
    %v8031 = vunpack.c.l.b16 %v7203
    %v8032 = vunpack.c.h.b16 %v7203
    %v8033 = vunpack.c.l.b16 %v7204
    %v8034 = vunpack.c.h.b16 %v7204
    %v8035 = vunpack.c.l.b16 %v7205
    %v8036 = vunpack.c.l.b16 %v7206
    %v8037 = vunpack.c.h.b16 %v7206
    %v8038 = vunpack.c.l.b16 %v7207
    %v8039 = vunpack.c.h.b16 %v7207
    %v8040 = vunpack.c.l.b16 %v7208
    %v8041 = vunpack.c.h.b16 %v7208
    %v8042 = vunpack.c.l.b16 %v7209
    %v8043 = vunpack.c.l.b16 %v7210
    %v8044 = vunpack.c.h.b16 %v7210
    %v8045 = vunpack.c.l.b16 %v7211
    %v8046 = vunpack.c.h.b16 %v7211
    %v8047 = vunpack.c.l.b16 %v7212
    %v8048 = vunpack.c.h.b16 %v7212
    %v8049 = vunpack.c.l.b16 %v7213
    %v8050 = vunpack.c.l.b16 %v7214
    %v8051 = vunpack.c.h.b16 %v7214
    %v8052 = vunpack.c.l.b16 %v7215
    %v8053 = vunpack.c.h.b16 %v7215
    %v8054 = vunpack.c.l.b16 %v7216
    %v8055 = vunpack.c.h.b16 %v7216
    %v8056 = vunpack.c.l.b16 %v7217
    %v8057 = vunpack.c.l.b16 %v7218
    %v8058 = vunpack.c.h.b16 %v7218
    %v8059 = vunpack.c.l.b16 %v7219
    %v8060 = vunpack.c.h.b16 %v7219
    %v8061 = vunpack.c.l.b16 %v7220
    %v8062 = vunpack.c.h.b16 %v7220
    %v8063 = vunpack.c.l.b16 %v7221
    %v8064 = vunpack.c.l.b16 %v7222
    %v8065 = vunpack.c.h.b16 %v7222
    %v8066 = vunpack.c.l.b16 %v7223
    %v8067 = vunpack.c.h.b16 %v7223
    %v8068 = vunpack.c.l.b16 %v7224
    %v8069 = vunpack.c.h.b16 %v7224
    %v8070 = vunpack.c.l.b16 %v7225
    %v8071 = vunpack.c.l.b16 %v7226
    %v8072 = vunpack.c.h.b16 %v7226
    %v8073 = vunpack.c.l.b16 %v7227
    %v8074 = vunpack.c.h.b16 %v7227
    %v8075 = vunpack.c.l.b16 %v7228
    %v8076 = vunpack.c.h.b16 %v7228
    %v8077 = vunpack.c.l.b16 %v7229
    %v8078 = vunpack.c.l.b16 %v7230
    %v8079 = vunpack.c.h.b16 %v7230
    %v8080 = vunpack.c.l.b16 %v7231
    %v8081 = vunpack.c.h.b16 %v7231
    %v8082 = vunpack.c.l.b16 %v7232
    %v8083 = vunpack.c.h.b16 %v7232
    %v8084 = vunpack.c.l.b16 %v7233
    %v8085 = vunpack.c.l.b16 %v7234
    %v8086 = vunpack.c.h.b16 %v7234
    %v8087 = vunpack.c.l.b16 %v7235
    %v8088 = vunpack.c.h.b16 %v7235
    %v8089 = vunpack.c.l.b16 %v7236
    %v8090 = vunpack.c.h.b16 %v7236
    %v8091 = vunpack.c.l.b16 %v7237
    %v8092 = vunpack.c.l.b16 %v7238
    %v8093 = vunpack.c.h.b16 %v7238
    %v8094 = vunpack.c.l.b16 %v7239
    %v8095 = vunpack.c.h.b16 %v7239
    %v8096 = vunpack.c.l.b16 %v7240
    %v8097 = vunpack.c.h.b16 %v7240
    %v8098 = vunpack.c.l.b16 %v7241
    %v8099 = vunpack.c.l.b16 %v7242
    %v8100 = vunpack.c.h.b16 %v7242
    %v8101 = vunpack.c.l.b16 %v7243
    %v8102 = vunpack.c.h.b16 %v7243
    %v8103 = vunpack.c.l.b16 %v7244
    %v8104 = vunpack.c.h.b16 %v7244
    %v8105 = vunpack.c.l.b16 %v7245
    %v8106 = vunpack.c.l.b16 %v7246
    %v8107 = vunpack.c.h.b16 %v7246
    %v8108 = vunpack.c.l.b16 %v7247
    %v8109 = vunpack.c.h.b16 %v7247
    %v8110 = vunpack.c.l.b16 %v7248
    %v8111 = vunpack.c.h.b16 %v7248
    %v8112 = vunpack.c.l.b16 %v7249
    %v8113 = vunpack.c.l.b16 %v7250
    %v8114 = vunpack.c.h.b16 %v7250
    %v8115 = vunpack.c.l.b16 %v7251
    %v8116 = vunpack.c.h.b16 %v7251
    %v8117 = vunpack.c.l.b16 %v7252
    %v8118 = vunpack.c.h.b16 %v7252
    %v8119 = vunpack.c.l.b16 %v7253
    %v8120 = vunpack.c.l.b16 %v7254
    %v8121 = vunpack.c.h.b16 %v7254
    %v8122 = vunpack.c.l.b16 %v7255
    %v8123 = vunpack.c.h.b16 %v7255
    %v8124 = vunpack.c.l.b16 %v7256
    %v8125 = vunpack.c.h.b16 %v7256
    %v8126 = vunpack.c.l.b16 %v7257
    %v8127 = vunpack.c.l.b16 %v7258
    %v8128 = vunpack.c.h.b16 %v7258
    %v8129 = vunpack.c.l.b16 %v7259
    %v8130 = vunpack.c.h.b16 %v7259
    %v8131 = vunpack.c.l.b16 %v7260
    %v8132 = vunpack.c.h.b16 %v7260
    %v8133 = vunpack.c.l.b16 %v7261
    %v8134 = vunpack.c.l.b16 %v7262
    %v8135 = vunpack.c.h.b16 %v7262
    %v8136 = vunpack.c.l.b16 %v7263
    %v8137 = vunpack.c.h.b16 %v7263
    %v8138 = vunpack.c.l.b16 %v7264
    %v8139 = vunpack.c.h.b16 %v7264
    %v8140 = vunpack.c.l.b16 %v7265
    %v8141 = vunpack.c.l.b16 %v7266
    %v8142 = vunpack.c.h.b16 %v7266
    %v8143 = vunpack.c.l.b16 %v7267
    %v8144 = vunpack.c.h.b16 %v7267
    %v8145 = vunpack.c.l.b16 %v7268
    %v8146 = vunpack.c.h.b16 %v7268
    %v8147 = vunpack.c.l.b16 %v7269
    %v8148 = vunpack.c.l.b16 %v7270
    %v8149 = vunpack.c.h.b16 %v7270
    %v8150 = vunpack.c.l.b16 %v7271
    %v8151 = vunpack.c.h.b16 %v7271
    %v8152 = vunpack.c.l.b16 %v7272
    %v8153 = vunpack.c.h.b16 %v7272
    %v8154 = vunpack.c.l.b16 %v7273
    %v8155 = vunpack.c.l.b16 %v7274
    %v8156 = vunpack.c.h.b16 %v7274
    %v8157 = vunpack.c.l.b16 %v7275
    %v8158 = vunpack.c.h.b16 %v7275
    %v8159 = vunpack.c.l.b16 %v7276
    %v8160 = vunpack.c.h.b16 %v7276
    %v8161 = vunpack.c.l.b16 %v7277
    %v8162 = vunpack.c.l.b16 %v7278
    %v8163 = vunpack.c.h.b16 %v7278
    %v8164 = vunpack.c.l.b16 %v7279
    %v8165 = vunpack.c.h.b16 %v7279
    %v8166 = vunpack.c.l.b16 %v7280
    %v8167 = vunpack.c.h.b16 %v7280
    %v8168 = vunpack.c.l.b16 %v7281
    %v8169 = vunpack.c.l.b16 %v7282
    %v8170 = vunpack.c.h.b16 %v7282
    %v8171 = vunpack.c.l.b16 %v7283
    %v8172 = vunpack.c.h.b16 %v7283
    %v8173 = vunpack.c.l.b16 %v7284
    %v8174 = vunpack.c.h.b16 %v7284
    %v8175 = vunpack.c.l.b16 %v7285
    %v8176 = vunpack.c.l.b16 %v7286
    %v8177 = vunpack.c.h.b16 %v7286
    %v8178 = vunpack.c.l.b16 %v7287
    %v8179 = vunpack.c.h.b16 %v7287
    %v8180 = vunpack.c.l.b16 %v7288
    %v8181 = vunpack.c.h.b16 %v7288
    %v8182 = vunpack.c.l.b16 %v7289
    %v8183 = vunpack.c.l.b16 %v7290
    %v8184 = vunpack.c.h.b16 %v7290
    %v8185 = vunpack.c.l.b16 %v7291
    %v8186 = vunpack.c.h.b16 %v7291
    %v8187 = vunpack.c.l.b16 %v7292
    %v8188 = vunpack.c.h.b16 %v7292
    %v8189 = vunpack.c.l.b16 %v7293
    %v8190 = vunpack.c.l.b16 %v7294
    %v8191 = vunpack.c.h.b16 %v7294
    %v8192 = vunpack.c.l.b16 %v7295
    %v8193 = vunpack.c.h.b16 %v7295
    %v8194 = vunpack.c.l.b16 %v7296
    %v8195 = vunpack.c.h.b16 %v7296
    %v8196 = vunpack.c.l.b16 %v7297
    %v8197 = vunpack.c.l.b16 %v7298
    %v8198 = vunpack.c.h.b16 %v7298
    %v8199 = vunpack.c.l.b16 %v7299
    %v8200 = vunpack.c.h.b16 %v7299
    %v8201 = vunpack.c.l.b16 %v7300
    %v8202 = vunpack.c.h.b16 %v7300
    %v8203 = vunpack.c.l.b16 %v7301
    %v8204 = vunpack.c.l.b16 %v7302
    %v8205 = vunpack.c.h.b16 %v7302
    %v8206 = vunpack.c.l.b16 %v7303
    %v8207 = vunpack.c.h.b16 %v7303
    %v8208 = vunpack.c.l.b16 %v7304
    %v8209 = vunpack.c.h.b16 %v7304
    %v8210 = vunpack.c.l.b16 %v7305
    %v8211 = vunpack.c.l.b16 %v7306
    %v8212 = vunpack.c.h.b16 %v7306
    %v8213 = vunpack.c.l.b16 %v7307
    %v8214 = vunpack.c.h.b16 %v7307
    %v8215 = vunpack.c.l.b16 %v7308
    %v8216 = vunpack.c.h.b16 %v7308
    %v8217 = vunpack.c.l.b16 %v7309
    %v8218 = vunpack.c.l.b16 %v7310
    %v8219 = vunpack.c.h.b16 %v7310
    %v8220 = vunpack.c.l.b16 %v7311
    %v8221 = vunpack.c.h.b16 %v7311
    %v8222 = vunpack.c.l.b16 %v7312
    %v8223 = vunpack.c.h.b16 %v7312
    %v8224 = vunpack.c.l.b16 %v7313
    %v8225 = vunpack.c.l.b16 %v7314
    %v8226 = vunpack.c.h.b16 %v7314
    %v8227 = vunpack.c.l.b16 %v7315
    %v8228 = vunpack.c.h.b16 %v7315
    %v8229 = vunpack.c.l.b16 %v7316
    %v8230 = vunpack.c.h.b16 %v7316
    %v8231 = vunpack.c.l.b16 %v7317
    %v8232 = vunpack.c.l.b16 %v7318
    %v8233 = vunpack.c.h.b16 %v7318
    %v8234 = vunpack.c.l.b16 %v7319
    %v8235 = vunpack.c.h.b16 %v7319
    %v8236 = vunpack.c.l.b16 %v7320
    %v8237 = vunpack.c.h.b16 %v7320
    %v8238 = vunpack.c.l.b16 %v7321
    %v8239 = vpack.c.b16 %v7686, %v7679
    %v8240 = vpack.c.b16 %v7687, %v7680
    %v8241 = vpack.c.b16 %v7688, %v7681
    %v8242 = vpack.c.b16 %v7689, %v7682
    %v8243 = vpack.c.b16 %v7690, %v7683
    %v8244 = vpack.c.b16 %v7691, %v7684
    %v8245 = vpack.c.b16 %v7692, %v7685
    %v8246 = vpack.c.b16 %v7700, %v7693
    %v8247 = vpack.c.b16 %v7701, %v7694
    %v8248 = vpack.c.b16 %v7702, %v7695
    %v8249 = vpack.c.b16 %v7703, %v7696
    %v8250 = vpack.c.b16 %v7704, %v7697
    %v8251 = vpack.c.b16 %v7705, %v7698
    %v8252 = vpack.c.b16 %v7706, %v7699
    %v8253 = vpack.c.b16 %v7714, %v7707
    %v8254 = vpack.c.b16 %v7715, %v7708
    %v8255 = vpack.c.b16 %v7716, %v7709
    %v8256 = vpack.c.b16 %v7717, %v7710
    %v8257 = vpack.c.b16 %v7718, %v7711
    %v8258 = vpack.c.b16 %v7719, %v7712
    %v8259 = vpack.c.b16 %v7720, %v7713
    %v8260 = vpack.c.b16 %v7728, %v7721
    %v8261 = vpack.c.b16 %v7729, %v7722
    %v8262 = vpack.c.b16 %v7730, %v7723
    %v8263 = vpack.c.b16 %v7731, %v7724
    %v8264 = vpack.c.b16 %v7732, %v7725
    %v8265 = vpack.c.b16 %v7733, %v7726
    %v8266 = vpack.c.b16 %v7734, %v7727
    %v8267 = vpack.c.b16 %v7742, %v7735
    %v8268 = vpack.c.b16 %v7743, %v7736
    %v8269 = vpack.c.b16 %v7744, %v7737
    %v8270 = vpack.c.b16 %v7745, %v7738
    %v8271 = vpack.c.b16 %v7746, %v7739
    %v8272 = vpack.c.b16 %v7747, %v7740
    %v8273 = vpack.c.b16 %v7748, %v7741
    %v8274 = vpack.c.b16 %v7756, %v7749
    %v8275 = vpack.c.b16 %v7757, %v7750
    %v8276 = vpack.c.b16 %v7758, %v7751
    %v8277 = vpack.c.b16 %v7759, %v7752
    %v8278 = vpack.c.b16 %v7760, %v7753
    %v8279 = vpack.c.b16 %v7761, %v7754
    %v8280 = vpack.c.b16 %v7762, %v7755
    %v8281 = vpack.c.b16 %v7770, %v7763
    %v8282 = vpack.c.b16 %v7771, %v7764
    %v8283 = vpack.c.b16 %v7772, %v7765
    %v8284 = vpack.c.b16 %v7773, %v7766
    %v8285 = vpack.c.b16 %v7774, %v7767
    %v8286 = vpack.c.b16 %v7775, %v7768
    %v8287 = vpack.c.b16 %v7776, %v7769
    %v8288 = vpack.c.b16 %v7784, %v7777
    %v8289 = vpack.c.b16 %v7785, %v7778
    %v8290 = vpack.c.b16 %v7786, %v7779
    %v8291 = vpack.c.b16 %v7787, %v7780
    %v8292 = vpack.c.b16 %v7788, %v7781
    %v8293 = vpack.c.b16 %v7789, %v7782
    %v8294 = vpack.c.b16 %v7790, %v7783
    %v8295 = vpack.c.b16 %v7798, %v7791
    %v8296 = vpack.c.b16 %v7799, %v7792
    %v8297 = vpack.c.b16 %v7800, %v7793
    %v8298 = vpack.c.b16 %v7801, %v7794
    %v8299 = vpack.c.b16 %v7802, %v7795
    %v8300 = vpack.c.b16 %v7803, %v7796
    %v8301 = vpack.c.b16 %v7804, %v7797
    %v8302 = vpack.c.b16 %v7812, %v7805
    %v8303 = vpack.c.b16 %v7813, %v7806
    %v8304 = vpack.c.b16 %v7814, %v7807
    %v8305 = vpack.c.b16 %v7815, %v7808
    %v8306 = vpack.c.b16 %v7816, %v7809
    %v8307 = vpack.c.b16 %v7817, %v7810
    %v8308 = vpack.c.b16 %v7818, %v7811
    %v8309 = vpack.c.b16 %v7826, %v7819
    %v8310 = vpack.c.b16 %v7827, %v7820
    %v8311 = vpack.c.b16 %v7828, %v7821
    %v8312 = vpack.c.b16 %v7829, %v7822
    %v8313 = vpack.c.b16 %v7830, %v7823
    %v8314 = vpack.c.b16 %v7831, %v7824
    %v8315 = vpack.c.b16 %v7832, %v7825
    %v8316 = vpack.c.b16 %v7840, %v7833
    %v8317 = vpack.c.b16 %v7841, %v7834
    %v8318 = vpack.c.b16 %v7842, %v7835
    %v8319 = vpack.c.b16 %v7843, %v7836
    %v8320 = vpack.c.b16 %v7844, %v7837
    %v8321 = vpack.c.b16 %v7845, %v7838
    %v8322 = vpack.c.b16 %v7846, %v7839
    %v8323 = vpack.c.b16 %v7854, %v7847
    %v8324 = vpack.c.b16 %v7855, %v7848
    %v8325 = vpack.c.b16 %v7856, %v7849
    %v8326 = vpack.c.b16 %v7857, %v7850
    %v8327 = vpack.c.b16 %v7858, %v7851
    %v8328 = vpack.c.b16 %v7859, %v7852
    %v8329 = vpack.c.b16 %v7860, %v7853
    %v8330 = vpack.c.b16 %v7868, %v7861
    %v8331 = vpack.c.b16 %v7869, %v7862
    %v8332 = vpack.c.b16 %v7870, %v7863
    %v8333 = vpack.c.b16 %v7871, %v7864
    %v8334 = vpack.c.b16 %v7872, %v7865
    %v8335 = vpack.c.b16 %v7873, %v7866
    %v8336 = vpack.c.b16 %v7874, %v7867
    %v8337 = vpack.c.b16 %v7882, %v7875
    %v8338 = vpack.c.b16 %v7883, %v7876
    %v8339 = vpack.c.b16 %v7884, %v7877
    %v8340 = vpack.c.b16 %v7885, %v7878
    %v8341 = vpack.c.b16 %v7886, %v7879
    %v8342 = vpack.c.b16 %v7887, %v7880
    %v8343 = vpack.c.b16 %v7888, %v7881
    %v8344 = vpack.c.b16 %v7896, %v7889
    %v8345 = vpack.c.b16 %v7897, %v7890
    %v8346 = vpack.c.b16 %v7898, %v7891
    %v8347 = vpack.c.b16 %v7899, %v7892
    %v8348 = vpack.c.b16 %v7900, %v7893
    %v8349 = vpack.c.b16 %v7901, %v7894
    %v8350 = vpack.c.b16 %v7902, %v7895
    %v8351 = vpack.c.b16 %v7910, %v7903
    %v8352 = vpack.c.b16 %v7911, %v7904
    %v8353 = vpack.c.b16 %v7912, %v7905
    %v8354 = vpack.c.b16 %v7913, %v7906
    %v8355 = vpack.c.b16 %v7914, %v7907
    %v8356 = vpack.c.b16 %v7915, %v7908
    %v8357 = vpack.c.b16 %v7916, %v7909
    %v8358 = vpack.c.b16 %v7924, %v7917
    %v8359 = vpack.c.b16 %v7925, %v7918
    %v8360 = vpack.c.b16 %v7926, %v7919
    %v8361 = vpack.c.b16 %v7927, %v7920
    %v8362 = vpack.c.b16 %v7928, %v7921
    %v8363 = vpack.c.b16 %v7929, %v7922
    %v8364 = vpack.c.b16 %v7930, %v7923
    %v8365 = vpack.c.b16 %v7938, %v7931
    %v8366 = vpack.c.b16 %v7939, %v7932
    %v8367 = vpack.c.b16 %v7940, %v7933
    %v8368 = vpack.c.b16 %v7941, %v7934
    %v8369 = vpack.c.b16 %v7942, %v7935
    %v8370 = vpack.c.b16 %v7943, %v7936
    %v8371 = vpack.c.b16 %v7944, %v7937
    %v8372 = vpack.c.b16 %v7952, %v7945
    %v8373 = vpack.c.b16 %v7953, %v7946
    %v8374 = vpack.c.b16 %v7954, %v7947
    %v8375 = vpack.c.b16 %v7955, %v7948
    %v8376 = vpack.c.b16 %v7956, %v7949
    %v8377 = vpack.c.b16 %v7957, %v7950
    %v8378 = vpack.c.b16 %v7958, %v7951
    %v8379 = vpack.c.b16 %v7966, %v7959
    %v8380 = vpack.c.b16 %v7967, %v7960
    %v8381 = vpack.c.b16 %v7968, %v7961
    %v8382 = vpack.c.b16 %v7969, %v7962
    %v8383 = vpack.c.b16 %v7970, %v7963
    %v8384 = vpack.c.b16 %v7971, %v7964
    %v8385 = vpack.c.b16 %v7972, %v7965
    %v8386 = vpack.c.b16 %v7980, %v7973
    %v8387 = vpack.c.b16 %v7981, %v7974
    %v8388 = vpack.c.b16 %v7982, %v7975
    %v8389 = vpack.c.b16 %v7983, %v7976
    %v8390 = vpack.c.b16 %v7984, %v7977
    %v8391 = vpack.c.b16 %v7985, %v7978
    %v8392 = vpack.c.b16 %v7986, %v7979
    %v8393 = vpack.c.b16 %v7994, %v7987
    %v8394 = vpack.c.b16 %v7995, %v7988
    %v8395 = vpack.c.b16 %v7996, %v7989
    %v8396 = vpack.c.b16 %v7997, %v7990
    %v8397 = vpack.c.b16 %v7998, %v7991
    %v8398 = vpack.c.b16 %v7999, %v7992
    %v8399 = vpack.c.b16 %v8000, %v7993
    %v8400 = vpack.c.b16 %v8008, %v8001
    %v8401 = vpack.c.b16 %v8009, %v8002
    %v8402 = vpack.c.b16 %v8010, %v8003
    %v8403 = vpack.c.b16 %v8011, %v8004
    %v8404 = vpack.c.b16 %v8012, %v8005
    %v8405 = vpack.c.b16 %v8013, %v8006
    %v8406 = vpack.c.b16 %v8014, %v8007
    %v8407 = vpack.c.b16 %v8022, %v8015
    %v8408 = vpack.c.b16 %v8023, %v8016
    %v8409 = vpack.c.b16 %v8024, %v8017
    %v8410 = vpack.c.b16 %v8025, %v8018
    %v8411 = vpack.c.b16 %v8026, %v8019
    %v8412 = vpack.c.b16 %v8027, %v8020
    %v8413 = vpack.c.b16 %v8028, %v8021
    %v8414 = vpack.c.b16 %v8036, %v8029
    %v8415 = vpack.c.b16 %v8037, %v8030
    %v8416 = vpack.c.b16 %v8038, %v8031
    %v8417 = vpack.c.b16 %v8039, %v8032
    %v8418 = vpack.c.b16 %v8040, %v8033
    %v8419 = vpack.c.b16 %v8041, %v8034
    %v8420 = vpack.c.b16 %v8042, %v8035
    %v8421 = vpack.c.b16 %v8050, %v8043
    %v8422 = vpack.c.b16 %v8051, %v8044
    %v8423 = vpack.c.b16 %v8052, %v8045
    %v8424 = vpack.c.b16 %v8053, %v8046
    %v8425 = vpack.c.b16 %v8054, %v8047
    %v8426 = vpack.c.b16 %v8055, %v8048
    %v8427 = vpack.c.b16 %v8056, %v8049
    %v8428 = vpack.c.b16 %v8064, %v8057
    %v8429 = vpack.c.b16 %v8065, %v8058
    %v8430 = vpack.c.b16 %v8066, %v8059
    %v8431 = vpack.c.b16 %v8067, %v8060
    %v8432 = vpack.c.b16 %v8068, %v8061
    %v8433 = vpack.c.b16 %v8069, %v8062
    %v8434 = vpack.c.b16 %v8070, %v8063
    %v8435 = vpack.c.b16 %v8078, %v8071
    %v8436 = vpack.c.b16 %v8079, %v8072
    %v8437 = vpack.c.b16 %v8080, %v8073
    %v8438 = vpack.c.b16 %v8081, %v8074
    %v8439 = vpack.c.b16 %v8082, %v8075
    %v8440 = vpack.c.b16 %v8083, %v8076
    %v8441 = vpack.c.b16 %v8084, %v8077
    %v8442 = vpack.c.b16 %v8092, %v8085
    %v8443 = vpack.c.b16 %v8093, %v8086
    %v8444 = vpack.c.b16 %v8094, %v8087
    %v8445 = vpack.c.b16 %v8095, %v8088
    %v8446 = vpack.c.b16 %v8096, %v8089
    %v8447 = vpack.c.b16 %v8097, %v8090
    %v8448 = vpack.c.b16 %v8098, %v8091
    %v8449 = vpack.c.b16 %v8106, %v8099
    %v8450 = vpack.c.b16 %v8107, %v8100
    %v8451 = vpack.c.b16 %v8108, %v8101
    %v8452 = vpack.c.b16 %v8109, %v8102
    %v8453 = vpack.c.b16 %v8110, %v8103
    %v8454 = vpack.c.b16 %v8111, %v8104
    %v8455 = vpack.c.b16 %v8112, %v8105
    %v8456 = vpack.c.b16 %v8120, %v8113
    %v8457 = vpack.c.b16 %v8121, %v8114
    %v8458 = vpack.c.b16 %v8122, %v8115
    %v8459 = vpack.c.b16 %v8123, %v8116
    %v8460 = vpack.c.b16 %v8124, %v8117
    %v8461 = vpack.c.b16 %v8125, %v8118
    %v8462 = vpack.c.b16 %v8126, %v8119
    %v8463 = vpack.c.b16 %v8134, %v8127
    %v8464 = vpack.c.b16 %v8135, %v8128
    %v8465 = vpack.c.b16 %v8136, %v8129
    %v8466 = vpack.c.b16 %v8137, %v8130
    %v8467 = vpack.c.b16 %v8138, %v8131
    %v8468 = vpack.c.b16 %v8139, %v8132
    %v8469 = vpack.c.b16 %v8140, %v8133
    %v8470 = vpack.c.b16 %v8148, %v8141
    %v8471 = vpack.c.b16 %v8149, %v8142
    %v8472 = vpack.c.b16 %v8150, %v8143
    %v8473 = vpack.c.b16 %v8151, %v8144
    %v8474 = vpack.c.b16 %v8152, %v8145
    %v8475 = vpack.c.b16 %v8153, %v8146
    %v8476 = vpack.c.b16 %v8154, %v8147
    %v8477 = vpack.c.b16 %v8162, %v8155
    %v8478 = vpack.c.b16 %v8163, %v8156
    %v8479 = vpack.c.b16 %v8164, %v8157
    %v8480 = vpack.c.b16 %v8165, %v8158
    %v8481 = vpack.c.b16 %v8166, %v8159
    %v8482 = vpack.c.b16 %v8167, %v8160
    %v8483 = vpack.c.b16 %v8168, %v8161
    %v8484 = vpack.c.b16 %v8176, %v8169
    %v8485 = vpack.c.b16 %v8177, %v8170
    %v8486 = vpack.c.b16 %v8178, %v8171
    %v8487 = vpack.c.b16 %v8179, %v8172
    %v8488 = vpack.c.b16 %v8180, %v8173
    %v8489 = vpack.c.b16 %v8181, %v8174
    %v8490 = vpack.c.b16 %v8182, %v8175
    %v8491 = vpack.c.b16 %v8190, %v8183
    %v8492 = vpack.c.b16 %v8191, %v8184
    %v8493 = vpack.c.b16 %v8192, %v8185
    %v8494 = vpack.c.b16 %v8193, %v8186
    %v8495 = vpack.c.b16 %v8194, %v8187
    %v8496 = vpack.c.b16 %v8195, %v8188
    %v8497 = vpack.c.b16 %v8196, %v8189
    %v8498 = vpack.c.b16 %v8204, %v8197
    %v8499 = vpack.c.b16 %v8205, %v8198
    %v8500 = vpack.c.b16 %v8206, %v8199
    %v8501 = vpack.c.b16 %v8207, %v8200
    %v8502 = vpack.c.b16 %v8208, %v8201
    %v8503 = vpack.c.b16 %v8209, %v8202
    %v8504 = vpack.c.b16 %v8210, %v8203
    %v8505 = vpack.c.b16 %v8218, %v8211
    %v8506 = vpack.c.b16 %v8219, %v8212
    %v8507 = vpack.c.b16 %v8220, %v8213
    %v8508 = vpack.c.b16 %v8221, %v8214
    %v8509 = vpack.c.b16 %v8222, %v8215
    %v8510 = vpack.c.b16 %v8223, %v8216
    %v8511 = vpack.c.b16 %v8224, %v8217
    %v8512 = vpack.c.b16 %v8232, %v8225
    %v8513 = vpack.c.b16 %v8233, %v8226
    %v8514 = vpack.c.b16 %v8234, %v8227
    %v8515 = vpack.c.b16 %v8235, %v8228
    %v8516 = vpack.c.b16 %v8236, %v8229
    %v8517 = vpack.c.b16 %v8237, %v8230
    %v8518 = vpack.c.b16 %v8238, %v8231
    %8799 = vmatprep.subr.bf16.mxu0 %v8240
    %8800 = vmatpush1.bf16.msra.mxu0 %v8239
    %8801 = vmatprep.subr.bf16.mxu0 %v8247
    %8802 = vmatpush1.bf16.msra.mxu0 %v8246
    %8803 = vmatprep.subr.bf16.mxu0 %v8254
    %8804 = vmatpush1.bf16.msra.mxu0 %v8253
    %8805 = vmatprep.subr.bf16.mxu0 %v8261
    %8806 = vmatpush1.bf16.msra.mxu0 %v8260
    %8807 = vmatprep.subr.bf16.mxu0 %v8268
    %8808 = vmatpush1.bf16.msra.mxu0 %v8267
    %8809 = vmatprep.subr.bf16.mxu0 %v8275
    %8810 = vmatpush1.bf16.msra.mxu0 %v8274
    %8811 = vmatprep.subr.bf16.mxu0 %v8282
    %8812 = vmatpush1.bf16.msra.mxu0 %v8281
    %8813 = vmatprep.subr.bf16.mxu0 %v8289
    %8814 = vmatpush1.bf16.msra.mxu0 %v8288
    %8815 = vmatprep.subr.bf16.mxu0 %v8296
    %8816 = vmatpush1.bf16.msra.mxu0 %v8295
    %8817 = vmatprep.subr.bf16.mxu0 %v8303
    %8818 = vmatpush1.bf16.msra.mxu0 %v8302
    %8819 = vmatprep.subr.bf16.mxu0 %v8310
    %8820 = vmatpush1.bf16.msra.mxu0 %v8309
    %8821 = vmatprep.subr.bf16.mxu0 %v8317
    %8822 = vmatpush1.bf16.msra.mxu0 %v8316
    %8823 = vmatprep.subr.bf16.mxu0 %v8324
    %8824 = vmatpush1.bf16.msra.mxu0 %v8323
    %8825 = vmatprep.subr.bf16.mxu0 %v8331
    %8826 = vmatpush1.bf16.msra.mxu0 %v8330
    %8827 = vmatprep.subr.bf16.mxu0 %v8338
    %8828 = vmatpush1.bf16.msra.mxu0 %v8337
    %8829 = vmatprep.subr.bf16.mxu0 %v8345
    %8830 = vmatpush1.bf16.msra.mxu0 %v8344
    %8831 = vmatprep.mubr.bf16.mxu0 %v6998
    %8832 = vmatmul.mubr.bf16.gmra.mrb[0].mxu0 %v6997
    %v8833 = vpop.f32.mrb[0].mxu0
    %v8834 = vadd.f32 %v7327, %v8833
    %v8835 = vpop.f32.mrb[0].mxu0
    %v8836 = vadd.f32 %v7331, %v8835
    %v8837 = vpop.f32.mrb[0].mxu0
    %v8838 = vpop.f32.mrb[0].mxu0
    %8839 = vdwg.mxu0
    %8840 = vmatprep.subr.bf16.mxu0 %v8352
    %8841 = vmatpush1.bf16.msra.mxu0 %v8351
    %8842 = vmatprep.subr.bf16.mxu0 %v8359
    %8843 = vmatpush1.bf16.msra.mxu0 %v8358
    %8844 = vmatprep.subr.bf16.mxu0 %v8366
    %8845 = vmatpush1.bf16.msra.mxu0 %v8365
    %8846 = vmatprep.subr.bf16.mxu0 %v8373
    %8847 = vmatpush1.bf16.msra.mxu0 %v8372
    %8848 = vmatprep.subr.bf16.mxu0 %v8380
    %8849 = vmatpush1.bf16.msra.mxu0 %v8379
    %8850 = vmatprep.subr.bf16.mxu0 %v8387
    %8851 = vmatpush1.bf16.msra.mxu0 %v8386
    %8852 = vmatprep.subr.bf16.mxu0 %v8394
    %8853 = vmatpush1.bf16.msra.mxu0 %v8393
    %8854 = vmatprep.subr.bf16.mxu0 %v8401
    %8855 = vmatpush1.bf16.msra.mxu0 %v8400
    %8856 = vmatprep.subr.bf16.mxu0 %v8408
    %8857 = vmatpush1.bf16.msra.mxu0 %v8407
    %8858 = vmatprep.subr.bf16.mxu0 %v8415
    %8859 = vmatpush1.bf16.msra.mxu0 %v8414
    %8860 = vmatprep.subr.bf16.mxu0 %v8422
    %8861 = vmatpush1.bf16.msra.mxu0 %v8421
    %8862 = vmatprep.subr.bf16.mxu0 %v8429
    %8863 = vmatpush1.bf16.msra.mxu0 %v8428
    %8864 = vmatprep.subr.bf16.mxu0 %v8436
    %8865 = vmatpush1.bf16.msra.mxu0 %v8435
    %8866 = vmatprep.subr.bf16.mxu0 %v8443
    %8867 = vmatpush1.bf16.msra.mxu0 %v8442
    %8868 = vmatprep.subr.bf16.mxu0 %v8450
    %8869 = vmatpush1.bf16.msra.mxu0 %v8449
    %8870 = vmatprep.subr.bf16.mxu0 %v8457
    %8871 = vmatpush1.bf16.msra.mxu0 %v8456
    %8872 = vmatprep.mubr.bf16.mxu0 %v7000
    %8873 = vmatmul.mubr.bf16.gmra.mrb[0].mxu0 %v6999
    %v8874 = vpop.f32.mrb[0].mxu0
    %v8875 = vadd.f32 %v8834, %v8874
    %v8876 = vpop.f32.mrb[0].mxu0
    %v8877 = vadd.f32 %v8836, %v8876
    %v8878 = vpop.f32.mrb[0].mxu0
    %v8879 = vpop.f32.mrb[0].mxu0
    %8880 = vdwg.mxu0
    %8881 = vmatprep.subr.bf16.mxu0 %v8464
    %8882 = vmatpush1.bf16.msra.mxu0 %v8463
    %8883 = vmatprep.subr.bf16.mxu0 %v8471
    %8884 = vmatpush1.bf16.msra.mxu0 %v8470
    %8885 = vmatprep.subr.bf16.mxu0 %v8478
    %8886 = vmatpush1.bf16.msra.mxu0 %v8477
    %8887 = vmatprep.subr.bf16.mxu0 %v8485
    %8888 = vmatpush1.bf16.msra.mxu0 %v8484
    %8889 = vmatprep.subr.bf16.mxu0 %v8492
    %8890 = vmatpush1.bf16.msra.mxu0 %v8491
    %8891 = vmatprep.subr.bf16.mxu0 %v8499
    %8892 = vmatpush1.bf16.msra.mxu0 %v8498
    %8893 = vmatprep.subr.bf16.mxu0 %v8506
    %8894 = vmatpush1.bf16.msra.mxu0 %v8505
    %8895 = vmatprep.subr.bf16.mxu0 %v8513
    %8896 = vmatpush1.bf16.msra.mxu0 %v8512
    %8897 = vmatprep.subr.bf16.mxu0 0
    %8898 = vmatpush1.bf16.msra.mxu0 0
    %8899 = vmatprep.subr.bf16.mxu0 0
    %8900 = vmatpush1.bf16.msra.mxu0 0
    %8901 = vmatprep.subr.bf16.mxu0 0
    %8902 = vmatpush1.bf16.msra.mxu0 0
    %8903 = vmatprep.subr.bf16.mxu0 0
    %8904 = vmatpush1.bf16.msra.mxu0 0
    %8905 = vmatprep.subr.bf16.mxu0 0
    %8906 = vmatpush1.bf16.msra.mxu0 0
    %8907 = vmatprep.subr.bf16.mxu0 0
    %8908 = vmatpush1.bf16.msra.mxu0 0
    %8909 = vmatprep.subr.bf16.mxu0 0
    %8910 = vmatpush1.bf16.msra.mxu0 0
    %8911 = vmatprep.subr.bf16.mxu0 0
    %8912 = vmatpush1.bf16.msra.mxu0 0
    %8913 = vmatprep.mubr.bf16.mxu0 0
    %8914 = vmatmul.mubr.bf16.gmra.mrb[0].mxu0 %v7001
    %v8915 = vpop.f32.mrb[0].mxu0
    %v8916 = vadd.f32 %v8875, %v8915
    %v8917 = vpop.f32.mrb[0].mxu0
    %v8918 = vadd.f32 %v8877, %v8917
    %v8919 = vpop.f32.mrb[0].mxu0
    %v8920 = vpop.f32.mrb[0].mxu0
    %8921 = vdwg.mxu0
    %8922 = vmatprep.subr.bf16.mxu0 %v8242
    %8923 = vmatpush1.bf16.msra.mxu0 %v8241
    %8924 = vmatprep.subr.bf16.mxu0 %v8249
    %8925 = vmatpush1.bf16.msra.mxu0 %v8248
    %8926 = vmatprep.subr.bf16.mxu0 %v8256
    %8927 = vmatpush1.bf16.msra.mxu0 %v8255
    %8928 = vmatprep.subr.bf16.mxu0 %v8263
    %8929 = vmatpush1.bf16.msra.mxu0 %v8262
    %8930 = vmatprep.subr.bf16.mxu0 %v8270
    %8931 = vmatpush1.bf16.msra.mxu0 %v8269
    %8932 = vmatprep.subr.bf16.mxu0 %v8277
    %8933 = vmatpush1.bf16.msra.mxu0 %v8276
    %8934 = vmatprep.subr.bf16.mxu0 %v8284
    %8935 = vmatpush1.bf16.msra.mxu0 %v8283
    %8936 = vmatprep.subr.bf16.mxu0 %v8291
    %8937 = vmatpush1.bf16.msra.mxu0 %v8290
    %8938 = vmatprep.subr.bf16.mxu0 %v8298
    %8939 = vmatpush1.bf16.msra.mxu0 %v8297
    %8940 = vmatprep.subr.bf16.mxu0 %v8305
    %8941 = vmatpush1.bf16.msra.mxu0 %v8304
    %8942 = vmatprep.subr.bf16.mxu0 %v8312
    %8943 = vmatpush1.bf16.msra.mxu0 %v8311
    %8944 = vmatprep.subr.bf16.mxu0 %v8319
    %8945 = vmatpush1.bf16.msra.mxu0 %v8318
    %8946 = vmatprep.subr.bf16.mxu0 %v8326
    %8947 = vmatpush1.bf16.msra.mxu0 %v8325
    %8948 = vmatprep.subr.bf16.mxu0 %v8333
    %8949 = vmatpush1.bf16.msra.mxu0 %v8332
    %8950 = vmatprep.subr.bf16.mxu0 %v8340
    %8951 = vmatpush1.bf16.msra.mxu0 %v8339
    %8952 = vmatprep.subr.bf16.mxu0 %v8347
    %8953 = vmatpush1.bf16.msra.mxu0 %v8346
    %8954 = vmatprep.mubr.bf16.mxu0 %v6998
    %8955 = vmatmul.mubr.bf16.gmra.mrb[0].mxu0 %v6997
    %v8956 = vpop.f32.mrb[0].mxu0
    %v8957 = vadd.f32 %v7335, %v8956
    %v8958 = vpop.f32.mrb[0].mxu0
    %v8959 = vadd.f32 %v7339, %v8958
    %v8960 = vpop.f32.mrb[0].mxu0
    %v8961 = vpop.f32.mrb[0].mxu0
    %8962 = vdwg.mxu0
    %8963 = vmatprep.subr.bf16.mxu0 %v8354
    %8964 = vmatpush1.bf16.msra.mxu0 %v8353
    %8965 = vmatprep.subr.bf16.mxu0 %v8361
    %8966 = vmatpush1.bf16.msra.mxu0 %v8360
    %8967 = vmatprep.subr.bf16.mxu0 %v8368
    %8968 = vmatpush1.bf16.msra.mxu0 %v8367
    %8969 = vmatprep.subr.bf16.mxu0 %v8375
    %8970 = vmatpush1.bf16.msra.mxu0 %v8374
    %8971 = vmatprep.subr.bf16.mxu0 %v8382
    %8972 = vmatpush1.bf16.msra.mxu0 %v8381
    %8973 = vmatprep.subr.bf16.mxu0 %v8389
    %8974 = vmatpush1.bf16.msra.mxu0 %v8388
    %8975 = vmatprep.subr.bf16.mxu0 %v8396
    %8976 = vmatpush1.bf16.msra.mxu0 %v8395
    %8977 = vmatprep.subr.bf16.mxu0 %v8403
    %8978 = vmatpush1.bf16.msra.mxu0 %v8402
    %8979 = vmatprep.subr.bf16.mxu0 %v8410
    %8980 = vmatpush1.bf16.msra.mxu0 %v8409
    %8981 = vmatprep.subr.bf16.mxu0 %v8417
    %8982 = vmatpush1.bf16.msra.mxu0 %v8416
    %8983 = vmatprep.subr.bf16.mxu0 %v8424
    %8984 = vmatpush1.bf16.msra.mxu0 %v8423
    %8985 = vmatprep.subr.bf16.mxu0 %v8431
    %8986 = vmatpush1.bf16.msra.mxu0 %v8430
    %8987 = vmatprep.subr.bf16.mxu0 %v8438
    %8988 = vmatpush1.bf16.msra.mxu0 %v8437
    %8989 = vmatprep.subr.bf16.mxu0 %v8445
    %8990 = vmatpush1.bf16.msra.mxu0 %v8444
    %8991 = vmatprep.subr.bf16.mxu0 %v8452
    %8992 = vmatpush1.bf16.msra.mxu0 %v8451
    %8993 = vmatprep.subr.bf16.mxu0 %v8459
    %8994 = vmatpush1.bf16.msra.mxu0 %v8458
    %8995 = vmatprep.mubr.bf16.mxu0 %v7000
    %8996 = vmatmul.mubr.bf16.gmra.mrb[0].mxu0 %v6999
    %v8997 = vpop.f32.mrb[0].mxu0
    %v8998 = vadd.f32 %v8957, %v8997
    %v8999 = vpop.f32.mrb[0].mxu0
    %v9000 = vadd.f32 %v8959, %v8999
    %v9001 = vpop.f32.mrb[0].mxu0
    %v9002 = vpop.f32.mrb[0].mxu0
    %9003 = vdwg.mxu0
    %9004 = vmatprep.subr.bf16.mxu0 %v8466
    %9005 = vmatpush1.bf16.msra.mxu0 %v8465
    %9006 = vmatprep.subr.bf16.mxu0 %v8473
    %9007 = vmatpush1.bf16.msra.mxu0 %v8472
    %9008 = vmatprep.subr.bf16.mxu0 %v8480
    %9009 = vmatpush1.bf16.msra.mxu0 %v8479
    %9010 = vmatprep.subr.bf16.mxu0 %v8487
    %9011 = vmatpush1.bf16.msra.mxu0 %v8486
    %9012 = vmatprep.subr.bf16.mxu0 %v8494
    %9013 = vmatpush1.bf16.msra.mxu0 %v8493
    %9014 = vmatprep.subr.bf16.mxu0 %v8501
    %9015 = vmatpush1.bf16.msra.mxu0 %v8500
    %9016 = vmatprep.subr.bf16.mxu0 %v8508
    %9017 = vmatpush1.bf16.msra.mxu0 %v8507
    %9018 = vmatprep.subr.bf16.mxu0 %v8515
    %9019 = vmatpush1.bf16.msra.mxu0 %v8514
    %9020 = vmatprep.subr.bf16.mxu0 0
    %9021 = vmatpush1.bf16.msra.mxu0 0
    %9022 = vmatprep.subr.bf16.mxu0 0
    %9023 = vmatpush1.bf16.msra.mxu0 0
    %9024 = vmatprep.subr.bf16.mxu0 0
    %9025 = vmatpush1.bf16.msra.mxu0 0
    %9026 = vmatprep.subr.bf16.mxu0 0
    %9027 = vmatpush1.bf16.msra.mxu0 0
    %9028 = vmatprep.subr.bf16.mxu0 0
    %9029 = vmatpush1.bf16.msra.mxu0 0
    %9030 = vmatprep.subr.bf16.mxu0 0
    %9031 = vmatpush1.bf16.msra.mxu0 0
    %9032 = vmatprep.subr.bf16.mxu0 0
    %9033 = vmatpush1.bf16.msra.mxu0 0
    %9034 = vmatprep.subr.bf16.mxu0 0
    %9035 = vmatpush1.bf16.msra.mxu0 0
    %9036 = vmatprep.mubr.bf16.mxu0 0
    %9037 = vmatmul.mubr.bf16.gmra.mrb[0].mxu0 %v7001
    %v9038 = vpop.f32.mrb[0].mxu0
    %v9039 = vadd.f32 %v8998, %v9038
    %v9040 = vpop.f32.mrb[0].mxu0
    %v9041 = vadd.f32 %v9000, %v9040
    %v9042 = vpop.f32.mrb[0].mxu0
    %v9043 = vpop.f32.mrb[0].mxu0
    %9044 = vdwg.mxu0
    %9045 = vmatprep.subr.bf16.mxu0 %v8244
    %9046 = vmatpush1.bf16.msra.mxu0 %v8243
    %9047 = vmatprep.subr.bf16.mxu0 %v8251
    %9048 = vmatpush1.bf16.msra.mxu0 %v8250
    %9049 = vmatprep.subr.bf16.mxu0 %v8258
    %9050 = vmatpush1.bf16.msra.mxu0 %v8257
    %9051 = vmatprep.subr.bf16.mxu0 %v8265
    %9052 = vmatpush1.bf16.msra.mxu0 %v8264
    %9053 = vmatprep.subr.bf16.mxu0 %v8272
    %9054 = vmatpush1.bf16.msra.mxu0 %v8271
    %9055 = vmatprep.subr.bf16.mxu0 %v8279
    %9056 = vmatpush1.bf16.msra.mxu0 %v8278
    %9057 = vmatprep.subr.bf16.mxu0 %v8286
    %9058 = vmatpush1.bf16.msra.mxu0 %v8285
    %9059 = vmatprep.subr.bf16.mxu0 %v8293
    %9060 = vmatpush1.bf16.msra.mxu0 %v8292
    %9061 = vmatprep.subr.bf16.mxu0 %v8300
    %9062 = vmatpush1.bf16.msra.mxu0 %v8299
    %9063 = vmatprep.subr.bf16.mxu0 %v8307
    %9064 = vmatpush1.bf16.msra.mxu0 %v8306
    %9065 = vmatprep.subr.bf16.mxu0 %v8314
    %9066 = vmatpush1.bf16.msra.mxu0 %v8313
    %9067 = vmatprep.subr.bf16.mxu0 %v8321
    %9068 = vmatpush1.bf16.msra.mxu0 %v8320
    %9069 = vmatprep.subr.bf16.mxu0 %v8328
    %9070 = vmatpush1.bf16.msra.mxu0 %v8327
    %9071 = vmatprep.subr.bf16.mxu0 %v8335
    %9072 = vmatpush1.bf16.msra.mxu0 %v8334
    %9073 = vmatprep.subr.bf16.mxu0 %v8342
    %9074 = vmatpush1.bf16.msra.mxu0 %v8341
    %9075 = vmatprep.subr.bf16.mxu0 %v8349
    %9076 = vmatpush1.bf16.msra.mxu0 %v8348
    %9077 = vmatprep.mubr.bf16.mxu0 %v6998
    %9078 = vmatmul.mubr.bf16.gmra.mrb[0].mxu0 %v6997
    %v9079 = vpop.f32.mrb[0].mxu0
    %v9080 = vadd.f32 %v7343, %v9079
    %v9081 = vpop.f32.mrb[0].mxu0
    %v9082 = vadd.f32 %v7347, %v9081
    %v9083 = vpop.f32.mrb[0].mxu0
    %v9084 = vpop.f32.mrb[0].mxu0
    %9085 = vdwg.mxu0
    %9086 = vmatprep.subr.bf16.mxu0 %v8356
    %9087 = vmatpush1.bf16.msra.mxu0 %v8355
    %9088 = vmatprep.subr.bf16.mxu0 %v8363
    %9089 = vmatpush1.bf16.msra.mxu0 %v8362
    %9090 = vmatprep.subr.bf16.mxu0 %v8370
    %9091 = vmatpush1.bf16.msra.mxu0 %v8369
    %9092 = vmatprep.subr.bf16.mxu0 %v8377
    %9093 = vmatpush1.bf16.msra.mxu0 %v8376
    %9094 = vmatprep.subr.bf16.mxu0 %v8384
    %9095 = vmatpush1.bf16.msra.mxu0 %v8383
    %9096 = vmatprep.subr.bf16.mxu0 %v8391
    %9097 = vmatpush1.bf16.msra.mxu0 %v8390
    %9098 = vmatprep.subr.bf16.mxu0 %v8398
    %9099 = vmatpush1.bf16.msra.mxu0 %v8397
    %9100 = vmatprep.subr.bf16.mxu0 %v8405
    %9101 = vmatpush1.bf16.msra.mxu0 %v8404
    %9102 = vmatprep.subr.bf16.mxu0 %v8412
    %9103 = vmatpush1.bf16.msra.mxu0 %v8411
    %9104 = vmatprep.subr.bf16.mxu0 %v8419
    %9105 = vmatpush1.bf16.msra.mxu0 %v8418
    %9106 = vmatprep.subr.bf16.mxu0 %v8426
    %9107 = vmatpush1.bf16.msra.mxu0 %v8425
    %9108 = vmatprep.subr.bf16.mxu0 %v8433
    %9109 = vmatpush1.bf16.msra.mxu0 %v8432
    %9110 = vmatprep.subr.bf16.mxu0 %v8440
    %9111 = vmatpush1.bf16.msra.mxu0 %v8439
    %9112 = vmatprep.subr.bf16.mxu0 %v8447
    %9113 = vmatpush1.bf16.msra.mxu0 %v8446
    %9114 = vmatprep.subr.bf16.mxu0 %v8454
    %9115 = vmatpush1.bf16.msra.mxu0 %v8453
    %9116 = vmatprep.subr.bf16.mxu0 %v8461
    %9117 = vmatpush1.bf16.msra.mxu0 %v8460
    %9118 = vmatprep.mubr.bf16.mxu0 %v7000
    %9119 = vmatmul.mubr.bf16.gmra.mrb[0].mxu0 %v6999
    %v9120 = vpop.f32.mrb[0].mxu0
    %v9121 = vadd.f32 %v9080, %v9120
    %v9122 = vpop.f32.mrb[0].mxu0
    %v9123 = vadd.f32 %v9082, %v9122
    %v9124 = vpop.f32.mrb[0].mxu0
    %v9125 = vpop.f32.mrb[0].mxu0
    %9126 = vdwg.mxu0
    %9127 = vmatprep.subr.bf16.mxu0 %v8468
    %9128 = vmatpush1.bf16.msra.mxu0 %v8467
    %9129 = vmatprep.subr.bf16.mxu0 %v8475
    %9130 = vmatpush1.bf16.msra.mxu0 %v8474
    %9131 = vmatprep.subr.bf16.mxu0 %v8482
    %9132 = vmatpush1.bf16.msra.mxu0 %v8481
    %9133 = vmatprep.subr.bf16.mxu0 %v8489
    %9134 = vmatpush1.bf16.msra.mxu0 %v8488
    %9135 = vmatprep.subr.bf16.mxu0 %v8496
    %9136 = vmatpush1.bf16.msra.mxu0 %v8495
    %9137 = vmatprep.subr.bf16.mxu0 %v8503
    %9138 = vmatpush1.bf16.msra.mxu0 %v8502
    %9139 = vmatprep.subr.bf16.mxu0 %v8510
    %9140 = vmatpush1.bf16.msra.mxu0 %v8509
    %9141 = vmatprep.subr.bf16.mxu0 %v8517
    %9142 = vmatpush1.bf16.msra.mxu0 %v8516
    %9143 = vmatprep.subr.bf16.mxu0 0
    %9144 = vmatpush1.bf16.msra.mxu0 0
    %9145 = vmatprep.subr.bf16.mxu0 0
    %9146 = vmatpush1.bf16.msra.mxu0 0
    %9147 = vmatprep.subr.bf16.mxu0 0
    %9148 = vmatpush1.bf16.msra.mxu0 0
    %9149 = vmatprep.subr.bf16.mxu0 0
    %9150 = vmatpush1.bf16.msra.mxu0 0
    %9151 = vmatprep.subr.bf16.mxu0 0
    %9152 = vmatpush1.bf16.msra.mxu0 0
    %9153 = vmatprep.subr.bf16.mxu0 0
    %9154 = vmatpush1.bf16.msra.mxu0 0
    %9155 = vmatprep.subr.bf16.mxu0 0
    %9156 = vmatpush1.bf16.msra.mxu0 0
    %9157 = vmatprep.subr.bf16.mxu0 0
    %9158 = vmatpush1.bf16.msra.mxu0 0
    %9159 = vmatprep.mubr.bf16.mxu0 0
    %9160 = vmatmul.mubr.bf16.gmra.mrb[0].mxu0 %v7001
    %v9161 = vpop.f32.mrb[0].mxu0
    %v9162 = vadd.f32 %v9121, %v9161
    %v9163 = vpop.f32.mrb[0].mxu0
    %v9164 = vadd.f32 %v9123, %v9163
    %v9165 = vpop.f32.mrb[0].mxu0
    %v9166 = vpop.f32.mrb[0].mxu0
    %9167 = vdwg.mxu0
    %9168 = vmatprep.subr.bf16.mxu0 0
    %9169 = vmatpush1.bf16.msra.mxu0 %v8245
    %9170 = vmatprep.subr.bf16.mxu0 0
    %9171 = vmatpush1.bf16.msra.mxu0 %v8252
    %9172 = vmatprep.subr.bf16.mxu0 0
    %9173 = vmatpush1.bf16.msra.mxu0 %v8259
    %9174 = vmatprep.subr.bf16.mxu0 0
    %9175 = vmatpush1.bf16.msra.mxu0 %v8266
    %9176 = vmatprep.subr.bf16.mxu0 0
    %9177 = vmatpush1.bf16.msra.mxu0 %v8273
    %9178 = vmatprep.subr.bf16.mxu0 0
    %9179 = vmatpush1.bf16.msra.mxu0 %v8280
    %9180 = vmatprep.subr.bf16.mxu0 0
    %9181 = vmatpush1.bf16.msra.mxu0 %v8287
    %9182 = vmatprep.subr.bf16.mxu0 0
    %9183 = vmatpush1.bf16.msra.mxu0 %v8294
    %9184 = vmatprep.subr.bf16.mxu0 0
    %9185 = vmatpush1.bf16.msra.mxu0 %v8301
    %9186 = vmatprep.subr.bf16.mxu0 0
    %9187 = vmatpush1.bf16.msra.mxu0 %v8308
    %9188 = vmatprep.subr.bf16.mxu0 0
    %9189 = vmatpush1.bf16.msra.mxu0 %v8315
    %9190 = vmatprep.subr.bf16.mxu0 0
    %9191 = vmatpush1.bf16.msra.mxu0 %v8322
    %9192 = vmatprep.subr.bf16.mxu0 0
    %9193 = vmatpush1.bf16.msra.mxu0 %v8329
    %9194 = vmatprep.subr.bf16.mxu0 0
    %9195 = vmatpush1.bf16.msra.mxu0 %v8336
    %9196 = vmatprep.subr.bf16.mxu0 0
    %9197 = vmatpush1.bf16.msra.mxu0 %v8343
    %9198 = vmatprep.subr.bf16.mxu0 0
    %9199 = vmatpush1.bf16.msra.mxu0 %v8350
    %9200 = vmatprep.mubr.bf16.mxu0 %v6998
    %9201 = vmatmul.mubr.bf16.gmra.mrb[0].mxu0 %v6997
    %v9202 = vpop.f32.mrb[0].mxu0
    %v9203 = vadd.f32 %v7351, %v9202
    %v9204 = vpop.f32.mrb[0].mxu0
    %v9205 = vpop.f32.mrb[0].mxu0
    %v9206 = vpop.f32.mrb[0].mxu0
    %9207 = vdwg.mxu0
    %9208 = vmatprep.subr.bf16.mxu0 0
    %9209 = vmatpush1.bf16.msra.mxu0 %v8357
    %9210 = vmatprep.subr.bf16.mxu0 0
    %9211 = vmatpush1.bf16.msra.mxu0 %v8364
    %9212 = vmatprep.subr.bf16.mxu0 0
    %9213 = vmatpush1.bf16.msra.mxu0 %v8371
    %9214 = vmatprep.subr.bf16.mxu0 0
    %9215 = vmatpush1.bf16.msra.mxu0 %v8378
    %9216 = vmatprep.subr.bf16.mxu0 0
    %9217 = vmatpush1.bf16.msra.mxu0 %v8385
    %9218 = vmatprep.subr.bf16.mxu0 0
    %9219 = vmatpush1.bf16.msra.mxu0 %v8392
    %9220 = vmatprep.subr.bf16.mxu0 0
    %9221 = vmatpush1.bf16.msra.mxu0 %v8399
    %9222 = vmatprep.subr.bf16.mxu0 0
    %9223 = vmatpush1.bf16.msra.mxu0 %v8406
    %9224 = vmatprep.subr.bf16.mxu0 0
    %9225 = vmatpush1.bf16.msra.mxu0 %v8413
    %9226 = vmatprep.subr.bf16.mxu0 0
    %9227 = vmatpush1.bf16.msra.mxu0 %v8420
    %9228 = vmatprep.subr.bf16.mxu0 0
    %9229 = vmatpush1.bf16.msra.mxu0 %v8427
    %9230 = vmatprep.subr.bf16.mxu0 0
    %9231 = vmatpush1.bf16.msra.mxu0 %v8434
    %9232 = vmatprep.subr.bf16.mxu0 0
    %9233 = vmatpush1.bf16.msra.mxu0 %v8441
    %9234 = vmatprep.subr.bf16.mxu0 0
    %9235 = vmatpush1.bf16.msra.mxu0 %v8448
    %9236 = vmatprep.subr.bf16.mxu0 0
    %9237 = vmatpush1.bf16.msra.mxu0 %v8455
    %9238 = vmatprep.subr.bf16.mxu0 0
    %9239 = vmatpush1.bf16.msra.mxu0 %v8462
    %9240 = vmatprep.mubr.bf16.mxu0 %v7000
    %9241 = vmatmul.mubr.bf16.gmra.mrb[0].mxu0 %v6999
    %v9242 = vpop.f32.mrb[0].mxu0
    %v9243 = vadd.f32 %v9203, %v9242
    %v9244 = vpop.f32.mrb[0].mxu0
    %v9245 = vpop.f32.mrb[0].mxu0
    %v9246 = vpop.f32.mrb[0].mxu0
    %9247 = vdwg.mxu0
    %9248 = vmatprep.subr.bf16.mxu0 0
    %9249 = vmatpush1.bf16.msra.mxu0 %v8469
    %9250 = vmatprep.subr.bf16.mxu0 0
    %9251 = vmatpush1.bf16.msra.mxu0 %v8476
    %9252 = vmatprep.subr.bf16.mxu0 0
    %9253 = vmatpush1.bf16.msra.mxu0 %v8483
    %9254 = vmatprep.subr.bf16.mxu0 0
    %9255 = vmatpush1.bf16.msra.mxu0 %v8490
    %9256 = vmatprep.subr.bf16.mxu0 0
    %9257 = vmatpush1.bf16.msra.mxu0 %v8497
    %9258 = vmatprep.subr.bf16.mxu0 0
    %9259 = vmatpush1.bf16.msra.mxu0 %v8504
    %9260 = vmatprep.subr.bf16.mxu0 0
    %9261 = vmatpush1.bf16.msra.mxu0 %v8511
    %9262 = vmatprep.subr.bf16.mxu0 0
    %9263 = vmatpush1.bf16.msra.mxu0 %v8518
    %9264 = vmatprep.subr.bf16.mxu0 0
    %9265 = vmatpush1.bf16.msra.mxu0 0
    %9266 = vmatprep.subr.bf16.mxu0 0
    %9267 = vmatpush1.bf16.msra.mxu0 0
    %9268 = vmatprep.subr.bf16.mxu0 0
    %9269 = vmatpush1.bf16.msra.mxu0 0
    %9270 = vmatprep.subr.bf16.mxu0 0
    %9271 = vmatpush1.bf16.msra.mxu0 0
    %9272 = vmatprep.subr.bf16.mxu0 0
    %9273 = vmatpush1.bf16.msra.mxu0 0
    %9274 = vmatprep.subr.bf16.mxu0 0
    %9275 = vmatpush1.bf16.msra.mxu0 0
    %9276 = vmatprep.subr.bf16.mxu0 0
    %9277 = vmatpush1.bf16.msra.mxu0 0
    %9278 = vmatprep.subr.bf16.mxu0 0
    %9279 = vmatpush1.bf16.msra.mxu0 0
    %9280 = vmatprep.mubr.bf16.mxu0 0
    %9281 = vmatmul.mubr.bf16.gmra.mrb[0].mxu0 %v7001
    %v9282 = vpop.f32.mrb[0].mxu0
    %v9283 = vadd.f32 %v9243, %v9282
    %v9284 = vpop.f32.mrb[0].mxu0
    %v9285 = vpop.f32.mrb[0].mxu0
    %v9286 = vpop.f32.mrb[0].mxu0
    %9287 = vdwg.mxu0
    %v9288 = vxor.u32 %v8916, 2147483648
    %v9289 = vxor.u32 %v8918, 2147483648
    %v9290 = vxor.u32 %v9039, 2147483648
    %v9291 = vxor.u32 %v9041, 2147483648
    %v9292 = vxor.u32 %v9162, 2147483648
    %v9293 = vxor.u32 %v9164, 2147483648
    %v9294 = vxor.u32 %v9283, 2147483648
    %v9295 = vmul.f32 %v9288, 1.442695
    %v9296 = vpow.pop %v9295
    %v9297 = vmul.f32 %v9289, 1.442695
    %v9298 = vpow.pop %v9297
    %v9299 = vmul.f32 %v9290, 1.442695
    %v9300 = vpow.pop %v9299
    %v9301 = vmul.f32 %v9291, 1.442695
    %v9302 = vpow.pop %v9301
    %v9303 = vmul.f32 %v9292, 1.442695
    %v9304 = vpow.pop %v9303
    %v9305 = vmul.f32 %v9293, 1.442695
    %v9306 = vpow.pop %v9305
    %v9307 = vmul.f32 %v9294, 1.442695
    %v9308 = vpow.pop %v9307
    %v9309 = vadd.f32 %v9296, 1.0
    %v9310 = vadd.f32 %v9298, 1.0
    %v9311 = vadd.f32 %v9300, 1.0
    %v9312 = vadd.f32 %v9302, 1.0
    %v9313 = vadd.f32 %v9304, 1.0
    %v9314 = vadd.f32 %v9306, 1.0
    %v9315 = vadd.f32 %v9308, 1.0
    %v9316 = vrcp.pop %v9309
    %v9317 = vmul.f32 1.0, %v9316
    %v9318 = vrcp.pop %v9310
    %v9319 = vmul.f32 1.0, %v9318
    %v9320 = vrcp.pop %v9311
    %v9321 = vmul.f32 1.0, %v9320
    %v9322 = vrcp.pop %v9312
    %v9323 = vmul.f32 1.0, %v9322
    %v9324 = vrcp.pop %v9313
    %v9325 = vmul.f32 1.0, %v9324
    %v9326 = vrcp.pop %v9314
    %v9327 = vmul.f32 1.0, %v9326
    %v9328 = vrcp.pop %v9315
    %v9329 = vmul.f32 1.0, %v9328
    %9330 = vst [vmem:[#allocation22] sm:$0xff] %v9317
    %9331 = vst [vmem:[#allocation22 + $0x8] sm:$0xff] %v9319
    %9332 = vst [vmem:[#allocation22 + $0x10] sm:$0xff] %v9321
    %9333 = vst [vmem:[#allocation22 + $0x18] sm:$0xff] %v9323
    %9334 = vst [vmem:[#allocation22 + $0x20] sm:$0xff] %v9325
    %9335 = vst [vmem:[#allocation22 + $0x28] sm:$0xff] %v9327
    %9336 = vst [vmem:[#allocation22 + $0x30] sm:$0xff] %v9329
    %9337 = vst [vmem:[#allocation23] sm:$0xff] %v5417
    %9338 = vst [vmem:[#allocation23 + $0x8] sm:$0xff] %v5419
    %9339 = vst [vmem:[#allocation23 + $0x10] sm:$0xff] %v5499
    %9340 = vst [vmem:[#allocation23 + $0x18] sm:$0xff] %v5501
    %9341 = vst [vmem:[#allocation25] sm:$0xff] %v5581
    %9342 = vst [vmem:[#allocation25 + $0x8] sm:$0xff] %v5583
    %9343 = vst [vmem:[#allocation25 + $0x10] sm:$0xff] %v5663
    %9344 = vst [vmem:[#allocation25 + $0x18] sm:$0xff] %v5665
    // Predicated region
    $region98: #{tpu_custom_call.1} parent=1 // pred_check
      _
    $region99: #{tpu_custom_call.1} parent=1 // pred_check_branch
      %9346 = sbr.rel (0) target = $region101
    $region100: #{tpu_custom_call.1} parent=1 // pred_region
      %s9348 = ssub.s32 896, 896
      %9349 = vsyncadd [#allocation4], %s9348
      %s9351 = sshll.u32 [#allocation22], 4
      %s9352 = int_to_ptr.vmem [resolvable:$true] %s9351
      %9354 = dma.vmem_to_hbm [thread:$0]  %s9352, 896, %s12, [#allocation4]
    $region101: #{tpu_custom_call.1} parent=1 // pred_fallthru
      _
    // Predicated region
    $region102: #{tpu_custom_call.1} parent=1 // pred_check
      _
    $region103: #{tpu_custom_call.1} parent=1 // pred_check_branch
      %9356 = sbr.rel (0) target = $region105
    $region104: #{tpu_custom_call.1} parent=1 // pred_region
      %s9358 = ssub.s32 512, 512
      %9359 = vsyncadd [#allocation24], %s9358
      %s9361 = sshll.u32 [#allocation23], 4
      %s9362 = int_to_ptr.vmem [resolvable:$true] %s9361
      %9364 = dma.vmem_to_hbm [thread:$0]  %s9362, 512, %s13, [#allocation24]
    $region105: #{tpu_custom_call.1} parent=1 // pred_fallthru
      _
    // Predicated region
    $region106: #{tpu_custom_call.1} parent=1 // pred_check
      _
    $region107: #{tpu_custom_call.1} parent=1 // pred_check_branch
      %9366 = sbr.rel (0) target = $region109
    $region108: #{tpu_custom_call.1} parent=1 // pred_region
      %s9368 = ssub.s32 512, 512
      %9369 = vsyncadd [#allocation24], %s9368
      %s9371 = sshll.u32 [#allocation25], 4
      %s9372 = int_to_ptr.vmem [resolvable:$true] %s9371
      %9374 = dma.vmem_to_hbm [thread:$0]  %s9372, 512, %s14, [#allocation24]
    $region109: #{tpu_custom_call.1} parent=1 // pred_fallthru
      _
    // Predicated region
    $region110: #{tpu_custom_call.1} parent=1 // pred_check
      _
    $region111: #{tpu_custom_call.1} parent=1 // pred_check_branch
      %9376 = sbr.rel (0) target = $region113
    $region112: #{tpu_custom_call.1} parent=1 // pred_region
      %9377 = dma.done [#allocation4], 896
    $region113: #{tpu_custom_call.1} parent=1 // pred_fallthru
      _
    // Predicated region
    $region114: #{tpu_custom_call.1} parent=1 // pred_check
      _
    $region115: #{tpu_custom_call.1} parent=1 // pred_check_branch
      %9379 = sbr.rel (0) target = $region117
    $region116: #{tpu_custom_call.1} parent=1 // pred_region
      %9380 = dma.done [#allocation24], 512
    $region117: #{tpu_custom_call.1} parent=1 // pred_fallthru
      _
    // Predicated region
    $region118: #{tpu_custom_call.1} parent=1 // pred_check
      _
    $region119: #{tpu_custom_call.1} parent=1 // pred_check_branch
      %9382 = sbr.rel (0) target = $region121
    $region120: #{tpu_custom_call.1} parent=1 // pred_region
      %9383 = dma.done [#allocation24], 512
    $region121: #{tpu_custom_call.1} parent=1 // pred_fallthru
      _
    %9384 = vsyncpa [#allocation3], 1
    %9385 = vsyncpa [#allocation6], 1
    %9386 = vsyncpa [#allocation9], 1
    %9387 = vsyncpa [#allocation12], 1
    %9388 = vsyncpa [#allocation15], 1
    %9389 = vsyncpa [#allocation18], 1
    %9390 = vsyncpa [#allocation21], 1
    %9391 = vsyncpa [#allocation4], 1
    %9392 = vsyncpa [#allocation24], 1

</llo_original>
